<compile_context>
chip_gen: v7x
topology: tpu7x:2x2x1
jax: 0.10.0
libtpu: 0.0.40
codegen_flags: <defaults>
</compile_context>

<pallas_src>
import functools

import jax
import jax.numpy as jnp
from jax.experimental import pallas as pl
from jax.experimental.pallas import tpu as pltpu


# ----------------------------------------------------------------------------
# Single fused kernel.
# ----------------------------------------------------------------------------
def _fused_model_kernel(x_ref, wc_ref, bc_ref, whh_ref, wp_ref, bp_ref,
                        wo_ref, bo_ref, out_ref, hs_ref, *, seq_len, pred_len):
    B = x_ref.shape[0]
    H = whh_ref.shape[0]

    xv = x_ref[...].astype(jnp.float32)     # (B, S, C)
    wc = wc_ref[...]                        # (C, 4H)  = (W_ih @ W1)^T
    bc = bc_ref[...]                        # (1, 4H)  = W_ih @ b1 + b_ih + b_hh
    whh = whh_ref[...]                      # (H, 4H)  = W_hh^T
    wp = wp_ref[...]                        # (H, 3H)  = W_ih^T with forget cols dropped, order [i|g|o]
    bp = bp_ref[...]                        # (1, 3H)  = (b_ih + b_hh) with forget chunk dropped

    h = jnp.zeros((B, H), jnp.float32)
    c = jnp.zeros((B, H), jnp.float32)

    def stash(pos, h_cur):
        # Store this timestep's hidden state into the lane-dense VMEM scratch.
        hs_ref[:, pos:pos + 1, :] = h_cur[:, None, :]

    # ---- LSTM over the input sequence (zero initial state). ----
    for t in range(seq_len):
        x_t = xv[:, t, :]                                          # (B, C)
        gates = (jnp.dot(x_t, wc, preferred_element_type=jnp.float32)
                 + jnp.dot(h, whh, preferred_element_type=jnp.float32)
                 + bc)                                             # (B, 4H)
        i = jax.nn.sigmoid(gates[:, 0 * H:1 * H])
        f = jax.nn.sigmoid(gates[:, 1 * H:2 * H])
        g = jnp.tanh(gates[:, 2 * H:3 * H])
        o = jax.nn.sigmoid(gates[:, 3 * H:4 * H])
        c = f * c + i * g
        h = o * jnp.tanh(c)
        if t >= 1:                      # outputs[:, 1:, :] drops the first timestep
            stash(t - 1, h)

    # ---- Prediction loop: each step re-runs the LSTM on the previous hidden
    # vector as a length-1 sequence with ZERO initial (h, c), exactly like the
    # PyTorch code.  With zero state the forget gate vanishes: c = i*g, h = o*tanh(c).
    for p in range(pred_len):
        gp = jnp.dot(h, wp, preferred_element_type=jnp.float32) + bp   # (B, 3H)
        i = jax.nn.sigmoid(gp[:, 0 * H:1 * H])
        g = jnp.tanh(gp[:, 1 * H:2 * H])
        o = jax.nn.sigmoid(gp[:, 2 * H:3 * H])
        h = o * jnp.tanh(i * g)
        stash(seq_len + p - 1, h)

    # ---- Fused Linear4 + Linear2: one matmul per batch row over all timesteps. ----
    wo = wo_ref[...]                        # (H, C)   = (W2 @ W4)^T
    bo = bo_ref[...]                        # (1, C)   = W2 @ b4 + b2
    for b in range(B):
        y = jnp.dot(hs_ref[b], wo, preferred_element_type=jnp.float32) + bo  # (T_out, C)
        out_ref[b] = y.astype(out_ref.dtype)


# ----------------------------------------------------------------------------
# One-time parameter folding (outside the jitted hot path).
# ----------------------------------------------------------------------------
def fold_params(params):
    """Algebraically compose affine layers and pre-transpose weights once.

    Linear1 folds into the LSTM input projection:
        x @ W1^T @ W_ih^T + (W_ih @ b1 + b_ih + b_hh)
    Linear4 + Linear2 compose into one affine layer:
        h @ (W2 @ W4)^T + (W2 @ b4 + b2)
    The pred-step projection drops the (unused, zero-state) forget-gate columns.
    """
    W_ih, W_hh = params["W_ih"], params["W_hh"]
    H = W_hh.shape[1]
    b_lstm = params["b_ih"] + params["b_hh"]                # (4H,)
    W_comb = W_ih @ params["W1"]                            # (4H, C)
    b_comb = W_ih @ params["b1"] + b_lstm                   # (4H,)
    W_out = params["W2"] @ params["W4"]                     # (C, H)
    b_out = params["W2"] @ params["b4"] + params["b2"]      # (C,)

    W_ih_T = W_ih.T                                         # (H, 4H), cols = [i|f|g|o]
    wp = jnp.concatenate([W_ih_T[:, 0:H], W_ih_T[:, 2 * H:4 * H]], axis=1)   # (H, 3H) [i|g|o]
    bp = jnp.concatenate([b_lstm[0:H], b_lstm[2 * H:4 * H]])                 # (3H,)

    H4 = W_ih.shape[0]
    C = W_comb.shape[1]
    return {
        "wc_t": jnp.asarray(W_comb.T),                      # (C, 4H)
        "b_comb": b_comb.reshape(1, H4),
        "whh_t": jnp.asarray(W_hh.T),                       # (H, 4H)
        "wp_t": jnp.asarray(wp),                            # (H, 3H)
        "b_pred": bp.reshape(1, 3 * H),
        "wo_t": jnp.asarray(W_out.T),                       # (H, C)
        "b_out": b_out.reshape(1, C),
    }


@functools.partial(jax.jit, static_argnames=("pred_len",))
def model_forward(x, folded, pred_len):
    B, S, C = x.shape
    H = folded["whh_t"].shape[0]
    H4 = 4 * H
    H3 = 3 * H
    T_out = S + pred_len - 1

    kernel = functools.partial(_fused_model_kernel, seq_len=S, pred_len=pred_len)
    return pl.pallas_call(
        kernel,
        out_shape=jax.ShapeDtypeStruct((B, T_out, C), x.dtype),
        grid=(1,),
        in_specs=[
            pl.BlockSpec((B, S, C), lambda i: (0, 0, 0)),
            pl.BlockSpec((C, H4), lambda i: (0, 0)),
            pl.BlockSpec((1, H4), lambda i: (0, 0)),
            pl.BlockSpec((H, H4), lambda i: (0, 0)),
            pl.BlockSpec((H, H3), lambda i: (0, 0)),
            pl.BlockSpec((1, H3), lambda i: (0, 0)),
            pl.BlockSpec((H, C), lambda i: (0, 0)),
            pl.BlockSpec((1, C), lambda i: (0, 0)),
        ],
        out_specs=pl.BlockSpec((B, T_out, C), lambda i: (0, 0, 0)),
        scratch_shapes=[pltpu.VMEM((B, T_out, H), jnp.float32)],
        compiler_params=pltpu.CompilerParams(dimension_semantics=("arbitrary",)),
    )(x, folded["wc_t"], folded["b_comb"], folded["whh_t"], folded["wp_t"],
      folded["b_pred"], folded["wo_t"], folded["b_out"])


# ----------------------------------------------------------------------------
# Parameters (PyTorch layouts) and pure-JAX reference (mirrors PyTorch exactly).
# ----------------------------------------------------------------------------
def init_params(key, channels, hidden=256):
    ks = jax.random.split(key, 10)
    s = 0.05
    return {
        "W1": s * jax.random.normal(ks[0], (hidden, channels), jnp.float32),
        "b1": s * jax.random.normal(ks[1], (hidden,), jnp.float32),
        "W_ih": s * jax.random.normal(ks[2], (4 * hidden, hidden), jnp.float32),
        "W_hh": s * jax.random.normal(ks[3], (4 * hidden, hidden), jnp.float32),
        "b_ih": s * jax.random.normal(ks[4], (4 * hidden,), jnp.float32),
        "b_hh": s * jax.random.normal(ks[5], (4 * hidden,), jnp.float32),
        "W4": s * jax.random.normal(ks[6], (128, hidden), jnp.float32),
        "b4": s * jax.random.normal(ks[7], (128,), jnp.float32),
        "W2": s * jax.random.normal(ks[8], (channels, 128), jnp.float32),
        "b2": s * jax.random.normal(ks[9], (channels,), jnp.float32),
    }


def reference_forward(x, params, pred_len):
    B, S, C = x.shape
    H = params["W1"].shape[0]
    W_ih, W_hh = params["W_ih"], params["W_hh"]
    b = params["b_ih"] + params["b_hh"]

    def cell(h, c, x_t):
        g = x_t @ W_ih.T + h @ W_hh.T + b
        i, f, gg, o = jnp.split(g, 4, axis=-1)
        i, f, o = jax.nn.sigmoid(i), jax.nn.sigmoid(f), jax.nn.sigmoid(o)
        c = f * c + i * jnp.tanh(gg)
        h = o * jnp.tanh(c)
        return h, c

    xl = x @ params["W1"].T + params["b1"]
    h = jnp.zeros((B, H), jnp.float32)
    c = jnp.zeros((B, H), jnp.float32)
    outs = []
    for t in range(S):
        h, c = cell(h, c, xl[:, t, :])
        outs.append(h)
    for _ in range(pred_len):
        h0, _ = cell(jnp.zeros((B, H)), jnp.zeros((B, H)), h)  # zero-state single step
        outs.append(h0)
        h = h0
    outputs = jnp.stack(outs, axis=1)[:, 1:, :]
    y = outputs @ params["W4"].T + params["b4"]
    y = y @ params["W2"].T + params["b2"]
    return y


if __name__ == "__main__":
    B, seq_len, pred_len, channels = 2, 8, 4, 4

    key = jax.random.PRNGKey(0)
    kx, kp = jax.random.split(key)
    x = jax.random.normal(kx, (B, seq_len, channels), jnp.float32)
    params = init_params(kp, channels)

    folded = fold_params(params)           # one-time fold/transpose, outside hot path
    out = model_forward(x, folded, pred_len)
    out = jax.block_until_ready(out)

    ref = reference_forward(x, params, pred_len)
    assert out.shape == (B, seq_len + pred_len - 1, channels), out.shape
    assert jnp.allclose(out, ref, atol=1e-4, rtol=1e-4), float(jnp.max(jnp.abs(out - ref)))

    print("KERNEL_OK")
</pallas_src>

<mosaic_0001>
module attributes {stable_mosaic.version = 11 : i64} {
  func.func @_fused_model_kernel(%arg0: i32, %arg1: memref<2x8x4xf32, #tpu.memory_space<vmem>>, %arg2: memref<4x1024xf32, #tpu.memory_space<vmem>>, %arg3: memref<1x1024xf32, #tpu.memory_space<vmem>>, %arg4: memref<256x1024xf32, #tpu.memory_space<vmem>>, %arg5: memref<256x768xf32, #tpu.memory_space<vmem>>, %arg6: memref<1x768xf32, #tpu.memory_space<vmem>>, %arg7: memref<256x4xf32, #tpu.memory_space<vmem>>, %arg8: memref<1x4xf32, #tpu.memory_space<vmem>>, %arg9: memref<2x11x4xf32, #tpu.memory_space<vmem>>, %arg10: memref<2x11x256xf32, #tpu.memory_space<vmem>>) attributes {dimension_semantics = [#tpu.dimension_semantics<arbitrary>], iteration_bounds = array<i64: 1>, scalar_prefetch = 0 : i64, scratch_operands = 1 : i64, tpu.core_type = #tpu.core_type<tc>, window_params = [{pipeline_mode = #tpu.pipeline_mode<synchronous>, transform_indices = @transform_0, window_bounds = array<i64: 2, 8, 4>}, {pipeline_mode = #tpu.pipeline_mode<synchronous>, transform_indices = @transform_1, window_bounds = array<i64: 4, 1024>}, {pipeline_mode = #tpu.pipeline_mode<synchronous>, transform_indices = @transform_2, window_bounds = array<i64: 1, 1024>}, {pipeline_mode = #tpu.pipeline_mode<synchronous>, transform_indices = @transform_3, window_bounds = array<i64: 256, 1024>}, {pipeline_mode = #tpu.pipeline_mode<synchronous>, transform_indices = @transform_4, window_bounds = array<i64: 256, 768>}, {pipeline_mode = #tpu.pipeline_mode<synchronous>, transform_indices = @transform_5, window_bounds = array<i64: 1, 768>}, {pipeline_mode = #tpu.pipeline_mode<synchronous>, transform_indices = @transform_6, window_bounds = array<i64: 256, 4>}, {pipeline_mode = #tpu.pipeline_mode<synchronous>, transform_indices = @transform_7, window_bounds = array<i64: 1, 4>}, {pipeline_mode = #tpu.pipeline_mode<synchronous>, transform_indices = @transform_8, window_bounds = array<i64: 2, 11, 4>}]} {
    %c0 = arith.constant 0 : index
    %c0_0 = arith.constant 0 : index
    %c0_1 = arith.constant 0 : index
    %0 = vector.load %arg1[%c0, %c0_0, %c0_1] : memref<2x8x4xf32, #tpu.memory_space<vmem>>, vector<2x8x4xf32>
    %c0_2 = arith.constant 0 : index
    %c0_3 = arith.constant 0 : index
    %1 = vector.load %arg2[%c0_2, %c0_3] : memref<4x1024xf32, #tpu.memory_space<vmem>>, vector<4x1024xf32>
    %c0_4 = arith.constant 0 : index
    %c0_5 = arith.constant 0 : index
    %2 = vector.load %arg3[%c0_4, %c0_5] : memref<1x1024xf32, #tpu.memory_space<vmem>>, vector<1x1024xf32>
    %c0_6 = arith.constant 0 : index
    %c0_7 = arith.constant 0 : index
    %3 = vector.load %arg4[%c0_6, %c0_7] : memref<256x1024xf32, #tpu.memory_space<vmem>>, vector<256x1024xf32>
    %c0_8 = arith.constant 0 : index
    %c0_9 = arith.constant 0 : index
    %4 = vector.load %arg5[%c0_8, %c0_9] : memref<256x768xf32, #tpu.memory_space<vmem>>, vector<256x768xf32>
    %c0_10 = arith.constant 0 : index
    %c0_11 = arith.constant 0 : index
    %5 = vector.load %arg6[%c0_10, %c0_11] : memref<1x768xf32, #tpu.memory_space<vmem>>, vector<1x768xf32>
    %cst = arith.constant 0.000000e+00 : f32
    %6 = vector.broadcast %cst : f32 to vector<2x256xf32>
    %cst_12 = arith.constant 0.000000e+00 : f32
    %7 = vector.broadcast %cst_12 : f32 to vector<2x256xf32>
    %8 = vector.extract_strided_slice %0 {offsets = [0, 0, 0], sizes = [2, 1, 4], strides = [1, 1, 1]} : vector<2x8x4xf32> to vector<2x1x4xf32>
    %9 = vector.shape_cast %8 : vector<2x1x4xf32> to vector<2x4xf32>
    %cst_13 = arith.constant dense<0.000000e+00> : vector<2x1024xf32>
    %10 = tpu.matmul %9, %1, %cst_13 {dimension_numbers = #tpu.dot_dimension_numbers<[1], [0], [0], [1], [0, 0, 1, 1], [], []>} : vector<2x4xf32>, vector<4x1024xf32>, vector<2x1024xf32> -> vector<2x1024xf32>
    %cst_14 = arith.constant dense<0.000000e+00> : vector<2x1024xf32>
    %11 = tpu.matmul %6, %3, %cst_14 {dimension_numbers = #tpu.dot_dimension_numbers<[1], [0], [0], [1], [0, 0, 1, 1], [], []>} : vector<2x256xf32>, vector<256x1024xf32>, vector<2x1024xf32> -> vector<2x1024xf32>
    %12 = arith.addf %10, %11 : vector<2x1024xf32>
    %13 = vector.broadcast %2 : vector<1x1024xf32> to vector<2x1024xf32>
    %14 = arith.addf %12, %13 : vector<2x1024xf32>
    %15 = vector.extract_strided_slice %14 {offsets = [0, 0], sizes = [2, 256], strides = [1, 1]} : vector<2x1024xf32> to vector<2x256xf32>
    %16 = arith.negf %15 : vector<2x256xf32>
    %17 = math.exp %16 : vector<2x256xf32>
    %cst_15 = arith.constant 1.000000e+00 : f32
    %18 = vector.broadcast %cst_15 : f32 to vector<2x256xf32>
    %19 = arith.addf %18, %17 : vector<2x256xf32>
    %20 = arith.divf %18, %19 : vector<2x256xf32>
    %21 = vector.extract_strided_slice %14 {offsets = [0, 256], sizes = [2, 256], strides = [1, 1]} : vector<2x1024xf32> to vector<2x256xf32>
    %22 = arith.negf %21 : vector<2x256xf32>
    %23 = math.exp %22 : vector<2x256xf32>
    %cst_16 = arith.constant 1.000000e+00 : f32
    %24 = vector.broadcast %cst_16 : f32 to vector<2x256xf32>
    %25 = arith.addf %24, %23 : vector<2x256xf32>
    %26 = arith.divf %24, %25 : vector<2x256xf32>
    %27 = vector.extract_strided_slice %14 {offsets = [0, 512], sizes = [2, 256], strides = [1, 1]} : vector<2x1024xf32> to vector<2x256xf32>
    %28 = math.tanh %27 : vector<2x256xf32>
    %29 = vector.extract_strided_slice %14 {offsets = [0, 768], sizes = [2, 256], strides = [1, 1]} : vector<2x1024xf32> to vector<2x256xf32>
    %30 = arith.negf %29 : vector<2x256xf32>
    %31 = math.exp %30 : vector<2x256xf32>
    %cst_17 = arith.constant 1.000000e+00 : f32
    %32 = vector.broadcast %cst_17 : f32 to vector<2x256xf32>
    %33 = arith.addf %32, %31 : vector<2x256xf32>
    %34 = arith.divf %32, %33 : vector<2x256xf32>
    %35 = arith.mulf %26, %7 : vector<2x256xf32>
    %36 = arith.mulf %20, %28 : vector<2x256xf32>
    %37 = arith.addf %35, %36 : vector<2x256xf32>
    %38 = math.tanh %37 : vector<2x256xf32>
    %39 = arith.mulf %34, %38 : vector<2x256xf32>
    %40 = vector.extract_strided_slice %0 {offsets = [0, 1, 0], sizes = [2, 1, 4], strides = [1, 1, 1]} : vector<2x8x4xf32> to vector<2x1x4xf32>
    %41 = vector.shape_cast %40 : vector<2x1x4xf32> to vector<2x4xf32>
    %cst_18 = arith.constant dense<0.000000e+00> : vector<2x1024xf32>
    %42 = tpu.matmul %41, %1, %cst_18 {dimension_numbers = #tpu.dot_dimension_numbers<[1], [0], [0], [1], [0, 0, 1, 1], [], []>} : vector<2x4xf32>, vector<4x1024xf32>, vector<2x1024xf32> -> vector<2x1024xf32>
    %cst_19 = arith.constant dense<0.000000e+00> : vector<2x1024xf32>
    %43 = tpu.matmul %39, %3, %cst_19 {dimension_numbers = #tpu.dot_dimension_numbers<[1], [0], [0], [1], [0, 0, 1, 1], [], []>} : vector<2x256xf32>, vector<256x1024xf32>, vector<2x1024xf32> -> vector<2x1024xf32>
    %44 = arith.addf %42, %43 : vector<2x1024xf32>
    %45 = vector.broadcast %2 : vector<1x1024xf32> to vector<2x1024xf32>
    %46 = arith.addf %44, %45 : vector<2x1024xf32>
    %47 = vector.extract_strided_slice %46 {offsets = [0, 0], sizes = [2, 256], strides = [1, 1]} : vector<2x1024xf32> to vector<2x256xf32>
    %48 = arith.negf %47 : vector<2x256xf32>
    %49 = math.exp %48 : vector<2x256xf32>
    %cst_20 = arith.constant 1.000000e+00 : f32
    %50 = vector.broadcast %cst_20 : f32 to vector<2x256xf32>
    %51 = arith.addf %50, %49 : vector<2x256xf32>
    %52 = arith.divf %50, %51 : vector<2x256xf32>
    %53 = vector.extract_strided_slice %46 {offsets = [0, 256], sizes = [2, 256], strides = [1, 1]} : vector<2x1024xf32> to vector<2x256xf32>
    %54 = arith.negf %53 : vector<2x256xf32>
    %55 = math.exp %54 : vector<2x256xf32>
    %cst_21 = arith.constant 1.000000e+00 : f32
    %56 = vector.broadcast %cst_21 : f32 to vector<2x256xf32>
    %57 = arith.addf %56, %55 : vector<2x256xf32>
    %58 = arith.divf %56, %57 : vector<2x256xf32>
    %59 = vector.extract_strided_slice %46 {offsets = [0, 512], sizes = [2, 256], strides = [1, 1]} : vector<2x1024xf32> to vector<2x256xf32>
    %60 = math.tanh %59 : vector<2x256xf32>
    %61 = vector.extract_strided_slice %46 {offsets = [0, 768], sizes = [2, 256], strides = [1, 1]} : vector<2x1024xf32> to vector<2x256xf32>
    %62 = arith.negf %61 : vector<2x256xf32>
    %63 = math.exp %62 : vector<2x256xf32>
    %cst_22 = arith.constant 1.000000e+00 : f32
    %64 = vector.broadcast %cst_22 : f32 to vector<2x256xf32>
    %65 = arith.addf %64, %63 : vector<2x256xf32>
    %66 = arith.divf %64, %65 : vector<2x256xf32>
    %67 = arith.mulf %58, %37 : vector<2x256xf32>
    %68 = arith.mulf %52, %60 : vector<2x256xf32>
    %69 = arith.addf %67, %68 : vector<2x256xf32>
    %70 = math.tanh %69 : vector<2x256xf32>
    %71 = arith.mulf %66, %70 : vector<2x256xf32>
    %72 = vector.shape_cast %71 : vector<2x256xf32> to vector<2x1x256xf32>
    %c0_23 = arith.constant 0 : index
    %c0_24 = arith.constant 0 : index
    %c0_25 = arith.constant 0 : index
    %73 = vector.load %arg10[%c0_23, %c0_24, %c0_25] : memref<2x11x256xf32, #tpu.memory_space<vmem>>, vector<2x1x256xf32>
    tpu.vector_store %arg10[%c0_23, %c0_24, %c0_25], %72 {strides = array<i32>} : memref<2x11x256xf32, #tpu.memory_space<vmem>>, vector<2x1x256xf32>,
    %74 = vector.extract_strided_slice %0 {offsets = [0, 2, 0], sizes = [2, 1, 4], strides = [1, 1, 1]} : vector<2x8x4xf32> to vector<2x1x4xf32>
    %75 = vector.shape_cast %74 : vector<2x1x4xf32> to vector<2x4xf32>
    %cst_26 = arith.constant dense<0.000000e+00> : vector<2x1024xf32>
    %76 = tpu.matmul %75, %1, %cst_26 {dimension_numbers = #tpu.dot_dimension_numbers<[1], [0], [0], [1], [0, 0, 1, 1], [], []>} : vector<2x4xf32>, vector<4x1024xf32>, vector<2x1024xf32> -> vector<2x1024xf32>
    %cst_27 = arith.constant dense<0.000000e+00> : vector<2x1024xf32>
    %77 = tpu.matmul %71, %3, %cst_27 {dimension_numbers = #tpu.dot_dimension_numbers<[1], [0], [0], [1], [0, 0, 1, 1], [], []>} : vector<2x256xf32>, vector<256x1024xf32>, vector<2x1024xf32> -> vector<2x1024xf32>
    %78 = arith.addf %76, %77 : vector<2x1024xf32>
    %79 = vector.broadcast %2 : vector<1x1024xf32> to vector<2x1024xf32>
    %80 = arith.addf %78, %79 : vector<2x1024xf32>
    %81 = vector.extract_strided_slice %80 {offsets = [0, 0], sizes = [2, 256], strides = [1, 1]} : vector<2x1024xf32> to vector<2x256xf32>
    %82 = arith.negf %81 : vector<2x256xf32>
    %83 = math.exp %82 : vector<2x256xf32>
    %cst_28 = arith.constant 1.000000e+00 : f32
    %84 = vector.broadcast %cst_28 : f32 to vector<2x256xf32>
    %85 = arith.addf %84, %83 : vector<2x256xf32>
    %86 = arith.divf %84, %85 : vector<2x256xf32>
    %87 = vector.extract_strided_slice %80 {offsets = [0, 256], sizes = [2, 256], strides = [1, 1]} : vector<2x1024xf32> to vector<2x256xf32>
    %88 = arith.negf %87 : vector<2x256xf32>
    %89 = math.exp %88 : vector<2x256xf32>
    %cst_29 = arith.constant 1.000000e+00 : f32
    %90 = vector.broadcast %cst_29 : f32 to vector<2x256xf32>
    %91 = arith.addf %90, %89 : vector<2x256xf32>
    %92 = arith.divf %90, %91 : vector<2x256xf32>
    %93 = vector.extract_strided_slice %80 {offsets = [0, 512], sizes = [2, 256], strides = [1, 1]} : vector<2x1024xf32> to vector<2x256xf32>
    %94 = math.tanh %93 : vector<2x256xf32>
    %95 = vector.extract_strided_slice %80 {offsets = [0, 768], sizes = [2, 256], strides = [1, 1]} : vector<2x1024xf32> to vector<2x256xf32>
    %96 = arith.negf %95 : vector<2x256xf32>
    %97 = math.exp %96 : vector<2x256xf32>
    %cst_30 = arith.constant 1.000000e+00 : f32
    %98 = vector.broadcast %cst_30 : f32 to vector<2x256xf32>
    %99 = arith.addf %98, %97 : vector<2x256xf32>
    %100 = arith.divf %98, %99 : vector<2x256xf32>
    %101 = arith.mulf %92, %69 : vector<2x256xf32>
    %102 = arith.mulf %86, %94 : vector<2x256xf32>
    %103 = arith.addf %101, %102 : vector<2x256xf32>
    %104 = math.tanh %103 : vector<2x256xf32>
    %105 = arith.mulf %100, %104 : vector<2x256xf32>
    %106 = vector.shape_cast %105 : vector<2x256xf32> to vector<2x1x256xf32>
    %c0_31 = arith.constant 0 : index
    %c1 = arith.constant 1 : index
    %c0_32 = arith.constant 0 : index
    %107 = vector.load %arg10[%c0_31, %c1, %c0_32] : memref<2x11x256xf32, #tpu.memory_space<vmem>>, vector<2x1x256xf32>
    tpu.vector_store %arg10[%c0_31, %c1, %c0_32], %106 {strides = array<i32>} : memref<2x11x256xf32, #tpu.memory_space<vmem>>, vector<2x1x256xf32>,
    %108 = vector.extract_strided_slice %0 {offsets = [0, 3, 0], sizes = [2, 1, 4], strides = [1, 1, 1]} : vector<2x8x4xf32> to vector<2x1x4xf32>
    %109 = vector.shape_cast %108 : vector<2x1x4xf32> to vector<2x4xf32>
    %cst_33 = arith.constant dense<0.000000e+00> : vector<2x1024xf32>
    %110 = tpu.matmul %109, %1, %cst_33 {dimension_numbers = #tpu.dot_dimension_numbers<[1], [0], [0], [1], [0, 0, 1, 1], [], []>} : vector<2x4xf32>, vector<4x1024xf32>, vector<2x1024xf32> -> vector<2x1024xf32>
    %cst_34 = arith.constant dense<0.000000e+00> : vector<2x1024xf32>
    %111 = tpu.matmul %105, %3, %cst_34 {dimension_numbers = #tpu.dot_dimension_numbers<[1], [0], [0], [1], [0, 0, 1, 1], [], []>} : vector<2x256xf32>, vector<256x1024xf32>, vector<2x1024xf32> -> vector<2x1024xf32>
    %112 = arith.addf %110, %111 : vector<2x1024xf32>
    %113 = vector.broadcast %2 : vector<1x1024xf32> to vector<2x1024xf32>
    %114 = arith.addf %112, %113 : vector<2x1024xf32>
    %115 = vector.extract_strided_slice %114 {offsets = [0, 0], sizes = [2, 256], strides = [1, 1]} : vector<2x1024xf32> to vector<2x256xf32>
    %116 = arith.negf %115 : vector<2x256xf32>
    %117 = math.exp %116 : vector<2x256xf32>
    %cst_35 = arith.constant 1.000000e+00 : f32
    %118 = vector.broadcast %cst_35 : f32 to vector<2x256xf32>
    %119 = arith.addf %118, %117 : vector<2x256xf32>
    %120 = arith.divf %118, %119 : vector<2x256xf32>
    %121 = vector.extract_strided_slice %114 {offsets = [0, 256], sizes = [2, 256], strides = [1, 1]} : vector<2x1024xf32> to vector<2x256xf32>
    %122 = arith.negf %121 : vector<2x256xf32>
    %123 = math.exp %122 : vector<2x256xf32>
    %cst_36 = arith.constant 1.000000e+00 : f32
    %124 = vector.broadcast %cst_36 : f32 to vector<2x256xf32>
    %125 = arith.addf %124, %123 : vector<2x256xf32>
    %126 = arith.divf %124, %125 : vector<2x256xf32>
    %127 = vector.extract_strided_slice %114 {offsets = [0, 512], sizes = [2, 256], strides = [1, 1]} : vector<2x1024xf32> to vector<2x256xf32>
    %128 = math.tanh %127 : vector<2x256xf32>
    %129 = vector.extract_strided_slice %114 {offsets = [0, 768], sizes = [2, 256], strides = [1, 1]} : vector<2x1024xf32> to vector<2x256xf32>
    %130 = arith.negf %129 : vector<2x256xf32>
    %131 = math.exp %130 : vector<2x256xf32>
    %cst_37 = arith.constant 1.000000e+00 : f32
    %132 = vector.broadcast %cst_37 : f32 to vector<2x256xf32>
    %133 = arith.addf %132, %131 : vector<2x256xf32>
    %134 = arith.divf %132, %133 : vector<2x256xf32>
    %135 = arith.mulf %126, %103 : vector<2x256xf32>
    %136 = arith.mulf %120, %128 : vector<2x256xf32>
    %137 = arith.addf %135, %136 : vector<2x256xf32>
    %138 = math.tanh %137 : vector<2x256xf32>
    %139 = arith.mulf %134, %138 : vector<2x256xf32>
    %140 = vector.shape_cast %139 : vector<2x256xf32> to vector<2x1x256xf32>
    %c0_38 = arith.constant 0 : index
    %c2 = arith.constant 2 : index
    %c0_39 = arith.constant 0 : index
    %141 = vector.load %arg10[%c0_38, %c2, %c0_39] : memref<2x11x256xf32, #tpu.memory_space<vmem>>, vector<2x1x256xf32>
    tpu.vector_store %arg10[%c0_38, %c2, %c0_39], %140 {strides = array<i32>} : memref<2x11x256xf32, #tpu.memory_space<vmem>>, vector<2x1x256xf32>,
    %142 = vector.extract_strided_slice %0 {offsets = [0, 4, 0], sizes = [2, 1, 4], strides = [1, 1, 1]} : vector<2x8x4xf32> to vector<2x1x4xf32>
    %143 = vector.shape_cast %142 : vector<2x1x4xf32> to vector<2x4xf32>
    %cst_40 = arith.constant dense<0.000000e+00> : vector<2x1024xf32>
    %144 = tpu.matmul %143, %1, %cst_40 {dimension_numbers = #tpu.dot_dimension_numbers<[1], [0], [0], [1], [0, 0, 1, 1], [], []>} : vector<2x4xf32>, vector<4x1024xf32>, vector<2x1024xf32> -> vector<2x1024xf32>
    %cst_41 = arith.constant dense<0.000000e+00> : vector<2x1024xf32>
    %145 = tpu.matmul %139, %3, %cst_41 {dimension_numbers = #tpu.dot_dimension_numbers<[1], [0], [0], [1], [0, 0, 1, 1], [], []>} : vector<2x256xf32>, vector<256x1024xf32>, vector<2x1024xf32> -> vector<2x1024xf32>
    %146 = arith.addf %144, %145 : vector<2x1024xf32>
    %147 = vector.broadcast %2 : vector<1x1024xf32> to vector<2x1024xf32>
    %148 = arith.addf %146, %147 : vector<2x1024xf32>
    %149 = vector.extract_strided_slice %148 {offsets = [0, 0], sizes = [2, 256], strides = [1, 1]} : vector<2x1024xf32> to vector<2x256xf32>
    %150 = arith.negf %149 : vector<2x256xf32>
    %151 = math.exp %150 : vector<2x256xf32>
    %cst_42 = arith.constant 1.000000e+00 : f32
    %152 = vector.broadcast %cst_42 : f32 to vector<2x256xf32>
    %153 = arith.addf %152, %151 : vector<2x256xf32>
    %154 = arith.divf %152, %153 : vector<2x256xf32>
    %155 = vector.extract_strided_slice %148 {offsets = [0, 256], sizes = [2, 256], strides = [1, 1]} : vector<2x1024xf32> to vector<2x256xf32>
    %156 = arith.negf %155 : vector<2x256xf32>
    %157 = math.exp %156 : vector<2x256xf32>
    %cst_43 = arith.constant 1.000000e+00 : f32
    %158 = vector.broadcast %cst_43 : f32 to vector<2x256xf32>
    %159 = arith.addf %158, %157 : vector<2x256xf32>
    %160 = arith.divf %158, %159 : vector<2x256xf32>
    %161 = vector.extract_strided_slice %148 {offsets = [0, 512], sizes = [2, 256], strides = [1, 1]} : vector<2x1024xf32> to vector<2x256xf32>
    %162 = math.tanh %161 : vector<2x256xf32>
    %163 = vector.extract_strided_slice %148 {offsets = [0, 768], sizes = [2, 256], strides = [1, 1]} : vector<2x1024xf32> to vector<2x256xf32>
    %164 = arith.negf %163 : vector<2x256xf32>
    %165 = math.exp %164 : vector<2x256xf32>
    %cst_44 = arith.constant 1.000000e+00 : f32
    %166 = vector.broadcast %cst_44 : f32 to vector<2x256xf32>
    %167 = arith.addf %166, %165 : vector<2x256xf32>
    %168 = arith.divf %166, %167 : vector<2x256xf32>
    %169 = arith.mulf %160, %137 : vector<2x256xf32>
    %170 = arith.mulf %154, %162 : vector<2x256xf32>
    %171 = arith.addf %169, %170 : vector<2x256xf32>
    %172 = math.tanh %171 : vector<2x256xf32>
    %173 = arith.mulf %168, %172 : vector<2x256xf32>
    %174 = vector.shape_cast %173 : vector<2x256xf32> to vector<2x1x256xf32>
    %c0_45 = arith.constant 0 : index
    %c3 = arith.constant 3 : index
    %c0_46 = arith.constant 0 : index
    %175 = vector.load %arg10[%c0_45, %c3, %c0_46] : memref<2x11x256xf32, #tpu.memory_space<vmem>>, vector<2x1x256xf32>
    tpu.vector_store %arg10[%c0_45, %c3, %c0_46], %174 {strides = array<i32>} : memref<2x11x256xf32, #tpu.memory_space<vmem>>, vector<2x1x256xf32>,
    %176 = vector.extract_strided_slice %0 {offsets = [0, 5, 0], sizes = [2, 1, 4], strides = [1, 1, 1]} : vector<2x8x4xf32> to vector<2x1x4xf32>
    %177 = vector.shape_cast %176 : vector<2x1x4xf32> to vector<2x4xf32>
    %cst_47 = arith.constant dense<0.000000e+00> : vector<2x1024xf32>
    %178 = tpu.matmul %177, %1, %cst_47 {dimension_numbers = #tpu.dot_dimension_numbers<[1], [0], [0], [1], [0, 0, 1, 1], [], []>} : vector<2x4xf32>, vector<4x1024xf32>, vector<2x1024xf32> -> vector<2x1024xf32>
    %cst_48 = arith.constant dense<0.000000e+00> : vector<2x1024xf32>
    %179 = tpu.matmul %173, %3, %cst_48 {dimension_numbers = #tpu.dot_dimension_numbers<[1], [0], [0], [1], [0, 0, 1, 1], [], []>} : vector<2x256xf32>, vector<256x1024xf32>, vector<2x1024xf32> -> vector<2x1024xf32>
    %180 = arith.addf %178, %179 : vector<2x1024xf32>
    %181 = vector.broadcast %2 : vector<1x1024xf32> to vector<2x1024xf32>
    %182 = arith.addf %180, %181 : vector<2x1024xf32>
    %183 = vector.extract_strided_slice %182 {offsets = [0, 0], sizes = [2, 256], strides = [1, 1]} : vector<2x1024xf32> to vector<2x256xf32>
    %184 = arith.negf %183 : vector<2x256xf32>
    %185 = math.exp %184 : vector<2x256xf32>
    %cst_49 = arith.constant 1.000000e+00 : f32
    %186 = vector.broadcast %cst_49 : f32 to vector<2x256xf32>
    %187 = arith.addf %186, %185 : vector<2x256xf32>
    %188 = arith.divf %186, %187 : vector<2x256xf32>
    %189 = vector.extract_strided_slice %182 {offsets = [0, 256], sizes = [2, 256], strides = [1, 1]} : vector<2x1024xf32> to vector<2x256xf32>
    %190 = arith.negf %189 : vector<2x256xf32>
    %191 = math.exp %190 : vector<2x256xf32>
    %cst_50 = arith.constant 1.000000e+00 : f32
    %192 = vector.broadcast %cst_50 : f32 to vector<2x256xf32>
    %193 = arith.addf %192, %191 : vector<2x256xf32>
    %194 = arith.divf %192, %193 : vector<2x256xf32>
    %195 = vector.extract_strided_slice %182 {offsets = [0, 512], sizes = [2, 256], strides = [1, 1]} : vector<2x1024xf32> to vector<2x256xf32>
    %196 = math.tanh %195 : vector<2x256xf32>
    %197 = vector.extract_strided_slice %182 {offsets = [0, 768], sizes = [2, 256], strides = [1, 1]} : vector<2x1024xf32> to vector<2x256xf32>
    %198 = arith.negf %197 : vector<2x256xf32>
    %199 = math.exp %198 : vector<2x256xf32>
    %cst_51 = arith.constant 1.000000e+00 : f32
    %200 = vector.broadcast %cst_51 : f32 to vector<2x256xf32>
    %201 = arith.addf %200, %199 : vector<2x256xf32>
    %202 = arith.divf %200, %201 : vector<2x256xf32>
    %203 = arith.mulf %194, %171 : vector<2x256xf32>
    %204 = arith.mulf %188, %196 : vector<2x256xf32>
    %205 = arith.addf %203, %204 : vector<2x256xf32>
    %206 = math.tanh %205 : vector<2x256xf32>
    %207 = arith.mulf %202, %206 : vector<2x256xf32>
    %208 = vector.shape_cast %207 : vector<2x256xf32> to vector<2x1x256xf32>
    %c0_52 = arith.constant 0 : index
    %c4 = arith.constant 4 : index
    %c0_53 = arith.constant 0 : index
    %209 = vector.load %arg10[%c0_52, %c4, %c0_53] : memref<2x11x256xf32, #tpu.memory_space<vmem>>, vector<2x1x256xf32>
    tpu.vector_store %arg10[%c0_52, %c4, %c0_53], %208 {strides = array<i32>} : memref<2x11x256xf32, #tpu.memory_space<vmem>>, vector<2x1x256xf32>,
    %210 = vector.extract_strided_slice %0 {offsets = [0, 6, 0], sizes = [2, 1, 4], strides = [1, 1, 1]} : vector<2x8x4xf32> to vector<2x1x4xf32>
    %211 = vector.shape_cast %210 : vector<2x1x4xf32> to vector<2x4xf32>
    %cst_54 = arith.constant dense<0.000000e+00> : vector<2x1024xf32>
    %212 = tpu.matmul %211, %1, %cst_54 {dimension_numbers = #tpu.dot_dimension_numbers<[1], [0], [0], [1], [0, 0, 1, 1], [], []>} : vector<2x4xf32>, vector<4x1024xf32>, vector<2x1024xf32> -> vector<2x1024xf32>
    %cst_55 = arith.constant dense<0.000000e+00> : vector<2x1024xf32>
    %213 = tpu.matmul %207, %3, %cst_55 {dimension_numbers = #tpu.dot_dimension_numbers<[1], [0], [0], [1], [0, 0, 1, 1], [], []>} : vector<2x256xf32>, vector<256x1024xf32>, vector<2x1024xf32> -> vector<2x1024xf32>
    %214 = arith.addf %212, %213 : vector<2x1024xf32>
    %215 = vector.broadcast %2 : vector<1x1024xf32> to vector<2x1024xf32>
    %216 = arith.addf %214, %215 : vector<2x1024xf32>
    %217 = vector.extract_strided_slice %216 {offsets = [0, 0], sizes = [2, 256], strides = [1, 1]} : vector<2x1024xf32> to vector<2x256xf32>
    %218 = arith.negf %217 : vector<2x256xf32>
    %219 = math.exp %218 : vector<2x256xf32>
    %cst_56 = arith.constant 1.000000e+00 : f32
    %220 = vector.broadcast %cst_56 : f32 to vector<2x256xf32>
    %221 = arith.addf %220, %219 : vector<2x256xf32>
    %222 = arith.divf %220, %221 : vector<2x256xf32>
    %223 = vector.extract_strided_slice %216 {offsets = [0, 256], sizes = [2, 256], strides = [1, 1]} : vector<2x1024xf32> to vector<2x256xf32>
    %224 = arith.negf %223 : vector<2x256xf32>
    %225 = math.exp %224 : vector<2x256xf32>
    %cst_57 = arith.constant 1.000000e+00 : f32
    %226 = vector.broadcast %cst_57 : f32 to vector<2x256xf32>
    %227 = arith.addf %226, %225 : vector<2x256xf32>
    %228 = arith.divf %226, %227 : vector<2x256xf32>
    %229 = vector.extract_strided_slice %216 {offsets = [0, 512], sizes = [2, 256], strides = [1, 1]} : vector<2x1024xf32> to vector<2x256xf32>
    %230 = math.tanh %229 : vector<2x256xf32>
    %231 = vector.extract_strided_slice %216 {offsets = [0, 768], sizes = [2, 256], strides = [1, 1]} : vector<2x1024xf32> to vector<2x256xf32>
    %232 = arith.negf %231 : vector<2x256xf32>
    %233 = math.exp %232 : vector<2x256xf32>
    %cst_58 = arith.constant 1.000000e+00 : f32
    %234 = vector.broadcast %cst_58 : f32 to vector<2x256xf32>
    %235 = arith.addf %234, %233 : vector<2x256xf32>
    %236 = arith.divf %234, %235 : vector<2x256xf32>
    %237 = arith.mulf %228, %205 : vector<2x256xf32>
    %238 = arith.mulf %222, %230 : vector<2x256xf32>
    %239 = arith.addf %237, %238 : vector<2x256xf32>
    %240 = math.tanh %239 : vector<2x256xf32>
    %241 = arith.mulf %236, %240 : vector<2x256xf32>
    %242 = vector.shape_cast %241 : vector<2x256xf32> to vector<2x1x256xf32>
    %c0_59 = arith.constant 0 : index
    %c5 = arith.constant 5 : index
    %c0_60 = arith.constant 0 : index
    %243 = vector.load %arg10[%c0_59, %c5, %c0_60] : memref<2x11x256xf32, #tpu.memory_space<vmem>>, vector<2x1x256xf32>
    tpu.vector_store %arg10[%c0_59, %c5, %c0_60], %242 {strides = array<i32>} : memref<2x11x256xf32, #tpu.memory_space<vmem>>, vector<2x1x256xf32>,
    %244 = vector.extract_strided_slice %0 {offsets = [0, 7, 0], sizes = [2, 1, 4], strides = [1, 1, 1]} : vector<2x8x4xf32> to vector<2x1x4xf32>
    %245 = vector.shape_cast %244 : vector<2x1x4xf32> to vector<2x4xf32>
    %cst_61 = arith.constant dense<0.000000e+00> : vector<2x1024xf32>
    %246 = tpu.matmul %245, %1, %cst_61 {dimension_numbers = #tpu.dot_dimension_numbers<[1], [0], [0], [1], [0, 0, 1, 1], [], []>} : vector<2x4xf32>, vector<4x1024xf32>, vector<2x1024xf32> -> vector<2x1024xf32>
    %cst_62 = arith.constant dense<0.000000e+00> : vector<2x1024xf32>
    %247 = tpu.matmul %241, %3, %cst_62 {dimension_numbers = #tpu.dot_dimension_numbers<[1], [0], [0], [1], [0, 0, 1, 1], [], []>} : vector<2x256xf32>, vector<256x1024xf32>, vector<2x1024xf32> -> vector<2x1024xf32>
    %248 = arith.addf %246, %247 : vector<2x1024xf32>
    %249 = vector.broadcast %2 : vector<1x1024xf32> to vector<2x1024xf32>
    %250 = arith.addf %248, %249 : vector<2x1024xf32>
    %251 = vector.extract_strided_slice %250 {offsets = [0, 0], sizes = [2, 256], strides = [1, 1]} : vector<2x1024xf32> to vector<2x256xf32>
    %252 = arith.negf %251 : vector<2x256xf32>
    %253 = math.exp %252 : vector<2x256xf32>
    %cst_63 = arith.constant 1.000000e+00 : f32
    %254 = vector.broadcast %cst_63 : f32 to vector<2x256xf32>
    %255 = arith.addf %254, %253 : vector<2x256xf32>
    %256 = arith.divf %254, %255 : vector<2x256xf32>
    %257 = vector.extract_strided_slice %250 {offsets = [0, 256], sizes = [2, 256], strides = [1, 1]} : vector<2x1024xf32> to vector<2x256xf32>
    %258 = arith.negf %257 : vector<2x256xf32>
    %259 = math.exp %258 : vector<2x256xf32>
    %cst_64 = arith.constant 1.000000e+00 : f32
    %260 = vector.broadcast %cst_64 : f32 to vector<2x256xf32>
    %261 = arith.addf %260, %259 : vector<2x256xf32>
    %262 = arith.divf %260, %261 : vector<2x256xf32>
    %263 = vector.extract_strided_slice %250 {offsets = [0, 512], sizes = [2, 256], strides = [1, 1]} : vector<2x1024xf32> to vector<2x256xf32>
    %264 = math.tanh %263 : vector<2x256xf32>
    %265 = vector.extract_strided_slice %250 {offsets = [0, 768], sizes = [2, 256], strides = [1, 1]} : vector<2x1024xf32> to vector<2x256xf32>
    %266 = arith.negf %265 : vector<2x256xf32>
    %267 = math.exp %266 : vector<2x256xf32>
    %cst_65 = arith.constant 1.000000e+00 : f32
    %268 = vector.broadcast %cst_65 : f32 to vector<2x256xf32>
    %269 = arith.addf %268, %267 : vector<2x256xf32>
    %270 = arith.divf %268, %269 : vector<2x256xf32>
    %271 = arith.mulf %262, %239 : vector<2x256xf32>
    %272 = arith.mulf %256, %264 : vector<2x256xf32>
    %273 = arith.addf %271, %272 : vector<2x256xf32>
    %274 = math.tanh %273 : vector<2x256xf32>
    %275 = arith.mulf %270, %274 : vector<2x256xf32>
    %276 = vector.shape_cast %275 : vector<2x256xf32> to vector<2x1x256xf32>
    %c0_66 = arith.constant 0 : index
    %c6 = arith.constant 6 : index
    %c0_67 = arith.constant 0 : index
    %277 = vector.load %arg10[%c0_66, %c6, %c0_67] : memref<2x11x256xf32, #tpu.memory_space<vmem>>, vector<2x1x256xf32>
    tpu.vector_store %arg10[%c0_66, %c6, %c0_67], %276 {strides = array<i32>} : memref<2x11x256xf32, #tpu.memory_space<vmem>>, vector<2x1x256xf32>,
    %cst_68 = arith.constant dense<0.000000e+00> : vector<2x768xf32>
    %278 = tpu.matmul %275, %4, %cst_68 {dimension_numbers = #tpu.dot_dimension_numbers<[1], [0], [0], [1], [0, 0, 1, 1], [], []>} : vector<2x256xf32>, vector<256x768xf32>, vector<2x768xf32> -> vector<2x768xf32>
    %279 = vector.broadcast %5 : vector<1x768xf32> to vector<2x768xf32>
    %280 = arith.addf %278, %279 : vector<2x768xf32>
    %281 = vector.extract_strided_slice %280 {offsets = [0, 0], sizes = [2, 256], strides = [1, 1]} : vector<2x768xf32> to vector<2x256xf32>
    %282 = arith.negf %281 : vector<2x256xf32>
    %283 = math.exp %282 : vector<2x256xf32>
    %cst_69 = arith.constant 1.000000e+00 : f32
    %284 = vector.broadcast %cst_69 : f32 to vector<2x256xf32>
    %285 = arith.addf %284, %283 : vector<2x256xf32>
    %286 = arith.divf %284, %285 : vector<2x256xf32>
    %287 = vector.extract_strided_slice %280 {offsets = [0, 256], sizes = [2, 256], strides = [1, 1]} : vector<2x768xf32> to vector<2x256xf32>
    %288 = math.tanh %287 : vector<2x256xf32>
    %289 = vector.extract_strided_slice %280 {offsets = [0, 512], sizes = [2, 256], strides = [1, 1]} : vector<2x768xf32> to vector<2x256xf32>
    %290 = arith.negf %289 : vector<2x256xf32>
    %291 = math.exp %290 : vector<2x256xf32>
    %cst_70 = arith.constant 1.000000e+00 : f32
    %292 = vector.broadcast %cst_70 : f32 to vector<2x256xf32>
    %293 = arith.addf %292, %291 : vector<2x256xf32>
    %294 = arith.divf %292, %293 : vector<2x256xf32>
    %295 = arith.mulf %286, %288 : vector<2x256xf32>
    %296 = math.tanh %295 : vector<2x256xf32>
    %297 = arith.mulf %294, %296 : vector<2x256xf32>
    %298 = vector.shape_cast %297 : vector<2x256xf32> to vector<2x1x256xf32>
    %c0_71 = arith.constant 0 : index
    %c7 = arith.constant 7 : index
    %c0_72 = arith.constant 0 : index
    %299 = vector.load %arg10[%c0_71, %c7, %c0_72] : memref<2x11x256xf32, #tpu.memory_space<vmem>>, vector<2x1x256xf32>
    tpu.vector_store %arg10[%c0_71, %c7, %c0_72], %298 {strides = array<i32>} : memref<2x11x256xf32, #tpu.memory_space<vmem>>, vector<2x1x256xf32>,
    %cst_73 = arith.constant dense<0.000000e+00> : vector<2x768xf32>
    %300 = tpu.matmul %297, %4, %cst_73 {dimension_numbers = #tpu.dot_dimension_numbers<[1], [0], [0], [1], [0, 0, 1, 1], [], []>} : vector<2x256xf32>, vector<256x768xf32>, vector<2x768xf32> -> vector<2x768xf32>
    %301 = vector.broadcast %5 : vector<1x768xf32> to vector<2x768xf32>
    %302 = arith.addf %300, %301 : vector<2x768xf32>
    %303 = vector.extract_strided_slice %302 {offsets = [0, 0], sizes = [2, 256], strides = [1, 1]} : vector<2x768xf32> to vector<2x256xf32>
    %304 = arith.negf %303 : vector<2x256xf32>
    %305 = math.exp %304 : vector<2x256xf32>
    %cst_74 = arith.constant 1.000000e+00 : f32
    %306 = vector.broadcast %cst_74 : f32 to vector<2x256xf32>
    %307 = arith.addf %306, %305 : vector<2x256xf32>
    %308 = arith.divf %306, %307 : vector<2x256xf32>
    %309 = vector.extract_strided_slice %302 {offsets = [0, 256], sizes = [2, 256], strides = [1, 1]} : vector<2x768xf32> to vector<2x256xf32>
    %310 = math.tanh %309 : vector<2x256xf32>
    %311 = vector.extract_strided_slice %302 {offsets = [0, 512], sizes = [2, 256], strides = [1, 1]} : vector<2x768xf32> to vector<2x256xf32>
    %312 = arith.negf %311 : vector<2x256xf32>
    %313 = math.exp %312 : vector<2x256xf32>
    %cst_75 = arith.constant 1.000000e+00 : f32
    %314 = vector.broadcast %cst_75 : f32 to vector<2x256xf32>
    %315 = arith.addf %314, %313 : vector<2x256xf32>
    %316 = arith.divf %314, %315 : vector<2x256xf32>
    %317 = arith.mulf %308, %310 : vector<2x256xf32>
    %318 = math.tanh %317 : vector<2x256xf32>
    %319 = arith.mulf %316, %318 : vector<2x256xf32>
    %320 = vector.shape_cast %319 : vector<2x256xf32> to vector<2x1x256xf32>
    %c0_76 = arith.constant 0 : index
    %c8 = arith.constant 8 : index
    %c0_77 = arith.constant 0 : index
    %321 = vector.load %arg10[%c0_76, %c8, %c0_77] : memref<2x11x256xf32, #tpu.memory_space<vmem>>, vector<2x1x256xf32>
    tpu.vector_store %arg10[%c0_76, %c8, %c0_77], %320 {strides = array<i32>} : memref<2x11x256xf32, #tpu.memory_space<vmem>>, vector<2x1x256xf32>,
    %cst_78 = arith.constant dense<0.000000e+00> : vector<2x768xf32>
    %322 = tpu.matmul %319, %4, %cst_78 {dimension_numbers = #tpu.dot_dimension_numbers<[1], [0], [0], [1], [0, 0, 1, 1], [], []>} : vector<2x256xf32>, vector<256x768xf32>, vector<2x768xf32> -> vector<2x768xf32>
    %323 = vector.broadcast %5 : vector<1x768xf32> to vector<2x768xf32>
    %324 = arith.addf %322, %323 : vector<2x768xf32>
    %325 = vector.extract_strided_slice %324 {offsets = [0, 0], sizes = [2, 256], strides = [1, 1]} : vector<2x768xf32> to vector<2x256xf32>
    %326 = arith.negf %325 : vector<2x256xf32>
    %327 = math.exp %326 : vector<2x256xf32>
    %cst_79 = arith.constant 1.000000e+00 : f32
    %328 = vector.broadcast %cst_79 : f32 to vector<2x256xf32>
    %329 = arith.addf %328, %327 : vector<2x256xf32>
    %330 = arith.divf %328, %329 : vector<2x256xf32>
    %331 = vector.extract_strided_slice %324 {offsets = [0, 256], sizes = [2, 256], strides = [1, 1]} : vector<2x768xf32> to vector<2x256xf32>
    %332 = math.tanh %331 : vector<2x256xf32>
    %333 = vector.extract_strided_slice %324 {offsets = [0, 512], sizes = [2, 256], strides = [1, 1]} : vector<2x768xf32> to vector<2x256xf32>
    %334 = arith.negf %333 : vector<2x256xf32>
    %335 = math.exp %334 : vector<2x256xf32>
    %cst_80 = arith.constant 1.000000e+00 : f32
    %336 = vector.broadcast %cst_80 : f32 to vector<2x256xf32>
    %337 = arith.addf %336, %335 : vector<2x256xf32>
    %338 = arith.divf %336, %337 : vector<2x256xf32>
    %339 = arith.mulf %330, %332 : vector<2x256xf32>
    %340 = math.tanh %339 : vector<2x256xf32>
    %341 = arith.mulf %338, %340 : vector<2x256xf32>
    %342 = vector.shape_cast %341 : vector<2x256xf32> to vector<2x1x256xf32>
    %c0_81 = arith.constant 0 : index
    %c9 = arith.constant 9 : index
    %c0_82 = arith.constant 0 : index
    %343 = vector.load %arg10[%c0_81, %c9, %c0_82] : memref<2x11x256xf32, #tpu.memory_space<vmem>>, vector<2x1x256xf32>
    tpu.vector_store %arg10[%c0_81, %c9, %c0_82], %342 {strides = array<i32>} : memref<2x11x256xf32, #tpu.memory_space<vmem>>, vector<2x1x256xf32>,
    %cst_83 = arith.constant dense<0.000000e+00> : vector<2x768xf32>
    %344 = tpu.matmul %341, %4, %cst_83 {dimension_numbers = #tpu.dot_dimension_numbers<[1], [0], [0], [1], [0, 0, 1, 1], [], []>} : vector<2x256xf32>, vector<256x768xf32>, vector<2x768xf32> -> vector<2x768xf32>
    %345 = vector.broadcast %5 : vector<1x768xf32> to vector<2x768xf32>
    %346 = arith.addf %344, %345 : vector<2x768xf32>
    %347 = vector.extract_strided_slice %346 {offsets = [0, 0], sizes = [2, 256], strides = [1, 1]} : vector<2x768xf32> to vector<2x256xf32>
    %348 = arith.negf %347 : vector<2x256xf32>
    %349 = math.exp %348 : vector<2x256xf32>
    %cst_84 = arith.constant 1.000000e+00 : f32
    %350 = vector.broadcast %cst_84 : f32 to vector<2x256xf32>
    %351 = arith.addf %350, %349 : vector<2x256xf32>
    %352 = arith.divf %350, %351 : vector<2x256xf32>
    %353 = vector.extract_strided_slice %346 {offsets = [0, 256], sizes = [2, 256], strides = [1, 1]} : vector<2x768xf32> to vector<2x256xf32>
    %354 = math.tanh %353 : vector<2x256xf32>
    %355 = vector.extract_strided_slice %346 {offsets = [0, 512], sizes = [2, 256], strides = [1, 1]} : vector<2x768xf32> to vector<2x256xf32>
    %356 = arith.negf %355 : vector<2x256xf32>
    %357 = math.exp %356 : vector<2x256xf32>
    %cst_85 = arith.constant 1.000000e+00 : f32
    %358 = vector.broadcast %cst_85 : f32 to vector<2x256xf32>
    %359 = arith.addf %358, %357 : vector<2x256xf32>
    %360 = arith.divf %358, %359 : vector<2x256xf32>
    %361 = arith.mulf %352, %354 : vector<2x256xf32>
    %362 = math.tanh %361 : vector<2x256xf32>
    %363 = arith.mulf %360, %362 : vector<2x256xf32>
    %364 = vector.shape_cast %363 : vector<2x256xf32> to vector<2x1x256xf32>
    %c0_86 = arith.constant 0 : index
    %c10 = arith.constant 10 : index
    %c0_87 = arith.constant 0 : index
    %365 = vector.load %arg10[%c0_86, %c10, %c0_87] : memref<2x11x256xf32, #tpu.memory_space<vmem>>, vector<2x1x256xf32>
    tpu.vector_store %arg10[%c0_86, %c10, %c0_87], %364 {strides = array<i32>} : memref<2x11x256xf32, #tpu.memory_space<vmem>>, vector<2x1x256xf32>,
    %c0_88 = arith.constant 0 : index
    %c0_89 = arith.constant 0 : index
    %366 = vector.load %arg7[%c0_88, %c0_89] : memref<256x4xf32, #tpu.memory_space<vmem>>, vector<256x4xf32>
    %c0_90 = arith.constant 0 : index
    %c0_91 = arith.constant 0 : index
    %367 = vector.load %arg8[%c0_90, %c0_91] : memref<1x4xf32, #tpu.memory_space<vmem>>, vector<1x4xf32>
    %c0_92 = arith.constant 0 : index
    %c0_93 = arith.constant 0 : index
    %c0_94 = arith.constant 0 : index
    %368 = vector.load %arg10[%c0_92, %c0_93, %c0_94] : memref<2x11x256xf32, #tpu.memory_space<vmem>>, vector<1x11x256xf32>
    %369 = vector.shape_cast %368 : vector<1x11x256xf32> to vector<11x256xf32>
    %cst_95 = arith.constant dense<0.000000e+00> : vector<11x4xf32>
    %370 = tpu.matmul %369, %366, %cst_95 {dimension_numbers = #tpu.dot_dimension_numbers<[1], [0], [0], [1], [0, 0, 1, 1], [], []>} : vector<11x256xf32>, vector<256x4xf32>, vector<11x4xf32> -> vector<11x4xf32>
    %371 = vector.broadcast %367 : vector<1x4xf32> to vector<11x4xf32>
    %372 = arith.addf %370, %371 : vector<11x4xf32>
    %c0_96 = arith.constant 0 : index
    %c0_97 = arith.constant 0 : index
    %c0_98 = arith.constant 0 : index
    %373 = vector.load %arg9[%c0_96, %c0_97, %c0_98] : memref<2x11x4xf32, #tpu.memory_space<vmem>>, vector<1x11x4xf32>
    %374 = vector.shape_cast %373 : vector<1x11x4xf32> to vector<11x4xf32>
    %375 = vector.shape_cast %372 : vector<11x4xf32> to vector<1x11x4xf32>
    tpu.vector_store %arg9[%c0_96, %c0_97, %c0_98], %375 {strides = array<i32>} : memref<2x11x4xf32, #tpu.memory_space<vmem>>, vector<1x11x4xf32>,
    %c1_99 = arith.constant 1 : index
    %c0_100 = arith.constant 0 : index
    %c0_101 = arith.constant 0 : index
    %376 = vector.load %arg10[%c1_99, %c0_100, %c0_101] : memref<2x11x256xf32, #tpu.memory_space<vmem>>, vector<1x11x256xf32>
    %377 = vector.shape_cast %376 : vector<1x11x256xf32> to vector<11x256xf32>
    %cst_102 = arith.constant dense<0.000000e+00> : vector<11x4xf32>
    %378 = tpu.matmul %377, %366, %cst_102 {dimension_numbers = #tpu.dot_dimension_numbers<[1], [0], [0], [1], [0, 0, 1, 1], [], []>} : vector<11x256xf32>, vector<256x4xf32>, vector<11x4xf32> -> vector<11x4xf32>
    %379 = vector.broadcast %367 : vector<1x4xf32> to vector<11x4xf32>
    %380 = arith.addf %378, %379 : vector<11x4xf32>
    %c1_103 = arith.constant 1 : index
    %c0_104 = arith.constant 0 : index
    %c0_105 = arith.constant 0 : index
    %381 = vector.load %arg9[%c1_103, %c0_104, %c0_105] : memref<2x11x4xf32, #tpu.memory_space<vmem>>, vector<1x11x4xf32>
    %382 = vector.shape_cast %381 : vector<1x11x4xf32> to vector<11x4xf32>
    %383 = vector.shape_cast %380 : vector<11x4xf32> to vector<1x11x4xf32>
    tpu.vector_store %arg9[%c1_103, %c0_104, %c0_105], %383 {strides = array<i32>} : memref<2x11x4xf32, #tpu.memory_space<vmem>>, vector<1x11x4xf32>,
    return
  }
  func.func @transform_0(%arg0: i32) -> (i32, i32, i32) {
    %c0_i32 = arith.constant 0 : i32
    %c0_i32_0 = arith.constant 0 : i32
    %c0_i32_1 = arith.constant 0 : i32
    %c0_i32_2 = arith.constant 0 : i32
    return %c0_i32, %c0_i32_0, %c0_i32_1 : i32, i32, i32
  }
  func.func @transform_1(%arg0: i32) -> (i32, i32) {
    %c0_i32 = arith.constant 0 : i32
    %c0_i32_0 = arith.constant 0 : i32
    %c0_i32_1 = arith.constant 0 : i32
    return %c0_i32, %c0_i32_0 : i32, i32
  }
  func.func @transform_2(%arg0: i32) -> (i32, i32) {
    %c0_i32 = arith.constant 0 : i32
    %c0_i32_0 = arith.constant 0 : i32
    %c0_i32_1 = arith.constant 0 : i32
    return %c0_i32, %c0_i32_0 : i32, i32
  }
  func.func @transform_3(%arg0: i32) -> (i32, i32) {
    %c0_i32 = arith.constant 0 : i32
    %c0_i32_0 = arith.constant 0 : i32
    %c0_i32_1 = arith.constant 0 : i32
    return %c0_i32, %c0_i32_0 : i32, i32
  }
  func.func @transform_4(%arg0: i32) -> (i32, i32) {
    %c0_i32 = arith.constant 0 : i32
    %c0_i32_0 = arith.constant 0 : i32
    %c0_i32_1 = arith.constant 0 : i32
    return %c0_i32, %c0_i32_0 : i32, i32
  }
  func.func @transform_5(%arg0: i32) -> (i32, i32) {
    %c0_i32 = arith.constant 0 : i32
    %c0_i32_0 = arith.constant 0 : i32
    %c0_i32_1 = arith.constant 0 : i32
    return %c0_i32, %c0_i32_0 : i32, i32
  }
  func.func @transform_6(%arg0: i32) -> (i32, i32) {
    %c0_i32 = arith.constant 0 : i32
    %c0_i32_0 = arith.constant 0 : i32
    %c0_i32_1 = arith.constant 0 : i32
    return %c0_i32, %c0_i32_0 : i32, i32
  }
  func.func @transform_7(%arg0: i32) -> (i32, i32) {
    %c0_i32 = arith.constant 0 : i32
    %c0_i32_0 = arith.constant 0 : i32
    %c0_i32_1 = arith.constant 0 : i32
    return %c0_i32, %c0_i32_0 : i32, i32
  }
  func.func @transform_8(%arg0: i32) -> (i32, i32, i32) {
    %c0_i32 = arith.constant 0 : i32
    %c0_i32_0 = arith.constant 0 : i32
    %c0_i32_1 = arith.constant 0 : i32
    %c0_i32_2 = arith.constant 0 : i32
    return %c0_i32, %c0_i32_0, %c0_i32_1 : i32, i32, i32
  }
}

</mosaic_0001>

<llo_original>
// kernel: model_forward.1
$region0: #{model_forward.1}
  #allocation0 [shape = 'u32[]', space=smem, size = 0x4, offset = 0x4, fixed_abs, tag = 'smem constant byte address 0x4 - core index']
  #allocation1 [shape = 'u32[144,128]{1,0:T(1,128)}', space=vmem, size = 0x12000, scoped, tag = 'internal scratch']
  #allocation2 [shape = 'f32[2,11,256]{2,1,0:T(8,128)}', space=vmem, size = 0x8000, scoped, tag = 'scratch operand']
  %s0 = inlined_call_operand.vmem [shape: f32[2,8,4], index: 0, kind: input, shape index: {}]
  %s1 = inlined_call_operand.vmem [shape: f32[4,1024], index: 1, kind: input, shape index: {}]
  %s2 = inlined_call_operand.vmem [shape: f32[1,1024], index: 2, kind: input, shape index: {}]
  %s3 = inlined_call_operand.hbm [shape: f32[256,1024], index: 3, kind: input, shape index: {}]
  %s4 = inlined_call_operand.hbm [shape: f32[256,768], index: 4, kind: input, shape index: {}]
  %s5 = inlined_call_operand.vmem [shape: f32[1,768], index: 5, kind: input, shape index: {}]
  %s6 = inlined_call_operand.vmem [shape: f32[256,4], index: 6, kind: input, shape index: {}]
  %s7 = inlined_call_operand.vmem [shape: f32[1,4], index: 7, kind: input, shape index: {}]
  %s8 = inlined_call_operand.vmem [shape: f32[2,11,4], index: 8, kind: output, shape index: {}]
  %s9 = sld [smem:[#allocation0]]
  $region50: #{model_forward.1} parent=0
    _
  %s11 = ssub.s32 1, %s9
  %s12 = scalar_select 0, %s11, %s9
  $region1: #{model_forward.1} parent=0
    #allocation3 [shape = 'u8[1048576]{0}', space=vmem, size = 0x100000, scoped, tag = 'input window, operand 3, single buffered']
    #allocation4 [shape = 's32[1]{0}', space=sflag, size = 0x4, scoped, tag = 'scoped memory for model_forward.1']
    #allocation5 [shape = 'u8[786432]{0}', space=vmem, size = 0xc0000, scoped, tag = 'input window, operand 4, single buffered']
    #allocation6 [shape = 's32[1]{0}', space=sflag, size = 0x4, scoped, tag = 'scoped memory for model_forward.1']
    %13 = vsyncpa [#allocation4], 0
    %14 = vsyncpa [#allocation6], 0
    // Predicated region
    $region2: #{model_forward.1} parent=1 // pred_check
      _
    $region3: #{model_forward.1} parent=1 // pred_check_branch
      %16 = sbr.rel (0) target = $region5
    $region4: #{model_forward.1} parent=1 // pred_region
      _
    $region5: #{model_forward.1} parent=1 // pred_fallthru
      _
    // Predicated region
    $region6: #{model_forward.1} parent=1 // pred_check
      _
    $region7: #{model_forward.1} parent=1 // pred_check_branch
      %18 = sbr.rel (0) target = $region9
    $region8: #{model_forward.1} parent=1 // pred_region
      _
    $region9: #{model_forward.1} parent=1 // pred_fallthru
      _
    // Predicated region
    $region10: #{model_forward.1} parent=1 // pred_check
      _
    $region11: #{model_forward.1} parent=1 // pred_check_branch
      %20 = sbr.rel (0) target = $region13
    $region12: #{model_forward.1} parent=1 // pred_region
      _
    $region13: #{model_forward.1} parent=1 // pred_fallthru
      _
    // Predicated region
    $region14: #{model_forward.1} parent=1 // pred_check
      _
    $region15: #{model_forward.1} parent=1 // pred_check_branch
      %22 = sbr.rel (0) target = $region17
    $region16: #{model_forward.1} parent=1 // pred_region
      %s24 = ssub.s32 32768, 32768
      %25 = vsyncadd [#allocation4], %s24
      %s26 = sshll.u32 [#allocation3], 4
      %s27 = int_to_ptr.vmem [resolvable:$true] %s26
      %32 = dma.hbm_to_vmem [thread:$0]  %s3, 32768, %s27, [#allocation4], 1024, 1024, 64
    $region17: #{model_forward.1} parent=1 // pred_fallthru
      _
    // Predicated region
    $region18: #{model_forward.1} parent=1 // pred_check
      _
    $region19: #{model_forward.1} parent=1 // pred_check_branch
      %34 = sbr.rel (0) target = $region21
    $region20: #{model_forward.1} parent=1 // pred_region
      %s36 = ssub.s32 24576, 24576
      %37 = vsyncadd [#allocation6], %s36
      %s38 = sshll.u32 [#allocation5], 4
      %s39 = int_to_ptr.vmem [resolvable:$true] %s38
      %44 = dma.hbm_to_vmem [thread:$0]  %s4, 24576, %s39, [#allocation6], 768, 768, 48
    $region21: #{model_forward.1} parent=1 // pred_fallthru
      _
    // Predicated region
    $region22: #{model_forward.1} parent=1 // pred_check
      _
    $region23: #{model_forward.1} parent=1 // pred_check_branch
      %46 = sbr.rel (0) target = $region25
    $region24: #{model_forward.1} parent=1 // pred_region
      _
    $region25: #{model_forward.1} parent=1 // pred_fallthru
      _
    // Predicated region
    $region26: #{model_forward.1} parent=1 // pred_check
      _
    $region27: #{model_forward.1} parent=1 // pred_check_branch
      %48 = sbr.rel (0) target = $region29
    $region28: #{model_forward.1} parent=1 // pred_region
      _
    $region29: #{model_forward.1} parent=1 // pred_fallthru
      _
    // Predicated region
    $region30: #{model_forward.1} parent=1 // pred_check
      _
    $region31: #{model_forward.1} parent=1 // pred_check_branch
      %50 = sbr.rel (0) target = $region33
    $region32: #{model_forward.1} parent=1 // pred_region
      _
    $region33: #{model_forward.1} parent=1 // pred_fallthru
      _
    // Predicated region
    $region34: #{model_forward.1} parent=1 // pred_check
      _
    $region35: #{model_forward.1} parent=1 // pred_check_branch
      %52 = sbr.rel (0) target = $region37
    $region36: #{model_forward.1} parent=1 // pred_region
      %53 = dma.done [#allocation4], 32768
    $region37: #{model_forward.1} parent=1 // pred_fallthru
      _
    // Predicated region
    $region38: #{model_forward.1} parent=1 // pred_check
      _
    $region39: #{model_forward.1} parent=1 // pred_check_branch
      %55 = sbr.rel (0) target = $region41
    $region40: #{model_forward.1} parent=1 // pred_region
      %56 = dma.done [#allocation6], 24576
    $region41: #{model_forward.1} parent=1 // pred_fallthru
      _
    %v57 = vld [vmem:[%s0] sm:$0xff]
    %v58 = vld [vmem:[%s0 + $0x8] sm:$0xff]
    %v59 = vld [vmem:[%s1] sm:$0xff]
    %v60 = vld [vmem:[%s1 + $0x8] sm:$0xff]
    %v61 = vld [vmem:[%s1 + $0x10] sm:$0xff]
    %v62 = vld [vmem:[%s1 + $0x18] sm:$0xff]
    %v63 = vld [vmem:[%s2] sm:$0xff]
    %v64 = vld [vmem:[#allocation3] sm:$0xff]
    %v65 = vld [vmem:[#allocation3 + $0x8] sm:$0xff]
    %v66 = vld [vmem:[#allocation3 + $0x10] sm:$0xff]
    %v67 = vld [vmem:[#allocation3 + $0x18] sm:$0xff]
    %v68 = vld [vmem:[#allocation3 + $0x20] sm:$0xff]
    %v69 = vld [vmem:[#allocation3 + $0x28] sm:$0xff]
    %v70 = vld [vmem:[#allocation3 + $0x30] sm:$0xff]
    %v71 = vld [vmem:[#allocation3 + $0x38] sm:$0xff]
    %v72 = vld [vmem:[#allocation3 + $0x40] sm:$0xff]
    %v73 = vld [vmem:[#allocation3 + $0x48] sm:$0xff]
    %v74 = vld [vmem:[#allocation3 + $0x50] sm:$0xff]
    %v75 = vld [vmem:[#allocation3 + $0x58] sm:$0xff]
    %v76 = vld [vmem:[#allocation3 + $0x60] sm:$0xff]
    %v77 = vld [vmem:[#allocation3 + $0x68] sm:$0xff]
    %v78 = vld [vmem:[#allocation3 + $0x70] sm:$0xff]
    %v79 = vld [vmem:[#allocation3 + $0x78] sm:$0xff]
    %v80 = vld [vmem:[#allocation3 + $0x80] sm:$0xff]
    %v81 = vld [vmem:[#allocation3 + $0x88] sm:$0xff]
    %v82 = vld [vmem:[#allocation3 + $0x90] sm:$0xff]
    %v83 = vld [vmem:[#allocation3 + $0x98] sm:$0xff]
    %v84 = vld [vmem:[#allocation3 + $0xa0] sm:$0xff]
    %v85 = vld [vmem:[#allocation3 + $0xa8] sm:$0xff]
    %v86 = vld [vmem:[#allocation3 + $0xb0] sm:$0xff]
    %v87 = vld [vmem:[#allocation3 + $0xb8] sm:$0xff]
    %v88 = vld [vmem:[#allocation3 + $0xc0] sm:$0xff]
    %v89 = vld [vmem:[#allocation3 + $0xc8] sm:$0xff]
    %v90 = vld [vmem:[#allocation3 + $0xd0] sm:$0xff]
    %v91 = vld [vmem:[#allocation3 + $0xd8] sm:$0xff]
    %v92 = vld [vmem:[#allocation3 + $0xe0] sm:$0xff]
    %v93 = vld [vmem:[#allocation3 + $0xe8] sm:$0xff]
    %v94 = vld [vmem:[#allocation3 + $0xf0] sm:$0xff]
    %v95 = vld [vmem:[#allocation3 + $0xf8] sm:$0xff]
    %v96 = vld [vmem:[#allocation3 + $0x100] sm:$0xff]
    %v97 = vld [vmem:[#allocation3 + $0x108] sm:$0xff]
    %v98 = vld [vmem:[#allocation3 + $0x110] sm:$0xff]
    %v99 = vld [vmem:[#allocation3 + $0x118] sm:$0xff]
    %v100 = vld [vmem:[#allocation3 + $0x120] sm:$0xff]
    %v101 = vld [vmem:[#allocation3 + $0x128] sm:$0xff]
    %v102 = vld [vmem:[#allocation3 + $0x130] sm:$0xff]
    %v103 = vld [vmem:[#allocation3 + $0x138] sm:$0xff]
    %v104 = vld [vmem:[#allocation3 + $0x140] sm:$0xff]
    %v105 = vld [vmem:[#allocation3 + $0x148] sm:$0xff]
    %v106 = vld [vmem:[#allocation3 + $0x150] sm:$0xff]
    %v107 = vld [vmem:[#allocation3 + $0x158] sm:$0xff]
    %v108 = vld [vmem:[#allocation3 + $0x160] sm:$0xff]
    %v109 = vld [vmem:[#allocation3 + $0x168] sm:$0xff]
    %v110 = vld [vmem:[#allocation3 + $0x170] sm:$0xff]
    %v111 = vld [vmem:[#allocation3 + $0x178] sm:$0xff]
    %v112 = vld [vmem:[#allocation3 + $0x180] sm:$0xff]
    %v113 = vld [vmem:[#allocation3 + $0x188] sm:$0xff]
    %v114 = vld [vmem:[#allocation3 + $0x190] sm:$0xff]
    %v115 = vld [vmem:[#allocation3 + $0x198] sm:$0xff]
    %v116 = vld [vmem:[#allocation3 + $0x1a0] sm:$0xff]
    %v117 = vld [vmem:[#allocation3 + $0x1a8] sm:$0xff]
    %v118 = vld [vmem:[#allocation3 + $0x1b0] sm:$0xff]
    %v119 = vld [vmem:[#allocation3 + $0x1b8] sm:$0xff]
    %v120 = vld [vmem:[#allocation3 + $0x1c0] sm:$0xff]
    %v121 = vld [vmem:[#allocation3 + $0x1c8] sm:$0xff]
    %v122 = vld [vmem:[#allocation3 + $0x1d0] sm:$0xff]
    %v123 = vld [vmem:[#allocation3 + $0x1d8] sm:$0xff]
    %v124 = vld [vmem:[#allocation3 + $0x1e0] sm:$0xff]
    %v125 = vld [vmem:[#allocation3 + $0x1e8] sm:$0xff]
    %v126 = vld [vmem:[#allocation3 + $0x1f0] sm:$0xff]
    %v127 = vld [vmem:[#allocation3 + $0x1f8] sm:$0xff]
    %v128 = vld [vmem:[#allocation3 + $0x200] sm:$0xff]
    %v129 = vld [vmem:[#allocation3 + $0x208] sm:$0xff]
    %v130 = vld [vmem:[#allocation3 + $0x210] sm:$0xff]
    %v131 = vld [vmem:[#allocation3 + $0x218] sm:$0xff]
    %v132 = vld [vmem:[#allocation3 + $0x220] sm:$0xff]
    %v133 = vld [vmem:[#allocation3 + $0x228] sm:$0xff]
    %v134 = vld [vmem:[#allocation3 + $0x230] sm:$0xff]
    %v135 = vld [vmem:[#allocation3 + $0x238] sm:$0xff]
    %v136 = vld [vmem:[#allocation3 + $0x240] sm:$0xff]
    %v137 = vld [vmem:[#allocation3 + $0x248] sm:$0xff]
    %v138 = vld [vmem:[#allocation3 + $0x250] sm:$0xff]
    %v139 = vld [vmem:[#allocation3 + $0x258] sm:$0xff]
    %v140 = vld [vmem:[#allocation3 + $0x260] sm:$0xff]
    %v141 = vld [vmem:[#allocation3 + $0x268] sm:$0xff]
    %v142 = vld [vmem:[#allocation3 + $0x270] sm:$0xff]
    %v143 = vld [vmem:[#allocation3 + $0x278] sm:$0xff]
    %v144 = vld [vmem:[#allocation3 + $0x280] sm:$0xff]
    %v145 = vld [vmem:[#allocation3 + $0x288] sm:$0xff]
    %v146 = vld [vmem:[#allocation3 + $0x290] sm:$0xff]
    %v147 = vld [vmem:[#allocation3 + $0x298] sm:$0xff]
    %v148 = vld [vmem:[#allocation3 + $0x2a0] sm:$0xff]
    %v149 = vld [vmem:[#allocation3 + $0x2a8] sm:$0xff]
    %v150 = vld [vmem:[#allocation3 + $0x2b0] sm:$0xff]
    %v151 = vld [vmem:[#allocation3 + $0x2b8] sm:$0xff]
    %v152 = vld [vmem:[#allocation3 + $0x2c0] sm:$0xff]
    %v153 = vld [vmem:[#allocation3 + $0x2c8] sm:$0xff]
    %v154 = vld [vmem:[#allocation3 + $0x2d0] sm:$0xff]
    %v155 = vld [vmem:[#allocation3 + $0x2d8] sm:$0xff]
    %v156 = vld [vmem:[#allocation3 + $0x2e0] sm:$0xff]
    %v157 = vld [vmem:[#allocation3 + $0x2e8] sm:$0xff]
    %v158 = vld [vmem:[#allocation3 + $0x2f0] sm:$0xff]
    %v159 = vld [vmem:[#allocation3 + $0x2f8] sm:$0xff]
    %v160 = vld [vmem:[#allocation3 + $0x300] sm:$0xff]
    %v161 = vld [vmem:[#allocation3 + $0x308] sm:$0xff]
    %v162 = vld [vmem:[#allocation3 + $0x310] sm:$0xff]
    %v163 = vld [vmem:[#allocation3 + $0x318] sm:$0xff]
    %v164 = vld [vmem:[#allocation3 + $0x320] sm:$0xff]
    %v165 = vld [vmem:[#allocation3 + $0x328] sm:$0xff]
    %v166 = vld [vmem:[#allocation3 + $0x330] sm:$0xff]
    %v167 = vld [vmem:[#allocation3 + $0x338] sm:$0xff]
    %v168 = vld [vmem:[#allocation3 + $0x340] sm:$0xff]
    %v169 = vld [vmem:[#allocation3 + $0x348] sm:$0xff]
    %v170 = vld [vmem:[#allocation3 + $0x350] sm:$0xff]
    %v171 = vld [vmem:[#allocation3 + $0x358] sm:$0xff]
    %v172 = vld [vmem:[#allocation3 + $0x360] sm:$0xff]
    %v173 = vld [vmem:[#allocation3 + $0x368] sm:$0xff]
    %v174 = vld [vmem:[#allocation3 + $0x370] sm:$0xff]
    %v175 = vld [vmem:[#allocation3 + $0x378] sm:$0xff]
    %v176 = vld [vmem:[#allocation3 + $0x380] sm:$0xff]
    %v177 = vld [vmem:[#allocation3 + $0x388] sm:$0xff]
    %v178 = vld [vmem:[#allocation3 + $0x390] sm:$0xff]
    %v179 = vld [vmem:[#allocation3 + $0x398] sm:$0xff]
    %v180 = vld [vmem:[#allocation3 + $0x3a0] sm:$0xff]
    %v181 = vld [vmem:[#allocation3 + $0x3a8] sm:$0xff]
    %v182 = vld [vmem:[#allocation3 + $0x3b0] sm:$0xff]
    %v183 = vld [vmem:[#allocation3 + $0x3b8] sm:$0xff]
    %v184 = vld [vmem:[#allocation3 + $0x3c0] sm:$0xff]
    %v185 = vld [vmem:[#allocation3 + $0x3c8] sm:$0xff]
    %v186 = vld [vmem:[#allocation3 + $0x3d0] sm:$0xff]
    %v187 = vld [vmem:[#allocation3 + $0x3d8] sm:$0xff]
    %v188 = vld [vmem:[#allocation3 + $0x3e0] sm:$0xff]
    %v189 = vld [vmem:[#allocation3 + $0x3e8] sm:$0xff]
    %v190 = vld [vmem:[#allocation3 + $0x3f0] sm:$0xff]
    %v191 = vld [vmem:[#allocation3 + $0x3f8] sm:$0xff]
    %v192 = vld [vmem:[#allocation3 + $0x400] sm:$0xff]
    %v193 = vld [vmem:[#allocation3 + $0x408] sm:$0xff]
    %v194 = vld [vmem:[#allocation3 + $0x410] sm:$0xff]
    %v195 = vld [vmem:[#allocation3 + $0x418] sm:$0xff]
    %v196 = vld [vmem:[#allocation3 + $0x420] sm:$0xff]
    %v197 = vld [vmem:[#allocation3 + $0x428] sm:$0xff]
    %v198 = vld [vmem:[#allocation3 + $0x430] sm:$0xff]
    %v199 = vld [vmem:[#allocation3 + $0x438] sm:$0xff]
    %v200 = vld [vmem:[#allocation3 + $0x440] sm:$0xff]
    %v201 = vld [vmem:[#allocation3 + $0x448] sm:$0xff]
    %v202 = vld [vmem:[#allocation3 + $0x450] sm:$0xff]
    %v203 = vld [vmem:[#allocation3 + $0x458] sm:$0xff]
    %v204 = vld [vmem:[#allocation3 + $0x460] sm:$0xff]
    %v205 = vld [vmem:[#allocation3 + $0x468] sm:$0xff]
    %v206 = vld [vmem:[#allocation3 + $0x470] sm:$0xff]
    %v207 = vld [vmem:[#allocation3 + $0x478] sm:$0xff]
    %v208 = vld [vmem:[#allocation3 + $0x480] sm:$0xff]
    %v209 = vld [vmem:[#allocation3 + $0x488] sm:$0xff]
    %v210 = vld [vmem:[#allocation3 + $0x490] sm:$0xff]
    %v211 = vld [vmem:[#allocation3 + $0x498] sm:$0xff]
    %v212 = vld [vmem:[#allocation3 + $0x4a0] sm:$0xff]
    %v213 = vld [vmem:[#allocation3 + $0x4a8] sm:$0xff]
    %v214 = vld [vmem:[#allocation3 + $0x4b0] sm:$0xff]
    %v215 = vld [vmem:[#allocation3 + $0x4b8] sm:$0xff]
    %v216 = vld [vmem:[#allocation3 + $0x4c0] sm:$0xff]
    %v217 = vld [vmem:[#allocation3 + $0x4c8] sm:$0xff]
    %v218 = vld [vmem:[#allocation3 + $0x4d0] sm:$0xff]
    %v219 = vld [vmem:[#allocation3 + $0x4d8] sm:$0xff]
    %v220 = vld [vmem:[#allocation3 + $0x4e0] sm:$0xff]
    %v221 = vld [vmem:[#allocation3 + $0x4e8] sm:$0xff]
    %v222 = vld [vmem:[#allocation3 + $0x4f0] sm:$0xff]
    %v223 = vld [vmem:[#allocation3 + $0x4f8] sm:$0xff]
    %v224 = vld [vmem:[#allocation3 + $0x500] sm:$0xff]
    %v225 = vld [vmem:[#allocation3 + $0x508] sm:$0xff]
    %v226 = vld [vmem:[#allocation3 + $0x510] sm:$0xff]
    %v227 = vld [vmem:[#allocation3 + $0x518] sm:$0xff]
    %v228 = vld [vmem:[#allocation3 + $0x520] sm:$0xff]
    %v229 = vld [vmem:[#allocation3 + $0x528] sm:$0xff]
    %v230 = vld [vmem:[#allocation3 + $0x530] sm:$0xff]
    %v231 = vld [vmem:[#allocation3 + $0x538] sm:$0xff]
    %v232 = vld [vmem:[#allocation3 + $0x540] sm:$0xff]
    %v233 = vld [vmem:[#allocation3 + $0x548] sm:$0xff]
    %v234 = vld [vmem:[#allocation3 + $0x550] sm:$0xff]
    %v235 = vld [vmem:[#allocation3 + $0x558] sm:$0xff]
    %v236 = vld [vmem:[#allocation3 + $0x560] sm:$0xff]
    %v237 = vld [vmem:[#allocation3 + $0x568] sm:$0xff]
    %v238 = vld [vmem:[#allocation3 + $0x570] sm:$0xff]
    %v239 = vld [vmem:[#allocation3 + $0x578] sm:$0xff]
    %v240 = vld [vmem:[#allocation3 + $0x580] sm:$0xff]
    %v241 = vld [vmem:[#allocation3 + $0x588] sm:$0xff]
    %v242 = vld [vmem:[#allocation3 + $0x590] sm:$0xff]
    %v243 = vld [vmem:[#allocation3 + $0x598] sm:$0xff]
    %v244 = vld [vmem:[#allocation3 + $0x5a0] sm:$0xff]
    %v245 = vld [vmem:[#allocation3 + $0x5a8] sm:$0xff]
    %v246 = vld [vmem:[#allocation3 + $0x5b0] sm:$0xff]
    %v247 = vld [vmem:[#allocation3 + $0x5b8] sm:$0xff]
    %v248 = vld [vmem:[#allocation3 + $0x5c0] sm:$0xff]
    %v249 = vld [vmem:[#allocation3 + $0x5c8] sm:$0xff]
    %v250 = vld [vmem:[#allocation3 + $0x5d0] sm:$0xff]
    %v251 = vld [vmem:[#allocation3 + $0x5d8] sm:$0xff]
    %v252 = vld [vmem:[#allocation3 + $0x5e0] sm:$0xff]
    %v253 = vld [vmem:[#allocation3 + $0x5e8] sm:$0xff]
    %v254 = vld [vmem:[#allocation3 + $0x5f0] sm:$0xff]
    %v255 = vld [vmem:[#allocation3 + $0x5f8] sm:$0xff]
    %v256 = vld [vmem:[#allocation3 + $0x600] sm:$0xff]
    %v257 = vld [vmem:[#allocation3 + $0x608] sm:$0xff]
    %v258 = vld [vmem:[#allocation3 + $0x610] sm:$0xff]
    %v259 = vld [vmem:[#allocation3 + $0x618] sm:$0xff]
    %v260 = vld [vmem:[#allocation3 + $0x620] sm:$0xff]
    %v261 = vld [vmem:[#allocation3 + $0x628] sm:$0xff]
    %v262 = vld [vmem:[#allocation3 + $0x630] sm:$0xff]
    %v263 = vld [vmem:[#allocation3 + $0x638] sm:$0xff]
    %v264 = vld [vmem:[#allocation3 + $0x640] sm:$0xff]
    %v265 = vld [vmem:[#allocation3 + $0x648] sm:$0xff]
    %v266 = vld [vmem:[#allocation3 + $0x650] sm:$0xff]
    %v267 = vld [vmem:[#allocation3 + $0x658] sm:$0xff]
    %v268 = vld [vmem:[#allocation3 + $0x660] sm:$0xff]
    %v269 = vld [vmem:[#allocation3 + $0x668] sm:$0xff]
    %v270 = vld [vmem:[#allocation3 + $0x670] sm:$0xff]
    %v271 = vld [vmem:[#allocation3 + $0x678] sm:$0xff]
    %v272 = vld [vmem:[#allocation3 + $0x680] sm:$0xff]
    %v273 = vld [vmem:[#allocation3 + $0x688] sm:$0xff]
    %v274 = vld [vmem:[#allocation3 + $0x690] sm:$0xff]
    %v275 = vld [vmem:[#allocation3 + $0x698] sm:$0xff]
    %v276 = vld [vmem:[#allocation3 + $0x6a0] sm:$0xff]
    %v277 = vld [vmem:[#allocation3 + $0x6a8] sm:$0xff]
    %v278 = vld [vmem:[#allocation3 + $0x6b0] sm:$0xff]
    %v279 = vld [vmem:[#allocation3 + $0x6b8] sm:$0xff]
    %v280 = vld [vmem:[#allocation3 + $0x6c0] sm:$0xff]
    %v281 = vld [vmem:[#allocation3 + $0x6c8] sm:$0xff]
    %v282 = vld [vmem:[#allocation3 + $0x6d0] sm:$0xff]
    %v283 = vld [vmem:[#allocation3 + $0x6d8] sm:$0xff]
    %v284 = vld [vmem:[#allocation3 + $0x6e0] sm:$0xff]
    %v285 = vld [vmem:[#allocation3 + $0x6e8] sm:$0xff]
    %v286 = vld [vmem:[#allocation3 + $0x6f0] sm:$0xff]
    %v287 = vld [vmem:[#allocation3 + $0x6f8] sm:$0xff]
    %v288 = vld [vmem:[#allocation3 + $0x700] sm:$0xff]
    %v289 = vld [vmem:[#allocation3 + $0x708] sm:$0xff]
    %v290 = vld [vmem:[#allocation3 + $0x710] sm:$0xff]
    %v291 = vld [vmem:[#allocation3 + $0x718] sm:$0xff]
    %v292 = vld [vmem:[#allocation3 + $0x720] sm:$0xff]
    %v293 = vld [vmem:[#allocation3 + $0x728] sm:$0xff]
    %v294 = vld [vmem:[#allocation3 + $0x730] sm:$0xff]
    %v295 = vld [vmem:[#allocation3 + $0x738] sm:$0xff]
    %v296 = vld [vmem:[#allocation3 + $0x740] sm:$0xff]
    %v297 = vld [vmem:[#allocation3 + $0x748] sm:$0xff]
    %v298 = vld [vmem:[#allocation3 + $0x750] sm:$0xff]
    %v299 = vld [vmem:[#allocation3 + $0x758] sm:$0xff]
    %v300 = vld [vmem:[#allocation3 + $0x760] sm:$0xff]
    %v301 = vld [vmem:[#allocation3 + $0x768] sm:$0xff]
    %v302 = vld [vmem:[#allocation3 + $0x770] sm:$0xff]
    %v303 = vld [vmem:[#allocation3 + $0x778] sm:$0xff]
    %v304 = vld [vmem:[#allocation3 + $0x780] sm:$0xff]
    %v305 = vld [vmem:[#allocation3 + $0x788] sm:$0xff]
    %v306 = vld [vmem:[#allocation3 + $0x790] sm:$0xff]
    %v307 = vld [vmem:[#allocation3 + $0x798] sm:$0xff]
    %v308 = vld [vmem:[#allocation3 + $0x7a0] sm:$0xff]
    %v309 = vld [vmem:[#allocation3 + $0x7a8] sm:$0xff]
    %v310 = vld [vmem:[#allocation3 + $0x7b0] sm:$0xff]
    %v311 = vld [vmem:[#allocation3 + $0x7b8] sm:$0xff]
    %v312 = vld [vmem:[#allocation3 + $0x7c0] sm:$0xff]
    %v313 = vld [vmem:[#allocation3 + $0x7c8] sm:$0xff]
    %v314 = vld [vmem:[#allocation3 + $0x7d0] sm:$0xff]
    %v315 = vld [vmem:[#allocation3 + $0x7d8] sm:$0xff]
    %v316 = vld [vmem:[#allocation3 + $0x7e0] sm:$0xff]
    %v317 = vld [vmem:[#allocation3 + $0x7e8] sm:$0xff]
    %v318 = vld [vmem:[#allocation3 + $0x7f0] sm:$0xff]
    %v319 = vld [vmem:[#allocation3 + $0x7f8] sm:$0xff]
    %v320 = vld [vmem:[#allocation5] sm:$0xff]
    %v321 = vld [vmem:[#allocation5 + $0x8] sm:$0xff]
    %v322 = vld [vmem:[#allocation5 + $0x10] sm:$0xff]
    %v323 = vld [vmem:[#allocation5 + $0x18] sm:$0xff]
    %v324 = vld [vmem:[#allocation5 + $0x20] sm:$0xff]
    %v325 = vld [vmem:[#allocation5 + $0x28] sm:$0xff]
    %v326 = vld [vmem:[#allocation5 + $0x30] sm:$0xff]
    %v327 = vld [vmem:[#allocation5 + $0x38] sm:$0xff]
    %v328 = vld [vmem:[#allocation5 + $0x40] sm:$0xff]
    %v329 = vld [vmem:[#allocation5 + $0x48] sm:$0xff]
    %v330 = vld [vmem:[#allocation5 + $0x50] sm:$0xff]
    %v331 = vld [vmem:[#allocation5 + $0x58] sm:$0xff]
    %v332 = vld [vmem:[#allocation5 + $0x60] sm:$0xff]
    %v333 = vld [vmem:[#allocation5 + $0x68] sm:$0xff]
    %v334 = vld [vmem:[#allocation5 + $0x70] sm:$0xff]
    %v335 = vld [vmem:[#allocation5 + $0x78] sm:$0xff]
    %v336 = vld [vmem:[#allocation5 + $0x80] sm:$0xff]
    %v337 = vld [vmem:[#allocation5 + $0x88] sm:$0xff]
    %v338 = vld [vmem:[#allocation5 + $0x90] sm:$0xff]
    %v339 = vld [vmem:[#allocation5 + $0x98] sm:$0xff]
    %v340 = vld [vmem:[#allocation5 + $0xa0] sm:$0xff]
    %v341 = vld [vmem:[#allocation5 + $0xa8] sm:$0xff]
    %v342 = vld [vmem:[#allocation5 + $0xb0] sm:$0xff]
    %v343 = vld [vmem:[#allocation5 + $0xb8] sm:$0xff]
    %v344 = vld [vmem:[#allocation5 + $0xc0] sm:$0xff]
    %v345 = vld [vmem:[#allocation5 + $0xc8] sm:$0xff]
    %v346 = vld [vmem:[#allocation5 + $0xd0] sm:$0xff]
    %v347 = vld [vmem:[#allocation5 + $0xd8] sm:$0xff]
    %v348 = vld [vmem:[#allocation5 + $0xe0] sm:$0xff]
    %v349 = vld [vmem:[#allocation5 + $0xe8] sm:$0xff]
    %v350 = vld [vmem:[#allocation5 + $0xf0] sm:$0xff]
    %v351 = vld [vmem:[#allocation5 + $0xf8] sm:$0xff]
    %v352 = vld [vmem:[#allocation5 + $0x100] sm:$0xff]
    %v353 = vld [vmem:[#allocation5 + $0x108] sm:$0xff]
    %v354 = vld [vmem:[#allocation5 + $0x110] sm:$0xff]
    %v355 = vld [vmem:[#allocation5 + $0x118] sm:$0xff]
    %v356 = vld [vmem:[#allocation5 + $0x120] sm:$0xff]
    %v357 = vld [vmem:[#allocation5 + $0x128] sm:$0xff]
    %v358 = vld [vmem:[#allocation5 + $0x130] sm:$0xff]
    %v359 = vld [vmem:[#allocation5 + $0x138] sm:$0xff]
    %v360 = vld [vmem:[#allocation5 + $0x140] sm:$0xff]
    %v361 = vld [vmem:[#allocation5 + $0x148] sm:$0xff]
    %v362 = vld [vmem:[#allocation5 + $0x150] sm:$0xff]
    %v363 = vld [vmem:[#allocation5 + $0x158] sm:$0xff]
    %v364 = vld [vmem:[#allocation5 + $0x160] sm:$0xff]
    %v365 = vld [vmem:[#allocation5 + $0x168] sm:$0xff]
    %v366 = vld [vmem:[#allocation5 + $0x170] sm:$0xff]
    %v367 = vld [vmem:[#allocation5 + $0x178] sm:$0xff]
    %v368 = vld [vmem:[#allocation5 + $0x180] sm:$0xff]
    %v369 = vld [vmem:[#allocation5 + $0x188] sm:$0xff]
    %v370 = vld [vmem:[#allocation5 + $0x190] sm:$0xff]
    %v371 = vld [vmem:[#allocation5 + $0x198] sm:$0xff]
    %v372 = vld [vmem:[#allocation5 + $0x1a0] sm:$0xff]
    %v373 = vld [vmem:[#allocation5 + $0x1a8] sm:$0xff]
    %v374 = vld [vmem:[#allocation5 + $0x1b0] sm:$0xff]
    %v375 = vld [vmem:[#allocation5 + $0x1b8] sm:$0xff]
    %v376 = vld [vmem:[#allocation5 + $0x1c0] sm:$0xff]
    %v377 = vld [vmem:[#allocation5 + $0x1c8] sm:$0xff]
    %v378 = vld [vmem:[#allocation5 + $0x1d0] sm:$0xff]
    %v379 = vld [vmem:[#allocation5 + $0x1d8] sm:$0xff]
    %v380 = vld [vmem:[#allocation5 + $0x1e0] sm:$0xff]
    %v381 = vld [vmem:[#allocation5 + $0x1e8] sm:$0xff]
    %v382 = vld [vmem:[#allocation5 + $0x1f0] sm:$0xff]
    %v383 = vld [vmem:[#allocation5 + $0x1f8] sm:$0xff]
    %v384 = vld [vmem:[#allocation5 + $0x200] sm:$0xff]
    %v385 = vld [vmem:[#allocation5 + $0x208] sm:$0xff]
    %v386 = vld [vmem:[#allocation5 + $0x210] sm:$0xff]
    %v387 = vld [vmem:[#allocation5 + $0x218] sm:$0xff]
    %v388 = vld [vmem:[#allocation5 + $0x220] sm:$0xff]
    %v389 = vld [vmem:[#allocation5 + $0x228] sm:$0xff]
    %v390 = vld [vmem:[#allocation5 + $0x230] sm:$0xff]
    %v391 = vld [vmem:[#allocation5 + $0x238] sm:$0xff]
    %v392 = vld [vmem:[#allocation5 + $0x240] sm:$0xff]
    %v393 = vld [vmem:[#allocation5 + $0x248] sm:$0xff]
    %v394 = vld [vmem:[#allocation5 + $0x250] sm:$0xff]
    %v395 = vld [vmem:[#allocation5 + $0x258] sm:$0xff]
    %v396 = vld [vmem:[#allocation5 + $0x260] sm:$0xff]
    %v397 = vld [vmem:[#allocation5 + $0x268] sm:$0xff]
    %v398 = vld [vmem:[#allocation5 + $0x270] sm:$0xff]
    %v399 = vld [vmem:[#allocation5 + $0x278] sm:$0xff]
    %v400 = vld [vmem:[#allocation5 + $0x280] sm:$0xff]
    %v401 = vld [vmem:[#allocation5 + $0x288] sm:$0xff]
    %v402 = vld [vmem:[#allocation5 + $0x290] sm:$0xff]
    %v403 = vld [vmem:[#allocation5 + $0x298] sm:$0xff]
    %v404 = vld [vmem:[#allocation5 + $0x2a0] sm:$0xff]
    %v405 = vld [vmem:[#allocation5 + $0x2a8] sm:$0xff]
    %v406 = vld [vmem:[#allocation5 + $0x2b0] sm:$0xff]
    %v407 = vld [vmem:[#allocation5 + $0x2b8] sm:$0xff]
    %v408 = vld [vmem:[#allocation5 + $0x2c0] sm:$0xff]
    %v409 = vld [vmem:[#allocation5 + $0x2c8] sm:$0xff]
    %v410 = vld [vmem:[#allocation5 + $0x2d0] sm:$0xff]
    %v411 = vld [vmem:[#allocation5 + $0x2d8] sm:$0xff]
    %v412 = vld [vmem:[#allocation5 + $0x2e0] sm:$0xff]
    %v413 = vld [vmem:[#allocation5 + $0x2e8] sm:$0xff]
    %v414 = vld [vmem:[#allocation5 + $0x2f0] sm:$0xff]
    %v415 = vld [vmem:[#allocation5 + $0x2f8] sm:$0xff]
    %v416 = vld [vmem:[#allocation5 + $0x300] sm:$0xff]
    %v417 = vld [vmem:[#allocation5 + $0x308] sm:$0xff]
    %v418 = vld [vmem:[#allocation5 + $0x310] sm:$0xff]
    %v419 = vld [vmem:[#allocation5 + $0x318] sm:$0xff]
    %v420 = vld [vmem:[#allocation5 + $0x320] sm:$0xff]
    %v421 = vld [vmem:[#allocation5 + $0x328] sm:$0xff]
    %v422 = vld [vmem:[#allocation5 + $0x330] sm:$0xff]
    %v423 = vld [vmem:[#allocation5 + $0x338] sm:$0xff]
    %v424 = vld [vmem:[#allocation5 + $0x340] sm:$0xff]
    %v425 = vld [vmem:[#allocation5 + $0x348] sm:$0xff]
    %v426 = vld [vmem:[#allocation5 + $0x350] sm:$0xff]
    %v427 = vld [vmem:[#allocation5 + $0x358] sm:$0xff]
    %v428 = vld [vmem:[#allocation5 + $0x360] sm:$0xff]
    %v429 = vld [vmem:[#allocation5 + $0x368] sm:$0xff]
    %v430 = vld [vmem:[#allocation5 + $0x370] sm:$0xff]
    %v431 = vld [vmem:[#allocation5 + $0x378] sm:$0xff]
    %v432 = vld [vmem:[#allocation5 + $0x380] sm:$0xff]
    %v433 = vld [vmem:[#allocation5 + $0x388] sm:$0xff]
    %v434 = vld [vmem:[#allocation5 + $0x390] sm:$0xff]
    %v435 = vld [vmem:[#allocation5 + $0x398] sm:$0xff]
    %v436 = vld [vmem:[#allocation5 + $0x3a0] sm:$0xff]
    %v437 = vld [vmem:[#allocation5 + $0x3a8] sm:$0xff]
    %v438 = vld [vmem:[#allocation5 + $0x3b0] sm:$0xff]
    %v439 = vld [vmem:[#allocation5 + $0x3b8] sm:$0xff]
    %v440 = vld [vmem:[#allocation5 + $0x3c0] sm:$0xff]
    %v441 = vld [vmem:[#allocation5 + $0x3c8] sm:$0xff]
    %v442 = vld [vmem:[#allocation5 + $0x3d0] sm:$0xff]
    %v443 = vld [vmem:[#allocation5 + $0x3d8] sm:$0xff]
    %v444 = vld [vmem:[#allocation5 + $0x3e0] sm:$0xff]
    %v445 = vld [vmem:[#allocation5 + $0x3e8] sm:$0xff]
    %v446 = vld [vmem:[#allocation5 + $0x3f0] sm:$0xff]
    %v447 = vld [vmem:[#allocation5 + $0x3f8] sm:$0xff]
    %v448 = vld [vmem:[#allocation5 + $0x400] sm:$0xff]
    %v449 = vld [vmem:[#allocation5 + $0x408] sm:$0xff]
    %v450 = vld [vmem:[#allocation5 + $0x410] sm:$0xff]
    %v451 = vld [vmem:[#allocation5 + $0x418] sm:$0xff]
    %v452 = vld [vmem:[#allocation5 + $0x420] sm:$0xff]
    %v453 = vld [vmem:[#allocation5 + $0x428] sm:$0xff]
    %v454 = vld [vmem:[#allocation5 + $0x430] sm:$0xff]
    %v455 = vld [vmem:[#allocation5 + $0x438] sm:$0xff]
    %v456 = vld [vmem:[#allocation5 + $0x440] sm:$0xff]
    %v457 = vld [vmem:[#allocation5 + $0x448] sm:$0xff]
    %v458 = vld [vmem:[#allocation5 + $0x450] sm:$0xff]
    %v459 = vld [vmem:[#allocation5 + $0x458] sm:$0xff]
    %v460 = vld [vmem:[#allocation5 + $0x460] sm:$0xff]
    %v461 = vld [vmem:[#allocation5 + $0x468] sm:$0xff]
    %v462 = vld [vmem:[#allocation5 + $0x470] sm:$0xff]
    %v463 = vld [vmem:[#allocation5 + $0x478] sm:$0xff]
    %v464 = vld [vmem:[#allocation5 + $0x480] sm:$0xff]
    %v465 = vld [vmem:[#allocation5 + $0x488] sm:$0xff]
    %v466 = vld [vmem:[#allocation5 + $0x490] sm:$0xff]
    %v467 = vld [vmem:[#allocation5 + $0x498] sm:$0xff]
    %v468 = vld [vmem:[#allocation5 + $0x4a0] sm:$0xff]
    %v469 = vld [vmem:[#allocation5 + $0x4a8] sm:$0xff]
    %v470 = vld [vmem:[#allocation5 + $0x4b0] sm:$0xff]
    %v471 = vld [vmem:[#allocation5 + $0x4b8] sm:$0xff]
    %v472 = vld [vmem:[#allocation5 + $0x4c0] sm:$0xff]
    %v473 = vld [vmem:[#allocation5 + $0x4c8] sm:$0xff]
    %v474 = vld [vmem:[#allocation5 + $0x4d0] sm:$0xff]
    %v475 = vld [vmem:[#allocation5 + $0x4d8] sm:$0xff]
    %v476 = vld [vmem:[#allocation5 + $0x4e0] sm:$0xff]
    %v477 = vld [vmem:[#allocation5 + $0x4e8] sm:$0xff]
    %v478 = vld [vmem:[#allocation5 + $0x4f0] sm:$0xff]
    %v479 = vld [vmem:[#allocation5 + $0x4f8] sm:$0xff]
    %v480 = vld [vmem:[#allocation5 + $0x500] sm:$0xff]
    %v481 = vld [vmem:[#allocation5 + $0x508] sm:$0xff]
    %v482 = vld [vmem:[#allocation5 + $0x510] sm:$0xff]
    %v483 = vld [vmem:[#allocation5 + $0x518] sm:$0xff]
    %v484 = vld [vmem:[#allocation5 + $0x520] sm:$0xff]
    %v485 = vld [vmem:[#allocation5 + $0x528] sm:$0xff]
    %v486 = vld [vmem:[#allocation5 + $0x530] sm:$0xff]
    %v487 = vld [vmem:[#allocation5 + $0x538] sm:$0xff]
    %v488 = vld [vmem:[#allocation5 + $0x540] sm:$0xff]
    %v489 = vld [vmem:[#allocation5 + $0x548] sm:$0xff]
    %v490 = vld [vmem:[#allocation5 + $0x550] sm:$0xff]
    %v491 = vld [vmem:[#allocation5 + $0x558] sm:$0xff]
    %v492 = vld [vmem:[#allocation5 + $0x560] sm:$0xff]
    %v493 = vld [vmem:[#allocation5 + $0x568] sm:$0xff]
    %v494 = vld [vmem:[#allocation5 + $0x570] sm:$0xff]
    %v495 = vld [vmem:[#allocation5 + $0x578] sm:$0xff]
    %v496 = vld [vmem:[#allocation5 + $0x580] sm:$0xff]
    %v497 = vld [vmem:[#allocation5 + $0x588] sm:$0xff]
    %v498 = vld [vmem:[#allocation5 + $0x590] sm:$0xff]
    %v499 = vld [vmem:[#allocation5 + $0x598] sm:$0xff]
    %v500 = vld [vmem:[#allocation5 + $0x5a0] sm:$0xff]
    %v501 = vld [vmem:[#allocation5 + $0x5a8] sm:$0xff]
    %v502 = vld [vmem:[#allocation5 + $0x5b0] sm:$0xff]
    %v503 = vld [vmem:[#allocation5 + $0x5b8] sm:$0xff]
    %v504 = vld [vmem:[#allocation5 + $0x5c0] sm:$0xff]
    %v505 = vld [vmem:[#allocation5 + $0x5c8] sm:$0xff]
    %v506 = vld [vmem:[#allocation5 + $0x5d0] sm:$0xff]
    %v507 = vld [vmem:[#allocation5 + $0x5d8] sm:$0xff]
    %v508 = vld [vmem:[#allocation5 + $0x5e0] sm:$0xff]
    %v509 = vld [vmem:[#allocation5 + $0x5e8] sm:$0xff]
    %v510 = vld [vmem:[#allocation5 + $0x5f0] sm:$0xff]
    %v511 = vld [vmem:[#allocation5 + $0x5f8] sm:$0xff]
    %v512 = vld [vmem:[%s5] sm:$0x3f]
    %513 = vmatprep.subr.mxu0 %v65
    %514 = vmatpush1.msra.mxu0 %v64
    %515 = vmatprep.subr.mxu0 %v73
    %516 = vmatpush1.msra.mxu0 %v72
    %517 = vmatprep.subr.mxu0 %v81
    %518 = vmatpush1.msra.mxu0 %v80
    %519 = vmatprep.subr.mxu0 %v89
    %520 = vmatpush1.msra.mxu0 %v88
    %521 = vmatprep.subr.mxu0 %v97
    %522 = vmatpush1.msra.mxu0 %v96
    %523 = vmatprep.subr.mxu0 %v105
    %524 = vmatpush1.msra.mxu0 %v104
    %525 = vmatprep.subr.mxu0 %v113
    %526 = vmatpush1.msra.mxu0 %v112
    %527 = vmatprep.subr.mxu0 %v121
    %528 = vmatpush1.msra.mxu0 %v120
    %529 = vmatprep.subr.mxu0 %v129
    %530 = vmatpush1.msra.mxu0 %v128
    %531 = vmatprep.subr.mxu0 %v137
    %532 = vmatpush1.msra.mxu0 %v136
    %533 = vmatprep.subr.mxu0 %v145
    %534 = vmatpush1.msra.mxu0 %v144
    %535 = vmatprep.subr.mxu0 %v153
    %536 = vmatpush1.msra.mxu0 %v152
    %537 = vmatprep.subr.mxu0 %v161
    %538 = vmatpush1.msra.mxu0 %v160
    %539 = vmatprep.subr.mxu0 %v169
    %540 = vmatpush1.msra.mxu0 %v168
    %541 = vmatprep.subr.mxu0 %v177
    %542 = vmatpush1.msra.mxu0 %v176
    %543 = vmatprep.subr.mxu0 %v185
    %544 = vmatpush1.msra.mxu0 %v184
    %545 = vmatprep.subr.mxu0 %v193
    %546 = vmatpush1.msra.mxu0 %v192
    %547 = vmatprep.subr.mxu0 %v201
    %548 = vmatpush1.msra.mxu0 %v200
    %549 = vmatprep.subr.mxu0 %v209
    %550 = vmatpush1.msra.mxu0 %v208
    %551 = vmatprep.subr.mxu0 %v217
    %552 = vmatpush1.msra.mxu0 %v216
    %553 = vmatprep.subr.mxu0 %v225
    %554 = vmatpush1.msra.mxu0 %v224
    %555 = vmatprep.subr.mxu0 %v233
    %556 = vmatpush1.msra.mxu0 %v232
    %557 = vmatprep.subr.mxu0 %v241
    %558 = vmatpush1.msra.mxu0 %v240
    %559 = vmatprep.subr.mxu0 %v249
    %560 = vmatpush1.msra.mxu0 %v248
    %561 = vmatprep.subr.mxu0 %v257
    %562 = vmatpush1.msra.mxu0 %v256
    %563 = vmatprep.subr.mxu0 %v265
    %564 = vmatpush1.msra.mxu0 %v264
    %565 = vmatprep.subr.mxu0 %v273
    %566 = vmatpush1.msra.mxu0 %v272
    %567 = vmatprep.subr.mxu0 %v281
    %568 = vmatpush1.msra.mxu0 %v280
    %569 = vmatprep.subr.mxu0 %v289
    %570 = vmatpush1.msra.mxu0 %v288
    %571 = vmatprep.subr.mxu0 %v297
    %572 = vmatpush1.msra.mxu0 %v296
    %573 = vmatprep.subr.mxu0 %v305
    %574 = vmatpush1.msra.mxu0 %v304
    %575 = vmatprep.subr.mxu0 %v313
    %576 = vmatpush1.msra.mxu0 %v312
    %577 = vmatprep.mubr.f32.mxu0 0.0
    %578 = vmatmul.mubr.f32.gmra.mrb[0].mxu0 0.0
    %v579 = vpop.f32.mrb[0].mxu0
    %v580 = vadd.f32 0.0, %v579
    %v581 = vpop.f32.mrb[0].mxu0
    %v582 = vadd.f32 0.0, %v581
    %583 = vdwg.mxu0
    %584 = vmatprep.subr.mxu0 %v67
    %585 = vmatpush1.msra.mxu0 %v66
    %586 = vmatprep.subr.mxu0 %v75
    %587 = vmatpush1.msra.mxu0 %v74
    %588 = vmatprep.subr.mxu0 %v83
    %589 = vmatpush1.msra.mxu0 %v82
    %590 = vmatprep.subr.mxu0 %v91
    %591 = vmatpush1.msra.mxu0 %v90
    %592 = vmatprep.subr.mxu0 %v99
    %593 = vmatpush1.msra.mxu0 %v98
    %594 = vmatprep.subr.mxu0 %v107
    %595 = vmatpush1.msra.mxu0 %v106
    %596 = vmatprep.subr.mxu0 %v115
    %597 = vmatpush1.msra.mxu0 %v114
    %598 = vmatprep.subr.mxu0 %v123
    %599 = vmatpush1.msra.mxu0 %v122
    %600 = vmatprep.subr.mxu0 %v131
    %601 = vmatpush1.msra.mxu0 %v130
    %602 = vmatprep.subr.mxu0 %v139
    %603 = vmatpush1.msra.mxu0 %v138
    %604 = vmatprep.subr.mxu0 %v147
    %605 = vmatpush1.msra.mxu0 %v146
    %606 = vmatprep.subr.mxu0 %v155
    %607 = vmatpush1.msra.mxu0 %v154
    %608 = vmatprep.subr.mxu0 %v163
    %609 = vmatpush1.msra.mxu0 %v162
    %610 = vmatprep.subr.mxu0 %v171
    %611 = vmatpush1.msra.mxu0 %v170
    %612 = vmatprep.subr.mxu0 %v179
    %613 = vmatpush1.msra.mxu0 %v178
    %614 = vmatprep.subr.mxu0 %v187
    %615 = vmatpush1.msra.mxu0 %v186
    %616 = vmatprep.subr.mxu0 %v195
    %617 = vmatpush1.msra.mxu0 %v194
    %618 = vmatprep.subr.mxu0 %v203
    %619 = vmatpush1.msra.mxu0 %v202
    %620 = vmatprep.subr.mxu0 %v211
    %621 = vmatpush1.msra.mxu0 %v210
    %622 = vmatprep.subr.mxu0 %v219
    %623 = vmatpush1.msra.mxu0 %v218
    %624 = vmatprep.subr.mxu0 %v227
    %625 = vmatpush1.msra.mxu0 %v226
    %626 = vmatprep.subr.mxu0 %v235
    %627 = vmatpush1.msra.mxu0 %v234
    %628 = vmatprep.subr.mxu0 %v243
    %629 = vmatpush1.msra.mxu0 %v242
    %630 = vmatprep.subr.mxu0 %v251
    %631 = vmatpush1.msra.mxu0 %v250
    %632 = vmatprep.subr.mxu0 %v259
    %633 = vmatpush1.msra.mxu0 %v258
    %634 = vmatprep.subr.mxu0 %v267
    %635 = vmatpush1.msra.mxu0 %v266
    %636 = vmatprep.subr.mxu0 %v275
    %637 = vmatpush1.msra.mxu0 %v274
    %638 = vmatprep.subr.mxu0 %v283
    %639 = vmatpush1.msra.mxu0 %v282
    %640 = vmatprep.subr.mxu0 %v291
    %641 = vmatpush1.msra.mxu0 %v290
    %642 = vmatprep.subr.mxu0 %v299
    %643 = vmatpush1.msra.mxu0 %v298
    %644 = vmatprep.subr.mxu0 %v307
    %645 = vmatpush1.msra.mxu0 %v306
    %646 = vmatprep.subr.mxu0 %v315
    %647 = vmatpush1.msra.mxu0 %v314
    %648 = vmatprep.mubr.f32.mxu0 0.0
    %649 = vmatmul.mubr.f32.gmra.mrb[0].mxu0 0.0
    %v650 = vpop.f32.mrb[0].mxu0
    %v651 = vadd.f32 0.0, %v650
    %v652 = vpop.f32.mrb[0].mxu0
    %v653 = vadd.f32 0.0, %v652
    %654 = vdwg.mxu0
    %655 = vmatprep.subr.mxu0 %v69
    %656 = vmatpush1.msra.mxu0 %v68
    %657 = vmatprep.subr.mxu0 %v77
    %658 = vmatpush1.msra.mxu0 %v76
    %659 = vmatprep.subr.mxu0 %v85
    %660 = vmatpush1.msra.mxu0 %v84
    %661 = vmatprep.subr.mxu0 %v93
    %662 = vmatpush1.msra.mxu0 %v92
    %663 = vmatprep.subr.mxu0 %v101
    %664 = vmatpush1.msra.mxu0 %v100
    %665 = vmatprep.subr.mxu0 %v109
    %666 = vmatpush1.msra.mxu0 %v108
    %667 = vmatprep.subr.mxu0 %v117
    %668 = vmatpush1.msra.mxu0 %v116
    %669 = vmatprep.subr.mxu0 %v125
    %670 = vmatpush1.msra.mxu0 %v124
    %671 = vmatprep.subr.mxu0 %v133
    %672 = vmatpush1.msra.mxu0 %v132
    %673 = vmatprep.subr.mxu0 %v141
    %674 = vmatpush1.msra.mxu0 %v140
    %675 = vmatprep.subr.mxu0 %v149
    %676 = vmatpush1.msra.mxu0 %v148
    %677 = vmatprep.subr.mxu0 %v157
    %678 = vmatpush1.msra.mxu0 %v156
    %679 = vmatprep.subr.mxu0 %v165
    %680 = vmatpush1.msra.mxu0 %v164
    %681 = vmatprep.subr.mxu0 %v173
    %682 = vmatpush1.msra.mxu0 %v172
    %683 = vmatprep.subr.mxu0 %v181
    %684 = vmatpush1.msra.mxu0 %v180
    %685 = vmatprep.subr.mxu0 %v189
    %686 = vmatpush1.msra.mxu0 %v188
    %687 = vmatprep.subr.mxu0 %v197
    %688 = vmatpush1.msra.mxu0 %v196
    %689 = vmatprep.subr.mxu0 %v205
    %690 = vmatpush1.msra.mxu0 %v204
    %691 = vmatprep.subr.mxu0 %v213
    %692 = vmatpush1.msra.mxu0 %v212
    %693 = vmatprep.subr.mxu0 %v221
    %694 = vmatpush1.msra.mxu0 %v220
    %695 = vmatprep.subr.mxu0 %v229
    %696 = vmatpush1.msra.mxu0 %v228
    %697 = vmatprep.subr.mxu0 %v237
    %698 = vmatpush1.msra.mxu0 %v236
    %699 = vmatprep.subr.mxu0 %v245
    %700 = vmatpush1.msra.mxu0 %v244
    %701 = vmatprep.subr.mxu0 %v253
    %702 = vmatpush1.msra.mxu0 %v252
    %703 = vmatprep.subr.mxu0 %v261
    %704 = vmatpush1.msra.mxu0 %v260
    %705 = vmatprep.subr.mxu0 %v269
    %706 = vmatpush1.msra.mxu0 %v268
    %707 = vmatprep.subr.mxu0 %v277
    %708 = vmatpush1.msra.mxu0 %v276
    %709 = vmatprep.subr.mxu0 %v285
    %710 = vmatpush1.msra.mxu0 %v284
    %711 = vmatprep.subr.mxu0 %v293
    %712 = vmatpush1.msra.mxu0 %v292
    %713 = vmatprep.subr.mxu0 %v301
    %714 = vmatpush1.msra.mxu0 %v300
    %715 = vmatprep.subr.mxu0 %v309
    %716 = vmatpush1.msra.mxu0 %v308
    %717 = vmatprep.subr.mxu0 %v317
    %718 = vmatpush1.msra.mxu0 %v316
    %719 = vmatprep.mubr.f32.mxu0 0.0
    %720 = vmatmul.mubr.f32.gmra.mrb[0].mxu0 0.0
    %v721 = vpop.f32.mrb[0].mxu0
    %v722 = vadd.f32 0.0, %v721
    %v723 = vpop.f32.mrb[0].mxu0
    %v724 = vadd.f32 0.0, %v723
    %725 = vdwg.mxu0
    %726 = vmatprep.subr.mxu0 %v71
    %727 = vmatpush1.msra.mxu0 %v70
    %728 = vmatprep.subr.mxu0 %v79
    %729 = vmatpush1.msra.mxu0 %v78
    %730 = vmatprep.subr.mxu0 %v87
    %731 = vmatpush1.msra.mxu0 %v86
    %732 = vmatprep.subr.mxu0 %v95
    %733 = vmatpush1.msra.mxu0 %v94
    %734 = vmatprep.subr.mxu0 %v103
    %735 = vmatpush1.msra.mxu0 %v102
    %736 = vmatprep.subr.mxu0 %v111
    %737 = vmatpush1.msra.mxu0 %v110
    %738 = vmatprep.subr.mxu0 %v119
    %739 = vmatpush1.msra.mxu0 %v118
    %740 = vmatprep.subr.mxu0 %v127
    %741 = vmatpush1.msra.mxu0 %v126
    %742 = vmatprep.subr.mxu0 %v135
    %743 = vmatpush1.msra.mxu0 %v134
    %744 = vmatprep.subr.mxu0 %v143
    %745 = vmatpush1.msra.mxu0 %v142
    %746 = vmatprep.subr.mxu0 %v151
    %747 = vmatpush1.msra.mxu0 %v150
    %748 = vmatprep.subr.mxu0 %v159
    %749 = vmatpush1.msra.mxu0 %v158
    %750 = vmatprep.subr.mxu0 %v167
    %751 = vmatpush1.msra.mxu0 %v166
    %752 = vmatprep.subr.mxu0 %v175
    %753 = vmatpush1.msra.mxu0 %v174
    %754 = vmatprep.subr.mxu0 %v183
    %755 = vmatpush1.msra.mxu0 %v182
    %756 = vmatprep.subr.mxu0 %v191
    %757 = vmatpush1.msra.mxu0 %v190
    %758 = vmatprep.subr.mxu0 %v199
    %759 = vmatpush1.msra.mxu0 %v198
    %760 = vmatprep.subr.mxu0 %v207
    %761 = vmatpush1.msra.mxu0 %v206
    %762 = vmatprep.subr.mxu0 %v215
    %763 = vmatpush1.msra.mxu0 %v214
    %764 = vmatprep.subr.mxu0 %v223
    %765 = vmatpush1.msra.mxu0 %v222
    %766 = vmatprep.subr.mxu0 %v231
    %767 = vmatpush1.msra.mxu0 %v230
    %768 = vmatprep.subr.mxu0 %v239
    %769 = vmatpush1.msra.mxu0 %v238
    %770 = vmatprep.subr.mxu0 %v247
    %771 = vmatpush1.msra.mxu0 %v246
    %772 = vmatprep.subr.mxu0 %v255
    %773 = vmatpush1.msra.mxu0 %v254
    %774 = vmatprep.subr.mxu0 %v263
    %775 = vmatpush1.msra.mxu0 %v262
    %776 = vmatprep.subr.mxu0 %v271
    %777 = vmatpush1.msra.mxu0 %v270
    %778 = vmatprep.subr.mxu0 %v279
    %779 = vmatpush1.msra.mxu0 %v278
    %780 = vmatprep.subr.mxu0 %v287
    %781 = vmatpush1.msra.mxu0 %v286
    %782 = vmatprep.subr.mxu0 %v295
    %783 = vmatpush1.msra.mxu0 %v294
    %784 = vmatprep.subr.mxu0 %v303
    %785 = vmatpush1.msra.mxu0 %v302
    %786 = vmatprep.subr.mxu0 %v311
    %787 = vmatpush1.msra.mxu0 %v310
    %788 = vmatprep.subr.mxu0 %v319
    %789 = vmatpush1.msra.mxu0 %v318
    %790 = vmatprep.mubr.f32.mxu0 0.0
    %791 = vmatmul.mubr.f32.gmra.mrb[0].mxu0 0.0
    %v792 = vpop.f32.mrb[0].mxu0
    %v793 = vadd.f32 0.0, %v792
    %v794 = vpop.f32.mrb[0].mxu0
    %v795 = vadd.f32 0.0, %v794
    %796 = vdwg.mxu0
    %v799 = vrot.slane %v58, 7
    %vm800 = vcmask 1041409
    %v801 = vsel %vm800, %v799, %v57
    %v806 = vcombine.high %v59, %v59
    %v807 = vcombine.high %v60, %v60
    %v808 = vcombine.high %v61, %v61
    %v809 = vcombine.high %v62, %v62
    %vm810 = vcmask 31744
    %v811 = vsel %vm810, %v801, 0
    %vm813 = vcmask 1043456
    %v814 = vsel %vm813, %v59, 0
    %v816 = vsel %vm813, %v806, 0
    %v818 = vsel %vm813, %v60, 0
    %v820 = vsel %vm813, %v807, 0
    %v822 = vsel %vm813, %v61, 0
    %v824 = vsel %vm813, %v808, 0
    %v826 = vsel %vm813, %v62, 0
    %v828 = vsel %vm813, %v809, 0
    %830 = vmatprep.subr.mxu0 %v816
    %831 = vmatpush1.msra.mxu0 %v814
    %832 = vmatprep.subr.mxu0 0.0
    %833 = vmatpush1.msra.mxu0 0.0
    %834 = vmatprep.subr.mxu0 0.0
    %835 = vmatpush1.msra.mxu0 0.0
    %836 = vmatprep.subr.mxu0 0.0
    %837 = vmatpush1.msra.mxu0 0.0
    %838 = vmatprep.subr.mxu0 0.0
    %839 = vmatpush1.msra.mxu0 0.0
    %840 = vmatprep.subr.mxu0 0.0
    %841 = vmatpush1.msra.mxu0 0.0
    %842 = vmatprep.subr.mxu0 0.0
    %843 = vmatpush1.msra.mxu0 0.0
    %844 = vmatprep.subr.mxu0 0.0
    %845 = vmatpush1.msra.mxu0 0.0
    %846 = vmatprep.subr.mxu0 0.0
    %847 = vmatpush1.msra.mxu0 0.0
    %848 = vmatprep.subr.mxu0 0.0
    %849 = vmatpush1.msra.mxu0 0.0
    %850 = vmatprep.subr.mxu0 0.0
    %851 = vmatpush1.msra.mxu0 0.0
    %852 = vmatprep.subr.mxu0 0.0
    %853 = vmatpush1.msra.mxu0 0.0
    %854 = vmatprep.subr.mxu0 0.0
    %855 = vmatpush1.msra.mxu0 0.0
    %856 = vmatprep.subr.mxu0 0.0
    %857 = vmatpush1.msra.mxu0 0.0
    %858 = vmatprep.subr.mxu0 0.0
    %859 = vmatpush1.msra.mxu0 0.0
    %860 = vmatprep.subr.mxu0 0.0
    %861 = vmatpush1.msra.mxu0 0.0
    %862 = vmatprep.subr.mxu0 0.0
    %863 = vmatpush1.msra.mxu0 0.0
    %864 = vmatprep.subr.mxu0 0.0
    %865 = vmatpush1.msra.mxu0 0.0
    %866 = vmatprep.subr.mxu0 0.0
    %867 = vmatpush1.msra.mxu0 0.0
    %868 = vmatprep.subr.mxu0 0.0
    %869 = vmatpush1.msra.mxu0 0.0
    %870 = vmatprep.subr.mxu0 0.0
    %871 = vmatpush1.msra.mxu0 0.0
    %872 = vmatprep.subr.mxu0 0.0
    %873 = vmatpush1.msra.mxu0 0.0
    %874 = vmatprep.subr.mxu0 0.0
    %875 = vmatpush1.msra.mxu0 0.0
    %876 = vmatprep.subr.mxu0 0.0
    %877 = vmatpush1.msra.mxu0 0.0
    %878 = vmatprep.subr.mxu0 0.0
    %879 = vmatpush1.msra.mxu0 0.0
    %880 = vmatprep.subr.mxu0 0.0
    %881 = vmatpush1.msra.mxu0 0.0
    %882 = vmatprep.subr.mxu0 0.0
    %883 = vmatpush1.msra.mxu0 0.0
    %884 = vmatprep.subr.mxu0 0.0
    %885 = vmatpush1.msra.mxu0 0.0
    %886 = vmatprep.subr.mxu0 0.0
    %887 = vmatpush1.msra.mxu0 0.0
    %888 = vmatprep.subr.mxu0 0.0
    %889 = vmatpush1.msra.mxu0 0.0
    %890 = vmatprep.subr.mxu0 0.0
    %891 = vmatpush1.msra.mxu0 0.0
    %892 = vmatprep.subr.mxu0 0.0
    %893 = vmatpush1.msra.mxu0 0.0
    %894 = vmatprep.mubr.f32.mxu0 0.0
    %895 = vmatmul.mubr.f32.gmra.mrb[0].mxu0 %v811
    %v896 = vpop.f32.mrb[0].mxu0
    %v897 = vadd.f32 %v580, %v896
    %v898 = vpop.f32.mrb[0].mxu0
    %v899 = vadd.f32 %v582, %v898
    %900 = vdwg.mxu0
    %901 = vmatprep.subr.mxu0 %v820
    %902 = vmatpush1.msra.mxu0 %v818
    %903 = vmatprep.subr.mxu0 0.0
    %904 = vmatpush1.msra.mxu0 0.0
    %905 = vmatprep.subr.mxu0 0.0
    %906 = vmatpush1.msra.mxu0 0.0
    %907 = vmatprep.subr.mxu0 0.0
    %908 = vmatpush1.msra.mxu0 0.0
    %909 = vmatprep.subr.mxu0 0.0
    %910 = vmatpush1.msra.mxu0 0.0
    %911 = vmatprep.subr.mxu0 0.0
    %912 = vmatpush1.msra.mxu0 0.0
    %913 = vmatprep.subr.mxu0 0.0
    %914 = vmatpush1.msra.mxu0 0.0
    %915 = vmatprep.subr.mxu0 0.0
    %916 = vmatpush1.msra.mxu0 0.0
    %917 = vmatprep.subr.mxu0 0.0
    %918 = vmatpush1.msra.mxu0 0.0
    %919 = vmatprep.subr.mxu0 0.0
    %920 = vmatpush1.msra.mxu0 0.0
    %921 = vmatprep.subr.mxu0 0.0
    %922 = vmatpush1.msra.mxu0 0.0
    %923 = vmatprep.subr.mxu0 0.0
    %924 = vmatpush1.msra.mxu0 0.0
    %925 = vmatprep.subr.mxu0 0.0
    %926 = vmatpush1.msra.mxu0 0.0
    %927 = vmatprep.subr.mxu0 0.0
    %928 = vmatpush1.msra.mxu0 0.0
    %929 = vmatprep.subr.mxu0 0.0
    %930 = vmatpush1.msra.mxu0 0.0
    %931 = vmatprep.subr.mxu0 0.0
    %932 = vmatpush1.msra.mxu0 0.0
    %933 = vmatprep.subr.mxu0 0.0
    %934 = vmatpush1.msra.mxu0 0.0
    %935 = vmatprep.subr.mxu0 0.0
    %936 = vmatpush1.msra.mxu0 0.0
    %937 = vmatprep.subr.mxu0 0.0
    %938 = vmatpush1.msra.mxu0 0.0
    %939 = vmatprep.subr.mxu0 0.0
    %940 = vmatpush1.msra.mxu0 0.0
    %941 = vmatprep.subr.mxu0 0.0
    %942 = vmatpush1.msra.mxu0 0.0
    %943 = vmatprep.subr.mxu0 0.0
    %944 = vmatpush1.msra.mxu0 0.0
    %945 = vmatprep.subr.mxu0 0.0
    %946 = vmatpush1.msra.mxu0 0.0
    %947 = vmatprep.subr.mxu0 0.0
    %948 = vmatpush1.msra.mxu0 0.0
    %949 = vmatprep.subr.mxu0 0.0
    %950 = vmatpush1.msra.mxu0 0.0
    %951 = vmatprep.subr.mxu0 0.0
    %952 = vmatpush1.msra.mxu0 0.0
    %953 = vmatprep.subr.mxu0 0.0
    %954 = vmatpush1.msra.mxu0 0.0
    %955 = vmatprep.subr.mxu0 0.0
    %956 = vmatpush1.msra.mxu0 0.0
    %957 = vmatprep.subr.mxu0 0.0
    %958 = vmatpush1.msra.mxu0 0.0
    %959 = vmatprep.subr.mxu0 0.0
    %960 = vmatpush1.msra.mxu0 0.0
    %961 = vmatprep.subr.mxu0 0.0
    %962 = vmatpush1.msra.mxu0 0.0
    %963 = vmatprep.subr.mxu0 0.0
    %964 = vmatpush1.msra.mxu0 0.0
    %965 = vmatprep.mubr.f32.mxu0 0.0
    %966 = vmatmul.mubr.f32.gmra.mrb[0].mxu0 %v811
    %v967 = vpop.f32.mrb[0].mxu0
    %v968 = vadd.f32 %v651, %v967
    %v969 = vpop.f32.mrb[0].mxu0
    %v970 = vadd.f32 %v653, %v969
    %971 = vdwg.mxu0
    %972 = vmatprep.subr.mxu0 %v824
    %973 = vmatpush1.msra.mxu0 %v822
    %974 = vmatprep.subr.mxu0 0.0
    %975 = vmatpush1.msra.mxu0 0.0
    %976 = vmatprep.subr.mxu0 0.0
    %977 = vmatpush1.msra.mxu0 0.0
    %978 = vmatprep.subr.mxu0 0.0
    %979 = vmatpush1.msra.mxu0 0.0
    %980 = vmatprep.subr.mxu0 0.0
    %981 = vmatpush1.msra.mxu0 0.0
    %982 = vmatprep.subr.mxu0 0.0
    %983 = vmatpush1.msra.mxu0 0.0
    %984 = vmatprep.subr.mxu0 0.0
    %985 = vmatpush1.msra.mxu0 0.0
    %986 = vmatprep.subr.mxu0 0.0
    %987 = vmatpush1.msra.mxu0 0.0
    %988 = vmatprep.subr.mxu0 0.0
    %989 = vmatpush1.msra.mxu0 0.0
    %990 = vmatprep.subr.mxu0 0.0
    %991 = vmatpush1.msra.mxu0 0.0
    %992 = vmatprep.subr.mxu0 0.0
    %993 = vmatpush1.msra.mxu0 0.0
    %994 = vmatprep.subr.mxu0 0.0
    %995 = vmatpush1.msra.mxu0 0.0
    %996 = vmatprep.subr.mxu0 0.0
    %997 = vmatpush1.msra.mxu0 0.0
    %998 = vmatprep.subr.mxu0 0.0
    %999 = vmatpush1.msra.mxu0 0.0
    %1000 = vmatprep.subr.mxu0 0.0
    %1001 = vmatpush1.msra.mxu0 0.0
    %1002 = vmatprep.subr.mxu0 0.0
    %1003 = vmatpush1.msra.mxu0 0.0
    %1004 = vmatprep.subr.mxu0 0.0
    %1005 = vmatpush1.msra.mxu0 0.0
    %1006 = vmatprep.subr.mxu0 0.0
    %1007 = vmatpush1.msra.mxu0 0.0
    %1008 = vmatprep.subr.mxu0 0.0
    %1009 = vmatpush1.msra.mxu0 0.0
    %1010 = vmatprep.subr.mxu0 0.0
    %1011 = vmatpush1.msra.mxu0 0.0
    %1012 = vmatprep.subr.mxu0 0.0
    %1013 = vmatpush1.msra.mxu0 0.0
    %1014 = vmatprep.subr.mxu0 0.0
    %1015 = vmatpush1.msra.mxu0 0.0
    %1016 = vmatprep.subr.mxu0 0.0
    %1017 = vmatpush1.msra.mxu0 0.0
    %1018 = vmatprep.subr.mxu0 0.0
    %1019 = vmatpush1.msra.mxu0 0.0
    %1020 = vmatprep.subr.mxu0 0.0
    %1021 = vmatpush1.msra.mxu0 0.0
    %1022 = vmatprep.subr.mxu0 0.0
    %1023 = vmatpush1.msra.mxu0 0.0
    %1024 = vmatprep.subr.mxu0 0.0
    %1025 = vmatpush1.msra.mxu0 0.0
    %1026 = vmatprep.subr.mxu0 0.0
    %1027 = vmatpush1.msra.mxu0 0.0
    %1028 = vmatprep.subr.mxu0 0.0
    %1029 = vmatpush1.msra.mxu0 0.0
    %1030 = vmatprep.subr.mxu0 0.0
    %1031 = vmatpush1.msra.mxu0 0.0
    %1032 = vmatprep.subr.mxu0 0.0
    %1033 = vmatpush1.msra.mxu0 0.0
    %1034 = vmatprep.subr.mxu0 0.0
    %1035 = vmatpush1.msra.mxu0 0.0
    %1036 = vmatprep.mubr.f32.mxu0 0.0
    %1037 = vmatmul.mubr.f32.gmra.mrb[0].mxu0 %v811
    %v1038 = vpop.f32.mrb[0].mxu0
    %v1039 = vadd.f32 %v722, %v1038
    %v1040 = vpop.f32.mrb[0].mxu0
    %v1041 = vadd.f32 %v724, %v1040
    %1042 = vdwg.mxu0
    %1043 = vmatprep.subr.mxu0 %v828
    %1044 = vmatpush1.msra.mxu0 %v826
    %1045 = vmatprep.subr.mxu0 0.0
    %1046 = vmatpush1.msra.mxu0 0.0
    %1047 = vmatprep.subr.mxu0 0.0
    %1048 = vmatpush1.msra.mxu0 0.0
    %1049 = vmatprep.subr.mxu0 0.0
    %1050 = vmatpush1.msra.mxu0 0.0
    %1051 = vmatprep.subr.mxu0 0.0
    %1052 = vmatpush1.msra.mxu0 0.0
    %1053 = vmatprep.subr.mxu0 0.0
    %1054 = vmatpush1.msra.mxu0 0.0
    %1055 = vmatprep.subr.mxu0 0.0
    %1056 = vmatpush1.msra.mxu0 0.0
    %1057 = vmatprep.subr.mxu0 0.0
    %1058 = vmatpush1.msra.mxu0 0.0
    %1059 = vmatprep.subr.mxu0 0.0
    %1060 = vmatpush1.msra.mxu0 0.0
    %1061 = vmatprep.subr.mxu0 0.0
    %1062 = vmatpush1.msra.mxu0 0.0
    %1063 = vmatprep.subr.mxu0 0.0
    %1064 = vmatpush1.msra.mxu0 0.0
    %1065 = vmatprep.subr.mxu0 0.0
    %1066 = vmatpush1.msra.mxu0 0.0
    %1067 = vmatprep.subr.mxu0 0.0
    %1068 = vmatpush1.msra.mxu0 0.0
    %1069 = vmatprep.subr.mxu0 0.0
    %1070 = vmatpush1.msra.mxu0 0.0
    %1071 = vmatprep.subr.mxu0 0.0
    %1072 = vmatpush1.msra.mxu0 0.0
    %1073 = vmatprep.subr.mxu0 0.0
    %1074 = vmatpush1.msra.mxu0 0.0
    %1075 = vmatprep.subr.mxu0 0.0
    %1076 = vmatpush1.msra.mxu0 0.0
    %1077 = vmatprep.subr.mxu0 0.0
    %1078 = vmatpush1.msra.mxu0 0.0
    %1079 = vmatprep.subr.mxu0 0.0
    %1080 = vmatpush1.msra.mxu0 0.0
    %1081 = vmatprep.subr.mxu0 0.0
    %1082 = vmatpush1.msra.mxu0 0.0
    %1083 = vmatprep.subr.mxu0 0.0
    %1084 = vmatpush1.msra.mxu0 0.0
    %1085 = vmatprep.subr.mxu0 0.0
    %1086 = vmatpush1.msra.mxu0 0.0
    %1087 = vmatprep.subr.mxu0 0.0
    %1088 = vmatpush1.msra.mxu0 0.0
    %1089 = vmatprep.subr.mxu0 0.0
    %1090 = vmatpush1.msra.mxu0 0.0
    %1091 = vmatprep.subr.mxu0 0.0
    %1092 = vmatpush1.msra.mxu0 0.0
    %1093 = vmatprep.subr.mxu0 0.0
    %1094 = vmatpush1.msra.mxu0 0.0
    %1095 = vmatprep.subr.mxu0 0.0
    %1096 = vmatpush1.msra.mxu0 0.0
    %1097 = vmatprep.subr.mxu0 0.0
    %1098 = vmatpush1.msra.mxu0 0.0
    %1099 = vmatprep.subr.mxu0 0.0
    %1100 = vmatpush1.msra.mxu0 0.0
    %1101 = vmatprep.subr.mxu0 0.0
    %1102 = vmatpush1.msra.mxu0 0.0
    %1103 = vmatprep.subr.mxu0 0.0
    %1104 = vmatpush1.msra.mxu0 0.0
    %1105 = vmatprep.subr.mxu0 0.0
    %1106 = vmatpush1.msra.mxu0 0.0
    %1107 = vmatprep.mubr.f32.mxu0 0.0
    %1108 = vmatmul.mubr.f32.gmra.mrb[0].mxu0 %v811
    %v1109 = vpop.f32.mrb[0].mxu0
    %v1110 = vadd.f32 %v793, %v1109
    %v1111 = vpop.f32.mrb[0].mxu0
    %v1112 = vadd.f32 %v795, %v1111
    %1113 = vdwg.mxu0
    %v1115 = vlaneseq
    %v1116 = vshrl.u32 %v1115, 7
    %v1117 = vsub.s32 0, %v1116
    %v1118 = vrot.slane %v63, %v1117
    %v1119 = vlaneseq
    %v1120 = vshrl.u32 %v1119, 7
    %v1121 = vsub.s32 1, %v1120
    %v1122 = vrot.slane %v63, %v1121
    %v1123 = vlaneseq
    %v1124 = vshrl.u32 %v1123, 7
    %v1125 = vsub.s32 2, %v1124
    %v1126 = vrot.slane %v63, %v1125
    %v1127 = vlaneseq
    %v1128 = vshrl.u32 %v1127, 7
    %v1129 = vsub.s32 3, %v1128
    %v1130 = vrot.slane %v63, %v1129
    %v1131 = vlaneseq
    %v1132 = vshrl.u32 %v1131, 7
    %v1133 = vsub.s32 4, %v1132
    %v1134 = vrot.slane %v63, %v1133
    %v1135 = vlaneseq
    %v1136 = vshrl.u32 %v1135, 7
    %v1137 = vsub.s32 5, %v1136
    %v1138 = vrot.slane %v63, %v1137
    %v1139 = vlaneseq
    %v1140 = vshrl.u32 %v1139, 7
    %v1141 = vsub.s32 6, %v1140
    %v1142 = vrot.slane %v63, %v1141
    %v1143 = vlaneseq
    %v1144 = vshrl.u32 %v1143, 7
    %v1145 = vsub.s32 7, %v1144
    %v1146 = vrot.slane %v63, %v1145
    %v1155 = vadd.f32 %v897, %v1118
    %v1156 = vadd.f32 %v899, %v1122
    %v1157 = vadd.f32 %v968, %v1126
    %v1158 = vadd.f32 %v970, %v1130
    %v1159 = vadd.f32 %v1039, %v1134
    %v1160 = vadd.f32 %v1041, %v1138
    %v1161 = vadd.f32 %v1110, %v1142
    %v1162 = vadd.f32 %v1112, %v1146
    %v1163 = vxor.u32 %v1155, 2147483648
    %v1164 = vxor.u32 %v1156, 2147483648
    %v1165 = vmul.f32 %v1163, 1.442695
    %v1166 = vpow.pop %v1165
    %v1167 = vmul.f32 %v1164, 1.442695
    %v1168 = vpow.pop %v1167
    %v1169 = vadd.f32 %v1166, 1.0
    %v1170 = vadd.f32 %v1168, 1.0
    %v1171 = vrcp.pop %v1169
    %v1172 = vmul.f32 1.0, %v1171
    %v1173 = vrcp.pop %v1170
    %v1174 = vmul.f32 1.0, %v1173
    %v1175 = vxor.u32 %v1157, 2147483648
    %v1176 = vxor.u32 %v1158, 2147483648
    %v1177 = vmul.f32 %v1175, 1.442695
    %v1178 = vpow.pop %v1177
    %v1179 = vmul.f32 %v1176, 1.442695
    %v1180 = vpow.pop %v1179
    %v1181 = vadd.f32 %v1178, 1.0
    %v1182 = vadd.f32 %v1180, 1.0
    %v1183 = vrcp.pop %v1181
    %v1184 = vmul.f32 1.0, %v1183
    %v1185 = vrcp.pop %v1182
    %v1186 = vmul.f32 1.0, %v1185
    %v1187 = vtanh.pop %v1159
    %v1188 = vtanh.pop %v1160
    %v1189 = vxor.u32 %v1161, 2147483648
    %v1190 = vxor.u32 %v1162, 2147483648
    %v1191 = vmul.f32 %v1189, 1.442695
    %v1192 = vpow.pop %v1191
    %v1193 = vmul.f32 %v1190, 1.442695
    %v1194 = vpow.pop %v1193
    %v1195 = vadd.f32 %v1192, 1.0
    %v1196 = vadd.f32 %v1194, 1.0
    %v1197 = vrcp.pop %v1195
    %v1198 = vmul.f32 1.0, %v1197
    %v1199 = vrcp.pop %v1196
    %v1200 = vmul.f32 1.0, %v1199
    %v1201 = vmul.f32 %v1184, 0.0
    %v1202 = vmul.f32 %v1186, 0.0
    %v1203 = vmul.f32 %v1172, %v1187
    %v1204 = vmul.f32 %v1174, %v1188
    %v1205 = vadd.f32 %v1201, %v1203
    %v1206 = vadd.f32 %v1202, %v1204
    %v1207 = vtanh.pop %v1205
    %v1208 = vtanh.pop %v1206
    %v1209 = vmul.f32 %v1198, %v1207
    %v1210 = vmul.f32 %v1200, %v1208
    %1211 = vmatprep.subr.mxu0 %v65
    %1212 = vmatpush1.msra.mxu0 %v64
    %1213 = vmatprep.subr.mxu0 %v73
    %1214 = vmatpush1.msra.mxu0 %v72
    %1215 = vmatprep.subr.mxu0 %v81
    %1216 = vmatpush1.msra.mxu0 %v80
    %1217 = vmatprep.subr.mxu0 %v89
    %1218 = vmatpush1.msra.mxu0 %v88
    %1219 = vmatprep.subr.mxu0 %v97
    %1220 = vmatpush1.msra.mxu0 %v96
    %1221 = vmatprep.subr.mxu0 %v105
    %1222 = vmatpush1.msra.mxu0 %v104
    %1223 = vmatprep.subr.mxu0 %v113
    %1224 = vmatpush1.msra.mxu0 %v112
    %1225 = vmatprep.subr.mxu0 %v121
    %1226 = vmatpush1.msra.mxu0 %v120
    %1227 = vmatprep.subr.mxu0 %v129
    %1228 = vmatpush1.msra.mxu0 %v128
    %1229 = vmatprep.subr.mxu0 %v137
    %1230 = vmatpush1.msra.mxu0 %v136
    %1231 = vmatprep.subr.mxu0 %v145
    %1232 = vmatpush1.msra.mxu0 %v144
    %1233 = vmatprep.subr.mxu0 %v153
    %1234 = vmatpush1.msra.mxu0 %v152
    %1235 = vmatprep.subr.mxu0 %v161
    %1236 = vmatpush1.msra.mxu0 %v160
    %1237 = vmatprep.subr.mxu0 %v169
    %1238 = vmatpush1.msra.mxu0 %v168
    %1239 = vmatprep.subr.mxu0 %v177
    %1240 = vmatpush1.msra.mxu0 %v176
    %1241 = vmatprep.subr.mxu0 %v185
    %1242 = vmatpush1.msra.mxu0 %v184
    %1243 = vmatprep.subr.mxu0 %v193
    %1244 = vmatpush1.msra.mxu0 %v192
    %1245 = vmatprep.subr.mxu0 %v201
    %1246 = vmatpush1.msra.mxu0 %v200
    %1247 = vmatprep.subr.mxu0 %v209
    %1248 = vmatpush1.msra.mxu0 %v208
    %1249 = vmatprep.subr.mxu0 %v217
    %1250 = vmatpush1.msra.mxu0 %v216
    %1251 = vmatprep.subr.mxu0 %v225
    %1252 = vmatpush1.msra.mxu0 %v224
    %1253 = vmatprep.subr.mxu0 %v233
    %1254 = vmatpush1.msra.mxu0 %v232
    %1255 = vmatprep.subr.mxu0 %v241
    %1256 = vmatpush1.msra.mxu0 %v240
    %1257 = vmatprep.subr.mxu0 %v249
    %1258 = vmatpush1.msra.mxu0 %v248
    %1259 = vmatprep.subr.mxu0 %v257
    %1260 = vmatpush1.msra.mxu0 %v256
    %1261 = vmatprep.subr.mxu0 %v265
    %1262 = vmatpush1.msra.mxu0 %v264
    %1263 = vmatprep.subr.mxu0 %v273
    %1264 = vmatpush1.msra.mxu0 %v272
    %1265 = vmatprep.subr.mxu0 %v281
    %1266 = vmatpush1.msra.mxu0 %v280
    %1267 = vmatprep.subr.mxu0 %v289
    %1268 = vmatpush1.msra.mxu0 %v288
    %1269 = vmatprep.subr.mxu0 %v297
    %1270 = vmatpush1.msra.mxu0 %v296
    %1271 = vmatprep.subr.mxu0 %v305
    %1272 = vmatpush1.msra.mxu0 %v304
    %1273 = vmatprep.subr.mxu0 %v313
    %1274 = vmatpush1.msra.mxu0 %v312
    %1275 = vmatprep.mubr.f32.mxu0 %v1210
    %1276 = vmatmul.mubr.f32.gmra.mrb[0].mxu0 %v1209
    %v1277 = vpop.f32.mrb[0].mxu0
    %v1278 = vadd.f32 0.0, %v1277
    %v1279 = vpop.f32.mrb[0].mxu0
    %v1280 = vadd.f32 0.0, %v1279
    %1281 = vdwg.mxu0
    %1282 = vmatprep.subr.mxu0 %v67
    %1283 = vmatpush1.msra.mxu0 %v66
    %1284 = vmatprep.subr.mxu0 %v75
    %1285 = vmatpush1.msra.mxu0 %v74
    %1286 = vmatprep.subr.mxu0 %v83
    %1287 = vmatpush1.msra.mxu0 %v82
    %1288 = vmatprep.subr.mxu0 %v91
    %1289 = vmatpush1.msra.mxu0 %v90
    %1290 = vmatprep.subr.mxu0 %v99
    %1291 = vmatpush1.msra.mxu0 %v98
    %1292 = vmatprep.subr.mxu0 %v107
    %1293 = vmatpush1.msra.mxu0 %v106
    %1294 = vmatprep.subr.mxu0 %v115
    %1295 = vmatpush1.msra.mxu0 %v114
    %1296 = vmatprep.subr.mxu0 %v123
    %1297 = vmatpush1.msra.mxu0 %v122
    %1298 = vmatprep.subr.mxu0 %v131
    %1299 = vmatpush1.msra.mxu0 %v130
    %1300 = vmatprep.subr.mxu0 %v139
    %1301 = vmatpush1.msra.mxu0 %v138
    %1302 = vmatprep.subr.mxu0 %v147
    %1303 = vmatpush1.msra.mxu0 %v146
    %1304 = vmatprep.subr.mxu0 %v155
    %1305 = vmatpush1.msra.mxu0 %v154
    %1306 = vmatprep.subr.mxu0 %v163
    %1307 = vmatpush1.msra.mxu0 %v162
    %1308 = vmatprep.subr.mxu0 %v171
    %1309 = vmatpush1.msra.mxu0 %v170
    %1310 = vmatprep.subr.mxu0 %v179
    %1311 = vmatpush1.msra.mxu0 %v178
    %1312 = vmatprep.subr.mxu0 %v187
    %1313 = vmatpush1.msra.mxu0 %v186
    %1314 = vmatprep.subr.mxu0 %v195
    %1315 = vmatpush1.msra.mxu0 %v194
    %1316 = vmatprep.subr.mxu0 %v203
    %1317 = vmatpush1.msra.mxu0 %v202
    %1318 = vmatprep.subr.mxu0 %v211
    %1319 = vmatpush1.msra.mxu0 %v210
    %1320 = vmatprep.subr.mxu0 %v219
    %1321 = vmatpush1.msra.mxu0 %v218
    %1322 = vmatprep.subr.mxu0 %v227
    %1323 = vmatpush1.msra.mxu0 %v226
    %1324 = vmatprep.subr.mxu0 %v235
    %1325 = vmatpush1.msra.mxu0 %v234
    %1326 = vmatprep.subr.mxu0 %v243
    %1327 = vmatpush1.msra.mxu0 %v242
    %1328 = vmatprep.subr.mxu0 %v251
    %1329 = vmatpush1.msra.mxu0 %v250
    %1330 = vmatprep.subr.mxu0 %v259
    %1331 = vmatpush1.msra.mxu0 %v258
    %1332 = vmatprep.subr.mxu0 %v267
    %1333 = vmatpush1.msra.mxu0 %v266
    %1334 = vmatprep.subr.mxu0 %v275
    %1335 = vmatpush1.msra.mxu0 %v274
    %1336 = vmatprep.subr.mxu0 %v283
    %1337 = vmatpush1.msra.mxu0 %v282
    %1338 = vmatprep.subr.mxu0 %v291
    %1339 = vmatpush1.msra.mxu0 %v290
    %1340 = vmatprep.subr.mxu0 %v299
    %1341 = vmatpush1.msra.mxu0 %v298
    %1342 = vmatprep.subr.mxu0 %v307
    %1343 = vmatpush1.msra.mxu0 %v306
    %1344 = vmatprep.subr.mxu0 %v315
    %1345 = vmatpush1.msra.mxu0 %v314
    %1346 = vmatprep.mubr.f32.mxu0 %v1210
    %1347 = vmatmul.mubr.f32.gmra.mrb[0].mxu0 %v1209
    %v1348 = vpop.f32.mrb[0].mxu0
    %v1349 = vadd.f32 0.0, %v1348
    %v1350 = vpop.f32.mrb[0].mxu0
    %v1351 = vadd.f32 0.0, %v1350
    %1352 = vdwg.mxu0
    %1353 = vmatprep.subr.mxu0 %v69
    %1354 = vmatpush1.msra.mxu0 %v68
    %1355 = vmatprep.subr.mxu0 %v77
    %1356 = vmatpush1.msra.mxu0 %v76
    %1357 = vmatprep.subr.mxu0 %v85
    %1358 = vmatpush1.msra.mxu0 %v84
    %1359 = vmatprep.subr.mxu0 %v93
    %1360 = vmatpush1.msra.mxu0 %v92
    %1361 = vmatprep.subr.mxu0 %v101
    %1362 = vmatpush1.msra.mxu0 %v100
    %1363 = vmatprep.subr.mxu0 %v109
    %1364 = vmatpush1.msra.mxu0 %v108
    %1365 = vmatprep.subr.mxu0 %v117
    %1366 = vmatpush1.msra.mxu0 %v116
    %1367 = vmatprep.subr.mxu0 %v125
    %1368 = vmatpush1.msra.mxu0 %v124
    %1369 = vmatprep.subr.mxu0 %v133
    %1370 = vmatpush1.msra.mxu0 %v132
    %1371 = vmatprep.subr.mxu0 %v141
    %1372 = vmatpush1.msra.mxu0 %v140
    %1373 = vmatprep.subr.mxu0 %v149
    %1374 = vmatpush1.msra.mxu0 %v148
    %1375 = vmatprep.subr.mxu0 %v157
    %1376 = vmatpush1.msra.mxu0 %v156
    %1377 = vmatprep.subr.mxu0 %v165
    %1378 = vmatpush1.msra.mxu0 %v164
    %1379 = vmatprep.subr.mxu0 %v173
    %1380 = vmatpush1.msra.mxu0 %v172
    %1381 = vmatprep.subr.mxu0 %v181
    %1382 = vmatpush1.msra.mxu0 %v180
    %1383 = vmatprep.subr.mxu0 %v189
    %1384 = vmatpush1.msra.mxu0 %v188
    %1385 = vmatprep.subr.mxu0 %v197
    %1386 = vmatpush1.msra.mxu0 %v196
    %1387 = vmatprep.subr.mxu0 %v205
    %1388 = vmatpush1.msra.mxu0 %v204
    %1389 = vmatprep.subr.mxu0 %v213
    %1390 = vmatpush1.msra.mxu0 %v212
    %1391 = vmatprep.subr.mxu0 %v221
    %1392 = vmatpush1.msra.mxu0 %v220
    %1393 = vmatprep.subr.mxu0 %v229
    %1394 = vmatpush1.msra.mxu0 %v228
    %1395 = vmatprep.subr.mxu0 %v237
    %1396 = vmatpush1.msra.mxu0 %v236
    %1397 = vmatprep.subr.mxu0 %v245
    %1398 = vmatpush1.msra.mxu0 %v244
    %1399 = vmatprep.subr.mxu0 %v253
    %1400 = vmatpush1.msra.mxu0 %v252
    %1401 = vmatprep.subr.mxu0 %v261
    %1402 = vmatpush1.msra.mxu0 %v260
    %1403 = vmatprep.subr.mxu0 %v269
    %1404 = vmatpush1.msra.mxu0 %v268
    %1405 = vmatprep.subr.mxu0 %v277
    %1406 = vmatpush1.msra.mxu0 %v276
    %1407 = vmatprep.subr.mxu0 %v285
    %1408 = vmatpush1.msra.mxu0 %v284
    %1409 = vmatprep.subr.mxu0 %v293
    %1410 = vmatpush1.msra.mxu0 %v292
    %1411 = vmatprep.subr.mxu0 %v301
    %1412 = vmatpush1.msra.mxu0 %v300
    %1413 = vmatprep.subr.mxu0 %v309
    %1414 = vmatpush1.msra.mxu0 %v308
    %1415 = vmatprep.subr.mxu0 %v317
    %1416 = vmatpush1.msra.mxu0 %v316
    %1417 = vmatprep.mubr.f32.mxu0 %v1210
    %1418 = vmatmul.mubr.f32.gmra.mrb[0].mxu0 %v1209
    %v1419 = vpop.f32.mrb[0].mxu0
    %v1420 = vadd.f32 0.0, %v1419
    %v1421 = vpop.f32.mrb[0].mxu0
    %v1422 = vadd.f32 0.0, %v1421
    %1423 = vdwg.mxu0
    %1424 = vmatprep.subr.mxu0 %v71
    %1425 = vmatpush1.msra.mxu0 %v70
    %1426 = vmatprep.subr.mxu0 %v79
    %1427 = vmatpush1.msra.mxu0 %v78
    %1428 = vmatprep.subr.mxu0 %v87
    %1429 = vmatpush1.msra.mxu0 %v86
    %1430 = vmatprep.subr.mxu0 %v95
    %1431 = vmatpush1.msra.mxu0 %v94
    %1432 = vmatprep.subr.mxu0 %v103
    %1433 = vmatpush1.msra.mxu0 %v102
    %1434 = vmatprep.subr.mxu0 %v111
    %1435 = vmatpush1.msra.mxu0 %v110
    %1436 = vmatprep.subr.mxu0 %v119
    %1437 = vmatpush1.msra.mxu0 %v118
    %1438 = vmatprep.subr.mxu0 %v127
    %1439 = vmatpush1.msra.mxu0 %v126
    %1440 = vmatprep.subr.mxu0 %v135
    %1441 = vmatpush1.msra.mxu0 %v134
    %1442 = vmatprep.subr.mxu0 %v143
    %1443 = vmatpush1.msra.mxu0 %v142
    %1444 = vmatprep.subr.mxu0 %v151
    %1445 = vmatpush1.msra.mxu0 %v150
    %1446 = vmatprep.subr.mxu0 %v159
    %1447 = vmatpush1.msra.mxu0 %v158
    %1448 = vmatprep.subr.mxu0 %v167
    %1449 = vmatpush1.msra.mxu0 %v166
    %1450 = vmatprep.subr.mxu0 %v175
    %1451 = vmatpush1.msra.mxu0 %v174
    %1452 = vmatprep.subr.mxu0 %v183
    %1453 = vmatpush1.msra.mxu0 %v182
    %1454 = vmatprep.subr.mxu0 %v191
    %1455 = vmatpush1.msra.mxu0 %v190
    %1456 = vmatprep.subr.mxu0 %v199
    %1457 = vmatpush1.msra.mxu0 %v198
    %1458 = vmatprep.subr.mxu0 %v207
    %1459 = vmatpush1.msra.mxu0 %v206
    %1460 = vmatprep.subr.mxu0 %v215
    %1461 = vmatpush1.msra.mxu0 %v214
    %1462 = vmatprep.subr.mxu0 %v223
    %1463 = vmatpush1.msra.mxu0 %v222
    %1464 = vmatprep.subr.mxu0 %v231
    %1465 = vmatpush1.msra.mxu0 %v230
    %1466 = vmatprep.subr.mxu0 %v239
    %1467 = vmatpush1.msra.mxu0 %v238
    %1468 = vmatprep.subr.mxu0 %v247
    %1469 = vmatpush1.msra.mxu0 %v246
    %1470 = vmatprep.subr.mxu0 %v255
    %1471 = vmatpush1.msra.mxu0 %v254
    %1472 = vmatprep.subr.mxu0 %v263
    %1473 = vmatpush1.msra.mxu0 %v262
    %1474 = vmatprep.subr.mxu0 %v271
    %1475 = vmatpush1.msra.mxu0 %v270
    %1476 = vmatprep.subr.mxu0 %v279
    %1477 = vmatpush1.msra.mxu0 %v278
    %1478 = vmatprep.subr.mxu0 %v287
    %1479 = vmatpush1.msra.mxu0 %v286
    %1480 = vmatprep.subr.mxu0 %v295
    %1481 = vmatpush1.msra.mxu0 %v294
    %1482 = vmatprep.subr.mxu0 %v303
    %1483 = vmatpush1.msra.mxu0 %v302
    %1484 = vmatprep.subr.mxu0 %v311
    %1485 = vmatpush1.msra.mxu0 %v310
    %1486 = vmatprep.subr.mxu0 %v319
    %1487 = vmatpush1.msra.mxu0 %v318
    %1488 = vmatprep.mubr.f32.mxu0 %v1210
    %1489 = vmatmul.mubr.f32.gmra.mrb[0].mxu0 %v1209
    %v1490 = vpop.f32.mrb[0].mxu0
    %v1491 = vadd.f32 0.0, %v1490
    %v1492 = vpop.f32.mrb[0].mxu0
    %v1493 = vadd.f32 0.0, %v1492
    %1494 = vdwg.mxu0
    %v1495 = vrot.slane %v57, 1
    %v1496 = vsel %vm800, %v58, %v1495
    %v1497 = vsel %vm810, %v1496, 0
    %1499 = vmatprep.subr.mxu0 %v816
    %1500 = vmatpush1.msra.mxu0 %v814
    %1501 = vmatprep.subr.mxu0 0.0
    %1502 = vmatpush1.msra.mxu0 0.0
    %1503 = vmatprep.subr.mxu0 0.0
    %1504 = vmatpush1.msra.mxu0 0.0
    %1505 = vmatprep.subr.mxu0 0.0
    %1506 = vmatpush1.msra.mxu0 0.0
    %1507 = vmatprep.subr.mxu0 0.0
    %1508 = vmatpush1.msra.mxu0 0.0
    %1509 = vmatprep.subr.mxu0 0.0
    %1510 = vmatpush1.msra.mxu0 0.0
    %1511 = vmatprep.subr.mxu0 0.0
    %1512 = vmatpush1.msra.mxu0 0.0
    %1513 = vmatprep.subr.mxu0 0.0
    %1514 = vmatpush1.msra.mxu0 0.0
    %1515 = vmatprep.subr.mxu0 0.0
    %1516 = vmatpush1.msra.mxu0 0.0
    %1517 = vmatprep.subr.mxu0 0.0
    %1518 = vmatpush1.msra.mxu0 0.0
    %1519 = vmatprep.subr.mxu0 0.0
    %1520 = vmatpush1.msra.mxu0 0.0
    %1521 = vmatprep.subr.mxu0 0.0
    %1522 = vmatpush1.msra.mxu0 0.0
    %1523 = vmatprep.subr.mxu0 0.0
    %1524 = vmatpush1.msra.mxu0 0.0
    %1525 = vmatprep.subr.mxu0 0.0
    %1526 = vmatpush1.msra.mxu0 0.0
    %1527 = vmatprep.subr.mxu0 0.0
    %1528 = vmatpush1.msra.mxu0 0.0
    %1529 = vmatprep.subr.mxu0 0.0
    %1530 = vmatpush1.msra.mxu0 0.0
    %1531 = vmatprep.subr.mxu0 0.0
    %1532 = vmatpush1.msra.mxu0 0.0
    %1533 = vmatprep.subr.mxu0 0.0
    %1534 = vmatpush1.msra.mxu0 0.0
    %1535 = vmatprep.subr.mxu0 0.0
    %1536 = vmatpush1.msra.mxu0 0.0
    %1537 = vmatprep.subr.mxu0 0.0
    %1538 = vmatpush1.msra.mxu0 0.0
    %1539 = vmatprep.subr.mxu0 0.0
    %1540 = vmatpush1.msra.mxu0 0.0
    %1541 = vmatprep.subr.mxu0 0.0
    %1542 = vmatpush1.msra.mxu0 0.0
    %1543 = vmatprep.subr.mxu0 0.0
    %1544 = vmatpush1.msra.mxu0 0.0
    %1545 = vmatprep.subr.mxu0 0.0
    %1546 = vmatpush1.msra.mxu0 0.0
    %1547 = vmatprep.subr.mxu0 0.0
    %1548 = vmatpush1.msra.mxu0 0.0
    %1549 = vmatprep.subr.mxu0 0.0
    %1550 = vmatpush1.msra.mxu0 0.0
    %1551 = vmatprep.subr.mxu0 0.0
    %1552 = vmatpush1.msra.mxu0 0.0
    %1553 = vmatprep.subr.mxu0 0.0
    %1554 = vmatpush1.msra.mxu0 0.0
    %1555 = vmatprep.subr.mxu0 0.0
    %1556 = vmatpush1.msra.mxu0 0.0
    %1557 = vmatprep.subr.mxu0 0.0
    %1558 = vmatpush1.msra.mxu0 0.0
    %1559 = vmatprep.subr.mxu0 0.0
    %1560 = vmatpush1.msra.mxu0 0.0
    %1561 = vmatprep.subr.mxu0 0.0
    %1562 = vmatpush1.msra.mxu0 0.0
    %1563 = vmatprep.mubr.f32.mxu0 0.0
    %1564 = vmatmul.mubr.f32.gmra.mrb[0].mxu0 %v1497
    %v1565 = vpop.f32.mrb[0].mxu0
    %v1566 = vadd.f32 %v1278, %v1565
    %v1567 = vpop.f32.mrb[0].mxu0
    %v1568 = vadd.f32 %v1280, %v1567
    %1569 = vdwg.mxu0
    %1570 = vmatprep.subr.mxu0 %v820
    %1571 = vmatpush1.msra.mxu0 %v818
    %1572 = vmatprep.subr.mxu0 0.0
    %1573 = vmatpush1.msra.mxu0 0.0
    %1574 = vmatprep.subr.mxu0 0.0
    %1575 = vmatpush1.msra.mxu0 0.0
    %1576 = vmatprep.subr.mxu0 0.0
    %1577 = vmatpush1.msra.mxu0 0.0
    %1578 = vmatprep.subr.mxu0 0.0
    %1579 = vmatpush1.msra.mxu0 0.0
    %1580 = vmatprep.subr.mxu0 0.0
    %1581 = vmatpush1.msra.mxu0 0.0
    %1582 = vmatprep.subr.mxu0 0.0
    %1583 = vmatpush1.msra.mxu0 0.0
    %1584 = vmatprep.subr.mxu0 0.0
    %1585 = vmatpush1.msra.mxu0 0.0
    %1586 = vmatprep.subr.mxu0 0.0
    %1587 = vmatpush1.msra.mxu0 0.0
    %1588 = vmatprep.subr.mxu0 0.0
    %1589 = vmatpush1.msra.mxu0 0.0
    %1590 = vmatprep.subr.mxu0 0.0
    %1591 = vmatpush1.msra.mxu0 0.0
    %1592 = vmatprep.subr.mxu0 0.0
    %1593 = vmatpush1.msra.mxu0 0.0
    %1594 = vmatprep.subr.mxu0 0.0
    %1595 = vmatpush1.msra.mxu0 0.0
    %1596 = vmatprep.subr.mxu0 0.0
    %1597 = vmatpush1.msra.mxu0 0.0
    %1598 = vmatprep.subr.mxu0 0.0
    %1599 = vmatpush1.msra.mxu0 0.0
    %1600 = vmatprep.subr.mxu0 0.0
    %1601 = vmatpush1.msra.mxu0 0.0
    %1602 = vmatprep.subr.mxu0 0.0
    %1603 = vmatpush1.msra.mxu0 0.0
    %1604 = vmatprep.subr.mxu0 0.0
    %1605 = vmatpush1.msra.mxu0 0.0
    %1606 = vmatprep.subr.mxu0 0.0
    %1607 = vmatpush1.msra.mxu0 0.0
    %1608 = vmatprep.subr.mxu0 0.0
    %1609 = vmatpush1.msra.mxu0 0.0
    %1610 = vmatprep.subr.mxu0 0.0
    %1611 = vmatpush1.msra.mxu0 0.0
    %1612 = vmatprep.subr.mxu0 0.0
    %1613 = vmatpush1.msra.mxu0 0.0
    %1614 = vmatprep.subr.mxu0 0.0
    %1615 = vmatpush1.msra.mxu0 0.0
    %1616 = vmatprep.subr.mxu0 0.0
    %1617 = vmatpush1.msra.mxu0 0.0
    %1618 = vmatprep.subr.mxu0 0.0
    %1619 = vmatpush1.msra.mxu0 0.0
    %1620 = vmatprep.subr.mxu0 0.0
    %1621 = vmatpush1.msra.mxu0 0.0
    %1622 = vmatprep.subr.mxu0 0.0
    %1623 = vmatpush1.msra.mxu0 0.0
    %1624 = vmatprep.subr.mxu0 0.0
    %1625 = vmatpush1.msra.mxu0 0.0
    %1626 = vmatprep.subr.mxu0 0.0
    %1627 = vmatpush1.msra.mxu0 0.0
    %1628 = vmatprep.subr.mxu0 0.0
    %1629 = vmatpush1.msra.mxu0 0.0
    %1630 = vmatprep.subr.mxu0 0.0
    %1631 = vmatpush1.msra.mxu0 0.0
    %1632 = vmatprep.subr.mxu0 0.0
    %1633 = vmatpush1.msra.mxu0 0.0
    %1634 = vmatprep.mubr.f32.mxu0 0.0
    %1635 = vmatmul.mubr.f32.gmra.mrb[0].mxu0 %v1497
    %v1636 = vpop.f32.mrb[0].mxu0
    %v1637 = vadd.f32 %v1349, %v1636
    %v1638 = vpop.f32.mrb[0].mxu0
    %v1639 = vadd.f32 %v1351, %v1638
    %1640 = vdwg.mxu0
    %1641 = vmatprep.subr.mxu0 %v824
    %1642 = vmatpush1.msra.mxu0 %v822
    %1643 = vmatprep.subr.mxu0 0.0
    %1644 = vmatpush1.msra.mxu0 0.0
    %1645 = vmatprep.subr.mxu0 0.0
    %1646 = vmatpush1.msra.mxu0 0.0
    %1647 = vmatprep.subr.mxu0 0.0
    %1648 = vmatpush1.msra.mxu0 0.0
    %1649 = vmatprep.subr.mxu0 0.0
    %1650 = vmatpush1.msra.mxu0 0.0
    %1651 = vmatprep.subr.mxu0 0.0
    %1652 = vmatpush1.msra.mxu0 0.0
    %1653 = vmatprep.subr.mxu0 0.0
    %1654 = vmatpush1.msra.mxu0 0.0
    %1655 = vmatprep.subr.mxu0 0.0
    %1656 = vmatpush1.msra.mxu0 0.0
    %1657 = vmatprep.subr.mxu0 0.0
    %1658 = vmatpush1.msra.mxu0 0.0
    %1659 = vmatprep.subr.mxu0 0.0
    %1660 = vmatpush1.msra.mxu0 0.0
    %1661 = vmatprep.subr.mxu0 0.0
    %1662 = vmatpush1.msra.mxu0 0.0
    %1663 = vmatprep.subr.mxu0 0.0
    %1664 = vmatpush1.msra.mxu0 0.0
    %1665 = vmatprep.subr.mxu0 0.0
    %1666 = vmatpush1.msra.mxu0 0.0
    %1667 = vmatprep.subr.mxu0 0.0
    %1668 = vmatpush1.msra.mxu0 0.0
    %1669 = vmatprep.subr.mxu0 0.0
    %1670 = vmatpush1.msra.mxu0 0.0
    %1671 = vmatprep.subr.mxu0 0.0
    %1672 = vmatpush1.msra.mxu0 0.0
    %1673 = vmatprep.subr.mxu0 0.0
    %1674 = vmatpush1.msra.mxu0 0.0
    %1675 = vmatprep.subr.mxu0 0.0
    %1676 = vmatpush1.msra.mxu0 0.0
    %1677 = vmatprep.subr.mxu0 0.0
    %1678 = vmatpush1.msra.mxu0 0.0
    %1679 = vmatprep.subr.mxu0 0.0
    %1680 = vmatpush1.msra.mxu0 0.0
    %1681 = vmatprep.subr.mxu0 0.0
    %1682 = vmatpush1.msra.mxu0 0.0
    %1683 = vmatprep.subr.mxu0 0.0
    %1684 = vmatpush1.msra.mxu0 0.0
    %1685 = vmatprep.subr.mxu0 0.0
    %1686 = vmatpush1.msra.mxu0 0.0
    %1687 = vmatprep.subr.mxu0 0.0
    %1688 = vmatpush1.msra.mxu0 0.0
    %1689 = vmatprep.subr.mxu0 0.0
    %1690 = vmatpush1.msra.mxu0 0.0
    %1691 = vmatprep.subr.mxu0 0.0
    %1692 = vmatpush1.msra.mxu0 0.0
    %1693 = vmatprep.subr.mxu0 0.0
    %1694 = vmatpush1.msra.mxu0 0.0
    %1695 = vmatprep.subr.mxu0 0.0
    %1696 = vmatpush1.msra.mxu0 0.0
    %1697 = vmatprep.subr.mxu0 0.0
    %1698 = vmatpush1.msra.mxu0 0.0
    %1699 = vmatprep.subr.mxu0 0.0
    %1700 = vmatpush1.msra.mxu0 0.0
    %1701 = vmatprep.subr.mxu0 0.0
    %1702 = vmatpush1.msra.mxu0 0.0
    %1703 = vmatprep.subr.mxu0 0.0
    %1704 = vmatpush1.msra.mxu0 0.0
    %1705 = vmatprep.mubr.f32.mxu0 0.0
    %1706 = vmatmul.mubr.f32.gmra.mrb[0].mxu0 %v1497
    %v1707 = vpop.f32.mrb[0].mxu0
    %v1708 = vadd.f32 %v1420, %v1707
    %v1709 = vpop.f32.mrb[0].mxu0
    %v1710 = vadd.f32 %v1422, %v1709
    %1711 = vdwg.mxu0
    %1712 = vmatprep.subr.mxu0 %v828
    %1713 = vmatpush1.msra.mxu0 %v826
    %1714 = vmatprep.subr.mxu0 0.0
    %1715 = vmatpush1.msra.mxu0 0.0
    %1716 = vmatprep.subr.mxu0 0.0
    %1717 = vmatpush1.msra.mxu0 0.0
    %1718 = vmatprep.subr.mxu0 0.0
    %1719 = vmatpush1.msra.mxu0 0.0
    %1720 = vmatprep.subr.mxu0 0.0
    %1721 = vmatpush1.msra.mxu0 0.0
    %1722 = vmatprep.subr.mxu0 0.0
    %1723 = vmatpush1.msra.mxu0 0.0
    %1724 = vmatprep.subr.mxu0 0.0
    %1725 = vmatpush1.msra.mxu0 0.0
    %1726 = vmatprep.subr.mxu0 0.0
    %1727 = vmatpush1.msra.mxu0 0.0
    %1728 = vmatprep.subr.mxu0 0.0
    %1729 = vmatpush1.msra.mxu0 0.0
    %1730 = vmatprep.subr.mxu0 0.0
    %1731 = vmatpush1.msra.mxu0 0.0
    %1732 = vmatprep.subr.mxu0 0.0
    %1733 = vmatpush1.msra.mxu0 0.0
    %1734 = vmatprep.subr.mxu0 0.0
    %1735 = vmatpush1.msra.mxu0 0.0
    %1736 = vmatprep.subr.mxu0 0.0
    %1737 = vmatpush1.msra.mxu0 0.0
    %1738 = vmatprep.subr.mxu0 0.0
    %1739 = vmatpush1.msra.mxu0 0.0
    %1740 = vmatprep.subr.mxu0 0.0
    %1741 = vmatpush1.msra.mxu0 0.0
    %1742 = vmatprep.subr.mxu0 0.0
    %1743 = vmatpush1.msra.mxu0 0.0
    %1744 = vmatprep.subr.mxu0 0.0
    %1745 = vmatpush1.msra.mxu0 0.0
    %1746 = vmatprep.subr.mxu0 0.0
    %1747 = vmatpush1.msra.mxu0 0.0
    %1748 = vmatprep.subr.mxu0 0.0
    %1749 = vmatpush1.msra.mxu0 0.0
    %1750 = vmatprep.subr.mxu0 0.0
    %1751 = vmatpush1.msra.mxu0 0.0
    %1752 = vmatprep.subr.mxu0 0.0
    %1753 = vmatpush1.msra.mxu0 0.0
    %1754 = vmatprep.subr.mxu0 0.0
    %1755 = vmatpush1.msra.mxu0 0.0
    %1756 = vmatprep.subr.mxu0 0.0
    %1757 = vmatpush1.msra.mxu0 0.0
    %1758 = vmatprep.subr.mxu0 0.0
    %1759 = vmatpush1.msra.mxu0 0.0
    %1760 = vmatprep.subr.mxu0 0.0
    %1761 = vmatpush1.msra.mxu0 0.0
    %1762 = vmatprep.subr.mxu0 0.0
    %1763 = vmatpush1.msra.mxu0 0.0
    %1764 = vmatprep.subr.mxu0 0.0
    %1765 = vmatpush1.msra.mxu0 0.0
    %1766 = vmatprep.subr.mxu0 0.0
    %1767 = vmatpush1.msra.mxu0 0.0
    %1768 = vmatprep.subr.mxu0 0.0
    %1769 = vmatpush1.msra.mxu0 0.0
    %1770 = vmatprep.subr.mxu0 0.0
    %1771 = vmatpush1.msra.mxu0 0.0
    %1772 = vmatprep.subr.mxu0 0.0
    %1773 = vmatpush1.msra.mxu0 0.0
    %1774 = vmatprep.subr.mxu0 0.0
    %1775 = vmatpush1.msra.mxu0 0.0
    %1776 = vmatprep.mubr.f32.mxu0 0.0
    %1777 = vmatmul.mubr.f32.gmra.mrb[0].mxu0 %v1497
    %v1778 = vpop.f32.mrb[0].mxu0
    %v1779 = vadd.f32 %v1491, %v1778
    %v1780 = vpop.f32.mrb[0].mxu0
    %v1781 = vadd.f32 %v1493, %v1780
    %1782 = vdwg.mxu0
    %v1783 = vadd.f32 %v1566, %v1118
    %v1784 = vadd.f32 %v1568, %v1122
    %v1785 = vadd.f32 %v1637, %v1126
    %v1786 = vadd.f32 %v1639, %v1130
    %v1787 = vadd.f32 %v1708, %v1134
    %v1788 = vadd.f32 %v1710, %v1138
    %v1789 = vadd.f32 %v1779, %v1142
    %v1790 = vadd.f32 %v1781, %v1146
    %v1791 = vxor.u32 %v1783, 2147483648
    %v1792 = vxor.u32 %v1784, 2147483648
    %v1793 = vmul.f32 %v1791, 1.442695
    %v1794 = vpow.pop %v1793
    %v1795 = vmul.f32 %v1792, 1.442695
    %v1796 = vpow.pop %v1795
    %v1797 = vadd.f32 %v1794, 1.0
    %v1798 = vadd.f32 %v1796, 1.0
    %v1799 = vrcp.pop %v1797
    %v1800 = vmul.f32 1.0, %v1799
    %v1801 = vrcp.pop %v1798
    %v1802 = vmul.f32 1.0, %v1801
    %v1803 = vxor.u32 %v1785, 2147483648
    %v1804 = vxor.u32 %v1786, 2147483648
    %v1805 = vmul.f32 %v1803, 1.442695
    %v1806 = vpow.pop %v1805
    %v1807 = vmul.f32 %v1804, 1.442695
    %v1808 = vpow.pop %v1807
    %v1809 = vadd.f32 %v1806, 1.0
    %v1810 = vadd.f32 %v1808, 1.0
    %v1811 = vrcp.pop %v1809
    %v1812 = vmul.f32 1.0, %v1811
    %v1813 = vrcp.pop %v1810
    %v1814 = vmul.f32 1.0, %v1813
    %v1815 = vtanh.pop %v1787
    %v1816 = vtanh.pop %v1788
    %v1817 = vxor.u32 %v1789, 2147483648
    %v1818 = vxor.u32 %v1790, 2147483648
    %v1819 = vmul.f32 %v1817, 1.442695
    %v1820 = vpow.pop %v1819
    %v1821 = vmul.f32 %v1818, 1.442695
    %v1822 = vpow.pop %v1821
    %v1823 = vadd.f32 %v1820, 1.0
    %v1824 = vadd.f32 %v1822, 1.0
    %v1825 = vrcp.pop %v1823
    %v1826 = vmul.f32 1.0, %v1825
    %v1827 = vrcp.pop %v1824
    %v1828 = vmul.f32 1.0, %v1827
    %v1829 = vmul.f32 %v1812, %v1205
    %v1830 = vmul.f32 %v1814, %v1206
    %v1831 = vmul.f32 %v1800, %v1815
    %v1832 = vmul.f32 %v1802, %v1816
    %v1833 = vadd.f32 %v1829, %v1831
    %v1834 = vadd.f32 %v1830, %v1832
    %v1835 = vtanh.pop %v1833
    %v1836 = vtanh.pop %v1834
    %v1837 = vmul.f32 %v1826, %v1835
    %v1838 = vmul.f32 %v1828, %v1836
    %v1841 = vcombine.low %v1837, %v1838
    %v1843 = vunpack.c.l.s4 1966171168
    %v1844 = vunpack.c.0.s8 %v1843
    %v1845 = vlaneseq
    %v1846 = vshrl.u32 %v1845, 7
    %v1847 = vsub.s32 %v1844, %v1846
    %v1848 = vrot.slane %v1841, %v1847
    %v1849 = vcombine.high %v1848, %v1848
    %v1851 = vunpack.c.l.s4 1966171168
    %v1852 = vunpack.c.0.s8 %v1851
    %v1853 = vlaneseq
    %v1854 = vshrl.u32 %v1853, 7
    %v1855 = vsub.s32 %v1852, %v1854
    %v1856 = vrot.slane %v1848, %v1855
    %v1858 = vunpack.c.l.s4 1966171168
    %v1859 = vunpack.c.0.s8 %v1858
    %v1860 = vlaneseq
    %v1861 = vshrl.u32 %v1860, 7
    %v1862 = vsub.s32 %v1859, %v1861
    %v1863 = vrot.slane %v1849, %v1862
    %v1866 = vlaneseq
    %vm1867 = vcmp.ge.s32.totalorder %v1866, 0
    %vm1868 = vcmp.lt.s32.totalorder %v1866, 256
    %vm1869 = vmand %vm1867, %vm1868
    %1870 = vst.msk [vmem:[#allocation2] ss:$8 sm:$0x3] %vm1869, %v1856
    %1871 = vst.msk [vmem:[#allocation2] ss:$8 sm:$0x0] %vm1869, %v1856
    %s1872 = scalar_lea.vmem [#allocation2], 32
    %1873 = vst.msk [vmem:[%s1872] ss:$8 sm:$0x3] %vm1869, %v1863
    %1874 = vst.msk [vmem:[%s1872] ss:$8 sm:$0x0] %vm1869, %v1863
    %1875 = vmatprep.subr.mxu0 %v65
    %1876 = vmatpush1.msra.mxu0 %v64
    %1877 = vmatprep.subr.mxu0 %v73
    %1878 = vmatpush1.msra.mxu0 %v72
    %1879 = vmatprep.subr.mxu0 %v81
    %1880 = vmatpush1.msra.mxu0 %v80
    %1881 = vmatprep.subr.mxu0 %v89
    %1882 = vmatpush1.msra.mxu0 %v88
    %1883 = vmatprep.subr.mxu0 %v97
    %1884 = vmatpush1.msra.mxu0 %v96
    %1885 = vmatprep.subr.mxu0 %v105
    %1886 = vmatpush1.msra.mxu0 %v104
    %1887 = vmatprep.subr.mxu0 %v113
    %1888 = vmatpush1.msra.mxu0 %v112
    %1889 = vmatprep.subr.mxu0 %v121
    %1890 = vmatpush1.msra.mxu0 %v120
    %1891 = vmatprep.subr.mxu0 %v129
    %1892 = vmatpush1.msra.mxu0 %v128
    %1893 = vmatprep.subr.mxu0 %v137
    %1894 = vmatpush1.msra.mxu0 %v136
    %1895 = vmatprep.subr.mxu0 %v145
    %1896 = vmatpush1.msra.mxu0 %v144
    %1897 = vmatprep.subr.mxu0 %v153
    %1898 = vmatpush1.msra.mxu0 %v152
    %1899 = vmatprep.subr.mxu0 %v161
    %1900 = vmatpush1.msra.mxu0 %v160
    %1901 = vmatprep.subr.mxu0 %v169
    %1902 = vmatpush1.msra.mxu0 %v168
    %1903 = vmatprep.subr.mxu0 %v177
    %1904 = vmatpush1.msra.mxu0 %v176
    %1905 = vmatprep.subr.mxu0 %v185
    %1906 = vmatpush1.msra.mxu0 %v184
    %1907 = vmatprep.subr.mxu0 %v193
    %1908 = vmatpush1.msra.mxu0 %v192
    %1909 = vmatprep.subr.mxu0 %v201
    %1910 = vmatpush1.msra.mxu0 %v200
    %1911 = vmatprep.subr.mxu0 %v209
    %1912 = vmatpush1.msra.mxu0 %v208
    %1913 = vmatprep.subr.mxu0 %v217
    %1914 = vmatpush1.msra.mxu0 %v216
    %1915 = vmatprep.subr.mxu0 %v225
    %1916 = vmatpush1.msra.mxu0 %v224
    %1917 = vmatprep.subr.mxu0 %v233
    %1918 = vmatpush1.msra.mxu0 %v232
    %1919 = vmatprep.subr.mxu0 %v241
    %1920 = vmatpush1.msra.mxu0 %v240
    %1921 = vmatprep.subr.mxu0 %v249
    %1922 = vmatpush1.msra.mxu0 %v248
    %1923 = vmatprep.subr.mxu0 %v257
    %1924 = vmatpush1.msra.mxu0 %v256
    %1925 = vmatprep.subr.mxu0 %v265
    %1926 = vmatpush1.msra.mxu0 %v264
    %1927 = vmatprep.subr.mxu0 %v273
    %1928 = vmatpush1.msra.mxu0 %v272
    %1929 = vmatprep.subr.mxu0 %v281
    %1930 = vmatpush1.msra.mxu0 %v280
    %1931 = vmatprep.subr.mxu0 %v289
    %1932 = vmatpush1.msra.mxu0 %v288
    %1933 = vmatprep.subr.mxu0 %v297
    %1934 = vmatpush1.msra.mxu0 %v296
    %1935 = vmatprep.subr.mxu0 %v305
    %1936 = vmatpush1.msra.mxu0 %v304
    %1937 = vmatprep.subr.mxu0 %v313
    %1938 = vmatpush1.msra.mxu0 %v312
    %1939 = vmatprep.mubr.f32.mxu0 %v1838
    %1940 = vmatmul.mubr.f32.gmra.mrb[0].mxu0 %v1837
    %v1941 = vpop.f32.mrb[0].mxu0
    %v1942 = vadd.f32 0.0, %v1941
    %v1943 = vpop.f32.mrb[0].mxu0
    %v1944 = vadd.f32 0.0, %v1943
    %1945 = vdwg.mxu0
    %1946 = vmatprep.subr.mxu0 %v67
    %1947 = vmatpush1.msra.mxu0 %v66
    %1948 = vmatprep.subr.mxu0 %v75
    %1949 = vmatpush1.msra.mxu0 %v74
    %1950 = vmatprep.subr.mxu0 %v83
    %1951 = vmatpush1.msra.mxu0 %v82
    %1952 = vmatprep.subr.mxu0 %v91
    %1953 = vmatpush1.msra.mxu0 %v90
    %1954 = vmatprep.subr.mxu0 %v99
    %1955 = vmatpush1.msra.mxu0 %v98
    %1956 = vmatprep.subr.mxu0 %v107
    %1957 = vmatpush1.msra.mxu0 %v106
    %1958 = vmatprep.subr.mxu0 %v115
    %1959 = vmatpush1.msra.mxu0 %v114
    %1960 = vmatprep.subr.mxu0 %v123
    %1961 = vmatpush1.msra.mxu0 %v122
    %1962 = vmatprep.subr.mxu0 %v131
    %1963 = vmatpush1.msra.mxu0 %v130
    %1964 = vmatprep.subr.mxu0 %v139
    %1965 = vmatpush1.msra.mxu0 %v138
    %1966 = vmatprep.subr.mxu0 %v147
    %1967 = vmatpush1.msra.mxu0 %v146
    %1968 = vmatprep.subr.mxu0 %v155
    %1969 = vmatpush1.msra.mxu0 %v154
    %1970 = vmatprep.subr.mxu0 %v163
    %1971 = vmatpush1.msra.mxu0 %v162
    %1972 = vmatprep.subr.mxu0 %v171
    %1973 = vmatpush1.msra.mxu0 %v170
    %1974 = vmatprep.subr.mxu0 %v179
    %1975 = vmatpush1.msra.mxu0 %v178
    %1976 = vmatprep.subr.mxu0 %v187
    %1977 = vmatpush1.msra.mxu0 %v186
    %1978 = vmatprep.subr.mxu0 %v195
    %1979 = vmatpush1.msra.mxu0 %v194
    %1980 = vmatprep.subr.mxu0 %v203
    %1981 = vmatpush1.msra.mxu0 %v202
    %1982 = vmatprep.subr.mxu0 %v211
    %1983 = vmatpush1.msra.mxu0 %v210
    %1984 = vmatprep.subr.mxu0 %v219
    %1985 = vmatpush1.msra.mxu0 %v218
    %1986 = vmatprep.subr.mxu0 %v227
    %1987 = vmatpush1.msra.mxu0 %v226
    %1988 = vmatprep.subr.mxu0 %v235
    %1989 = vmatpush1.msra.mxu0 %v234
    %1990 = vmatprep.subr.mxu0 %v243
    %1991 = vmatpush1.msra.mxu0 %v242
    %1992 = vmatprep.subr.mxu0 %v251
    %1993 = vmatpush1.msra.mxu0 %v250
    %1994 = vmatprep.subr.mxu0 %v259
    %1995 = vmatpush1.msra.mxu0 %v258
    %1996 = vmatprep.subr.mxu0 %v267
    %1997 = vmatpush1.msra.mxu0 %v266
    %1998 = vmatprep.subr.mxu0 %v275
    %1999 = vmatpush1.msra.mxu0 %v274
    %2000 = vmatprep.subr.mxu0 %v283
    %2001 = vmatpush1.msra.mxu0 %v282
    %2002 = vmatprep.subr.mxu0 %v291
    %2003 = vmatpush1.msra.mxu0 %v290
    %2004 = vmatprep.subr.mxu0 %v299
    %2005 = vmatpush1.msra.mxu0 %v298
    %2006 = vmatprep.subr.mxu0 %v307
    %2007 = vmatpush1.msra.mxu0 %v306
    %2008 = vmatprep.subr.mxu0 %v315
    %2009 = vmatpush1.msra.mxu0 %v314
    %2010 = vmatprep.mubr.f32.mxu0 %v1838
    %2011 = vmatmul.mubr.f32.gmra.mrb[0].mxu0 %v1837
    %v2012 = vpop.f32.mrb[0].mxu0
    %v2013 = vadd.f32 0.0, %v2012
    %v2014 = vpop.f32.mrb[0].mxu0
    %v2015 = vadd.f32 0.0, %v2014
    %2016 = vdwg.mxu0
    %2017 = vmatprep.subr.mxu0 %v69
    %2018 = vmatpush1.msra.mxu0 %v68
    %2019 = vmatprep.subr.mxu0 %v77
    %2020 = vmatpush1.msra.mxu0 %v76
    %2021 = vmatprep.subr.mxu0 %v85
    %2022 = vmatpush1.msra.mxu0 %v84
    %2023 = vmatprep.subr.mxu0 %v93
    %2024 = vmatpush1.msra.mxu0 %v92
    %2025 = vmatprep.subr.mxu0 %v101
    %2026 = vmatpush1.msra.mxu0 %v100
    %2027 = vmatprep.subr.mxu0 %v109
    %2028 = vmatpush1.msra.mxu0 %v108
    %2029 = vmatprep.subr.mxu0 %v117
    %2030 = vmatpush1.msra.mxu0 %v116
    %2031 = vmatprep.subr.mxu0 %v125
    %2032 = vmatpush1.msra.mxu0 %v124
    %2033 = vmatprep.subr.mxu0 %v133
    %2034 = vmatpush1.msra.mxu0 %v132
    %2035 = vmatprep.subr.mxu0 %v141
    %2036 = vmatpush1.msra.mxu0 %v140
    %2037 = vmatprep.subr.mxu0 %v149
    %2038 = vmatpush1.msra.mxu0 %v148
    %2039 = vmatprep.subr.mxu0 %v157
    %2040 = vmatpush1.msra.mxu0 %v156
    %2041 = vmatprep.subr.mxu0 %v165
    %2042 = vmatpush1.msra.mxu0 %v164
    %2043 = vmatprep.subr.mxu0 %v173
    %2044 = vmatpush1.msra.mxu0 %v172
    %2045 = vmatprep.subr.mxu0 %v181
    %2046 = vmatpush1.msra.mxu0 %v180
    %2047 = vmatprep.subr.mxu0 %v189
    %2048 = vmatpush1.msra.mxu0 %v188
    %2049 = vmatprep.subr.mxu0 %v197
    %2050 = vmatpush1.msra.mxu0 %v196
    %2051 = vmatprep.subr.mxu0 %v205
    %2052 = vmatpush1.msra.mxu0 %v204
    %2053 = vmatprep.subr.mxu0 %v213
    %2054 = vmatpush1.msra.mxu0 %v212
    %2055 = vmatprep.subr.mxu0 %v221
    %2056 = vmatpush1.msra.mxu0 %v220
    %2057 = vmatprep.subr.mxu0 %v229
    %2058 = vmatpush1.msra.mxu0 %v228
    %2059 = vmatprep.subr.mxu0 %v237
    %2060 = vmatpush1.msra.mxu0 %v236
    %2061 = vmatprep.subr.mxu0 %v245
    %2062 = vmatpush1.msra.mxu0 %v244
    %2063 = vmatprep.subr.mxu0 %v253
    %2064 = vmatpush1.msra.mxu0 %v252
    %2065 = vmatprep.subr.mxu0 %v261
    %2066 = vmatpush1.msra.mxu0 %v260
    %2067 = vmatprep.subr.mxu0 %v269
    %2068 = vmatpush1.msra.mxu0 %v268
    %2069 = vmatprep.subr.mxu0 %v277
    %2070 = vmatpush1.msra.mxu0 %v276
    %2071 = vmatprep.subr.mxu0 %v285
    %2072 = vmatpush1.msra.mxu0 %v284
    %2073 = vmatprep.subr.mxu0 %v293
    %2074 = vmatpush1.msra.mxu0 %v292
    %2075 = vmatprep.subr.mxu0 %v301
    %2076 = vmatpush1.msra.mxu0 %v300
    %2077 = vmatprep.subr.mxu0 %v309
    %2078 = vmatpush1.msra.mxu0 %v308
    %2079 = vmatprep.subr.mxu0 %v317
    %2080 = vmatpush1.msra.mxu0 %v316
    %2081 = vmatprep.mubr.f32.mxu0 %v1838
    %2082 = vmatmul.mubr.f32.gmra.mrb[0].mxu0 %v1837
    %v2083 = vpop.f32.mrb[0].mxu0
    %v2084 = vadd.f32 0.0, %v2083
    %v2085 = vpop.f32.mrb[0].mxu0
    %v2086 = vadd.f32 0.0, %v2085
    %2087 = vdwg.mxu0
    %2088 = vmatprep.subr.mxu0 %v71
    %2089 = vmatpush1.msra.mxu0 %v70
    %2090 = vmatprep.subr.mxu0 %v79
    %2091 = vmatpush1.msra.mxu0 %v78
    %2092 = vmatprep.subr.mxu0 %v87
    %2093 = vmatpush1.msra.mxu0 %v86
    %2094 = vmatprep.subr.mxu0 %v95
    %2095 = vmatpush1.msra.mxu0 %v94
    %2096 = vmatprep.subr.mxu0 %v103
    %2097 = vmatpush1.msra.mxu0 %v102
    %2098 = vmatprep.subr.mxu0 %v111
    %2099 = vmatpush1.msra.mxu0 %v110
    %2100 = vmatprep.subr.mxu0 %v119
    %2101 = vmatpush1.msra.mxu0 %v118
    %2102 = vmatprep.subr.mxu0 %v127
    %2103 = vmatpush1.msra.mxu0 %v126
    %2104 = vmatprep.subr.mxu0 %v135
    %2105 = vmatpush1.msra.mxu0 %v134
    %2106 = vmatprep.subr.mxu0 %v143
    %2107 = vmatpush1.msra.mxu0 %v142
    %2108 = vmatprep.subr.mxu0 %v151
    %2109 = vmatpush1.msra.mxu0 %v150
    %2110 = vmatprep.subr.mxu0 %v159
    %2111 = vmatpush1.msra.mxu0 %v158
    %2112 = vmatprep.subr.mxu0 %v167
    %2113 = vmatpush1.msra.mxu0 %v166
    %2114 = vmatprep.subr.mxu0 %v175
    %2115 = vmatpush1.msra.mxu0 %v174
    %2116 = vmatprep.subr.mxu0 %v183
    %2117 = vmatpush1.msra.mxu0 %v182
    %2118 = vmatprep.subr.mxu0 %v191
    %2119 = vmatpush1.msra.mxu0 %v190
    %2120 = vmatprep.subr.mxu0 %v199
    %2121 = vmatpush1.msra.mxu0 %v198
    %2122 = vmatprep.subr.mxu0 %v207
    %2123 = vmatpush1.msra.mxu0 %v206
    %2124 = vmatprep.subr.mxu0 %v215
    %2125 = vmatpush1.msra.mxu0 %v214
    %2126 = vmatprep.subr.mxu0 %v223
    %2127 = vmatpush1.msra.mxu0 %v222
    %2128 = vmatprep.subr.mxu0 %v231
    %2129 = vmatpush1.msra.mxu0 %v230
    %2130 = vmatprep.subr.mxu0 %v239
    %2131 = vmatpush1.msra.mxu0 %v238
    %2132 = vmatprep.subr.mxu0 %v247
    %2133 = vmatpush1.msra.mxu0 %v246
    %2134 = vmatprep.subr.mxu0 %v255
    %2135 = vmatpush1.msra.mxu0 %v254
    %2136 = vmatprep.subr.mxu0 %v263
    %2137 = vmatpush1.msra.mxu0 %v262
    %2138 = vmatprep.subr.mxu0 %v271
    %2139 = vmatpush1.msra.mxu0 %v270
    %2140 = vmatprep.subr.mxu0 %v279
    %2141 = vmatpush1.msra.mxu0 %v278
    %2142 = vmatprep.subr.mxu0 %v287
    %2143 = vmatpush1.msra.mxu0 %v286
    %2144 = vmatprep.subr.mxu0 %v295
    %2145 = vmatpush1.msra.mxu0 %v294
    %2146 = vmatprep.subr.mxu0 %v303
    %2147 = vmatpush1.msra.mxu0 %v302
    %2148 = vmatprep.subr.mxu0 %v311
    %2149 = vmatpush1.msra.mxu0 %v310
    %2150 = vmatprep.subr.mxu0 %v319
    %2151 = vmatpush1.msra.mxu0 %v318
    %2152 = vmatprep.mubr.f32.mxu0 %v1838
    %2153 = vmatmul.mubr.f32.gmra.mrb[0].mxu0 %v1837
    %v2154 = vpop.f32.mrb[0].mxu0
    %v2155 = vadd.f32 0.0, %v2154
    %v2156 = vpop.f32.mrb[0].mxu0
    %v2157 = vadd.f32 0.0, %v2156
    %2158 = vdwg.mxu0
    %v2159 = vrot.slane %v57, 2
    %v2160 = vrot.slane %v58, 1
    %v2161 = vsel %vm800, %v2160, %v2159
    %v2162 = vsel %vm810, %v2161, 0
    %2164 = vmatprep.subr.mxu0 %v816
    %2165 = vmatpush1.msra.mxu0 %v814
    %2166 = vmatprep.subr.mxu0 0.0
    %2167 = vmatpush1.msra.mxu0 0.0
    %2168 = vmatprep.subr.mxu0 0.0
    %2169 = vmatpush1.msra.mxu0 0.0
    %2170 = vmatprep.subr.mxu0 0.0
    %2171 = vmatpush1.msra.mxu0 0.0
    %2172 = vmatprep.subr.mxu0 0.0
    %2173 = vmatpush1.msra.mxu0 0.0
    %2174 = vmatprep.subr.mxu0 0.0
    %2175 = vmatpush1.msra.mxu0 0.0
    %2176 = vmatprep.subr.mxu0 0.0
    %2177 = vmatpush1.msra.mxu0 0.0
    %2178 = vmatprep.subr.mxu0 0.0
    %2179 = vmatpush1.msra.mxu0 0.0
    %2180 = vmatprep.subr.mxu0 0.0
    %2181 = vmatpush1.msra.mxu0 0.0
    %2182 = vmatprep.subr.mxu0 0.0
    %2183 = vmatpush1.msra.mxu0 0.0
    %2184 = vmatprep.subr.mxu0 0.0
    %2185 = vmatpush1.msra.mxu0 0.0
    %2186 = vmatprep.subr.mxu0 0.0
    %2187 = vmatpush1.msra.mxu0 0.0
    %2188 = vmatprep.subr.mxu0 0.0
    %2189 = vmatpush1.msra.mxu0 0.0
    %2190 = vmatprep.subr.mxu0 0.0
    %2191 = vmatpush1.msra.mxu0 0.0
    %2192 = vmatprep.subr.mxu0 0.0
    %2193 = vmatpush1.msra.mxu0 0.0
    %2194 = vmatprep.subr.mxu0 0.0
    %2195 = vmatpush1.msra.mxu0 0.0
    %2196 = vmatprep.subr.mxu0 0.0
    %2197 = vmatpush1.msra.mxu0 0.0
    %2198 = vmatprep.subr.mxu0 0.0
    %2199 = vmatpush1.msra.mxu0 0.0
    %2200 = vmatprep.subr.mxu0 0.0
    %2201 = vmatpush1.msra.mxu0 0.0
    %2202 = vmatprep.subr.mxu0 0.0
    %2203 = vmatpush1.msra.mxu0 0.0
    %2204 = vmatprep.subr.mxu0 0.0
    %2205 = vmatpush1.msra.mxu0 0.0
    %2206 = vmatprep.subr.mxu0 0.0
    %2207 = vmatpush1.msra.mxu0 0.0
    %2208 = vmatprep.subr.mxu0 0.0
    %2209 = vmatpush1.msra.mxu0 0.0
    %2210 = vmatprep.subr.mxu0 0.0
    %2211 = vmatpush1.msra.mxu0 0.0
    %2212 = vmatprep.subr.mxu0 0.0
    %2213 = vmatpush1.msra.mxu0 0.0
    %2214 = vmatprep.subr.mxu0 0.0
    %2215 = vmatpush1.msra.mxu0 0.0
    %2216 = vmatprep.subr.mxu0 0.0
    %2217 = vmatpush1.msra.mxu0 0.0
    %2218 = vmatprep.subr.mxu0 0.0
    %2219 = vmatpush1.msra.mxu0 0.0
    %2220 = vmatprep.subr.mxu0 0.0
    %2221 = vmatpush1.msra.mxu0 0.0
    %2222 = vmatprep.subr.mxu0 0.0
    %2223 = vmatpush1.msra.mxu0 0.0
    %2224 = vmatprep.subr.mxu0 0.0
    %2225 = vmatpush1.msra.mxu0 0.0
    %2226 = vmatprep.subr.mxu0 0.0
    %2227 = vmatpush1.msra.mxu0 0.0
    %2228 = vmatprep.mubr.f32.mxu0 0.0
    %2229 = vmatmul.mubr.f32.gmra.mrb[0].mxu0 %v2162
    %v2230 = vpop.f32.mrb[0].mxu0
    %v2231 = vadd.f32 %v1942, %v2230
    %v2232 = vpop.f32.mrb[0].mxu0
    %v2233 = vadd.f32 %v1944, %v2232
    %2234 = vdwg.mxu0
    %2235 = vmatprep.subr.mxu0 %v820
    %2236 = vmatpush1.msra.mxu0 %v818
    %2237 = vmatprep.subr.mxu0 0.0
    %2238 = vmatpush1.msra.mxu0 0.0
    %2239 = vmatprep.subr.mxu0 0.0
    %2240 = vmatpush1.msra.mxu0 0.0
    %2241 = vmatprep.subr.mxu0 0.0
    %2242 = vmatpush1.msra.mxu0 0.0
    %2243 = vmatprep.subr.mxu0 0.0
    %2244 = vmatpush1.msra.mxu0 0.0
    %2245 = vmatprep.subr.mxu0 0.0
    %2246 = vmatpush1.msra.mxu0 0.0
    %2247 = vmatprep.subr.mxu0 0.0
    %2248 = vmatpush1.msra.mxu0 0.0
    %2249 = vmatprep.subr.mxu0 0.0
    %2250 = vmatpush1.msra.mxu0 0.0
    %2251 = vmatprep.subr.mxu0 0.0
    %2252 = vmatpush1.msra.mxu0 0.0
    %2253 = vmatprep.subr.mxu0 0.0
    %2254 = vmatpush1.msra.mxu0 0.0
    %2255 = vmatprep.subr.mxu0 0.0
    %2256 = vmatpush1.msra.mxu0 0.0
    %2257 = vmatprep.subr.mxu0 0.0
    %2258 = vmatpush1.msra.mxu0 0.0
    %2259 = vmatprep.subr.mxu0 0.0
    %2260 = vmatpush1.msra.mxu0 0.0
    %2261 = vmatprep.subr.mxu0 0.0
    %2262 = vmatpush1.msra.mxu0 0.0
    %2263 = vmatprep.subr.mxu0 0.0
    %2264 = vmatpush1.msra.mxu0 0.0
    %2265 = vmatprep.subr.mxu0 0.0
    %2266 = vmatpush1.msra.mxu0 0.0
    %2267 = vmatprep.subr.mxu0 0.0
    %2268 = vmatpush1.msra.mxu0 0.0
    %2269 = vmatprep.subr.mxu0 0.0
    %2270 = vmatpush1.msra.mxu0 0.0
    %2271 = vmatprep.subr.mxu0 0.0
    %2272 = vmatpush1.msra.mxu0 0.0
    %2273 = vmatprep.subr.mxu0 0.0
    %2274 = vmatpush1.msra.mxu0 0.0
    %2275 = vmatprep.subr.mxu0 0.0
    %2276 = vmatpush1.msra.mxu0 0.0
    %2277 = vmatprep.subr.mxu0 0.0
    %2278 = vmatpush1.msra.mxu0 0.0
    %2279 = vmatprep.subr.mxu0 0.0
    %2280 = vmatpush1.msra.mxu0 0.0
    %2281 = vmatprep.subr.mxu0 0.0
    %2282 = vmatpush1.msra.mxu0 0.0
    %2283 = vmatprep.subr.mxu0 0.0
    %2284 = vmatpush1.msra.mxu0 0.0
    %2285 = vmatprep.subr.mxu0 0.0
    %2286 = vmatpush1.msra.mxu0 0.0
    %2287 = vmatprep.subr.mxu0 0.0
    %2288 = vmatpush1.msra.mxu0 0.0
    %2289 = vmatprep.subr.mxu0 0.0
    %2290 = vmatpush1.msra.mxu0 0.0
    %2291 = vmatprep.subr.mxu0 0.0
    %2292 = vmatpush1.msra.mxu0 0.0
    %2293 = vmatprep.subr.mxu0 0.0
    %2294 = vmatpush1.msra.mxu0 0.0
    %2295 = vmatprep.subr.mxu0 0.0
    %2296 = vmatpush1.msra.mxu0 0.0
    %2297 = vmatprep.subr.mxu0 0.0
    %2298 = vmatpush1.msra.mxu0 0.0
    %2299 = vmatprep.mubr.f32.mxu0 0.0
    %2300 = vmatmul.mubr.f32.gmra.mrb[0].mxu0 %v2162
    %v2301 = vpop.f32.mrb[0].mxu0
    %v2302 = vadd.f32 %v2013, %v2301
    %v2303 = vpop.f32.mrb[0].mxu0
    %v2304 = vadd.f32 %v2015, %v2303
    %2305 = vdwg.mxu0
    %2306 = vmatprep.subr.mxu0 %v824
    %2307 = vmatpush1.msra.mxu0 %v822
    %2308 = vmatprep.subr.mxu0 0.0
    %2309 = vmatpush1.msra.mxu0 0.0
    %2310 = vmatprep.subr.mxu0 0.0
    %2311 = vmatpush1.msra.mxu0 0.0
    %2312 = vmatprep.subr.mxu0 0.0
    %2313 = vmatpush1.msra.mxu0 0.0
    %2314 = vmatprep.subr.mxu0 0.0
    %2315 = vmatpush1.msra.mxu0 0.0
    %2316 = vmatprep.subr.mxu0 0.0
    %2317 = vmatpush1.msra.mxu0 0.0
    %2318 = vmatprep.subr.mxu0 0.0
    %2319 = vmatpush1.msra.mxu0 0.0
    %2320 = vmatprep.subr.mxu0 0.0
    %2321 = vmatpush1.msra.mxu0 0.0
    %2322 = vmatprep.subr.mxu0 0.0
    %2323 = vmatpush1.msra.mxu0 0.0
    %2324 = vmatprep.subr.mxu0 0.0
    %2325 = vmatpush1.msra.mxu0 0.0
    %2326 = vmatprep.subr.mxu0 0.0
    %2327 = vmatpush1.msra.mxu0 0.0
    %2328 = vmatprep.subr.mxu0 0.0
    %2329 = vmatpush1.msra.mxu0 0.0
    %2330 = vmatprep.subr.mxu0 0.0
    %2331 = vmatpush1.msra.mxu0 0.0
    %2332 = vmatprep.subr.mxu0 0.0
    %2333 = vmatpush1.msra.mxu0 0.0
    %2334 = vmatprep.subr.mxu0 0.0
    %2335 = vmatpush1.msra.mxu0 0.0
    %2336 = vmatprep.subr.mxu0 0.0
    %2337 = vmatpush1.msra.mxu0 0.0
    %2338 = vmatprep.subr.mxu0 0.0
    %2339 = vmatpush1.msra.mxu0 0.0
    %2340 = vmatprep.subr.mxu0 0.0
    %2341 = vmatpush1.msra.mxu0 0.0
    %2342 = vmatprep.subr.mxu0 0.0
    %2343 = vmatpush1.msra.mxu0 0.0
    %2344 = vmatprep.subr.mxu0 0.0
    %2345 = vmatpush1.msra.mxu0 0.0
    %2346 = vmatprep.subr.mxu0 0.0
    %2347 = vmatpush1.msra.mxu0 0.0
    %2348 = vmatprep.subr.mxu0 0.0
    %2349 = vmatpush1.msra.mxu0 0.0
    %2350 = vmatprep.subr.mxu0 0.0
    %2351 = vmatpush1.msra.mxu0 0.0
    %2352 = vmatprep.subr.mxu0 0.0
    %2353 = vmatpush1.msra.mxu0 0.0
    %2354 = vmatprep.subr.mxu0 0.0
    %2355 = vmatpush1.msra.mxu0 0.0
    %2356 = vmatprep.subr.mxu0 0.0
    %2357 = vmatpush1.msra.mxu0 0.0
    %2358 = vmatprep.subr.mxu0 0.0
    %2359 = vmatpush1.msra.mxu0 0.0
    %2360 = vmatprep.subr.mxu0 0.0
    %2361 = vmatpush1.msra.mxu0 0.0
    %2362 = vmatprep.subr.mxu0 0.0
    %2363 = vmatpush1.msra.mxu0 0.0
    %2364 = vmatprep.subr.mxu0 0.0
    %2365 = vmatpush1.msra.mxu0 0.0
    %2366 = vmatprep.subr.mxu0 0.0
    %2367 = vmatpush1.msra.mxu0 0.0
    %2368 = vmatprep.subr.mxu0 0.0
    %2369 = vmatpush1.msra.mxu0 0.0
    %2370 = vmatprep.mubr.f32.mxu0 0.0
    %2371 = vmatmul.mubr.f32.gmra.mrb[0].mxu0 %v2162
    %v2372 = vpop.f32.mrb[0].mxu0
    %v2373 = vadd.f32 %v2084, %v2372
    %v2374 = vpop.f32.mrb[0].mxu0
    %v2375 = vadd.f32 %v2086, %v2374
    %2376 = vdwg.mxu0
    %2377 = vmatprep.subr.mxu0 %v828
    %2378 = vmatpush1.msra.mxu0 %v826
    %2379 = vmatprep.subr.mxu0 0.0
    %2380 = vmatpush1.msra.mxu0 0.0
    %2381 = vmatprep.subr.mxu0 0.0
    %2382 = vmatpush1.msra.mxu0 0.0
    %2383 = vmatprep.subr.mxu0 0.0
    %2384 = vmatpush1.msra.mxu0 0.0
    %2385 = vmatprep.subr.mxu0 0.0
    %2386 = vmatpush1.msra.mxu0 0.0
    %2387 = vmatprep.subr.mxu0 0.0
    %2388 = vmatpush1.msra.mxu0 0.0
    %2389 = vmatprep.subr.mxu0 0.0
    %2390 = vmatpush1.msra.mxu0 0.0
    %2391 = vmatprep.subr.mxu0 0.0
    %2392 = vmatpush1.msra.mxu0 0.0
    %2393 = vmatprep.subr.mxu0 0.0
    %2394 = vmatpush1.msra.mxu0 0.0
    %2395 = vmatprep.subr.mxu0 0.0
    %2396 = vmatpush1.msra.mxu0 0.0
    %2397 = vmatprep.subr.mxu0 0.0
    %2398 = vmatpush1.msra.mxu0 0.0
    %2399 = vmatprep.subr.mxu0 0.0
    %2400 = vmatpush1.msra.mxu0 0.0
    %2401 = vmatprep.subr.mxu0 0.0
    %2402 = vmatpush1.msra.mxu0 0.0
    %2403 = vmatprep.subr.mxu0 0.0
    %2404 = vmatpush1.msra.mxu0 0.0
    %2405 = vmatprep.subr.mxu0 0.0
    %2406 = vmatpush1.msra.mxu0 0.0
    %2407 = vmatprep.subr.mxu0 0.0
    %2408 = vmatpush1.msra.mxu0 0.0
    %2409 = vmatprep.subr.mxu0 0.0
    %2410 = vmatpush1.msra.mxu0 0.0
    %2411 = vmatprep.subr.mxu0 0.0
    %2412 = vmatpush1.msra.mxu0 0.0
    %2413 = vmatprep.subr.mxu0 0.0
    %2414 = vmatpush1.msra.mxu0 0.0
    %2415 = vmatprep.subr.mxu0 0.0
    %2416 = vmatpush1.msra.mxu0 0.0
    %2417 = vmatprep.subr.mxu0 0.0
    %2418 = vmatpush1.msra.mxu0 0.0
    %2419 = vmatprep.subr.mxu0 0.0
    %2420 = vmatpush1.msra.mxu0 0.0
    %2421 = vmatprep.subr.mxu0 0.0
    %2422 = vmatpush1.msra.mxu0 0.0
    %2423 = vmatprep.subr.mxu0 0.0
    %2424 = vmatpush1.msra.mxu0 0.0
    %2425 = vmatprep.subr.mxu0 0.0
    %2426 = vmatpush1.msra.mxu0 0.0
    %2427 = vmatprep.subr.mxu0 0.0
    %2428 = vmatpush1.msra.mxu0 0.0
    %2429 = vmatprep.subr.mxu0 0.0
    %2430 = vmatpush1.msra.mxu0 0.0
    %2431 = vmatprep.subr.mxu0 0.0
    %2432 = vmatpush1.msra.mxu0 0.0
    %2433 = vmatprep.subr.mxu0 0.0
    %2434 = vmatpush1.msra.mxu0 0.0
    %2435 = vmatprep.subr.mxu0 0.0
    %2436 = vmatpush1.msra.mxu0 0.0
    %2437 = vmatprep.subr.mxu0 0.0
    %2438 = vmatpush1.msra.mxu0 0.0
    %2439 = vmatprep.subr.mxu0 0.0
    %2440 = vmatpush1.msra.mxu0 0.0
    %2441 = vmatprep.mubr.f32.mxu0 0.0
    %2442 = vmatmul.mubr.f32.gmra.mrb[0].mxu0 %v2162
    %v2443 = vpop.f32.mrb[0].mxu0
    %v2444 = vadd.f32 %v2155, %v2443
    %v2445 = vpop.f32.mrb[0].mxu0
    %v2446 = vadd.f32 %v2157, %v2445
    %2447 = vdwg.mxu0
    %v2448 = vadd.f32 %v2231, %v1118
    %v2449 = vadd.f32 %v2233, %v1122
    %v2450 = vadd.f32 %v2302, %v1126
    %v2451 = vadd.f32 %v2304, %v1130
    %v2452 = vadd.f32 %v2373, %v1134
    %v2453 = vadd.f32 %v2375, %v1138
    %v2454 = vadd.f32 %v2444, %v1142
    %v2455 = vadd.f32 %v2446, %v1146
    %v2456 = vxor.u32 %v2448, 2147483648
    %v2457 = vxor.u32 %v2449, 2147483648
    %v2458 = vmul.f32 %v2456, 1.442695
    %v2459 = vpow.pop %v2458
    %v2460 = vmul.f32 %v2457, 1.442695
    %v2461 = vpow.pop %v2460
    %v2462 = vadd.f32 %v2459, 1.0
    %v2463 = vadd.f32 %v2461, 1.0
    %v2464 = vrcp.pop %v2462
    %v2465 = vmul.f32 1.0, %v2464
    %v2466 = vrcp.pop %v2463
    %v2467 = vmul.f32 1.0, %v2466
    %v2468 = vxor.u32 %v2450, 2147483648
    %v2469 = vxor.u32 %v2451, 2147483648
    %v2470 = vmul.f32 %v2468, 1.442695
    %v2471 = vpow.pop %v2470
    %v2472 = vmul.f32 %v2469, 1.442695
    %v2473 = vpow.pop %v2472
    %v2474 = vadd.f32 %v2471, 1.0
    %v2475 = vadd.f32 %v2473, 1.0
    %v2476 = vrcp.pop %v2474
    %v2477 = vmul.f32 1.0, %v2476
    %v2478 = vrcp.pop %v2475
    %v2479 = vmul.f32 1.0, %v2478
    %v2480 = vtanh.pop %v2452
    %v2481 = vtanh.pop %v2453
    %v2482 = vxor.u32 %v2454, 2147483648
    %v2483 = vxor.u32 %v2455, 2147483648
    %v2484 = vmul.f32 %v2482, 1.442695
    %v2485 = vpow.pop %v2484
    %v2486 = vmul.f32 %v2483, 1.442695
    %v2487 = vpow.pop %v2486
    %v2488 = vadd.f32 %v2485, 1.0
    %v2489 = vadd.f32 %v2487, 1.0
    %v2490 = vrcp.pop %v2488
    %v2491 = vmul.f32 1.0, %v2490
    %v2492 = vrcp.pop %v2489
    %v2493 = vmul.f32 1.0, %v2492
    %v2494 = vmul.f32 %v2477, %v1833
    %v2495 = vmul.f32 %v2479, %v1834
    %v2496 = vmul.f32 %v2465, %v2480
    %v2497 = vmul.f32 %v2467, %v2481
    %v2498 = vadd.f32 %v2494, %v2496
    %v2499 = vadd.f32 %v2495, %v2497
    %v2500 = vtanh.pop %v2498
    %v2501 = vtanh.pop %v2499
    %v2502 = vmul.f32 %v2491, %v2500
    %v2503 = vmul.f32 %v2493, %v2501
    %v2506 = vcombine.low %v2502, %v2503
    %v2508 = vunpack.c.l.s4 1966171168
    %v2509 = vunpack.c.0.s8 %v2508
    %v2510 = vlaneseq
    %v2511 = vshrl.u32 %v2510, 7
    %v2512 = vsub.s32 %v2509, %v2511
    %v2513 = vrot.slane %v2506, %v2512
    %v2514 = vcombine.high %v2513, %v2513
    %v2516 = vunpack.c.l.s4 1966171168
    %v2517 = vunpack.c.0.s8 %v2516
    %v2518 = vlaneseq
    %v2519 = vshrl.u32 %v2518, 7
    %v2520 = vsub.s32 %v2517, %v2519
    %v2521 = vrot.slane %v2513, %v2520
    %v2523 = vunpack.c.l.s4 1966171168
    %v2524 = vunpack.c.0.s8 %v2523
    %v2525 = vlaneseq
    %v2526 = vshrl.u32 %v2525, 7
    %v2527 = vsub.s32 %v2524, %v2526
    %v2528 = vrot.slane %v2514, %v2527
    %s2531 = scalar_lea.vmem [#allocation2], 1
    %2532 = vst.msk [vmem:[%s2531] ss:$8 sm:$0x3] %vm1869, %v2521
    %2533 = vst.msk [vmem:[%s2531] ss:$8 sm:$0x0] %vm1869, %v2521
    %s2534 = scalar_lea.vmem [#allocation2], 33
    %2535 = vst.msk [vmem:[%s2534] ss:$8 sm:$0x3] %vm1869, %v2528
    %2536 = vst.msk [vmem:[%s2534] ss:$8 sm:$0x0] %vm1869, %v2528
    %2537 = vmatprep.subr.mxu0 %v65
    %2538 = vmatpush1.msra.mxu0 %v64
    %2539 = vmatprep.subr.mxu0 %v73
    %2540 = vmatpush1.msra.mxu0 %v72
    %2541 = vmatprep.subr.mxu0 %v81
    %2542 = vmatpush1.msra.mxu0 %v80
    %2543 = vmatprep.subr.mxu0 %v89
    %2544 = vmatpush1.msra.mxu0 %v88
    %2545 = vmatprep.subr.mxu0 %v97
    %2546 = vmatpush1.msra.mxu0 %v96
    %2547 = vmatprep.subr.mxu0 %v105
    %2548 = vmatpush1.msra.mxu0 %v104
    %2549 = vmatprep.subr.mxu0 %v113
    %2550 = vmatpush1.msra.mxu0 %v112
    %2551 = vmatprep.subr.mxu0 %v121
    %2552 = vmatpush1.msra.mxu0 %v120
    %2553 = vmatprep.subr.mxu0 %v129
    %2554 = vmatpush1.msra.mxu0 %v128
    %2555 = vmatprep.subr.mxu0 %v137
    %2556 = vmatpush1.msra.mxu0 %v136
    %2557 = vmatprep.subr.mxu0 %v145
    %2558 = vmatpush1.msra.mxu0 %v144
    %2559 = vmatprep.subr.mxu0 %v153
    %2560 = vmatpush1.msra.mxu0 %v152
    %2561 = vmatprep.subr.mxu0 %v161
    %2562 = vmatpush1.msra.mxu0 %v160
    %2563 = vmatprep.subr.mxu0 %v169
    %2564 = vmatpush1.msra.mxu0 %v168
    %2565 = vmatprep.subr.mxu0 %v177
    %2566 = vmatpush1.msra.mxu0 %v176
    %2567 = vmatprep.subr.mxu0 %v185
    %2568 = vmatpush1.msra.mxu0 %v184
    %2569 = vmatprep.subr.mxu0 %v193
    %2570 = vmatpush1.msra.mxu0 %v192
    %2571 = vmatprep.subr.mxu0 %v201
    %2572 = vmatpush1.msra.mxu0 %v200
    %2573 = vmatprep.subr.mxu0 %v209
    %2574 = vmatpush1.msra.mxu0 %v208
    %2575 = vmatprep.subr.mxu0 %v217
    %2576 = vmatpush1.msra.mxu0 %v216
    %2577 = vmatprep.subr.mxu0 %v225
    %2578 = vmatpush1.msra.mxu0 %v224
    %2579 = vmatprep.subr.mxu0 %v233
    %2580 = vmatpush1.msra.mxu0 %v232
    %2581 = vmatprep.subr.mxu0 %v241
    %2582 = vmatpush1.msra.mxu0 %v240
    %2583 = vmatprep.subr.mxu0 %v249
    %2584 = vmatpush1.msra.mxu0 %v248
    %2585 = vmatprep.subr.mxu0 %v257
    %2586 = vmatpush1.msra.mxu0 %v256
    %2587 = vmatprep.subr.mxu0 %v265
    %2588 = vmatpush1.msra.mxu0 %v264
    %2589 = vmatprep.subr.mxu0 %v273
    %2590 = vmatpush1.msra.mxu0 %v272
    %2591 = vmatprep.subr.mxu0 %v281
    %2592 = vmatpush1.msra.mxu0 %v280
    %2593 = vmatprep.subr.mxu0 %v289
    %2594 = vmatpush1.msra.mxu0 %v288
    %2595 = vmatprep.subr.mxu0 %v297
    %2596 = vmatpush1.msra.mxu0 %v296
    %2597 = vmatprep.subr.mxu0 %v305
    %2598 = vmatpush1.msra.mxu0 %v304
    %2599 = vmatprep.subr.mxu0 %v313
    %2600 = vmatpush1.msra.mxu0 %v312
    %2601 = vmatprep.mubr.f32.mxu0 %v2503
    %2602 = vmatmul.mubr.f32.gmra.mrb[0].mxu0 %v2502
    %v2603 = vpop.f32.mrb[0].mxu0
    %v2604 = vadd.f32 0.0, %v2603
    %v2605 = vpop.f32.mrb[0].mxu0
    %v2606 = vadd.f32 0.0, %v2605
    %2607 = vdwg.mxu0
    %2608 = vmatprep.subr.mxu0 %v67
    %2609 = vmatpush1.msra.mxu0 %v66
    %2610 = vmatprep.subr.mxu0 %v75
    %2611 = vmatpush1.msra.mxu0 %v74
    %2612 = vmatprep.subr.mxu0 %v83
    %2613 = vmatpush1.msra.mxu0 %v82
    %2614 = vmatprep.subr.mxu0 %v91
    %2615 = vmatpush1.msra.mxu0 %v90
    %2616 = vmatprep.subr.mxu0 %v99
    %2617 = vmatpush1.msra.mxu0 %v98
    %2618 = vmatprep.subr.mxu0 %v107
    %2619 = vmatpush1.msra.mxu0 %v106
    %2620 = vmatprep.subr.mxu0 %v115
    %2621 = vmatpush1.msra.mxu0 %v114
    %2622 = vmatprep.subr.mxu0 %v123
    %2623 = vmatpush1.msra.mxu0 %v122
    %2624 = vmatprep.subr.mxu0 %v131
    %2625 = vmatpush1.msra.mxu0 %v130
    %2626 = vmatprep.subr.mxu0 %v139
    %2627 = vmatpush1.msra.mxu0 %v138
    %2628 = vmatprep.subr.mxu0 %v147
    %2629 = vmatpush1.msra.mxu0 %v146
    %2630 = vmatprep.subr.mxu0 %v155
    %2631 = vmatpush1.msra.mxu0 %v154
    %2632 = vmatprep.subr.mxu0 %v163
    %2633 = vmatpush1.msra.mxu0 %v162
    %2634 = vmatprep.subr.mxu0 %v171
    %2635 = vmatpush1.msra.mxu0 %v170
    %2636 = vmatprep.subr.mxu0 %v179
    %2637 = vmatpush1.msra.mxu0 %v178
    %2638 = vmatprep.subr.mxu0 %v187
    %2639 = vmatpush1.msra.mxu0 %v186
    %2640 = vmatprep.subr.mxu0 %v195
    %2641 = vmatpush1.msra.mxu0 %v194
    %2642 = vmatprep.subr.mxu0 %v203
    %2643 = vmatpush1.msra.mxu0 %v202
    %2644 = vmatprep.subr.mxu0 %v211
    %2645 = vmatpush1.msra.mxu0 %v210
    %2646 = vmatprep.subr.mxu0 %v219
    %2647 = vmatpush1.msra.mxu0 %v218
    %2648 = vmatprep.subr.mxu0 %v227
    %2649 = vmatpush1.msra.mxu0 %v226
    %2650 = vmatprep.subr.mxu0 %v235
    %2651 = vmatpush1.msra.mxu0 %v234
    %2652 = vmatprep.subr.mxu0 %v243
    %2653 = vmatpush1.msra.mxu0 %v242
    %2654 = vmatprep.subr.mxu0 %v251
    %2655 = vmatpush1.msra.mxu0 %v250
    %2656 = vmatprep.subr.mxu0 %v259
    %2657 = vmatpush1.msra.mxu0 %v258
    %2658 = vmatprep.subr.mxu0 %v267
    %2659 = vmatpush1.msra.mxu0 %v266
    %2660 = vmatprep.subr.mxu0 %v275
    %2661 = vmatpush1.msra.mxu0 %v274
    %2662 = vmatprep.subr.mxu0 %v283
    %2663 = vmatpush1.msra.mxu0 %v282
    %2664 = vmatprep.subr.mxu0 %v291
    %2665 = vmatpush1.msra.mxu0 %v290
    %2666 = vmatprep.subr.mxu0 %v299
    %2667 = vmatpush1.msra.mxu0 %v298
    %2668 = vmatprep.subr.mxu0 %v307
    %2669 = vmatpush1.msra.mxu0 %v306
    %2670 = vmatprep.subr.mxu0 %v315
    %2671 = vmatpush1.msra.mxu0 %v314
    %2672 = vmatprep.mubr.f32.mxu0 %v2503
    %2673 = vmatmul.mubr.f32.gmra.mrb[0].mxu0 %v2502
    %v2674 = vpop.f32.mrb[0].mxu0
    %v2675 = vadd.f32 0.0, %v2674
    %v2676 = vpop.f32.mrb[0].mxu0
    %v2677 = vadd.f32 0.0, %v2676
    %2678 = vdwg.mxu0
    %2679 = vmatprep.subr.mxu0 %v69
    %2680 = vmatpush1.msra.mxu0 %v68
    %2681 = vmatprep.subr.mxu0 %v77
    %2682 = vmatpush1.msra.mxu0 %v76
    %2683 = vmatprep.subr.mxu0 %v85
    %2684 = vmatpush1.msra.mxu0 %v84
    %2685 = vmatprep.subr.mxu0 %v93
    %2686 = vmatpush1.msra.mxu0 %v92
    %2687 = vmatprep.subr.mxu0 %v101
    %2688 = vmatpush1.msra.mxu0 %v100
    %2689 = vmatprep.subr.mxu0 %v109
    %2690 = vmatpush1.msra.mxu0 %v108
    %2691 = vmatprep.subr.mxu0 %v117
    %2692 = vmatpush1.msra.mxu0 %v116
    %2693 = vmatprep.subr.mxu0 %v125
    %2694 = vmatpush1.msra.mxu0 %v124
    %2695 = vmatprep.subr.mxu0 %v133
    %2696 = vmatpush1.msra.mxu0 %v132
    %2697 = vmatprep.subr.mxu0 %v141
    %2698 = vmatpush1.msra.mxu0 %v140
    %2699 = vmatprep.subr.mxu0 %v149
    %2700 = vmatpush1.msra.mxu0 %v148
    %2701 = vmatprep.subr.mxu0 %v157
    %2702 = vmatpush1.msra.mxu0 %v156
    %2703 = vmatprep.subr.mxu0 %v165
    %2704 = vmatpush1.msra.mxu0 %v164
    %2705 = vmatprep.subr.mxu0 %v173
    %2706 = vmatpush1.msra.mxu0 %v172
    %2707 = vmatprep.subr.mxu0 %v181
    %2708 = vmatpush1.msra.mxu0 %v180
    %2709 = vmatprep.subr.mxu0 %v189
    %2710 = vmatpush1.msra.mxu0 %v188
    %2711 = vmatprep.subr.mxu0 %v197
    %2712 = vmatpush1.msra.mxu0 %v196
    %2713 = vmatprep.subr.mxu0 %v205
    %2714 = vmatpush1.msra.mxu0 %v204
    %2715 = vmatprep.subr.mxu0 %v213
    %2716 = vmatpush1.msra.mxu0 %v212
    %2717 = vmatprep.subr.mxu0 %v221
    %2718 = vmatpush1.msra.mxu0 %v220
    %2719 = vmatprep.subr.mxu0 %v229
    %2720 = vmatpush1.msra.mxu0 %v228
    %2721 = vmatprep.subr.mxu0 %v237
    %2722 = vmatpush1.msra.mxu0 %v236
    %2723 = vmatprep.subr.mxu0 %v245
    %2724 = vmatpush1.msra.mxu0 %v244
    %2725 = vmatprep.subr.mxu0 %v253
    %2726 = vmatpush1.msra.mxu0 %v252
    %2727 = vmatprep.subr.mxu0 %v261
    %2728 = vmatpush1.msra.mxu0 %v260
    %2729 = vmatprep.subr.mxu0 %v269
    %2730 = vmatpush1.msra.mxu0 %v268
    %2731 = vmatprep.subr.mxu0 %v277
    %2732 = vmatpush1.msra.mxu0 %v276
    %2733 = vmatprep.subr.mxu0 %v285
    %2734 = vmatpush1.msra.mxu0 %v284
    %2735 = vmatprep.subr.mxu0 %v293
    %2736 = vmatpush1.msra.mxu0 %v292
    %2737 = vmatprep.subr.mxu0 %v301
    %2738 = vmatpush1.msra.mxu0 %v300
    %2739 = vmatprep.subr.mxu0 %v309
    %2740 = vmatpush1.msra.mxu0 %v308
    %2741 = vmatprep.subr.mxu0 %v317
    %2742 = vmatpush1.msra.mxu0 %v316
    %2743 = vmatprep.mubr.f32.mxu0 %v2503
    %2744 = vmatmul.mubr.f32.gmra.mrb[0].mxu0 %v2502
    %v2745 = vpop.f32.mrb[0].mxu0
    %v2746 = vadd.f32 0.0, %v2745
    %v2747 = vpop.f32.mrb[0].mxu0
    %v2748 = vadd.f32 0.0, %v2747
    %2749 = vdwg.mxu0
    %2750 = vmatprep.subr.mxu0 %v71
    %2751 = vmatpush1.msra.mxu0 %v70
    %2752 = vmatprep.subr.mxu0 %v79
    %2753 = vmatpush1.msra.mxu0 %v78
    %2754 = vmatprep.subr.mxu0 %v87
    %2755 = vmatpush1.msra.mxu0 %v86
    %2756 = vmatprep.subr.mxu0 %v95
    %2757 = vmatpush1.msra.mxu0 %v94
    %2758 = vmatprep.subr.mxu0 %v103
    %2759 = vmatpush1.msra.mxu0 %v102
    %2760 = vmatprep.subr.mxu0 %v111
    %2761 = vmatpush1.msra.mxu0 %v110
    %2762 = vmatprep.subr.mxu0 %v119
    %2763 = vmatpush1.msra.mxu0 %v118
    %2764 = vmatprep.subr.mxu0 %v127
    %2765 = vmatpush1.msra.mxu0 %v126
    %2766 = vmatprep.subr.mxu0 %v135
    %2767 = vmatpush1.msra.mxu0 %v134
    %2768 = vmatprep.subr.mxu0 %v143
    %2769 = vmatpush1.msra.mxu0 %v142
    %2770 = vmatprep.subr.mxu0 %v151
    %2771 = vmatpush1.msra.mxu0 %v150
    %2772 = vmatprep.subr.mxu0 %v159
    %2773 = vmatpush1.msra.mxu0 %v158
    %2774 = vmatprep.subr.mxu0 %v167
    %2775 = vmatpush1.msra.mxu0 %v166
    %2776 = vmatprep.subr.mxu0 %v175
    %2777 = vmatpush1.msra.mxu0 %v174
    %2778 = vmatprep.subr.mxu0 %v183
    %2779 = vmatpush1.msra.mxu0 %v182
    %2780 = vmatprep.subr.mxu0 %v191
    %2781 = vmatpush1.msra.mxu0 %v190
    %2782 = vmatprep.subr.mxu0 %v199
    %2783 = vmatpush1.msra.mxu0 %v198
    %2784 = vmatprep.subr.mxu0 %v207
    %2785 = vmatpush1.msra.mxu0 %v206
    %2786 = vmatprep.subr.mxu0 %v215
    %2787 = vmatpush1.msra.mxu0 %v214
    %2788 = vmatprep.subr.mxu0 %v223
    %2789 = vmatpush1.msra.mxu0 %v222
    %2790 = vmatprep.subr.mxu0 %v231
    %2791 = vmatpush1.msra.mxu0 %v230
    %2792 = vmatprep.subr.mxu0 %v239
    %2793 = vmatpush1.msra.mxu0 %v238
    %2794 = vmatprep.subr.mxu0 %v247
    %2795 = vmatpush1.msra.mxu0 %v246
    %2796 = vmatprep.subr.mxu0 %v255
    %2797 = vmatpush1.msra.mxu0 %v254
    %2798 = vmatprep.subr.mxu0 %v263
    %2799 = vmatpush1.msra.mxu0 %v262
    %2800 = vmatprep.subr.mxu0 %v271
    %2801 = vmatpush1.msra.mxu0 %v270
    %2802 = vmatprep.subr.mxu0 %v279
    %2803 = vmatpush1.msra.mxu0 %v278
    %2804 = vmatprep.subr.mxu0 %v287
    %2805 = vmatpush1.msra.mxu0 %v286
    %2806 = vmatprep.subr.mxu0 %v295
    %2807 = vmatpush1.msra.mxu0 %v294
    %2808 = vmatprep.subr.mxu0 %v303
    %2809 = vmatpush1.msra.mxu0 %v302
    %2810 = vmatprep.subr.mxu0 %v311
    %2811 = vmatpush1.msra.mxu0 %v310
    %2812 = vmatprep.subr.mxu0 %v319
    %2813 = vmatpush1.msra.mxu0 %v318
    %2814 = vmatprep.mubr.f32.mxu0 %v2503
    %2815 = vmatmul.mubr.f32.gmra.mrb[0].mxu0 %v2502
    %v2816 = vpop.f32.mrb[0].mxu0
    %v2817 = vadd.f32 0.0, %v2816
    %v2818 = vpop.f32.mrb[0].mxu0
    %v2819 = vadd.f32 0.0, %v2818
    %2820 = vdwg.mxu0
    %v2821 = vrot.slane %v57, 3
    %v2822 = vrot.slane %v58, 2
    %v2823 = vsel %vm800, %v2822, %v2821
    %v2824 = vsel %vm810, %v2823, 0
    %2826 = vmatprep.subr.mxu0 %v816
    %2827 = vmatpush1.msra.mxu0 %v814
    %2828 = vmatprep.subr.mxu0 0.0
    %2829 = vmatpush1.msra.mxu0 0.0
    %2830 = vmatprep.subr.mxu0 0.0
    %2831 = vmatpush1.msra.mxu0 0.0
    %2832 = vmatprep.subr.mxu0 0.0
    %2833 = vmatpush1.msra.mxu0 0.0
    %2834 = vmatprep.subr.mxu0 0.0
    %2835 = vmatpush1.msra.mxu0 0.0
    %2836 = vmatprep.subr.mxu0 0.0
    %2837 = vmatpush1.msra.mxu0 0.0
    %2838 = vmatprep.subr.mxu0 0.0
    %2839 = vmatpush1.msra.mxu0 0.0
    %2840 = vmatprep.subr.mxu0 0.0
    %2841 = vmatpush1.msra.mxu0 0.0
    %2842 = vmatprep.subr.mxu0 0.0
    %2843 = vmatpush1.msra.mxu0 0.0
    %2844 = vmatprep.subr.mxu0 0.0
    %2845 = vmatpush1.msra.mxu0 0.0
    %2846 = vmatprep.subr.mxu0 0.0
    %2847 = vmatpush1.msra.mxu0 0.0
    %2848 = vmatprep.subr.mxu0 0.0
    %2849 = vmatpush1.msra.mxu0 0.0
    %2850 = vmatprep.subr.mxu0 0.0
    %2851 = vmatpush1.msra.mxu0 0.0
    %2852 = vmatprep.subr.mxu0 0.0
    %2853 = vmatpush1.msra.mxu0 0.0
    %2854 = vmatprep.subr.mxu0 0.0
    %2855 = vmatpush1.msra.mxu0 0.0
    %2856 = vmatprep.subr.mxu0 0.0
    %2857 = vmatpush1.msra.mxu0 0.0
    %2858 = vmatprep.subr.mxu0 0.0
    %2859 = vmatpush1.msra.mxu0 0.0
    %2860 = vmatprep.subr.mxu0 0.0
    %2861 = vmatpush1.msra.mxu0 0.0
    %2862 = vmatprep.subr.mxu0 0.0
    %2863 = vmatpush1.msra.mxu0 0.0
    %2864 = vmatprep.subr.mxu0 0.0
    %2865 = vmatpush1.msra.mxu0 0.0
    %2866 = vmatprep.subr.mxu0 0.0
    %2867 = vmatpush1.msra.mxu0 0.0
    %2868 = vmatprep.subr.mxu0 0.0
    %2869 = vmatpush1.msra.mxu0 0.0
    %2870 = vmatprep.subr.mxu0 0.0
    %2871 = vmatpush1.msra.mxu0 0.0
    %2872 = vmatprep.subr.mxu0 0.0
    %2873 = vmatpush1.msra.mxu0 0.0
    %2874 = vmatprep.subr.mxu0 0.0
    %2875 = vmatpush1.msra.mxu0 0.0
    %2876 = vmatprep.subr.mxu0 0.0
    %2877 = vmatpush1.msra.mxu0 0.0
    %2878 = vmatprep.subr.mxu0 0.0
    %2879 = vmatpush1.msra.mxu0 0.0
    %2880 = vmatprep.subr.mxu0 0.0
    %2881 = vmatpush1.msra.mxu0 0.0
    %2882 = vmatprep.subr.mxu0 0.0
    %2883 = vmatpush1.msra.mxu0 0.0
    %2884 = vmatprep.subr.mxu0 0.0
    %2885 = vmatpush1.msra.mxu0 0.0
    %2886 = vmatprep.subr.mxu0 0.0
    %2887 = vmatpush1.msra.mxu0 0.0
    %2888 = vmatprep.subr.mxu0 0.0
    %2889 = vmatpush1.msra.mxu0 0.0
    %2890 = vmatprep.mubr.f32.mxu0 0.0
    %2891 = vmatmul.mubr.f32.gmra.mrb[0].mxu0 %v2824
    %v2892 = vpop.f32.mrb[0].mxu0
    %v2893 = vadd.f32 %v2604, %v2892
    %v2894 = vpop.f32.mrb[0].mxu0
    %v2895 = vadd.f32 %v2606, %v2894
    %2896 = vdwg.mxu0
    %2897 = vmatprep.subr.mxu0 %v820
    %2898 = vmatpush1.msra.mxu0 %v818
    %2899 = vmatprep.subr.mxu0 0.0
    %2900 = vmatpush1.msra.mxu0 0.0
    %2901 = vmatprep.subr.mxu0 0.0
    %2902 = vmatpush1.msra.mxu0 0.0
    %2903 = vmatprep.subr.mxu0 0.0
    %2904 = vmatpush1.msra.mxu0 0.0
    %2905 = vmatprep.subr.mxu0 0.0
    %2906 = vmatpush1.msra.mxu0 0.0
    %2907 = vmatprep.subr.mxu0 0.0
    %2908 = vmatpush1.msra.mxu0 0.0
    %2909 = vmatprep.subr.mxu0 0.0
    %2910 = vmatpush1.msra.mxu0 0.0
    %2911 = vmatprep.subr.mxu0 0.0
    %2912 = vmatpush1.msra.mxu0 0.0
    %2913 = vmatprep.subr.mxu0 0.0
    %2914 = vmatpush1.msra.mxu0 0.0
    %2915 = vmatprep.subr.mxu0 0.0
    %2916 = vmatpush1.msra.mxu0 0.0
    %2917 = vmatprep.subr.mxu0 0.0
    %2918 = vmatpush1.msra.mxu0 0.0
    %2919 = vmatprep.subr.mxu0 0.0
    %2920 = vmatpush1.msra.mxu0 0.0
    %2921 = vmatprep.subr.mxu0 0.0
    %2922 = vmatpush1.msra.mxu0 0.0
    %2923 = vmatprep.subr.mxu0 0.0
    %2924 = vmatpush1.msra.mxu0 0.0
    %2925 = vmatprep.subr.mxu0 0.0
    %2926 = vmatpush1.msra.mxu0 0.0
    %2927 = vmatprep.subr.mxu0 0.0
    %2928 = vmatpush1.msra.mxu0 0.0
    %2929 = vmatprep.subr.mxu0 0.0
    %2930 = vmatpush1.msra.mxu0 0.0
    %2931 = vmatprep.subr.mxu0 0.0
    %2932 = vmatpush1.msra.mxu0 0.0
    %2933 = vmatprep.subr.mxu0 0.0
    %2934 = vmatpush1.msra.mxu0 0.0
    %2935 = vmatprep.subr.mxu0 0.0
    %2936 = vmatpush1.msra.mxu0 0.0
    %2937 = vmatprep.subr.mxu0 0.0
    %2938 = vmatpush1.msra.mxu0 0.0
    %2939 = vmatprep.subr.mxu0 0.0
    %2940 = vmatpush1.msra.mxu0 0.0
    %2941 = vmatprep.subr.mxu0 0.0
    %2942 = vmatpush1.msra.mxu0 0.0
    %2943 = vmatprep.subr.mxu0 0.0
    %2944 = vmatpush1.msra.mxu0 0.0
    %2945 = vmatprep.subr.mxu0 0.0
    %2946 = vmatpush1.msra.mxu0 0.0
    %2947 = vmatprep.subr.mxu0 0.0
    %2948 = vmatpush1.msra.mxu0 0.0
    %2949 = vmatprep.subr.mxu0 0.0
    %2950 = vmatpush1.msra.mxu0 0.0
    %2951 = vmatprep.subr.mxu0 0.0
    %2952 = vmatpush1.msra.mxu0 0.0
    %2953 = vmatprep.subr.mxu0 0.0
    %2954 = vmatpush1.msra.mxu0 0.0
    %2955 = vmatprep.subr.mxu0 0.0
    %2956 = vmatpush1.msra.mxu0 0.0
    %2957 = vmatprep.subr.mxu0 0.0
    %2958 = vmatpush1.msra.mxu0 0.0
    %2959 = vmatprep.subr.mxu0 0.0
    %2960 = vmatpush1.msra.mxu0 0.0
    %2961 = vmatprep.mubr.f32.mxu0 0.0
    %2962 = vmatmul.mubr.f32.gmra.mrb[0].mxu0 %v2824
    %v2963 = vpop.f32.mrb[0].mxu0
    %v2964 = vadd.f32 %v2675, %v2963
    %v2965 = vpop.f32.mrb[0].mxu0
    %v2966 = vadd.f32 %v2677, %v2965
    %2967 = vdwg.mxu0
    %2968 = vmatprep.subr.mxu0 %v824
    %2969 = vmatpush1.msra.mxu0 %v822
    %2970 = vmatprep.subr.mxu0 0.0
    %2971 = vmatpush1.msra.mxu0 0.0
    %2972 = vmatprep.subr.mxu0 0.0
    %2973 = vmatpush1.msra.mxu0 0.0
    %2974 = vmatprep.subr.mxu0 0.0
    %2975 = vmatpush1.msra.mxu0 0.0
    %2976 = vmatprep.subr.mxu0 0.0
    %2977 = vmatpush1.msra.mxu0 0.0
    %2978 = vmatprep.subr.mxu0 0.0
    %2979 = vmatpush1.msra.mxu0 0.0
    %2980 = vmatprep.subr.mxu0 0.0
    %2981 = vmatpush1.msra.mxu0 0.0
    %2982 = vmatprep.subr.mxu0 0.0
    %2983 = vmatpush1.msra.mxu0 0.0
    %2984 = vmatprep.subr.mxu0 0.0
    %2985 = vmatpush1.msra.mxu0 0.0
    %2986 = vmatprep.subr.mxu0 0.0
    %2987 = vmatpush1.msra.mxu0 0.0
    %2988 = vmatprep.subr.mxu0 0.0
    %2989 = vmatpush1.msra.mxu0 0.0
    %2990 = vmatprep.subr.mxu0 0.0
    %2991 = vmatpush1.msra.mxu0 0.0
    %2992 = vmatprep.subr.mxu0 0.0
    %2993 = vmatpush1.msra.mxu0 0.0
    %2994 = vmatprep.subr.mxu0 0.0
    %2995 = vmatpush1.msra.mxu0 0.0
    %2996 = vmatprep.subr.mxu0 0.0
    %2997 = vmatpush1.msra.mxu0 0.0
    %2998 = vmatprep.subr.mxu0 0.0
    %2999 = vmatpush1.msra.mxu0 0.0
    %3000 = vmatprep.subr.mxu0 0.0
    %3001 = vmatpush1.msra.mxu0 0.0
    %3002 = vmatprep.subr.mxu0 0.0
    %3003 = vmatpush1.msra.mxu0 0.0
    %3004 = vmatprep.subr.mxu0 0.0
    %3005 = vmatpush1.msra.mxu0 0.0
    %3006 = vmatprep.subr.mxu0 0.0
    %3007 = vmatpush1.msra.mxu0 0.0
    %3008 = vmatprep.subr.mxu0 0.0
    %3009 = vmatpush1.msra.mxu0 0.0
    %3010 = vmatprep.subr.mxu0 0.0
    %3011 = vmatpush1.msra.mxu0 0.0
    %3012 = vmatprep.subr.mxu0 0.0
    %3013 = vmatpush1.msra.mxu0 0.0
    %3014 = vmatprep.subr.mxu0 0.0
    %3015 = vmatpush1.msra.mxu0 0.0
    %3016 = vmatprep.subr.mxu0 0.0
    %3017 = vmatpush1.msra.mxu0 0.0
    %3018 = vmatprep.subr.mxu0 0.0
    %3019 = vmatpush1.msra.mxu0 0.0
    %3020 = vmatprep.subr.mxu0 0.0
    %3021 = vmatpush1.msra.mxu0 0.0
    %3022 = vmatprep.subr.mxu0 0.0
    %3023 = vmatpush1.msra.mxu0 0.0
    %3024 = vmatprep.subr.mxu0 0.0
    %3025 = vmatpush1.msra.mxu0 0.0
    %3026 = vmatprep.subr.mxu0 0.0
    %3027 = vmatpush1.msra.mxu0 0.0
    %3028 = vmatprep.subr.mxu0 0.0
    %3029 = vmatpush1.msra.mxu0 0.0
    %3030 = vmatprep.subr.mxu0 0.0
    %3031 = vmatpush1.msra.mxu0 0.0
    %3032 = vmatprep.mubr.f32.mxu0 0.0
    %3033 = vmatmul.mubr.f32.gmra.mrb[0].mxu0 %v2824
    %v3034 = vpop.f32.mrb[0].mxu0
    %v3035 = vadd.f32 %v2746, %v3034
    %v3036 = vpop.f32.mrb[0].mxu0
    %v3037 = vadd.f32 %v2748, %v3036
    %3038 = vdwg.mxu0
    %3039 = vmatprep.subr.mxu0 %v828
    %3040 = vmatpush1.msra.mxu0 %v826
    %3041 = vmatprep.subr.mxu0 0.0
    %3042 = vmatpush1.msra.mxu0 0.0
    %3043 = vmatprep.subr.mxu0 0.0
    %3044 = vmatpush1.msra.mxu0 0.0
    %3045 = vmatprep.subr.mxu0 0.0
    %3046 = vmatpush1.msra.mxu0 0.0
    %3047 = vmatprep.subr.mxu0 0.0
    %3048 = vmatpush1.msra.mxu0 0.0
    %3049 = vmatprep.subr.mxu0 0.0
    %3050 = vmatpush1.msra.mxu0 0.0
    %3051 = vmatprep.subr.mxu0 0.0
    %3052 = vmatpush1.msra.mxu0 0.0
    %3053 = vmatprep.subr.mxu0 0.0
    %3054 = vmatpush1.msra.mxu0 0.0
    %3055 = vmatprep.subr.mxu0 0.0
    %3056 = vmatpush1.msra.mxu0 0.0
    %3057 = vmatprep.subr.mxu0 0.0
    %3058 = vmatpush1.msra.mxu0 0.0
    %3059 = vmatprep.subr.mxu0 0.0
    %3060 = vmatpush1.msra.mxu0 0.0
    %3061 = vmatprep.subr.mxu0 0.0
    %3062 = vmatpush1.msra.mxu0 0.0
    %3063 = vmatprep.subr.mxu0 0.0
    %3064 = vmatpush1.msra.mxu0 0.0
    %3065 = vmatprep.subr.mxu0 0.0
    %3066 = vmatpush1.msra.mxu0 0.0
    %3067 = vmatprep.subr.mxu0 0.0
    %3068 = vmatpush1.msra.mxu0 0.0
    %3069 = vmatprep.subr.mxu0 0.0
    %3070 = vmatpush1.msra.mxu0 0.0
    %3071 = vmatprep.subr.mxu0 0.0
    %3072 = vmatpush1.msra.mxu0 0.0
    %3073 = vmatprep.subr.mxu0 0.0
    %3074 = vmatpush1.msra.mxu0 0.0
    %3075 = vmatprep.subr.mxu0 0.0
    %3076 = vmatpush1.msra.mxu0 0.0
    %3077 = vmatprep.subr.mxu0 0.0
    %3078 = vmatpush1.msra.mxu0 0.0
    %3079 = vmatprep.subr.mxu0 0.0
    %3080 = vmatpush1.msra.mxu0 0.0
    %3081 = vmatprep.subr.mxu0 0.0
    %3082 = vmatpush1.msra.mxu0 0.0
    %3083 = vmatprep.subr.mxu0 0.0
    %3084 = vmatpush1.msra.mxu0 0.0
    %3085 = vmatprep.subr.mxu0 0.0
    %3086 = vmatpush1.msra.mxu0 0.0
    %3087 = vmatprep.subr.mxu0 0.0
    %3088 = vmatpush1.msra.mxu0 0.0
    %3089 = vmatprep.subr.mxu0 0.0
    %3090 = vmatpush1.msra.mxu0 0.0
    %3091 = vmatprep.subr.mxu0 0.0
    %3092 = vmatpush1.msra.mxu0 0.0
    %3093 = vmatprep.subr.mxu0 0.0
    %3094 = vmatpush1.msra.mxu0 0.0
    %3095 = vmatprep.subr.mxu0 0.0
    %3096 = vmatpush1.msra.mxu0 0.0
    %3097 = vmatprep.subr.mxu0 0.0
    %3098 = vmatpush1.msra.mxu0 0.0
    %3099 = vmatprep.subr.mxu0 0.0
    %3100 = vmatpush1.msra.mxu0 0.0
    %3101 = vmatprep.subr.mxu0 0.0
    %3102 = vmatpush1.msra.mxu0 0.0
    %3103 = vmatprep.mubr.f32.mxu0 0.0
    %3104 = vmatmul.mubr.f32.gmra.mrb[0].mxu0 %v2824
    %v3105 = vpop.f32.mrb[0].mxu0
    %v3106 = vadd.f32 %v2817, %v3105
    %v3107 = vpop.f32.mrb[0].mxu0
    %v3108 = vadd.f32 %v2819, %v3107
    %3109 = vdwg.mxu0
    %v3110 = vadd.f32 %v2893, %v1118
    %v3111 = vadd.f32 %v2895, %v1122
    %v3112 = vadd.f32 %v2964, %v1126
    %v3113 = vadd.f32 %v2966, %v1130
    %v3114 = vadd.f32 %v3035, %v1134
    %v3115 = vadd.f32 %v3037, %v1138
    %v3116 = vadd.f32 %v3106, %v1142
    %v3117 = vadd.f32 %v3108, %v1146
    %v3118 = vxor.u32 %v3110, 2147483648
    %v3119 = vxor.u32 %v3111, 2147483648
    %v3120 = vmul.f32 %v3118, 1.442695
    %v3121 = vpow.pop %v3120
    %v3122 = vmul.f32 %v3119, 1.442695
    %v3123 = vpow.pop %v3122
    %v3124 = vadd.f32 %v3121, 1.0
    %v3125 = vadd.f32 %v3123, 1.0
    %v3126 = vrcp.pop %v3124
    %v3127 = vmul.f32 1.0, %v3126
    %v3128 = vrcp.pop %v3125
    %v3129 = vmul.f32 1.0, %v3128
    %v3130 = vxor.u32 %v3112, 2147483648
    %v3131 = vxor.u32 %v3113, 2147483648
    %v3132 = vmul.f32 %v3130, 1.442695
    %v3133 = vpow.pop %v3132
    %v3134 = vmul.f32 %v3131, 1.442695
    %v3135 = vpow.pop %v3134
    %v3136 = vadd.f32 %v3133, 1.0
    %v3137 = vadd.f32 %v3135, 1.0
    %v3138 = vrcp.pop %v3136
    %v3139 = vmul.f32 1.0, %v3138
    %v3140 = vrcp.pop %v3137
    %v3141 = vmul.f32 1.0, %v3140
    %v3142 = vtanh.pop %v3114
    %v3143 = vtanh.pop %v3115
    %v3144 = vxor.u32 %v3116, 2147483648
    %v3145 = vxor.u32 %v3117, 2147483648
    %v3146 = vmul.f32 %v3144, 1.442695
    %v3147 = vpow.pop %v3146
    %v3148 = vmul.f32 %v3145, 1.442695
    %v3149 = vpow.pop %v3148
    %v3150 = vadd.f32 %v3147, 1.0
    %v3151 = vadd.f32 %v3149, 1.0
    %v3152 = vrcp.pop %v3150
    %v3153 = vmul.f32 1.0, %v3152
    %v3154 = vrcp.pop %v3151
    %v3155 = vmul.f32 1.0, %v3154
    %v3156 = vmul.f32 %v3139, %v2498
    %v3157 = vmul.f32 %v3141, %v2499
    %v3158 = vmul.f32 %v3127, %v3142
    %v3159 = vmul.f32 %v3129, %v3143
    %v3160 = vadd.f32 %v3156, %v3158
    %v3161 = vadd.f32 %v3157, %v3159
    %v3162 = vtanh.pop %v3160
    %v3163 = vtanh.pop %v3161
    %v3164 = vmul.f32 %v3153, %v3162
    %v3165 = vmul.f32 %v3155, %v3163
    %v3168 = vcombine.low %v3164, %v3165
    %v3170 = vunpack.c.l.s4 1966171168
    %v3171 = vunpack.c.0.s8 %v3170
    %v3172 = vlaneseq
    %v3173 = vshrl.u32 %v3172, 7
    %v3174 = vsub.s32 %v3171, %v3173
    %v3175 = vrot.slane %v3168, %v3174
    %v3176 = vcombine.high %v3175, %v3175
    %v3178 = vunpack.c.l.s4 1966171168
    %v3179 = vunpack.c.0.s8 %v3178
    %v3180 = vlaneseq
    %v3181 = vshrl.u32 %v3180, 7
    %v3182 = vsub.s32 %v3179, %v3181
    %v3183 = vrot.slane %v3175, %v3182
    %v3185 = vunpack.c.l.s4 1966171168
    %v3186 = vunpack.c.0.s8 %v3185
    %v3187 = vlaneseq
    %v3188 = vshrl.u32 %v3187, 7
    %v3189 = vsub.s32 %v3186, %v3188
    %v3190 = vrot.slane %v3176, %v3189
    %s3193 = scalar_lea.vmem [#allocation2], 2
    %3194 = vst.msk [vmem:[%s3193] ss:$8 sm:$0x3] %vm1869, %v3183
    %3195 = vst.msk [vmem:[%s3193] ss:$8 sm:$0x0] %vm1869, %v3183
    %s3196 = scalar_lea.vmem [#allocation2], 34
    %3197 = vst.msk [vmem:[%s3196] ss:$8 sm:$0x3] %vm1869, %v3190
    %3198 = vst.msk [vmem:[%s3196] ss:$8 sm:$0x0] %vm1869, %v3190
    %3199 = vmatprep.subr.mxu0 %v65
    %3200 = vmatpush1.msra.mxu0 %v64
    %3201 = vmatprep.subr.mxu0 %v73
    %3202 = vmatpush1.msra.mxu0 %v72
    %3203 = vmatprep.subr.mxu0 %v81
    %3204 = vmatpush1.msra.mxu0 %v80
    %3205 = vmatprep.subr.mxu0 %v89
    %3206 = vmatpush1.msra.mxu0 %v88
    %3207 = vmatprep.subr.mxu0 %v97
    %3208 = vmatpush1.msra.mxu0 %v96
    %3209 = vmatprep.subr.mxu0 %v105
    %3210 = vmatpush1.msra.mxu0 %v104
    %3211 = vmatprep.subr.mxu0 %v113
    %3212 = vmatpush1.msra.mxu0 %v112
    %3213 = vmatprep.subr.mxu0 %v121
    %3214 = vmatpush1.msra.mxu0 %v120
    %3215 = vmatprep.subr.mxu0 %v129
    %3216 = vmatpush1.msra.mxu0 %v128
    %3217 = vmatprep.subr.mxu0 %v137
    %3218 = vmatpush1.msra.mxu0 %v136
    %3219 = vmatprep.subr.mxu0 %v145
    %3220 = vmatpush1.msra.mxu0 %v144
    %3221 = vmatprep.subr.mxu0 %v153
    %3222 = vmatpush1.msra.mxu0 %v152
    %3223 = vmatprep.subr.mxu0 %v161
    %3224 = vmatpush1.msra.mxu0 %v160
    %3225 = vmatprep.subr.mxu0 %v169
    %3226 = vmatpush1.msra.mxu0 %v168
    %3227 = vmatprep.subr.mxu0 %v177
    %3228 = vmatpush1.msra.mxu0 %v176
    %3229 = vmatprep.subr.mxu0 %v185
    %3230 = vmatpush1.msra.mxu0 %v184
    %3231 = vmatprep.subr.mxu0 %v193
    %3232 = vmatpush1.msra.mxu0 %v192
    %3233 = vmatprep.subr.mxu0 %v201
    %3234 = vmatpush1.msra.mxu0 %v200
    %3235 = vmatprep.subr.mxu0 %v209
    %3236 = vmatpush1.msra.mxu0 %v208
    %3237 = vmatprep.subr.mxu0 %v217
    %3238 = vmatpush1.msra.mxu0 %v216
    %3239 = vmatprep.subr.mxu0 %v225
    %3240 = vmatpush1.msra.mxu0 %v224
    %3241 = vmatprep.subr.mxu0 %v233
    %3242 = vmatpush1.msra.mxu0 %v232
    %3243 = vmatprep.subr.mxu0 %v241
    %3244 = vmatpush1.msra.mxu0 %v240
    %3245 = vmatprep.subr.mxu0 %v249
    %3246 = vmatpush1.msra.mxu0 %v248
    %3247 = vmatprep.subr.mxu0 %v257
    %3248 = vmatpush1.msra.mxu0 %v256
    %3249 = vmatprep.subr.mxu0 %v265
    %3250 = vmatpush1.msra.mxu0 %v264
    %3251 = vmatprep.subr.mxu0 %v273
    %3252 = vmatpush1.msra.mxu0 %v272
    %3253 = vmatprep.subr.mxu0 %v281
    %3254 = vmatpush1.msra.mxu0 %v280
    %3255 = vmatprep.subr.mxu0 %v289
    %3256 = vmatpush1.msra.mxu0 %v288
    %3257 = vmatprep.subr.mxu0 %v297
    %3258 = vmatpush1.msra.mxu0 %v296
    %3259 = vmatprep.subr.mxu0 %v305
    %3260 = vmatpush1.msra.mxu0 %v304
    %3261 = vmatprep.subr.mxu0 %v313
    %3262 = vmatpush1.msra.mxu0 %v312
    %3263 = vmatprep.mubr.f32.mxu0 %v3165
    %3264 = vmatmul.mubr.f32.gmra.mrb[0].mxu0 %v3164
    %v3265 = vpop.f32.mrb[0].mxu0
    %v3266 = vadd.f32 0.0, %v3265
    %v3267 = vpop.f32.mrb[0].mxu0
    %v3268 = vadd.f32 0.0, %v3267
    %3269 = vdwg.mxu0
    %3270 = vmatprep.subr.mxu0 %v67
    %3271 = vmatpush1.msra.mxu0 %v66
    %3272 = vmatprep.subr.mxu0 %v75
    %3273 = vmatpush1.msra.mxu0 %v74
    %3274 = vmatprep.subr.mxu0 %v83
    %3275 = vmatpush1.msra.mxu0 %v82
    %3276 = vmatprep.subr.mxu0 %v91
    %3277 = vmatpush1.msra.mxu0 %v90
    %3278 = vmatprep.subr.mxu0 %v99
    %3279 = vmatpush1.msra.mxu0 %v98
    %3280 = vmatprep.subr.mxu0 %v107
    %3281 = vmatpush1.msra.mxu0 %v106
    %3282 = vmatprep.subr.mxu0 %v115
    %3283 = vmatpush1.msra.mxu0 %v114
    %3284 = vmatprep.subr.mxu0 %v123
    %3285 = vmatpush1.msra.mxu0 %v122
    %3286 = vmatprep.subr.mxu0 %v131
    %3287 = vmatpush1.msra.mxu0 %v130
    %3288 = vmatprep.subr.mxu0 %v139
    %3289 = vmatpush1.msra.mxu0 %v138
    %3290 = vmatprep.subr.mxu0 %v147
    %3291 = vmatpush1.msra.mxu0 %v146
    %3292 = vmatprep.subr.mxu0 %v155
    %3293 = vmatpush1.msra.mxu0 %v154
    %3294 = vmatprep.subr.mxu0 %v163
    %3295 = vmatpush1.msra.mxu0 %v162
    %3296 = vmatprep.subr.mxu0 %v171
    %3297 = vmatpush1.msra.mxu0 %v170
    %3298 = vmatprep.subr.mxu0 %v179
    %3299 = vmatpush1.msra.mxu0 %v178
    %3300 = vmatprep.subr.mxu0 %v187
    %3301 = vmatpush1.msra.mxu0 %v186
    %3302 = vmatprep.subr.mxu0 %v195
    %3303 = vmatpush1.msra.mxu0 %v194
    %3304 = vmatprep.subr.mxu0 %v203
    %3305 = vmatpush1.msra.mxu0 %v202
    %3306 = vmatprep.subr.mxu0 %v211
    %3307 = vmatpush1.msra.mxu0 %v210
    %3308 = vmatprep.subr.mxu0 %v219
    %3309 = vmatpush1.msra.mxu0 %v218
    %3310 = vmatprep.subr.mxu0 %v227
    %3311 = vmatpush1.msra.mxu0 %v226
    %3312 = vmatprep.subr.mxu0 %v235
    %3313 = vmatpush1.msra.mxu0 %v234
    %3314 = vmatprep.subr.mxu0 %v243
    %3315 = vmatpush1.msra.mxu0 %v242
    %3316 = vmatprep.subr.mxu0 %v251
    %3317 = vmatpush1.msra.mxu0 %v250
    %3318 = vmatprep.subr.mxu0 %v259
    %3319 = vmatpush1.msra.mxu0 %v258
    %3320 = vmatprep.subr.mxu0 %v267
    %3321 = vmatpush1.msra.mxu0 %v266
    %3322 = vmatprep.subr.mxu0 %v275
    %3323 = vmatpush1.msra.mxu0 %v274
    %3324 = vmatprep.subr.mxu0 %v283
    %3325 = vmatpush1.msra.mxu0 %v282
    %3326 = vmatprep.subr.mxu0 %v291
    %3327 = vmatpush1.msra.mxu0 %v290
    %3328 = vmatprep.subr.mxu0 %v299
    %3329 = vmatpush1.msra.mxu0 %v298
    %3330 = vmatprep.subr.mxu0 %v307
    %3331 = vmatpush1.msra.mxu0 %v306
    %3332 = vmatprep.subr.mxu0 %v315
    %3333 = vmatpush1.msra.mxu0 %v314
    %3334 = vmatprep.mubr.f32.mxu0 %v3165
    %3335 = vmatmul.mubr.f32.gmra.mrb[0].mxu0 %v3164
    %v3336 = vpop.f32.mrb[0].mxu0
    %v3337 = vadd.f32 0.0, %v3336
    %v3338 = vpop.f32.mrb[0].mxu0
    %v3339 = vadd.f32 0.0, %v3338
    %3340 = vdwg.mxu0
    %3341 = vmatprep.subr.mxu0 %v69
    %3342 = vmatpush1.msra.mxu0 %v68
    %3343 = vmatprep.subr.mxu0 %v77
    %3344 = vmatpush1.msra.mxu0 %v76
    %3345 = vmatprep.subr.mxu0 %v85
    %3346 = vmatpush1.msra.mxu0 %v84
    %3347 = vmatprep.subr.mxu0 %v93
    %3348 = vmatpush1.msra.mxu0 %v92
    %3349 = vmatprep.subr.mxu0 %v101
    %3350 = vmatpush1.msra.mxu0 %v100
    %3351 = vmatprep.subr.mxu0 %v109
    %3352 = vmatpush1.msra.mxu0 %v108
    %3353 = vmatprep.subr.mxu0 %v117
    %3354 = vmatpush1.msra.mxu0 %v116
    %3355 = vmatprep.subr.mxu0 %v125
    %3356 = vmatpush1.msra.mxu0 %v124
    %3357 = vmatprep.subr.mxu0 %v133
    %3358 = vmatpush1.msra.mxu0 %v132
    %3359 = vmatprep.subr.mxu0 %v141
    %3360 = vmatpush1.msra.mxu0 %v140
    %3361 = vmatprep.subr.mxu0 %v149
    %3362 = vmatpush1.msra.mxu0 %v148
    %3363 = vmatprep.subr.mxu0 %v157
    %3364 = vmatpush1.msra.mxu0 %v156
    %3365 = vmatprep.subr.mxu0 %v165
    %3366 = vmatpush1.msra.mxu0 %v164
    %3367 = vmatprep.subr.mxu0 %v173
    %3368 = vmatpush1.msra.mxu0 %v172
    %3369 = vmatprep.subr.mxu0 %v181
    %3370 = vmatpush1.msra.mxu0 %v180
    %3371 = vmatprep.subr.mxu0 %v189
    %3372 = vmatpush1.msra.mxu0 %v188
    %3373 = vmatprep.subr.mxu0 %v197
    %3374 = vmatpush1.msra.mxu0 %v196
    %3375 = vmatprep.subr.mxu0 %v205
    %3376 = vmatpush1.msra.mxu0 %v204
    %3377 = vmatprep.subr.mxu0 %v213
    %3378 = vmatpush1.msra.mxu0 %v212
    %3379 = vmatprep.subr.mxu0 %v221
    %3380 = vmatpush1.msra.mxu0 %v220
    %3381 = vmatprep.subr.mxu0 %v229
    %3382 = vmatpush1.msra.mxu0 %v228
    %3383 = vmatprep.subr.mxu0 %v237
    %3384 = vmatpush1.msra.mxu0 %v236
    %3385 = vmatprep.subr.mxu0 %v245
    %3386 = vmatpush1.msra.mxu0 %v244
    %3387 = vmatprep.subr.mxu0 %v253
    %3388 = vmatpush1.msra.mxu0 %v252
    %3389 = vmatprep.subr.mxu0 %v261
    %3390 = vmatpush1.msra.mxu0 %v260
    %3391 = vmatprep.subr.mxu0 %v269
    %3392 = vmatpush1.msra.mxu0 %v268
    %3393 = vmatprep.subr.mxu0 %v277
    %3394 = vmatpush1.msra.mxu0 %v276
    %3395 = vmatprep.subr.mxu0 %v285
    %3396 = vmatpush1.msra.mxu0 %v284
    %3397 = vmatprep.subr.mxu0 %v293
    %3398 = vmatpush1.msra.mxu0 %v292
    %3399 = vmatprep.subr.mxu0 %v301
    %3400 = vmatpush1.msra.mxu0 %v300
    %3401 = vmatprep.subr.mxu0 %v309
    %3402 = vmatpush1.msra.mxu0 %v308
    %3403 = vmatprep.subr.mxu0 %v317
    %3404 = vmatpush1.msra.mxu0 %v316
    %3405 = vmatprep.mubr.f32.mxu0 %v3165
    %3406 = vmatmul.mubr.f32.gmra.mrb[0].mxu0 %v3164
    %v3407 = vpop.f32.mrb[0].mxu0
    %v3408 = vadd.f32 0.0, %v3407
    %v3409 = vpop.f32.mrb[0].mxu0
    %v3410 = vadd.f32 0.0, %v3409
    %3411 = vdwg.mxu0
    %3412 = vmatprep.subr.mxu0 %v71
    %3413 = vmatpush1.msra.mxu0 %v70
    %3414 = vmatprep.subr.mxu0 %v79
    %3415 = vmatpush1.msra.mxu0 %v78
    %3416 = vmatprep.subr.mxu0 %v87
    %3417 = vmatpush1.msra.mxu0 %v86
    %3418 = vmatprep.subr.mxu0 %v95
    %3419 = vmatpush1.msra.mxu0 %v94
    %3420 = vmatprep.subr.mxu0 %v103
    %3421 = vmatpush1.msra.mxu0 %v102
    %3422 = vmatprep.subr.mxu0 %v111
    %3423 = vmatpush1.msra.mxu0 %v110
    %3424 = vmatprep.subr.mxu0 %v119
    %3425 = vmatpush1.msra.mxu0 %v118
    %3426 = vmatprep.subr.mxu0 %v127
    %3427 = vmatpush1.msra.mxu0 %v126
    %3428 = vmatprep.subr.mxu0 %v135
    %3429 = vmatpush1.msra.mxu0 %v134
    %3430 = vmatprep.subr.mxu0 %v143
    %3431 = vmatpush1.msra.mxu0 %v142
    %3432 = vmatprep.subr.mxu0 %v151
    %3433 = vmatpush1.msra.mxu0 %v150
    %3434 = vmatprep.subr.mxu0 %v159
    %3435 = vmatpush1.msra.mxu0 %v158
    %3436 = vmatprep.subr.mxu0 %v167
    %3437 = vmatpush1.msra.mxu0 %v166
    %3438 = vmatprep.subr.mxu0 %v175
    %3439 = vmatpush1.msra.mxu0 %v174
    %3440 = vmatprep.subr.mxu0 %v183
    %3441 = vmatpush1.msra.mxu0 %v182
    %3442 = vmatprep.subr.mxu0 %v191
    %3443 = vmatpush1.msra.mxu0 %v190
    %3444 = vmatprep.subr.mxu0 %v199
    %3445 = vmatpush1.msra.mxu0 %v198
    %3446 = vmatprep.subr.mxu0 %v207
    %3447 = vmatpush1.msra.mxu0 %v206
    %3448 = vmatprep.subr.mxu0 %v215
    %3449 = vmatpush1.msra.mxu0 %v214
    %3450 = vmatprep.subr.mxu0 %v223
    %3451 = vmatpush1.msra.mxu0 %v222
    %3452 = vmatprep.subr.mxu0 %v231
    %3453 = vmatpush1.msra.mxu0 %v230
    %3454 = vmatprep.subr.mxu0 %v239
    %3455 = vmatpush1.msra.mxu0 %v238
    %3456 = vmatprep.subr.mxu0 %v247
    %3457 = vmatpush1.msra.mxu0 %v246
    %3458 = vmatprep.subr.mxu0 %v255
    %3459 = vmatpush1.msra.mxu0 %v254
    %3460 = vmatprep.subr.mxu0 %v263
    %3461 = vmatpush1.msra.mxu0 %v262
    %3462 = vmatprep.subr.mxu0 %v271
    %3463 = vmatpush1.msra.mxu0 %v270
    %3464 = vmatprep.subr.mxu0 %v279
    %3465 = vmatpush1.msra.mxu0 %v278
    %3466 = vmatprep.subr.mxu0 %v287
    %3467 = vmatpush1.msra.mxu0 %v286
    %3468 = vmatprep.subr.mxu0 %v295
    %3469 = vmatpush1.msra.mxu0 %v294
    %3470 = vmatprep.subr.mxu0 %v303
    %3471 = vmatpush1.msra.mxu0 %v302
    %3472 = vmatprep.subr.mxu0 %v311
    %3473 = vmatpush1.msra.mxu0 %v310
    %3474 = vmatprep.subr.mxu0 %v319
    %3475 = vmatpush1.msra.mxu0 %v318
    %3476 = vmatprep.mubr.f32.mxu0 %v3165
    %3477 = vmatmul.mubr.f32.gmra.mrb[0].mxu0 %v3164
    %v3478 = vpop.f32.mrb[0].mxu0
    %v3479 = vadd.f32 0.0, %v3478
    %v3480 = vpop.f32.mrb[0].mxu0
    %v3481 = vadd.f32 0.0, %v3480
    %3482 = vdwg.mxu0
    %v3483 = vrot.slane %v57, 4
    %v3484 = vrot.slane %v58, 3
    %v3485 = vsel %vm800, %v3484, %v3483
    %v3486 = vsel %vm810, %v3485, 0
    %3488 = vmatprep.subr.mxu0 %v816
    %3489 = vmatpush1.msra.mxu0 %v814
    %3490 = vmatprep.subr.mxu0 0.0
    %3491 = vmatpush1.msra.mxu0 0.0
    %3492 = vmatprep.subr.mxu0 0.0
    %3493 = vmatpush1.msra.mxu0 0.0
    %3494 = vmatprep.subr.mxu0 0.0
    %3495 = vmatpush1.msra.mxu0 0.0
    %3496 = vmatprep.subr.mxu0 0.0
    %3497 = vmatpush1.msra.mxu0 0.0
    %3498 = vmatprep.subr.mxu0 0.0
    %3499 = vmatpush1.msra.mxu0 0.0
    %3500 = vmatprep.subr.mxu0 0.0
    %3501 = vmatpush1.msra.mxu0 0.0
    %3502 = vmatprep.subr.mxu0 0.0
    %3503 = vmatpush1.msra.mxu0 0.0
    %3504 = vmatprep.subr.mxu0 0.0
    %3505 = vmatpush1.msra.mxu0 0.0
    %3506 = vmatprep.subr.mxu0 0.0
    %3507 = vmatpush1.msra.mxu0 0.0
    %3508 = vmatprep.subr.mxu0 0.0
    %3509 = vmatpush1.msra.mxu0 0.0
    %3510 = vmatprep.subr.mxu0 0.0
    %3511 = vmatpush1.msra.mxu0 0.0
    %3512 = vmatprep.subr.mxu0 0.0
    %3513 = vmatpush1.msra.mxu0 0.0
    %3514 = vmatprep.subr.mxu0 0.0
    %3515 = vmatpush1.msra.mxu0 0.0
    %3516 = vmatprep.subr.mxu0 0.0
    %3517 = vmatpush1.msra.mxu0 0.0
    %3518 = vmatprep.subr.mxu0 0.0
    %3519 = vmatpush1.msra.mxu0 0.0
    %3520 = vmatprep.subr.mxu0 0.0
    %3521 = vmatpush1.msra.mxu0 0.0
    %3522 = vmatprep.subr.mxu0 0.0
    %3523 = vmatpush1.msra.mxu0 0.0
    %3524 = vmatprep.subr.mxu0 0.0
    %3525 = vmatpush1.msra.mxu0 0.0
    %3526 = vmatprep.subr.mxu0 0.0
    %3527 = vmatpush1.msra.mxu0 0.0
    %3528 = vmatprep.subr.mxu0 0.0
    %3529 = vmatpush1.msra.mxu0 0.0
    %3530 = vmatprep.subr.mxu0 0.0
    %3531 = vmatpush1.msra.mxu0 0.0
    %3532 = vmatprep.subr.mxu0 0.0
    %3533 = vmatpush1.msra.mxu0 0.0
    %3534 = vmatprep.subr.mxu0 0.0
    %3535 = vmatpush1.msra.mxu0 0.0
    %3536 = vmatprep.subr.mxu0 0.0
    %3537 = vmatpush1.msra.mxu0 0.0
    %3538 = vmatprep.subr.mxu0 0.0
    %3539 = vmatpush1.msra.mxu0 0.0
    %3540 = vmatprep.subr.mxu0 0.0
    %3541 = vmatpush1.msra.mxu0 0.0
    %3542 = vmatprep.subr.mxu0 0.0
    %3543 = vmatpush1.msra.mxu0 0.0
    %3544 = vmatprep.subr.mxu0 0.0
    %3545 = vmatpush1.msra.mxu0 0.0
    %3546 = vmatprep.subr.mxu0 0.0
    %3547 = vmatpush1.msra.mxu0 0.0
    %3548 = vmatprep.subr.mxu0 0.0
    %3549 = vmatpush1.msra.mxu0 0.0
    %3550 = vmatprep.subr.mxu0 0.0
    %3551 = vmatpush1.msra.mxu0 0.0
    %3552 = vmatprep.mubr.f32.mxu0 0.0
    %3553 = vmatmul.mubr.f32.gmra.mrb[0].mxu0 %v3486
    %v3554 = vpop.f32.mrb[0].mxu0
    %v3555 = vadd.f32 %v3266, %v3554
    %v3556 = vpop.f32.mrb[0].mxu0
    %v3557 = vadd.f32 %v3268, %v3556
    %3558 = vdwg.mxu0
    %3559 = vmatprep.subr.mxu0 %v820
    %3560 = vmatpush1.msra.mxu0 %v818
    %3561 = vmatprep.subr.mxu0 0.0
    %3562 = vmatpush1.msra.mxu0 0.0
    %3563 = vmatprep.subr.mxu0 0.0
    %3564 = vmatpush1.msra.mxu0 0.0
    %3565 = vmatprep.subr.mxu0 0.0
    %3566 = vmatpush1.msra.mxu0 0.0
    %3567 = vmatprep.subr.mxu0 0.0
    %3568 = vmatpush1.msra.mxu0 0.0
    %3569 = vmatprep.subr.mxu0 0.0
    %3570 = vmatpush1.msra.mxu0 0.0
    %3571 = vmatprep.subr.mxu0 0.0
    %3572 = vmatpush1.msra.mxu0 0.0
    %3573 = vmatprep.subr.mxu0 0.0
    %3574 = vmatpush1.msra.mxu0 0.0
    %3575 = vmatprep.subr.mxu0 0.0
    %3576 = vmatpush1.msra.mxu0 0.0
    %3577 = vmatprep.subr.mxu0 0.0
    %3578 = vmatpush1.msra.mxu0 0.0
    %3579 = vmatprep.subr.mxu0 0.0
    %3580 = vmatpush1.msra.mxu0 0.0
    %3581 = vmatprep.subr.mxu0 0.0
    %3582 = vmatpush1.msra.mxu0 0.0
    %3583 = vmatprep.subr.mxu0 0.0
    %3584 = vmatpush1.msra.mxu0 0.0
    %3585 = vmatprep.subr.mxu0 0.0
    %3586 = vmatpush1.msra.mxu0 0.0
    %3587 = vmatprep.subr.mxu0 0.0
    %3588 = vmatpush1.msra.mxu0 0.0
    %3589 = vmatprep.subr.mxu0 0.0
    %3590 = vmatpush1.msra.mxu0 0.0
    %3591 = vmatprep.subr.mxu0 0.0
    %3592 = vmatpush1.msra.mxu0 0.0
    %3593 = vmatprep.subr.mxu0 0.0
    %3594 = vmatpush1.msra.mxu0 0.0
    %3595 = vmatprep.subr.mxu0 0.0
    %3596 = vmatpush1.msra.mxu0 0.0
    %3597 = vmatprep.subr.mxu0 0.0
    %3598 = vmatpush1.msra.mxu0 0.0
    %3599 = vmatprep.subr.mxu0 0.0
    %3600 = vmatpush1.msra.mxu0 0.0
    %3601 = vmatprep.subr.mxu0 0.0
    %3602 = vmatpush1.msra.mxu0 0.0
    %3603 = vmatprep.subr.mxu0 0.0
    %3604 = vmatpush1.msra.mxu0 0.0
    %3605 = vmatprep.subr.mxu0 0.0
    %3606 = vmatpush1.msra.mxu0 0.0
    %3607 = vmatprep.subr.mxu0 0.0
    %3608 = vmatpush1.msra.mxu0 0.0
    %3609 = vmatprep.subr.mxu0 0.0
    %3610 = vmatpush1.msra.mxu0 0.0
    %3611 = vmatprep.subr.mxu0 0.0
    %3612 = vmatpush1.msra.mxu0 0.0
    %3613 = vmatprep.subr.mxu0 0.0
    %3614 = vmatpush1.msra.mxu0 0.0
    %3615 = vmatprep.subr.mxu0 0.0
    %3616 = vmatpush1.msra.mxu0 0.0
    %3617 = vmatprep.subr.mxu0 0.0
    %3618 = vmatpush1.msra.mxu0 0.0
    %3619 = vmatprep.subr.mxu0 0.0
    %3620 = vmatpush1.msra.mxu0 0.0
    %3621 = vmatprep.subr.mxu0 0.0
    %3622 = vmatpush1.msra.mxu0 0.0
    %3623 = vmatprep.mubr.f32.mxu0 0.0
    %3624 = vmatmul.mubr.f32.gmra.mrb[0].mxu0 %v3486
    %v3625 = vpop.f32.mrb[0].mxu0
    %v3626 = vadd.f32 %v3337, %v3625
    %v3627 = vpop.f32.mrb[0].mxu0
    %v3628 = vadd.f32 %v3339, %v3627
    %3629 = vdwg.mxu0
    %3630 = vmatprep.subr.mxu0 %v824
    %3631 = vmatpush1.msra.mxu0 %v822
    %3632 = vmatprep.subr.mxu0 0.0
    %3633 = vmatpush1.msra.mxu0 0.0
    %3634 = vmatprep.subr.mxu0 0.0
    %3635 = vmatpush1.msra.mxu0 0.0
    %3636 = vmatprep.subr.mxu0 0.0
    %3637 = vmatpush1.msra.mxu0 0.0
    %3638 = vmatprep.subr.mxu0 0.0
    %3639 = vmatpush1.msra.mxu0 0.0
    %3640 = vmatprep.subr.mxu0 0.0
    %3641 = vmatpush1.msra.mxu0 0.0
    %3642 = vmatprep.subr.mxu0 0.0
    %3643 = vmatpush1.msra.mxu0 0.0
    %3644 = vmatprep.subr.mxu0 0.0
    %3645 = vmatpush1.msra.mxu0 0.0
    %3646 = vmatprep.subr.mxu0 0.0
    %3647 = vmatpush1.msra.mxu0 0.0
    %3648 = vmatprep.subr.mxu0 0.0
    %3649 = vmatpush1.msra.mxu0 0.0
    %3650 = vmatprep.subr.mxu0 0.0
    %3651 = vmatpush1.msra.mxu0 0.0
    %3652 = vmatprep.subr.mxu0 0.0
    %3653 = vmatpush1.msra.mxu0 0.0
    %3654 = vmatprep.subr.mxu0 0.0
    %3655 = vmatpush1.msra.mxu0 0.0
    %3656 = vmatprep.subr.mxu0 0.0
    %3657 = vmatpush1.msra.mxu0 0.0
    %3658 = vmatprep.subr.mxu0 0.0
    %3659 = vmatpush1.msra.mxu0 0.0
    %3660 = vmatprep.subr.mxu0 0.0
    %3661 = vmatpush1.msra.mxu0 0.0
    %3662 = vmatprep.subr.mxu0 0.0
    %3663 = vmatpush1.msra.mxu0 0.0
    %3664 = vmatprep.subr.mxu0 0.0
    %3665 = vmatpush1.msra.mxu0 0.0
    %3666 = vmatprep.subr.mxu0 0.0
    %3667 = vmatpush1.msra.mxu0 0.0
    %3668 = vmatprep.subr.mxu0 0.0
    %3669 = vmatpush1.msra.mxu0 0.0
    %3670 = vmatprep.subr.mxu0 0.0
    %3671 = vmatpush1.msra.mxu0 0.0
    %3672 = vmatprep.subr.mxu0 0.0
    %3673 = vmatpush1.msra.mxu0 0.0
    %3674 = vmatprep.subr.mxu0 0.0
    %3675 = vmatpush1.msra.mxu0 0.0
    %3676 = vmatprep.subr.mxu0 0.0
    %3677 = vmatpush1.msra.mxu0 0.0
    %3678 = vmatprep.subr.mxu0 0.0
    %3679 = vmatpush1.msra.mxu0 0.0
    %3680 = vmatprep.subr.mxu0 0.0
    %3681 = vmatpush1.msra.mxu0 0.0
    %3682 = vmatprep.subr.mxu0 0.0
    %3683 = vmatpush1.msra.mxu0 0.0
    %3684 = vmatprep.subr.mxu0 0.0
    %3685 = vmatpush1.msra.mxu0 0.0
    %3686 = vmatprep.subr.mxu0 0.0
    %3687 = vmatpush1.msra.mxu0 0.0
    %3688 = vmatprep.subr.mxu0 0.0
    %3689 = vmatpush1.msra.mxu0 0.0
    %3690 = vmatprep.subr.mxu0 0.0
    %3691 = vmatpush1.msra.mxu0 0.0
    %3692 = vmatprep.subr.mxu0 0.0
    %3693 = vmatpush1.msra.mxu0 0.0
    %3694 = vmatprep.mubr.f32.mxu0 0.0
    %3695 = vmatmul.mubr.f32.gmra.mrb[0].mxu0 %v3486
    %v3696 = vpop.f32.mrb[0].mxu0
    %v3697 = vadd.f32 %v3408, %v3696
    %v3698 = vpop.f32.mrb[0].mxu0
    %v3699 = vadd.f32 %v3410, %v3698
    %3700 = vdwg.mxu0
    %3701 = vmatprep.subr.mxu0 %v828
    %3702 = vmatpush1.msra.mxu0 %v826
    %3703 = vmatprep.subr.mxu0 0.0
    %3704 = vmatpush1.msra.mxu0 0.0
    %3705 = vmatprep.subr.mxu0 0.0
    %3706 = vmatpush1.msra.mxu0 0.0
    %3707 = vmatprep.subr.mxu0 0.0
    %3708 = vmatpush1.msra.mxu0 0.0
    %3709 = vmatprep.subr.mxu0 0.0
    %3710 = vmatpush1.msra.mxu0 0.0
    %3711 = vmatprep.subr.mxu0 0.0
    %3712 = vmatpush1.msra.mxu0 0.0
    %3713 = vmatprep.subr.mxu0 0.0
    %3714 = vmatpush1.msra.mxu0 0.0
    %3715 = vmatprep.subr.mxu0 0.0
    %3716 = vmatpush1.msra.mxu0 0.0
    %3717 = vmatprep.subr.mxu0 0.0
    %3718 = vmatpush1.msra.mxu0 0.0
    %3719 = vmatprep.subr.mxu0 0.0
    %3720 = vmatpush1.msra.mxu0 0.0
    %3721 = vmatprep.subr.mxu0 0.0
    %3722 = vmatpush1.msra.mxu0 0.0
    %3723 = vmatprep.subr.mxu0 0.0
    %3724 = vmatpush1.msra.mxu0 0.0
    %3725 = vmatprep.subr.mxu0 0.0
    %3726 = vmatpush1.msra.mxu0 0.0
    %3727 = vmatprep.subr.mxu0 0.0
    %3728 = vmatpush1.msra.mxu0 0.0
    %3729 = vmatprep.subr.mxu0 0.0
    %3730 = vmatpush1.msra.mxu0 0.0
    %3731 = vmatprep.subr.mxu0 0.0
    %3732 = vmatpush1.msra.mxu0 0.0
    %3733 = vmatprep.subr.mxu0 0.0
    %3734 = vmatpush1.msra.mxu0 0.0
    %3735 = vmatprep.subr.mxu0 0.0
    %3736 = vmatpush1.msra.mxu0 0.0
    %3737 = vmatprep.subr.mxu0 0.0
    %3738 = vmatpush1.msra.mxu0 0.0
    %3739 = vmatprep.subr.mxu0 0.0
    %3740 = vmatpush1.msra.mxu0 0.0
    %3741 = vmatprep.subr.mxu0 0.0
    %3742 = vmatpush1.msra.mxu0 0.0
    %3743 = vmatprep.subr.mxu0 0.0
    %3744 = vmatpush1.msra.mxu0 0.0
    %3745 = vmatprep.subr.mxu0 0.0
    %3746 = vmatpush1.msra.mxu0 0.0
    %3747 = vmatprep.subr.mxu0 0.0
    %3748 = vmatpush1.msra.mxu0 0.0
    %3749 = vmatprep.subr.mxu0 0.0
    %3750 = vmatpush1.msra.mxu0 0.0
    %3751 = vmatprep.subr.mxu0 0.0
    %3752 = vmatpush1.msra.mxu0 0.0
    %3753 = vmatprep.subr.mxu0 0.0
    %3754 = vmatpush1.msra.mxu0 0.0
    %3755 = vmatprep.subr.mxu0 0.0
    %3756 = vmatpush1.msra.mxu0 0.0
    %3757 = vmatprep.subr.mxu0 0.0
    %3758 = vmatpush1.msra.mxu0 0.0
    %3759 = vmatprep.subr.mxu0 0.0
    %3760 = vmatpush1.msra.mxu0 0.0
    %3761 = vmatprep.subr.mxu0 0.0
    %3762 = vmatpush1.msra.mxu0 0.0
    %3763 = vmatprep.subr.mxu0 0.0
    %3764 = vmatpush1.msra.mxu0 0.0
    %3765 = vmatprep.mubr.f32.mxu0 0.0
    %3766 = vmatmul.mubr.f32.gmra.mrb[0].mxu0 %v3486
    %v3767 = vpop.f32.mrb[0].mxu0
    %v3768 = vadd.f32 %v3479, %v3767
    %v3769 = vpop.f32.mrb[0].mxu0
    %v3770 = vadd.f32 %v3481, %v3769
    %3771 = vdwg.mxu0
    %v3772 = vadd.f32 %v3555, %v1118
    %v3773 = vadd.f32 %v3557, %v1122
    %v3774 = vadd.f32 %v3626, %v1126
    %v3775 = vadd.f32 %v3628, %v1130
    %v3776 = vadd.f32 %v3697, %v1134
    %v3777 = vadd.f32 %v3699, %v1138
    %v3778 = vadd.f32 %v3768, %v1142
    %v3779 = vadd.f32 %v3770, %v1146
    %v3780 = vxor.u32 %v3772, 2147483648
    %v3781 = vxor.u32 %v3773, 2147483648
    %v3782 = vmul.f32 %v3780, 1.442695
    %v3783 = vpow.pop %v3782
    %v3784 = vmul.f32 %v3781, 1.442695
    %v3785 = vpow.pop %v3784
    %v3786 = vadd.f32 %v3783, 1.0
    %v3787 = vadd.f32 %v3785, 1.0
    %v3788 = vrcp.pop %v3786
    %v3789 = vmul.f32 1.0, %v3788
    %v3790 = vrcp.pop %v3787
    %v3791 = vmul.f32 1.0, %v3790
    %v3792 = vxor.u32 %v3774, 2147483648
    %v3793 = vxor.u32 %v3775, 2147483648
    %v3794 = vmul.f32 %v3792, 1.442695
    %v3795 = vpow.pop %v3794
    %v3796 = vmul.f32 %v3793, 1.442695
    %v3797 = vpow.pop %v3796
    %v3798 = vadd.f32 %v3795, 1.0
    %v3799 = vadd.f32 %v3797, 1.0
    %v3800 = vrcp.pop %v3798
    %v3801 = vmul.f32 1.0, %v3800
    %v3802 = vrcp.pop %v3799
    %v3803 = vmul.f32 1.0, %v3802
    %v3804 = vtanh.pop %v3776
    %v3805 = vtanh.pop %v3777
    %v3806 = vxor.u32 %v3778, 2147483648
    %v3807 = vxor.u32 %v3779, 2147483648
    %v3808 = vmul.f32 %v3806, 1.442695
    %v3809 = vpow.pop %v3808
    %v3810 = vmul.f32 %v3807, 1.442695
    %v3811 = vpow.pop %v3810
    %v3812 = vadd.f32 %v3809, 1.0
    %v3813 = vadd.f32 %v3811, 1.0
    %v3814 = vrcp.pop %v3812
    %v3815 = vmul.f32 1.0, %v3814
    %v3816 = vrcp.pop %v3813
    %v3817 = vmul.f32 1.0, %v3816
    %v3818 = vmul.f32 %v3801, %v3160
    %v3819 = vmul.f32 %v3803, %v3161
    %v3820 = vmul.f32 %v3789, %v3804
    %v3821 = vmul.f32 %v3791, %v3805
    %v3822 = vadd.f32 %v3818, %v3820
    %v3823 = vadd.f32 %v3819, %v3821
    %v3824 = vtanh.pop %v3822
    %v3825 = vtanh.pop %v3823
    %v3826 = vmul.f32 %v3815, %v3824
    %v3827 = vmul.f32 %v3817, %v3825
    %v3830 = vcombine.low %v3826, %v3827
    %v3832 = vunpack.c.l.s4 1966171168
    %v3833 = vunpack.c.0.s8 %v3832
    %v3834 = vlaneseq
    %v3835 = vshrl.u32 %v3834, 7
    %v3836 = vsub.s32 %v3833, %v3835
    %v3837 = vrot.slane %v3830, %v3836
    %v3838 = vcombine.high %v3837, %v3837
    %v3840 = vunpack.c.l.s4 1966171168
    %v3841 = vunpack.c.0.s8 %v3840
    %v3842 = vlaneseq
    %v3843 = vshrl.u32 %v3842, 7
    %v3844 = vsub.s32 %v3841, %v3843
    %v3845 = vrot.slane %v3837, %v3844
    %v3847 = vunpack.c.l.s4 1966171168
    %v3848 = vunpack.c.0.s8 %v3847
    %v3849 = vlaneseq
    %v3850 = vshrl.u32 %v3849, 7
    %v3851 = vsub.s32 %v3848, %v3850
    %v3852 = vrot.slane %v3838, %v3851
    %s3855 = scalar_lea.vmem [#allocation2], 3
    %3856 = vst.msk [vmem:[%s3855] ss:$8 sm:$0x3] %vm1869, %v3845
    %3857 = vst.msk [vmem:[%s3855] ss:$8 sm:$0x0] %vm1869, %v3845
    %s3858 = scalar_lea.vmem [#allocation2], 35
    %3859 = vst.msk [vmem:[%s3858] ss:$8 sm:$0x3] %vm1869, %v3852
    %3860 = vst.msk [vmem:[%s3858] ss:$8 sm:$0x0] %vm1869, %v3852
    %3861 = vmatprep.subr.mxu0 %v65
    %3862 = vmatpush1.msra.mxu0 %v64
    %3863 = vmatprep.subr.mxu0 %v73
    %3864 = vmatpush1.msra.mxu0 %v72
    %3865 = vmatprep.subr.mxu0 %v81
    %3866 = vmatpush1.msra.mxu0 %v80
    %3867 = vmatprep.subr.mxu0 %v89
    %3868 = vmatpush1.msra.mxu0 %v88
    %3869 = vmatprep.subr.mxu0 %v97
    %3870 = vmatpush1.msra.mxu0 %v96
    %3871 = vmatprep.subr.mxu0 %v105
    %3872 = vmatpush1.msra.mxu0 %v104
    %3873 = vmatprep.subr.mxu0 %v113
    %3874 = vmatpush1.msra.mxu0 %v112
    %3875 = vmatprep.subr.mxu0 %v121
    %3876 = vmatpush1.msra.mxu0 %v120
    %3877 = vmatprep.subr.mxu0 %v129
    %3878 = vmatpush1.msra.mxu0 %v128
    %3879 = vmatprep.subr.mxu0 %v137
    %3880 = vmatpush1.msra.mxu0 %v136
    %3881 = vmatprep.subr.mxu0 %v145
    %3882 = vmatpush1.msra.mxu0 %v144
    %3883 = vmatprep.subr.mxu0 %v153
    %3884 = vmatpush1.msra.mxu0 %v152
    %3885 = vmatprep.subr.mxu0 %v161
    %3886 = vmatpush1.msra.mxu0 %v160
    %3887 = vmatprep.subr.mxu0 %v169
    %3888 = vmatpush1.msra.mxu0 %v168
    %3889 = vmatprep.subr.mxu0 %v177
    %3890 = vmatpush1.msra.mxu0 %v176
    %3891 = vmatprep.subr.mxu0 %v185
    %3892 = vmatpush1.msra.mxu0 %v184
    %3893 = vmatprep.subr.mxu0 %v193
    %3894 = vmatpush1.msra.mxu0 %v192
    %3895 = vmatprep.subr.mxu0 %v201
    %3896 = vmatpush1.msra.mxu0 %v200
    %3897 = vmatprep.subr.mxu0 %v209
    %3898 = vmatpush1.msra.mxu0 %v208
    %3899 = vmatprep.subr.mxu0 %v217
    %3900 = vmatpush1.msra.mxu0 %v216
    %3901 = vmatprep.subr.mxu0 %v225
    %3902 = vmatpush1.msra.mxu0 %v224
    %3903 = vmatprep.subr.mxu0 %v233
    %3904 = vmatpush1.msra.mxu0 %v232
    %3905 = vmatprep.subr.mxu0 %v241
    %3906 = vmatpush1.msra.mxu0 %v240
    %3907 = vmatprep.subr.mxu0 %v249
    %3908 = vmatpush1.msra.mxu0 %v248
    %3909 = vmatprep.subr.mxu0 %v257
    %3910 = vmatpush1.msra.mxu0 %v256
    %3911 = vmatprep.subr.mxu0 %v265
    %3912 = vmatpush1.msra.mxu0 %v264
    %3913 = vmatprep.subr.mxu0 %v273
    %3914 = vmatpush1.msra.mxu0 %v272
    %3915 = vmatprep.subr.mxu0 %v281
    %3916 = vmatpush1.msra.mxu0 %v280
    %3917 = vmatprep.subr.mxu0 %v289
    %3918 = vmatpush1.msra.mxu0 %v288
    %3919 = vmatprep.subr.mxu0 %v297
    %3920 = vmatpush1.msra.mxu0 %v296
    %3921 = vmatprep.subr.mxu0 %v305
    %3922 = vmatpush1.msra.mxu0 %v304
    %3923 = vmatprep.subr.mxu0 %v313
    %3924 = vmatpush1.msra.mxu0 %v312
    %3925 = vmatprep.mubr.f32.mxu0 %v3827
    %3926 = vmatmul.mubr.f32.gmra.mrb[0].mxu0 %v3826
    %v3927 = vpop.f32.mrb[0].mxu0
    %v3928 = vadd.f32 0.0, %v3927
    %v3929 = vpop.f32.mrb[0].mxu0
    %v3930 = vadd.f32 0.0, %v3929
    %3931 = vdwg.mxu0
    %3932 = vmatprep.subr.mxu0 %v67
    %3933 = vmatpush1.msra.mxu0 %v66
    %3934 = vmatprep.subr.mxu0 %v75
    %3935 = vmatpush1.msra.mxu0 %v74
    %3936 = vmatprep.subr.mxu0 %v83
    %3937 = vmatpush1.msra.mxu0 %v82
    %3938 = vmatprep.subr.mxu0 %v91
    %3939 = vmatpush1.msra.mxu0 %v90
    %3940 = vmatprep.subr.mxu0 %v99
    %3941 = vmatpush1.msra.mxu0 %v98
    %3942 = vmatprep.subr.mxu0 %v107
    %3943 = vmatpush1.msra.mxu0 %v106
    %3944 = vmatprep.subr.mxu0 %v115
    %3945 = vmatpush1.msra.mxu0 %v114
    %3946 = vmatprep.subr.mxu0 %v123
    %3947 = vmatpush1.msra.mxu0 %v122
    %3948 = vmatprep.subr.mxu0 %v131
    %3949 = vmatpush1.msra.mxu0 %v130
    %3950 = vmatprep.subr.mxu0 %v139
    %3951 = vmatpush1.msra.mxu0 %v138
    %3952 = vmatprep.subr.mxu0 %v147
    %3953 = vmatpush1.msra.mxu0 %v146
    %3954 = vmatprep.subr.mxu0 %v155
    %3955 = vmatpush1.msra.mxu0 %v154
    %3956 = vmatprep.subr.mxu0 %v163
    %3957 = vmatpush1.msra.mxu0 %v162
    %3958 = vmatprep.subr.mxu0 %v171
    %3959 = vmatpush1.msra.mxu0 %v170
    %3960 = vmatprep.subr.mxu0 %v179
    %3961 = vmatpush1.msra.mxu0 %v178
    %3962 = vmatprep.subr.mxu0 %v187
    %3963 = vmatpush1.msra.mxu0 %v186
    %3964 = vmatprep.subr.mxu0 %v195
    %3965 = vmatpush1.msra.mxu0 %v194
    %3966 = vmatprep.subr.mxu0 %v203
    %3967 = vmatpush1.msra.mxu0 %v202
    %3968 = vmatprep.subr.mxu0 %v211
    %3969 = vmatpush1.msra.mxu0 %v210
    %3970 = vmatprep.subr.mxu0 %v219
    %3971 = vmatpush1.msra.mxu0 %v218
    %3972 = vmatprep.subr.mxu0 %v227
    %3973 = vmatpush1.msra.mxu0 %v226
    %3974 = vmatprep.subr.mxu0 %v235
    %3975 = vmatpush1.msra.mxu0 %v234
    %3976 = vmatprep.subr.mxu0 %v243
    %3977 = vmatpush1.msra.mxu0 %v242
    %3978 = vmatprep.subr.mxu0 %v251
    %3979 = vmatpush1.msra.mxu0 %v250
    %3980 = vmatprep.subr.mxu0 %v259
    %3981 = vmatpush1.msra.mxu0 %v258
    %3982 = vmatprep.subr.mxu0 %v267
    %3983 = vmatpush1.msra.mxu0 %v266
    %3984 = vmatprep.subr.mxu0 %v275
    %3985 = vmatpush1.msra.mxu0 %v274
    %3986 = vmatprep.subr.mxu0 %v283
    %3987 = vmatpush1.msra.mxu0 %v282
    %3988 = vmatprep.subr.mxu0 %v291
    %3989 = vmatpush1.msra.mxu0 %v290
    %3990 = vmatprep.subr.mxu0 %v299
    %3991 = vmatpush1.msra.mxu0 %v298
    %3992 = vmatprep.subr.mxu0 %v307
    %3993 = vmatpush1.msra.mxu0 %v306
    %3994 = vmatprep.subr.mxu0 %v315
    %3995 = vmatpush1.msra.mxu0 %v314
    %3996 = vmatprep.mubr.f32.mxu0 %v3827
    %3997 = vmatmul.mubr.f32.gmra.mrb[0].mxu0 %v3826
    %v3998 = vpop.f32.mrb[0].mxu0
    %v3999 = vadd.f32 0.0, %v3998
    %v4000 = vpop.f32.mrb[0].mxu0
    %v4001 = vadd.f32 0.0, %v4000
    %4002 = vdwg.mxu0
    %4003 = vmatprep.subr.mxu0 %v69
    %4004 = vmatpush1.msra.mxu0 %v68
    %4005 = vmatprep.subr.mxu0 %v77
    %4006 = vmatpush1.msra.mxu0 %v76
    %4007 = vmatprep.subr.mxu0 %v85
    %4008 = vmatpush1.msra.mxu0 %v84
    %4009 = vmatprep.subr.mxu0 %v93
    %4010 = vmatpush1.msra.mxu0 %v92
    %4011 = vmatprep.subr.mxu0 %v101
    %4012 = vmatpush1.msra.mxu0 %v100
    %4013 = vmatprep.subr.mxu0 %v109
    %4014 = vmatpush1.msra.mxu0 %v108
    %4015 = vmatprep.subr.mxu0 %v117
    %4016 = vmatpush1.msra.mxu0 %v116
    %4017 = vmatprep.subr.mxu0 %v125
    %4018 = vmatpush1.msra.mxu0 %v124
    %4019 = vmatprep.subr.mxu0 %v133
    %4020 = vmatpush1.msra.mxu0 %v132
    %4021 = vmatprep.subr.mxu0 %v141
    %4022 = vmatpush1.msra.mxu0 %v140
    %4023 = vmatprep.subr.mxu0 %v149
    %4024 = vmatpush1.msra.mxu0 %v148
    %4025 = vmatprep.subr.mxu0 %v157
    %4026 = vmatpush1.msra.mxu0 %v156
    %4027 = vmatprep.subr.mxu0 %v165
    %4028 = vmatpush1.msra.mxu0 %v164
    %4029 = vmatprep.subr.mxu0 %v173
    %4030 = vmatpush1.msra.mxu0 %v172
    %4031 = vmatprep.subr.mxu0 %v181
    %4032 = vmatpush1.msra.mxu0 %v180
    %4033 = vmatprep.subr.mxu0 %v189
    %4034 = vmatpush1.msra.mxu0 %v188
    %4035 = vmatprep.subr.mxu0 %v197
    %4036 = vmatpush1.msra.mxu0 %v196
    %4037 = vmatprep.subr.mxu0 %v205
    %4038 = vmatpush1.msra.mxu0 %v204
    %4039 = vmatprep.subr.mxu0 %v213
    %4040 = vmatpush1.msra.mxu0 %v212
    %4041 = vmatprep.subr.mxu0 %v221
    %4042 = vmatpush1.msra.mxu0 %v220
    %4043 = vmatprep.subr.mxu0 %v229
    %4044 = vmatpush1.msra.mxu0 %v228
    %4045 = vmatprep.subr.mxu0 %v237
    %4046 = vmatpush1.msra.mxu0 %v236
    %4047 = vmatprep.subr.mxu0 %v245
    %4048 = vmatpush1.msra.mxu0 %v244
    %4049 = vmatprep.subr.mxu0 %v253
    %4050 = vmatpush1.msra.mxu0 %v252
    %4051 = vmatprep.subr.mxu0 %v261
    %4052 = vmatpush1.msra.mxu0 %v260
    %4053 = vmatprep.subr.mxu0 %v269
    %4054 = vmatpush1.msra.mxu0 %v268
    %4055 = vmatprep.subr.mxu0 %v277
    %4056 = vmatpush1.msra.mxu0 %v276
    %4057 = vmatprep.subr.mxu0 %v285
    %4058 = vmatpush1.msra.mxu0 %v284
    %4059 = vmatprep.subr.mxu0 %v293
    %4060 = vmatpush1.msra.mxu0 %v292
    %4061 = vmatprep.subr.mxu0 %v301
    %4062 = vmatpush1.msra.mxu0 %v300
    %4063 = vmatprep.subr.mxu0 %v309
    %4064 = vmatpush1.msra.mxu0 %v308
    %4065 = vmatprep.subr.mxu0 %v317
    %4066 = vmatpush1.msra.mxu0 %v316
    %4067 = vmatprep.mubr.f32.mxu0 %v3827
    %4068 = vmatmul.mubr.f32.gmra.mrb[0].mxu0 %v3826
    %v4069 = vpop.f32.mrb[0].mxu0
    %v4070 = vadd.f32 0.0, %v4069
    %v4071 = vpop.f32.mrb[0].mxu0
    %v4072 = vadd.f32 0.0, %v4071
    %4073 = vdwg.mxu0
    %4074 = vmatprep.subr.mxu0 %v71
    %4075 = vmatpush1.msra.mxu0 %v70
    %4076 = vmatprep.subr.mxu0 %v79
    %4077 = vmatpush1.msra.mxu0 %v78
    %4078 = vmatprep.subr.mxu0 %v87
    %4079 = vmatpush1.msra.mxu0 %v86
    %4080 = vmatprep.subr.mxu0 %v95
    %4081 = vmatpush1.msra.mxu0 %v94
    %4082 = vmatprep.subr.mxu0 %v103
    %4083 = vmatpush1.msra.mxu0 %v102
    %4084 = vmatprep.subr.mxu0 %v111
    %4085 = vmatpush1.msra.mxu0 %v110
    %4086 = vmatprep.subr.mxu0 %v119
    %4087 = vmatpush1.msra.mxu0 %v118
    %4088 = vmatprep.subr.mxu0 %v127
    %4089 = vmatpush1.msra.mxu0 %v126
    %4090 = vmatprep.subr.mxu0 %v135
    %4091 = vmatpush1.msra.mxu0 %v134
    %4092 = vmatprep.subr.mxu0 %v143
    %4093 = vmatpush1.msra.mxu0 %v142
    %4094 = vmatprep.subr.mxu0 %v151
    %4095 = vmatpush1.msra.mxu0 %v150
    %4096 = vmatprep.subr.mxu0 %v159
    %4097 = vmatpush1.msra.mxu0 %v158
    %4098 = vmatprep.subr.mxu0 %v167
    %4099 = vmatpush1.msra.mxu0 %v166
    %4100 = vmatprep.subr.mxu0 %v175
    %4101 = vmatpush1.msra.mxu0 %v174
    %4102 = vmatprep.subr.mxu0 %v183
    %4103 = vmatpush1.msra.mxu0 %v182
    %4104 = vmatprep.subr.mxu0 %v191
    %4105 = vmatpush1.msra.mxu0 %v190
    %4106 = vmatprep.subr.mxu0 %v199
    %4107 = vmatpush1.msra.mxu0 %v198
    %4108 = vmatprep.subr.mxu0 %v207
    %4109 = vmatpush1.msra.mxu0 %v206
    %4110 = vmatprep.subr.mxu0 %v215
    %4111 = vmatpush1.msra.mxu0 %v214
    %4112 = vmatprep.subr.mxu0 %v223
    %4113 = vmatpush1.msra.mxu0 %v222
    %4114 = vmatprep.subr.mxu0 %v231
    %4115 = vmatpush1.msra.mxu0 %v230
    %4116 = vmatprep.subr.mxu0 %v239
    %4117 = vmatpush1.msra.mxu0 %v238
    %4118 = vmatprep.subr.mxu0 %v247
    %4119 = vmatpush1.msra.mxu0 %v246
    %4120 = vmatprep.subr.mxu0 %v255
    %4121 = vmatpush1.msra.mxu0 %v254
    %4122 = vmatprep.subr.mxu0 %v263
    %4123 = vmatpush1.msra.mxu0 %v262
    %4124 = vmatprep.subr.mxu0 %v271
    %4125 = vmatpush1.msra.mxu0 %v270
    %4126 = vmatprep.subr.mxu0 %v279
    %4127 = vmatpush1.msra.mxu0 %v278
    %4128 = vmatprep.subr.mxu0 %v287
    %4129 = vmatpush1.msra.mxu0 %v286
    %4130 = vmatprep.subr.mxu0 %v295
    %4131 = vmatpush1.msra.mxu0 %v294
    %4132 = vmatprep.subr.mxu0 %v303
    %4133 = vmatpush1.msra.mxu0 %v302
    %4134 = vmatprep.subr.mxu0 %v311
    %4135 = vmatpush1.msra.mxu0 %v310
    %4136 = vmatprep.subr.mxu0 %v319
    %4137 = vmatpush1.msra.mxu0 %v318
    %4138 = vmatprep.mubr.f32.mxu0 %v3827
    %4139 = vmatmul.mubr.f32.gmra.mrb[0].mxu0 %v3826
    %v4140 = vpop.f32.mrb[0].mxu0
    %v4141 = vadd.f32 0.0, %v4140
    %v4142 = vpop.f32.mrb[0].mxu0
    %v4143 = vadd.f32 0.0, %v4142
    %4144 = vdwg.mxu0
    %v4145 = vrot.slane %v57, 5
    %v4146 = vrot.slane %v58, 4
    %v4147 = vsel %vm800, %v4146, %v4145
    %v4148 = vsel %vm810, %v4147, 0
    %4150 = vmatprep.subr.mxu0 %v816
    %4151 = vmatpush1.msra.mxu0 %v814
    %4152 = vmatprep.subr.mxu0 0.0
    %4153 = vmatpush1.msra.mxu0 0.0
    %4154 = vmatprep.subr.mxu0 0.0
    %4155 = vmatpush1.msra.mxu0 0.0
    %4156 = vmatprep.subr.mxu0 0.0
    %4157 = vmatpush1.msra.mxu0 0.0
    %4158 = vmatprep.subr.mxu0 0.0
    %4159 = vmatpush1.msra.mxu0 0.0
    %4160 = vmatprep.subr.mxu0 0.0
    %4161 = vmatpush1.msra.mxu0 0.0
    %4162 = vmatprep.subr.mxu0 0.0
    %4163 = vmatpush1.msra.mxu0 0.0
    %4164 = vmatprep.subr.mxu0 0.0
    %4165 = vmatpush1.msra.mxu0 0.0
    %4166 = vmatprep.subr.mxu0 0.0
    %4167 = vmatpush1.msra.mxu0 0.0
    %4168 = vmatprep.subr.mxu0 0.0
    %4169 = vmatpush1.msra.mxu0 0.0
    %4170 = vmatprep.subr.mxu0 0.0
    %4171 = vmatpush1.msra.mxu0 0.0
    %4172 = vmatprep.subr.mxu0 0.0
    %4173 = vmatpush1.msra.mxu0 0.0
    %4174 = vmatprep.subr.mxu0 0.0
    %4175 = vmatpush1.msra.mxu0 0.0
    %4176 = vmatprep.subr.mxu0 0.0
    %4177 = vmatpush1.msra.mxu0 0.0
    %4178 = vmatprep.subr.mxu0 0.0
    %4179 = vmatpush1.msra.mxu0 0.0
    %4180 = vmatprep.subr.mxu0 0.0
    %4181 = vmatpush1.msra.mxu0 0.0
    %4182 = vmatprep.subr.mxu0 0.0
    %4183 = vmatpush1.msra.mxu0 0.0
    %4184 = vmatprep.subr.mxu0 0.0
    %4185 = vmatpush1.msra.mxu0 0.0
    %4186 = vmatprep.subr.mxu0 0.0
    %4187 = vmatpush1.msra.mxu0 0.0
    %4188 = vmatprep.subr.mxu0 0.0
    %4189 = vmatpush1.msra.mxu0 0.0
    %4190 = vmatprep.subr.mxu0 0.0
    %4191 = vmatpush1.msra.mxu0 0.0
    %4192 = vmatprep.subr.mxu0 0.0
    %4193 = vmatpush1.msra.mxu0 0.0
    %4194 = vmatprep.subr.mxu0 0.0
    %4195 = vmatpush1.msra.mxu0 0.0
    %4196 = vmatprep.subr.mxu0 0.0
    %4197 = vmatpush1.msra.mxu0 0.0
    %4198 = vmatprep.subr.mxu0 0.0
    %4199 = vmatpush1.msra.mxu0 0.0
    %4200 = vmatprep.subr.mxu0 0.0
    %4201 = vmatpush1.msra.mxu0 0.0
    %4202 = vmatprep.subr.mxu0 0.0
    %4203 = vmatpush1.msra.mxu0 0.0
    %4204 = vmatprep.subr.mxu0 0.0
    %4205 = vmatpush1.msra.mxu0 0.0
    %4206 = vmatprep.subr.mxu0 0.0
    %4207 = vmatpush1.msra.mxu0 0.0
    %4208 = vmatprep.subr.mxu0 0.0
    %4209 = vmatpush1.msra.mxu0 0.0
    %4210 = vmatprep.subr.mxu0 0.0
    %4211 = vmatpush1.msra.mxu0 0.0
    %4212 = vmatprep.subr.mxu0 0.0
    %4213 = vmatpush1.msra.mxu0 0.0
    %4214 = vmatprep.mubr.f32.mxu0 0.0
    %4215 = vmatmul.mubr.f32.gmra.mrb[0].mxu0 %v4148
    %v4216 = vpop.f32.mrb[0].mxu0
    %v4217 = vadd.f32 %v3928, %v4216
    %v4218 = vpop.f32.mrb[0].mxu0
    %v4219 = vadd.f32 %v3930, %v4218
    %4220 = vdwg.mxu0
    %4221 = vmatprep.subr.mxu0 %v820
    %4222 = vmatpush1.msra.mxu0 %v818
    %4223 = vmatprep.subr.mxu0 0.0
    %4224 = vmatpush1.msra.mxu0 0.0
    %4225 = vmatprep.subr.mxu0 0.0
    %4226 = vmatpush1.msra.mxu0 0.0
    %4227 = vmatprep.subr.mxu0 0.0
    %4228 = vmatpush1.msra.mxu0 0.0
    %4229 = vmatprep.subr.mxu0 0.0
    %4230 = vmatpush1.msra.mxu0 0.0
    %4231 = vmatprep.subr.mxu0 0.0
    %4232 = vmatpush1.msra.mxu0 0.0
    %4233 = vmatprep.subr.mxu0 0.0
    %4234 = vmatpush1.msra.mxu0 0.0
    %4235 = vmatprep.subr.mxu0 0.0
    %4236 = vmatpush1.msra.mxu0 0.0
    %4237 = vmatprep.subr.mxu0 0.0
    %4238 = vmatpush1.msra.mxu0 0.0
    %4239 = vmatprep.subr.mxu0 0.0
    %4240 = vmatpush1.msra.mxu0 0.0
    %4241 = vmatprep.subr.mxu0 0.0
    %4242 = vmatpush1.msra.mxu0 0.0
    %4243 = vmatprep.subr.mxu0 0.0
    %4244 = vmatpush1.msra.mxu0 0.0
    %4245 = vmatprep.subr.mxu0 0.0
    %4246 = vmatpush1.msra.mxu0 0.0
    %4247 = vmatprep.subr.mxu0 0.0
    %4248 = vmatpush1.msra.mxu0 0.0
    %4249 = vmatprep.subr.mxu0 0.0
    %4250 = vmatpush1.msra.mxu0 0.0
    %4251 = vmatprep.subr.mxu0 0.0
    %4252 = vmatpush1.msra.mxu0 0.0
    %4253 = vmatprep.subr.mxu0 0.0
    %4254 = vmatpush1.msra.mxu0 0.0
    %4255 = vmatprep.subr.mxu0 0.0
    %4256 = vmatpush1.msra.mxu0 0.0
    %4257 = vmatprep.subr.mxu0 0.0
    %4258 = vmatpush1.msra.mxu0 0.0
    %4259 = vmatprep.subr.mxu0 0.0
    %4260 = vmatpush1.msra.mxu0 0.0
    %4261 = vmatprep.subr.mxu0 0.0
    %4262 = vmatpush1.msra.mxu0 0.0
    %4263 = vmatprep.subr.mxu0 0.0
    %4264 = vmatpush1.msra.mxu0 0.0
    %4265 = vmatprep.subr.mxu0 0.0
    %4266 = vmatpush1.msra.mxu0 0.0
    %4267 = vmatprep.subr.mxu0 0.0
    %4268 = vmatpush1.msra.mxu0 0.0
    %4269 = vmatprep.subr.mxu0 0.0
    %4270 = vmatpush1.msra.mxu0 0.0
    %4271 = vmatprep.subr.mxu0 0.0
    %4272 = vmatpush1.msra.mxu0 0.0
    %4273 = vmatprep.subr.mxu0 0.0
    %4274 = vmatpush1.msra.mxu0 0.0
    %4275 = vmatprep.subr.mxu0 0.0
    %4276 = vmatpush1.msra.mxu0 0.0
    %4277 = vmatprep.subr.mxu0 0.0
    %4278 = vmatpush1.msra.mxu0 0.0
    %4279 = vmatprep.subr.mxu0 0.0
    %4280 = vmatpush1.msra.mxu0 0.0
    %4281 = vmatprep.subr.mxu0 0.0
    %4282 = vmatpush1.msra.mxu0 0.0
    %4283 = vmatprep.subr.mxu0 0.0
    %4284 = vmatpush1.msra.mxu0 0.0
    %4285 = vmatprep.mubr.f32.mxu0 0.0
    %4286 = vmatmul.mubr.f32.gmra.mrb[0].mxu0 %v4148
    %v4287 = vpop.f32.mrb[0].mxu0
    %v4288 = vadd.f32 %v3999, %v4287
    %v4289 = vpop.f32.mrb[0].mxu0
    %v4290 = vadd.f32 %v4001, %v4289
    %4291 = vdwg.mxu0
    %4292 = vmatprep.subr.mxu0 %v824
    %4293 = vmatpush1.msra.mxu0 %v822
    %4294 = vmatprep.subr.mxu0 0.0
    %4295 = vmatpush1.msra.mxu0 0.0
    %4296 = vmatprep.subr.mxu0 0.0
    %4297 = vmatpush1.msra.mxu0 0.0
    %4298 = vmatprep.subr.mxu0 0.0
    %4299 = vmatpush1.msra.mxu0 0.0
    %4300 = vmatprep.subr.mxu0 0.0
    %4301 = vmatpush1.msra.mxu0 0.0
    %4302 = vmatprep.subr.mxu0 0.0
    %4303 = vmatpush1.msra.mxu0 0.0
    %4304 = vmatprep.subr.mxu0 0.0
    %4305 = vmatpush1.msra.mxu0 0.0
    %4306 = vmatprep.subr.mxu0 0.0
    %4307 = vmatpush1.msra.mxu0 0.0
    %4308 = vmatprep.subr.mxu0 0.0
    %4309 = vmatpush1.msra.mxu0 0.0
    %4310 = vmatprep.subr.mxu0 0.0
    %4311 = vmatpush1.msra.mxu0 0.0
    %4312 = vmatprep.subr.mxu0 0.0
    %4313 = vmatpush1.msra.mxu0 0.0
    %4314 = vmatprep.subr.mxu0 0.0
    %4315 = vmatpush1.msra.mxu0 0.0
    %4316 = vmatprep.subr.mxu0 0.0
    %4317 = vmatpush1.msra.mxu0 0.0
    %4318 = vmatprep.subr.mxu0 0.0
    %4319 = vmatpush1.msra.mxu0 0.0
    %4320 = vmatprep.subr.mxu0 0.0
    %4321 = vmatpush1.msra.mxu0 0.0
    %4322 = vmatprep.subr.mxu0 0.0
    %4323 = vmatpush1.msra.mxu0 0.0
    %4324 = vmatprep.subr.mxu0 0.0
    %4325 = vmatpush1.msra.mxu0 0.0
    %4326 = vmatprep.subr.mxu0 0.0
    %4327 = vmatpush1.msra.mxu0 0.0
    %4328 = vmatprep.subr.mxu0 0.0
    %4329 = vmatpush1.msra.mxu0 0.0
    %4330 = vmatprep.subr.mxu0 0.0
    %4331 = vmatpush1.msra.mxu0 0.0
    %4332 = vmatprep.subr.mxu0 0.0
    %4333 = vmatpush1.msra.mxu0 0.0
    %4334 = vmatprep.subr.mxu0 0.0
    %4335 = vmatpush1.msra.mxu0 0.0
    %4336 = vmatprep.subr.mxu0 0.0
    %4337 = vmatpush1.msra.mxu0 0.0
    %4338 = vmatprep.subr.mxu0 0.0
    %4339 = vmatpush1.msra.mxu0 0.0
    %4340 = vmatprep.subr.mxu0 0.0
    %4341 = vmatpush1.msra.mxu0 0.0
    %4342 = vmatprep.subr.mxu0 0.0
    %4343 = vmatpush1.msra.mxu0 0.0
    %4344 = vmatprep.subr.mxu0 0.0
    %4345 = vmatpush1.msra.mxu0 0.0
    %4346 = vmatprep.subr.mxu0 0.0
    %4347 = vmatpush1.msra.mxu0 0.0
    %4348 = vmatprep.subr.mxu0 0.0
    %4349 = vmatpush1.msra.mxu0 0.0
    %4350 = vmatprep.subr.mxu0 0.0
    %4351 = vmatpush1.msra.mxu0 0.0
    %4352 = vmatprep.subr.mxu0 0.0
    %4353 = vmatpush1.msra.mxu0 0.0
    %4354 = vmatprep.subr.mxu0 0.0
    %4355 = vmatpush1.msra.mxu0 0.0
    %4356 = vmatprep.mubr.f32.mxu0 0.0
    %4357 = vmatmul.mubr.f32.gmra.mrb[0].mxu0 %v4148
    %v4358 = vpop.f32.mrb[0].mxu0
    %v4359 = vadd.f32 %v4070, %v4358
    %v4360 = vpop.f32.mrb[0].mxu0
    %v4361 = vadd.f32 %v4072, %v4360
    %4362 = vdwg.mxu0
    %4363 = vmatprep.subr.mxu0 %v828
    %4364 = vmatpush1.msra.mxu0 %v826
    %4365 = vmatprep.subr.mxu0 0.0
    %4366 = vmatpush1.msra.mxu0 0.0
    %4367 = vmatprep.subr.mxu0 0.0
    %4368 = vmatpush1.msra.mxu0 0.0
    %4369 = vmatprep.subr.mxu0 0.0
    %4370 = vmatpush1.msra.mxu0 0.0
    %4371 = vmatprep.subr.mxu0 0.0
    %4372 = vmatpush1.msra.mxu0 0.0
    %4373 = vmatprep.subr.mxu0 0.0
    %4374 = vmatpush1.msra.mxu0 0.0
    %4375 = vmatprep.subr.mxu0 0.0
    %4376 = vmatpush1.msra.mxu0 0.0
    %4377 = vmatprep.subr.mxu0 0.0
    %4378 = vmatpush1.msra.mxu0 0.0
    %4379 = vmatprep.subr.mxu0 0.0
    %4380 = vmatpush1.msra.mxu0 0.0
    %4381 = vmatprep.subr.mxu0 0.0
    %4382 = vmatpush1.msra.mxu0 0.0
    %4383 = vmatprep.subr.mxu0 0.0
    %4384 = vmatpush1.msra.mxu0 0.0
    %4385 = vmatprep.subr.mxu0 0.0
    %4386 = vmatpush1.msra.mxu0 0.0
    %4387 = vmatprep.subr.mxu0 0.0
    %4388 = vmatpush1.msra.mxu0 0.0
    %4389 = vmatprep.subr.mxu0 0.0
    %4390 = vmatpush1.msra.mxu0 0.0
    %4391 = vmatprep.subr.mxu0 0.0
    %4392 = vmatpush1.msra.mxu0 0.0
    %4393 = vmatprep.subr.mxu0 0.0
    %4394 = vmatpush1.msra.mxu0 0.0
    %4395 = vmatprep.subr.mxu0 0.0
    %4396 = vmatpush1.msra.mxu0 0.0
    %4397 = vmatprep.subr.mxu0 0.0
    %4398 = vmatpush1.msra.mxu0 0.0
    %4399 = vmatprep.subr.mxu0 0.0
    %4400 = vmatpush1.msra.mxu0 0.0
    %4401 = vmatprep.subr.mxu0 0.0
    %4402 = vmatpush1.msra.mxu0 0.0
    %4403 = vmatprep.subr.mxu0 0.0
    %4404 = vmatpush1.msra.mxu0 0.0
    %4405 = vmatprep.subr.mxu0 0.0
    %4406 = vmatpush1.msra.mxu0 0.0
    %4407 = vmatprep.subr.mxu0 0.0
    %4408 = vmatpush1.msra.mxu0 0.0
    %4409 = vmatprep.subr.mxu0 0.0
    %4410 = vmatpush1.msra.mxu0 0.0
    %4411 = vmatprep.subr.mxu0 0.0
    %4412 = vmatpush1.msra.mxu0 0.0
    %4413 = vmatprep.subr.mxu0 0.0
    %4414 = vmatpush1.msra.mxu0 0.0
    %4415 = vmatprep.subr.mxu0 0.0
    %4416 = vmatpush1.msra.mxu0 0.0
    %4417 = vmatprep.subr.mxu0 0.0
    %4418 = vmatpush1.msra.mxu0 0.0
    %4419 = vmatprep.subr.mxu0 0.0
    %4420 = vmatpush1.msra.mxu0 0.0
    %4421 = vmatprep.subr.mxu0 0.0
    %4422 = vmatpush1.msra.mxu0 0.0
    %4423 = vmatprep.subr.mxu0 0.0
    %4424 = vmatpush1.msra.mxu0 0.0
    %4425 = vmatprep.subr.mxu0 0.0
    %4426 = vmatpush1.msra.mxu0 0.0
    %4427 = vmatprep.mubr.f32.mxu0 0.0
    %4428 = vmatmul.mubr.f32.gmra.mrb[0].mxu0 %v4148
    %v4429 = vpop.f32.mrb[0].mxu0
    %v4430 = vadd.f32 %v4141, %v4429
    %v4431 = vpop.f32.mrb[0].mxu0
    %v4432 = vadd.f32 %v4143, %v4431
    %4433 = vdwg.mxu0
    %v4434 = vadd.f32 %v4217, %v1118
    %v4435 = vadd.f32 %v4219, %v1122
    %v4436 = vadd.f32 %v4288, %v1126
    %v4437 = vadd.f32 %v4290, %v1130
    %v4438 = vadd.f32 %v4359, %v1134
    %v4439 = vadd.f32 %v4361, %v1138
    %v4440 = vadd.f32 %v4430, %v1142
    %v4441 = vadd.f32 %v4432, %v1146
    %v4442 = vxor.u32 %v4434, 2147483648
    %v4443 = vxor.u32 %v4435, 2147483648
    %v4444 = vmul.f32 %v4442, 1.442695
    %v4445 = vpow.pop %v4444
    %v4446 = vmul.f32 %v4443, 1.442695
    %v4447 = vpow.pop %v4446
    %v4448 = vadd.f32 %v4445, 1.0
    %v4449 = vadd.f32 %v4447, 1.0
    %v4450 = vrcp.pop %v4448
    %v4451 = vmul.f32 1.0, %v4450
    %v4452 = vrcp.pop %v4449
    %v4453 = vmul.f32 1.0, %v4452
    %v4454 = vxor.u32 %v4436, 2147483648
    %v4455 = vxor.u32 %v4437, 2147483648
    %v4456 = vmul.f32 %v4454, 1.442695
    %v4457 = vpow.pop %v4456
    %v4458 = vmul.f32 %v4455, 1.442695
    %v4459 = vpow.pop %v4458
    %v4460 = vadd.f32 %v4457, 1.0
    %v4461 = vadd.f32 %v4459, 1.0
    %v4462 = vrcp.pop %v4460
    %v4463 = vmul.f32 1.0, %v4462
    %v4464 = vrcp.pop %v4461
    %v4465 = vmul.f32 1.0, %v4464
    %v4466 = vtanh.pop %v4438
    %v4467 = vtanh.pop %v4439
    %v4468 = vxor.u32 %v4440, 2147483648
    %v4469 = vxor.u32 %v4441, 2147483648
    %v4470 = vmul.f32 %v4468, 1.442695
    %v4471 = vpow.pop %v4470
    %v4472 = vmul.f32 %v4469, 1.442695
    %v4473 = vpow.pop %v4472
    %v4474 = vadd.f32 %v4471, 1.0
    %v4475 = vadd.f32 %v4473, 1.0
    %v4476 = vrcp.pop %v4474
    %v4477 = vmul.f32 1.0, %v4476
    %v4478 = vrcp.pop %v4475
    %v4479 = vmul.f32 1.0, %v4478
    %v4480 = vmul.f32 %v4463, %v3822
    %v4481 = vmul.f32 %v4465, %v3823
    %v4482 = vmul.f32 %v4451, %v4466
    %v4483 = vmul.f32 %v4453, %v4467
    %v4484 = vadd.f32 %v4480, %v4482
    %v4485 = vadd.f32 %v4481, %v4483
    %v4486 = vtanh.pop %v4484
    %v4487 = vtanh.pop %v4485
    %v4488 = vmul.f32 %v4477, %v4486
    %v4489 = vmul.f32 %v4479, %v4487
    %v4492 = vcombine.low %v4488, %v4489
    %v4494 = vunpack.c.l.s4 1966171168
    %v4495 = vunpack.c.0.s8 %v4494
    %v4496 = vlaneseq
    %v4497 = vshrl.u32 %v4496, 7
    %v4498 = vsub.s32 %v4495, %v4497
    %v4499 = vrot.slane %v4492, %v4498
    %v4500 = vcombine.high %v4499, %v4499
    %v4502 = vunpack.c.l.s4 1966171168
    %v4503 = vunpack.c.0.s8 %v4502
    %v4504 = vlaneseq
    %v4505 = vshrl.u32 %v4504, 7
    %v4506 = vsub.s32 %v4503, %v4505
    %v4507 = vrot.slane %v4499, %v4506
    %v4509 = vunpack.c.l.s4 1966171168
    %v4510 = vunpack.c.0.s8 %v4509
    %v4511 = vlaneseq
    %v4512 = vshrl.u32 %v4511, 7
    %v4513 = vsub.s32 %v4510, %v4512
    %v4514 = vrot.slane %v4500, %v4513
    %s4517 = scalar_lea.vmem [#allocation2], 4
    %4518 = vst.msk [vmem:[%s4517] ss:$8 sm:$0x3] %vm1869, %v4507
    %4519 = vst.msk [vmem:[%s4517] ss:$8 sm:$0x0] %vm1869, %v4507
    %s4520 = scalar_lea.vmem [#allocation2], 36
    %4521 = vst.msk [vmem:[%s4520] ss:$8 sm:$0x3] %vm1869, %v4514
    %4522 = vst.msk [vmem:[%s4520] ss:$8 sm:$0x0] %vm1869, %v4514
    %4523 = vmatprep.subr.mxu0 %v65
    %4524 = vmatpush1.msra.mxu0 %v64
    %4525 = vmatprep.subr.mxu0 %v73
    %4526 = vmatpush1.msra.mxu0 %v72
    %4527 = vmatprep.subr.mxu0 %v81
    %4528 = vmatpush1.msra.mxu0 %v80
    %4529 = vmatprep.subr.mxu0 %v89
    %4530 = vmatpush1.msra.mxu0 %v88
    %4531 = vmatprep.subr.mxu0 %v97
    %4532 = vmatpush1.msra.mxu0 %v96
    %4533 = vmatprep.subr.mxu0 %v105
    %4534 = vmatpush1.msra.mxu0 %v104
    %4535 = vmatprep.subr.mxu0 %v113
    %4536 = vmatpush1.msra.mxu0 %v112
    %4537 = vmatprep.subr.mxu0 %v121
    %4538 = vmatpush1.msra.mxu0 %v120
    %4539 = vmatprep.subr.mxu0 %v129
    %4540 = vmatpush1.msra.mxu0 %v128
    %4541 = vmatprep.subr.mxu0 %v137
    %4542 = vmatpush1.msra.mxu0 %v136
    %4543 = vmatprep.subr.mxu0 %v145
    %4544 = vmatpush1.msra.mxu0 %v144
    %4545 = vmatprep.subr.mxu0 %v153
    %4546 = vmatpush1.msra.mxu0 %v152
    %4547 = vmatprep.subr.mxu0 %v161
    %4548 = vmatpush1.msra.mxu0 %v160
    %4549 = vmatprep.subr.mxu0 %v169
    %4550 = vmatpush1.msra.mxu0 %v168
    %4551 = vmatprep.subr.mxu0 %v177
    %4552 = vmatpush1.msra.mxu0 %v176
    %4553 = vmatprep.subr.mxu0 %v185
    %4554 = vmatpush1.msra.mxu0 %v184
    %4555 = vmatprep.subr.mxu0 %v193
    %4556 = vmatpush1.msra.mxu0 %v192
    %4557 = vmatprep.subr.mxu0 %v201
    %4558 = vmatpush1.msra.mxu0 %v200
    %4559 = vmatprep.subr.mxu0 %v209
    %4560 = vmatpush1.msra.mxu0 %v208
    %4561 = vmatprep.subr.mxu0 %v217
    %4562 = vmatpush1.msra.mxu0 %v216
    %4563 = vmatprep.subr.mxu0 %v225
    %4564 = vmatpush1.msra.mxu0 %v224
    %4565 = vmatprep.subr.mxu0 %v233
    %4566 = vmatpush1.msra.mxu0 %v232
    %4567 = vmatprep.subr.mxu0 %v241
    %4568 = vmatpush1.msra.mxu0 %v240
    %4569 = vmatprep.subr.mxu0 %v249
    %4570 = vmatpush1.msra.mxu0 %v248
    %4571 = vmatprep.subr.mxu0 %v257
    %4572 = vmatpush1.msra.mxu0 %v256
    %4573 = vmatprep.subr.mxu0 %v265
    %4574 = vmatpush1.msra.mxu0 %v264
    %4575 = vmatprep.subr.mxu0 %v273
    %4576 = vmatpush1.msra.mxu0 %v272
    %4577 = vmatprep.subr.mxu0 %v281
    %4578 = vmatpush1.msra.mxu0 %v280
    %4579 = vmatprep.subr.mxu0 %v289
    %4580 = vmatpush1.msra.mxu0 %v288
    %4581 = vmatprep.subr.mxu0 %v297
    %4582 = vmatpush1.msra.mxu0 %v296
    %4583 = vmatprep.subr.mxu0 %v305
    %4584 = vmatpush1.msra.mxu0 %v304
    %4585 = vmatprep.subr.mxu0 %v313
    %4586 = vmatpush1.msra.mxu0 %v312
    %4587 = vmatprep.mubr.f32.mxu0 %v4489
    %4588 = vmatmul.mubr.f32.gmra.mrb[0].mxu0 %v4488
    %v4589 = vpop.f32.mrb[0].mxu0
    %v4590 = vadd.f32 0.0, %v4589
    %v4591 = vpop.f32.mrb[0].mxu0
    %v4592 = vadd.f32 0.0, %v4591
    %4593 = vdwg.mxu0
    %4594 = vmatprep.subr.mxu0 %v67
    %4595 = vmatpush1.msra.mxu0 %v66
    %4596 = vmatprep.subr.mxu0 %v75
    %4597 = vmatpush1.msra.mxu0 %v74
    %4598 = vmatprep.subr.mxu0 %v83
    %4599 = vmatpush1.msra.mxu0 %v82
    %4600 = vmatprep.subr.mxu0 %v91
    %4601 = vmatpush1.msra.mxu0 %v90
    %4602 = vmatprep.subr.mxu0 %v99
    %4603 = vmatpush1.msra.mxu0 %v98
    %4604 = vmatprep.subr.mxu0 %v107
    %4605 = vmatpush1.msra.mxu0 %v106
    %4606 = vmatprep.subr.mxu0 %v115
    %4607 = vmatpush1.msra.mxu0 %v114
    %4608 = vmatprep.subr.mxu0 %v123
    %4609 = vmatpush1.msra.mxu0 %v122
    %4610 = vmatprep.subr.mxu0 %v131
    %4611 = vmatpush1.msra.mxu0 %v130
    %4612 = vmatprep.subr.mxu0 %v139
    %4613 = vmatpush1.msra.mxu0 %v138
    %4614 = vmatprep.subr.mxu0 %v147
    %4615 = vmatpush1.msra.mxu0 %v146
    %4616 = vmatprep.subr.mxu0 %v155
    %4617 = vmatpush1.msra.mxu0 %v154
    %4618 = vmatprep.subr.mxu0 %v163
    %4619 = vmatpush1.msra.mxu0 %v162
    %4620 = vmatprep.subr.mxu0 %v171
    %4621 = vmatpush1.msra.mxu0 %v170
    %4622 = vmatprep.subr.mxu0 %v179
    %4623 = vmatpush1.msra.mxu0 %v178
    %4624 = vmatprep.subr.mxu0 %v187
    %4625 = vmatpush1.msra.mxu0 %v186
    %4626 = vmatprep.subr.mxu0 %v195
    %4627 = vmatpush1.msra.mxu0 %v194
    %4628 = vmatprep.subr.mxu0 %v203
    %4629 = vmatpush1.msra.mxu0 %v202
    %4630 = vmatprep.subr.mxu0 %v211
    %4631 = vmatpush1.msra.mxu0 %v210
    %4632 = vmatprep.subr.mxu0 %v219
    %4633 = vmatpush1.msra.mxu0 %v218
    %4634 = vmatprep.subr.mxu0 %v227
    %4635 = vmatpush1.msra.mxu0 %v226
    %4636 = vmatprep.subr.mxu0 %v235
    %4637 = vmatpush1.msra.mxu0 %v234
    %4638 = vmatprep.subr.mxu0 %v243
    %4639 = vmatpush1.msra.mxu0 %v242
    %4640 = vmatprep.subr.mxu0 %v251
    %4641 = vmatpush1.msra.mxu0 %v250
    %4642 = vmatprep.subr.mxu0 %v259
    %4643 = vmatpush1.msra.mxu0 %v258
    %4644 = vmatprep.subr.mxu0 %v267
    %4645 = vmatpush1.msra.mxu0 %v266
    %4646 = vmatprep.subr.mxu0 %v275
    %4647 = vmatpush1.msra.mxu0 %v274
    %4648 = vmatprep.subr.mxu0 %v283
    %4649 = vmatpush1.msra.mxu0 %v282
    %4650 = vmatprep.subr.mxu0 %v291
    %4651 = vmatpush1.msra.mxu0 %v290
    %4652 = vmatprep.subr.mxu0 %v299
    %4653 = vmatpush1.msra.mxu0 %v298
    %4654 = vmatprep.subr.mxu0 %v307
    %4655 = vmatpush1.msra.mxu0 %v306
    %4656 = vmatprep.subr.mxu0 %v315
    %4657 = vmatpush1.msra.mxu0 %v314
    %4658 = vmatprep.mubr.f32.mxu0 %v4489
    %4659 = vmatmul.mubr.f32.gmra.mrb[0].mxu0 %v4488
    %v4660 = vpop.f32.mrb[0].mxu0
    %v4661 = vadd.f32 0.0, %v4660
    %v4662 = vpop.f32.mrb[0].mxu0
    %v4663 = vadd.f32 0.0, %v4662
    %4664 = vdwg.mxu0
    %4665 = vmatprep.subr.mxu0 %v69
    %4666 = vmatpush1.msra.mxu0 %v68
    %4667 = vmatprep.subr.mxu0 %v77
    %4668 = vmatpush1.msra.mxu0 %v76
    %4669 = vmatprep.subr.mxu0 %v85
    %4670 = vmatpush1.msra.mxu0 %v84
    %4671 = vmatprep.subr.mxu0 %v93
    %4672 = vmatpush1.msra.mxu0 %v92
    %4673 = vmatprep.subr.mxu0 %v101
    %4674 = vmatpush1.msra.mxu0 %v100
    %4675 = vmatprep.subr.mxu0 %v109
    %4676 = vmatpush1.msra.mxu0 %v108
    %4677 = vmatprep.subr.mxu0 %v117
    %4678 = vmatpush1.msra.mxu0 %v116
    %4679 = vmatprep.subr.mxu0 %v125
    %4680 = vmatpush1.msra.mxu0 %v124
    %4681 = vmatprep.subr.mxu0 %v133
    %4682 = vmatpush1.msra.mxu0 %v132
    %4683 = vmatprep.subr.mxu0 %v141
    %4684 = vmatpush1.msra.mxu0 %v140
    %4685 = vmatprep.subr.mxu0 %v149
    %4686 = vmatpush1.msra.mxu0 %v148
    %4687 = vmatprep.subr.mxu0 %v157
    %4688 = vmatpush1.msra.mxu0 %v156
    %4689 = vmatprep.subr.mxu0 %v165
    %4690 = vmatpush1.msra.mxu0 %v164
    %4691 = vmatprep.subr.mxu0 %v173
    %4692 = vmatpush1.msra.mxu0 %v172
    %4693 = vmatprep.subr.mxu0 %v181
    %4694 = vmatpush1.msra.mxu0 %v180
    %4695 = vmatprep.subr.mxu0 %v189
    %4696 = vmatpush1.msra.mxu0 %v188
    %4697 = vmatprep.subr.mxu0 %v197
    %4698 = vmatpush1.msra.mxu0 %v196
    %4699 = vmatprep.subr.mxu0 %v205
    %4700 = vmatpush1.msra.mxu0 %v204
    %4701 = vmatprep.subr.mxu0 %v213
    %4702 = vmatpush1.msra.mxu0 %v212
    %4703 = vmatprep.subr.mxu0 %v221
    %4704 = vmatpush1.msra.mxu0 %v220
    %4705 = vmatprep.subr.mxu0 %v229
    %4706 = vmatpush1.msra.mxu0 %v228
    %4707 = vmatprep.subr.mxu0 %v237
    %4708 = vmatpush1.msra.mxu0 %v236
    %4709 = vmatprep.subr.mxu0 %v245
    %4710 = vmatpush1.msra.mxu0 %v244
    %4711 = vmatprep.subr.mxu0 %v253
    %4712 = vmatpush1.msra.mxu0 %v252
    %4713 = vmatprep.subr.mxu0 %v261
    %4714 = vmatpush1.msra.mxu0 %v260
    %4715 = vmatprep.subr.mxu0 %v269
    %4716 = vmatpush1.msra.mxu0 %v268
    %4717 = vmatprep.subr.mxu0 %v277
    %4718 = vmatpush1.msra.mxu0 %v276
    %4719 = vmatprep.subr.mxu0 %v285
    %4720 = vmatpush1.msra.mxu0 %v284
    %4721 = vmatprep.subr.mxu0 %v293
    %4722 = vmatpush1.msra.mxu0 %v292
    %4723 = vmatprep.subr.mxu0 %v301
    %4724 = vmatpush1.msra.mxu0 %v300
    %4725 = vmatprep.subr.mxu0 %v309
    %4726 = vmatpush1.msra.mxu0 %v308
    %4727 = vmatprep.subr.mxu0 %v317
    %4728 = vmatpush1.msra.mxu0 %v316
    %4729 = vmatprep.mubr.f32.mxu0 %v4489
    %4730 = vmatmul.mubr.f32.gmra.mrb[0].mxu0 %v4488
    %v4731 = vpop.f32.mrb[0].mxu0
    %v4732 = vadd.f32 0.0, %v4731
    %v4733 = vpop.f32.mrb[0].mxu0
    %v4734 = vadd.f32 0.0, %v4733
    %4735 = vdwg.mxu0
    %4736 = vmatprep.subr.mxu0 %v71
    %4737 = vmatpush1.msra.mxu0 %v70
    %4738 = vmatprep.subr.mxu0 %v79
    %4739 = vmatpush1.msra.mxu0 %v78
    %4740 = vmatprep.subr.mxu0 %v87
    %4741 = vmatpush1.msra.mxu0 %v86
    %4742 = vmatprep.subr.mxu0 %v95
    %4743 = vmatpush1.msra.mxu0 %v94
    %4744 = vmatprep.subr.mxu0 %v103
    %4745 = vmatpush1.msra.mxu0 %v102
    %4746 = vmatprep.subr.mxu0 %v111
    %4747 = vmatpush1.msra.mxu0 %v110
    %4748 = vmatprep.subr.mxu0 %v119
    %4749 = vmatpush1.msra.mxu0 %v118
    %4750 = vmatprep.subr.mxu0 %v127
    %4751 = vmatpush1.msra.mxu0 %v126
    %4752 = vmatprep.subr.mxu0 %v135
    %4753 = vmatpush1.msra.mxu0 %v134
    %4754 = vmatprep.subr.mxu0 %v143
    %4755 = vmatpush1.msra.mxu0 %v142
    %4756 = vmatprep.subr.mxu0 %v151
    %4757 = vmatpush1.msra.mxu0 %v150
    %4758 = vmatprep.subr.mxu0 %v159
    %4759 = vmatpush1.msra.mxu0 %v158
    %4760 = vmatprep.subr.mxu0 %v167
    %4761 = vmatpush1.msra.mxu0 %v166
    %4762 = vmatprep.subr.mxu0 %v175
    %4763 = vmatpush1.msra.mxu0 %v174
    %4764 = vmatprep.subr.mxu0 %v183
    %4765 = vmatpush1.msra.mxu0 %v182
    %4766 = vmatprep.subr.mxu0 %v191
    %4767 = vmatpush1.msra.mxu0 %v190
    %4768 = vmatprep.subr.mxu0 %v199
    %4769 = vmatpush1.msra.mxu0 %v198
    %4770 = vmatprep.subr.mxu0 %v207
    %4771 = vmatpush1.msra.mxu0 %v206
    %4772 = vmatprep.subr.mxu0 %v215
    %4773 = vmatpush1.msra.mxu0 %v214
    %4774 = vmatprep.subr.mxu0 %v223
    %4775 = vmatpush1.msra.mxu0 %v222
    %4776 = vmatprep.subr.mxu0 %v231
    %4777 = vmatpush1.msra.mxu0 %v230
    %4778 = vmatprep.subr.mxu0 %v239
    %4779 = vmatpush1.msra.mxu0 %v238
    %4780 = vmatprep.subr.mxu0 %v247
    %4781 = vmatpush1.msra.mxu0 %v246
    %4782 = vmatprep.subr.mxu0 %v255
    %4783 = vmatpush1.msra.mxu0 %v254
    %4784 = vmatprep.subr.mxu0 %v263
    %4785 = vmatpush1.msra.mxu0 %v262
    %4786 = vmatprep.subr.mxu0 %v271
    %4787 = vmatpush1.msra.mxu0 %v270
    %4788 = vmatprep.subr.mxu0 %v279
    %4789 = vmatpush1.msra.mxu0 %v278
    %4790 = vmatprep.subr.mxu0 %v287
    %4791 = vmatpush1.msra.mxu0 %v286
    %4792 = vmatprep.subr.mxu0 %v295
    %4793 = vmatpush1.msra.mxu0 %v294
    %4794 = vmatprep.subr.mxu0 %v303
    %4795 = vmatpush1.msra.mxu0 %v302
    %4796 = vmatprep.subr.mxu0 %v311
    %4797 = vmatpush1.msra.mxu0 %v310
    %4798 = vmatprep.subr.mxu0 %v319
    %4799 = vmatpush1.msra.mxu0 %v318
    %4800 = vmatprep.mubr.f32.mxu0 %v4489
    %4801 = vmatmul.mubr.f32.gmra.mrb[0].mxu0 %v4488
    %v4802 = vpop.f32.mrb[0].mxu0
    %v4803 = vadd.f32 0.0, %v4802
    %v4804 = vpop.f32.mrb[0].mxu0
    %v4805 = vadd.f32 0.0, %v4804
    %4806 = vdwg.mxu0
    %v4807 = vrot.slane %v57, 6
    %v4808 = vrot.slane %v58, 5
    %v4809 = vsel %vm800, %v4808, %v4807
    %v4810 = vsel %vm810, %v4809, 0
    %4812 = vmatprep.subr.mxu0 %v816
    %4813 = vmatpush1.msra.mxu0 %v814
    %4814 = vmatprep.subr.mxu0 0.0
    %4815 = vmatpush1.msra.mxu0 0.0
    %4816 = vmatprep.subr.mxu0 0.0
    %4817 = vmatpush1.msra.mxu0 0.0
    %4818 = vmatprep.subr.mxu0 0.0
    %4819 = vmatpush1.msra.mxu0 0.0
    %4820 = vmatprep.subr.mxu0 0.0
    %4821 = vmatpush1.msra.mxu0 0.0
    %4822 = vmatprep.subr.mxu0 0.0
    %4823 = vmatpush1.msra.mxu0 0.0
    %4824 = vmatprep.subr.mxu0 0.0
    %4825 = vmatpush1.msra.mxu0 0.0
    %4826 = vmatprep.subr.mxu0 0.0
    %4827 = vmatpush1.msra.mxu0 0.0
    %4828 = vmatprep.subr.mxu0 0.0
    %4829 = vmatpush1.msra.mxu0 0.0
    %4830 = vmatprep.subr.mxu0 0.0
    %4831 = vmatpush1.msra.mxu0 0.0
    %4832 = vmatprep.subr.mxu0 0.0
    %4833 = vmatpush1.msra.mxu0 0.0
    %4834 = vmatprep.subr.mxu0 0.0
    %4835 = vmatpush1.msra.mxu0 0.0
    %4836 = vmatprep.subr.mxu0 0.0
    %4837 = vmatpush1.msra.mxu0 0.0
    %4838 = vmatprep.subr.mxu0 0.0
    %4839 = vmatpush1.msra.mxu0 0.0
    %4840 = vmatprep.subr.mxu0 0.0
    %4841 = vmatpush1.msra.mxu0 0.0
    %4842 = vmatprep.subr.mxu0 0.0
    %4843 = vmatpush1.msra.mxu0 0.0
    %4844 = vmatprep.subr.mxu0 0.0
    %4845 = vmatpush1.msra.mxu0 0.0
    %4846 = vmatprep.subr.mxu0 0.0
    %4847 = vmatpush1.msra.mxu0 0.0
    %4848 = vmatprep.subr.mxu0 0.0
    %4849 = vmatpush1.msra.mxu0 0.0
    %4850 = vmatprep.subr.mxu0 0.0
    %4851 = vmatpush1.msra.mxu0 0.0
    %4852 = vmatprep.subr.mxu0 0.0
    %4853 = vmatpush1.msra.mxu0 0.0
    %4854 = vmatprep.subr.mxu0 0.0
    %4855 = vmatpush1.msra.mxu0 0.0
    %4856 = vmatprep.subr.mxu0 0.0
    %4857 = vmatpush1.msra.mxu0 0.0
    %4858 = vmatprep.subr.mxu0 0.0
    %4859 = vmatpush1.msra.mxu0 0.0
    %4860 = vmatprep.subr.mxu0 0.0
    %4861 = vmatpush1.msra.mxu0 0.0
    %4862 = vmatprep.subr.mxu0 0.0
    %4863 = vmatpush1.msra.mxu0 0.0
    %4864 = vmatprep.subr.mxu0 0.0
    %4865 = vmatpush1.msra.mxu0 0.0
    %4866 = vmatprep.subr.mxu0 0.0
    %4867 = vmatpush1.msra.mxu0 0.0
    %4868 = vmatprep.subr.mxu0 0.0
    %4869 = vmatpush1.msra.mxu0 0.0
    %4870 = vmatprep.subr.mxu0 0.0
    %4871 = vmatpush1.msra.mxu0 0.0
    %4872 = vmatprep.subr.mxu0 0.0
    %4873 = vmatpush1.msra.mxu0 0.0
    %4874 = vmatprep.subr.mxu0 0.0
    %4875 = vmatpush1.msra.mxu0 0.0
    %4876 = vmatprep.mubr.f32.mxu0 0.0
    %4877 = vmatmul.mubr.f32.gmra.mrb[0].mxu0 %v4810
    %v4878 = vpop.f32.mrb[0].mxu0
    %v4879 = vadd.f32 %v4590, %v4878
    %v4880 = vpop.f32.mrb[0].mxu0
    %v4881 = vadd.f32 %v4592, %v4880
    %4882 = vdwg.mxu0
    %4883 = vmatprep.subr.mxu0 %v820
    %4884 = vmatpush1.msra.mxu0 %v818
    %4885 = vmatprep.subr.mxu0 0.0
    %4886 = vmatpush1.msra.mxu0 0.0
    %4887 = vmatprep.subr.mxu0 0.0
    %4888 = vmatpush1.msra.mxu0 0.0
    %4889 = vmatprep.subr.mxu0 0.0
    %4890 = vmatpush1.msra.mxu0 0.0
    %4891 = vmatprep.subr.mxu0 0.0
    %4892 = vmatpush1.msra.mxu0 0.0
    %4893 = vmatprep.subr.mxu0 0.0
    %4894 = vmatpush1.msra.mxu0 0.0
    %4895 = vmatprep.subr.mxu0 0.0
    %4896 = vmatpush1.msra.mxu0 0.0
    %4897 = vmatprep.subr.mxu0 0.0
    %4898 = vmatpush1.msra.mxu0 0.0
    %4899 = vmatprep.subr.mxu0 0.0
    %4900 = vmatpush1.msra.mxu0 0.0
    %4901 = vmatprep.subr.mxu0 0.0
    %4902 = vmatpush1.msra.mxu0 0.0
    %4903 = vmatprep.subr.mxu0 0.0
    %4904 = vmatpush1.msra.mxu0 0.0
    %4905 = vmatprep.subr.mxu0 0.0
    %4906 = vmatpush1.msra.mxu0 0.0
    %4907 = vmatprep.subr.mxu0 0.0
    %4908 = vmatpush1.msra.mxu0 0.0
    %4909 = vmatprep.subr.mxu0 0.0
    %4910 = vmatpush1.msra.mxu0 0.0
    %4911 = vmatprep.subr.mxu0 0.0
    %4912 = vmatpush1.msra.mxu0 0.0
    %4913 = vmatprep.subr.mxu0 0.0
    %4914 = vmatpush1.msra.mxu0 0.0
    %4915 = vmatprep.subr.mxu0 0.0
    %4916 = vmatpush1.msra.mxu0 0.0
    %4917 = vmatprep.subr.mxu0 0.0
    %4918 = vmatpush1.msra.mxu0 0.0
    %4919 = vmatprep.subr.mxu0 0.0
    %4920 = vmatpush1.msra.mxu0 0.0
    %4921 = vmatprep.subr.mxu0 0.0
    %4922 = vmatpush1.msra.mxu0 0.0
    %4923 = vmatprep.subr.mxu0 0.0
    %4924 = vmatpush1.msra.mxu0 0.0
    %4925 = vmatprep.subr.mxu0 0.0
    %4926 = vmatpush1.msra.mxu0 0.0
    %4927 = vmatprep.subr.mxu0 0.0
    %4928 = vmatpush1.msra.mxu0 0.0
    %4929 = vmatprep.subr.mxu0 0.0
    %4930 = vmatpush1.msra.mxu0 0.0
    %4931 = vmatprep.subr.mxu0 0.0
    %4932 = vmatpush1.msra.mxu0 0.0
    %4933 = vmatprep.subr.mxu0 0.0
    %4934 = vmatpush1.msra.mxu0 0.0
    %4935 = vmatprep.subr.mxu0 0.0
    %4936 = vmatpush1.msra.mxu0 0.0
    %4937 = vmatprep.subr.mxu0 0.0
    %4938 = vmatpush1.msra.mxu0 0.0
    %4939 = vmatprep.subr.mxu0 0.0
    %4940 = vmatpush1.msra.mxu0 0.0
    %4941 = vmatprep.subr.mxu0 0.0
    %4942 = vmatpush1.msra.mxu0 0.0
    %4943 = vmatprep.subr.mxu0 0.0
    %4944 = vmatpush1.msra.mxu0 0.0
    %4945 = vmatprep.subr.mxu0 0.0
    %4946 = vmatpush1.msra.mxu0 0.0
    %4947 = vmatprep.mubr.f32.mxu0 0.0
    %4948 = vmatmul.mubr.f32.gmra.mrb[0].mxu0 %v4810
    %v4949 = vpop.f32.mrb[0].mxu0
    %v4950 = vadd.f32 %v4661, %v4949
    %v4951 = vpop.f32.mrb[0].mxu0
    %v4952 = vadd.f32 %v4663, %v4951
    %4953 = vdwg.mxu0
    %4954 = vmatprep.subr.mxu0 %v824
    %4955 = vmatpush1.msra.mxu0 %v822
    %4956 = vmatprep.subr.mxu0 0.0
    %4957 = vmatpush1.msra.mxu0 0.0
    %4958 = vmatprep.subr.mxu0 0.0
    %4959 = vmatpush1.msra.mxu0 0.0
    %4960 = vmatprep.subr.mxu0 0.0
    %4961 = vmatpush1.msra.mxu0 0.0
    %4962 = vmatprep.subr.mxu0 0.0
    %4963 = vmatpush1.msra.mxu0 0.0
    %4964 = vmatprep.subr.mxu0 0.0
    %4965 = vmatpush1.msra.mxu0 0.0
    %4966 = vmatprep.subr.mxu0 0.0
    %4967 = vmatpush1.msra.mxu0 0.0
    %4968 = vmatprep.subr.mxu0 0.0
    %4969 = vmatpush1.msra.mxu0 0.0
    %4970 = vmatprep.subr.mxu0 0.0
    %4971 = vmatpush1.msra.mxu0 0.0
    %4972 = vmatprep.subr.mxu0 0.0
    %4973 = vmatpush1.msra.mxu0 0.0
    %4974 = vmatprep.subr.mxu0 0.0
    %4975 = vmatpush1.msra.mxu0 0.0
    %4976 = vmatprep.subr.mxu0 0.0
    %4977 = vmatpush1.msra.mxu0 0.0
    %4978 = vmatprep.subr.mxu0 0.0
    %4979 = vmatpush1.msra.mxu0 0.0
    %4980 = vmatprep.subr.mxu0 0.0
    %4981 = vmatpush1.msra.mxu0 0.0
    %4982 = vmatprep.subr.mxu0 0.0
    %4983 = vmatpush1.msra.mxu0 0.0
    %4984 = vmatprep.subr.mxu0 0.0
    %4985 = vmatpush1.msra.mxu0 0.0
    %4986 = vmatprep.subr.mxu0 0.0
    %4987 = vmatpush1.msra.mxu0 0.0
    %4988 = vmatprep.subr.mxu0 0.0
    %4989 = vmatpush1.msra.mxu0 0.0
    %4990 = vmatprep.subr.mxu0 0.0
    %4991 = vmatpush1.msra.mxu0 0.0
    %4992 = vmatprep.subr.mxu0 0.0
    %4993 = vmatpush1.msra.mxu0 0.0
    %4994 = vmatprep.subr.mxu0 0.0
    %4995 = vmatpush1.msra.mxu0 0.0
    %4996 = vmatprep.subr.mxu0 0.0
    %4997 = vmatpush1.msra.mxu0 0.0
    %4998 = vmatprep.subr.mxu0 0.0
    %4999 = vmatpush1.msra.mxu0 0.0
    %5000 = vmatprep.subr.mxu0 0.0
    %5001 = vmatpush1.msra.mxu0 0.0
    %5002 = vmatprep.subr.mxu0 0.0
    %5003 = vmatpush1.msra.mxu0 0.0
    %5004 = vmatprep.subr.mxu0 0.0
    %5005 = vmatpush1.msra.mxu0 0.0
    %5006 = vmatprep.subr.mxu0 0.0
    %5007 = vmatpush1.msra.mxu0 0.0
    %5008 = vmatprep.subr.mxu0 0.0
    %5009 = vmatpush1.msra.mxu0 0.0
    %5010 = vmatprep.subr.mxu0 0.0
    %5011 = vmatpush1.msra.mxu0 0.0
    %5012 = vmatprep.subr.mxu0 0.0
    %5013 = vmatpush1.msra.mxu0 0.0
    %5014 = vmatprep.subr.mxu0 0.0
    %5015 = vmatpush1.msra.mxu0 0.0
    %5016 = vmatprep.subr.mxu0 0.0
    %5017 = vmatpush1.msra.mxu0 0.0
    %5018 = vmatprep.mubr.f32.mxu0 0.0
    %5019 = vmatmul.mubr.f32.gmra.mrb[0].mxu0 %v4810
    %v5020 = vpop.f32.mrb[0].mxu0
    %v5021 = vadd.f32 %v4732, %v5020
    %v5022 = vpop.f32.mrb[0].mxu0
    %v5023 = vadd.f32 %v4734, %v5022
    %5024 = vdwg.mxu0
    %5025 = vmatprep.subr.mxu0 %v828
    %5026 = vmatpush1.msra.mxu0 %v826
    %5027 = vmatprep.subr.mxu0 0.0
    %5028 = vmatpush1.msra.mxu0 0.0
    %5029 = vmatprep.subr.mxu0 0.0
    %5030 = vmatpush1.msra.mxu0 0.0
    %5031 = vmatprep.subr.mxu0 0.0
    %5032 = vmatpush1.msra.mxu0 0.0
    %5033 = vmatprep.subr.mxu0 0.0
    %5034 = vmatpush1.msra.mxu0 0.0
    %5035 = vmatprep.subr.mxu0 0.0
    %5036 = vmatpush1.msra.mxu0 0.0
    %5037 = vmatprep.subr.mxu0 0.0
    %5038 = vmatpush1.msra.mxu0 0.0
    %5039 = vmatprep.subr.mxu0 0.0
    %5040 = vmatpush1.msra.mxu0 0.0
    %5041 = vmatprep.subr.mxu0 0.0
    %5042 = vmatpush1.msra.mxu0 0.0
    %5043 = vmatprep.subr.mxu0 0.0
    %5044 = vmatpush1.msra.mxu0 0.0
    %5045 = vmatprep.subr.mxu0 0.0
    %5046 = vmatpush1.msra.mxu0 0.0
    %5047 = vmatprep.subr.mxu0 0.0
    %5048 = vmatpush1.msra.mxu0 0.0
    %5049 = vmatprep.subr.mxu0 0.0
    %5050 = vmatpush1.msra.mxu0 0.0
    %5051 = vmatprep.subr.mxu0 0.0
    %5052 = vmatpush1.msra.mxu0 0.0
    %5053 = vmatprep.subr.mxu0 0.0
    %5054 = vmatpush1.msra.mxu0 0.0
    %5055 = vmatprep.subr.mxu0 0.0
    %5056 = vmatpush1.msra.mxu0 0.0
    %5057 = vmatprep.subr.mxu0 0.0
    %5058 = vmatpush1.msra.mxu0 0.0
    %5059 = vmatprep.subr.mxu0 0.0
    %5060 = vmatpush1.msra.mxu0 0.0
    %5061 = vmatprep.subr.mxu0 0.0
    %5062 = vmatpush1.msra.mxu0 0.0
    %5063 = vmatprep.subr.mxu0 0.0
    %5064 = vmatpush1.msra.mxu0 0.0
    %5065 = vmatprep.subr.mxu0 0.0
    %5066 = vmatpush1.msra.mxu0 0.0
    %5067 = vmatprep.subr.mxu0 0.0
    %5068 = vmatpush1.msra.mxu0 0.0
    %5069 = vmatprep.subr.mxu0 0.0
    %5070 = vmatpush1.msra.mxu0 0.0
    %5071 = vmatprep.subr.mxu0 0.0
    %5072 = vmatpush1.msra.mxu0 0.0
    %5073 = vmatprep.subr.mxu0 0.0
    %5074 = vmatpush1.msra.mxu0 0.0
    %5075 = vmatprep.subr.mxu0 0.0
    %5076 = vmatpush1.msra.mxu0 0.0
    %5077 = vmatprep.subr.mxu0 0.0
    %5078 = vmatpush1.msra.mxu0 0.0
    %5079 = vmatprep.subr.mxu0 0.0
    %5080 = vmatpush1.msra.mxu0 0.0
    %5081 = vmatprep.subr.mxu0 0.0
    %5082 = vmatpush1.msra.mxu0 0.0
    %5083 = vmatprep.subr.mxu0 0.0
    %5084 = vmatpush1.msra.mxu0 0.0
    %5085 = vmatprep.subr.mxu0 0.0
    %5086 = vmatpush1.msra.mxu0 0.0
    %5087 = vmatprep.subr.mxu0 0.0
    %5088 = vmatpush1.msra.mxu0 0.0
    %5089 = vmatprep.mubr.f32.mxu0 0.0
    %5090 = vmatmul.mubr.f32.gmra.mrb[0].mxu0 %v4810
    %v5091 = vpop.f32.mrb[0].mxu0
    %v5092 = vadd.f32 %v4803, %v5091
    %v5093 = vpop.f32.mrb[0].mxu0
    %v5094 = vadd.f32 %v4805, %v5093
    %5095 = vdwg.mxu0
    %v5096 = vadd.f32 %v4879, %v1118
    %v5097 = vadd.f32 %v4881, %v1122
    %v5098 = vadd.f32 %v4950, %v1126
    %v5099 = vadd.f32 %v4952, %v1130
    %v5100 = vadd.f32 %v5021, %v1134
    %v5101 = vadd.f32 %v5023, %v1138
    %v5102 = vadd.f32 %v5092, %v1142
    %v5103 = vadd.f32 %v5094, %v1146
    %v5104 = vxor.u32 %v5096, 2147483648
    %v5105 = vxor.u32 %v5097, 2147483648
    %v5106 = vmul.f32 %v5104, 1.442695
    %v5107 = vpow.pop %v5106
    %v5108 = vmul.f32 %v5105, 1.442695
    %v5109 = vpow.pop %v5108
    %v5110 = vadd.f32 %v5107, 1.0
    %v5111 = vadd.f32 %v5109, 1.0
    %v5112 = vrcp.pop %v5110
    %v5113 = vmul.f32 1.0, %v5112
    %v5114 = vrcp.pop %v5111
    %v5115 = vmul.f32 1.0, %v5114
    %v5116 = vxor.u32 %v5098, 2147483648
    %v5117 = vxor.u32 %v5099, 2147483648
    %v5118 = vmul.f32 %v5116, 1.442695
    %v5119 = vpow.pop %v5118
    %v5120 = vmul.f32 %v5117, 1.442695
    %v5121 = vpow.pop %v5120
    %v5122 = vadd.f32 %v5119, 1.0
    %v5123 = vadd.f32 %v5121, 1.0
    %v5124 = vrcp.pop %v5122
    %v5125 = vmul.f32 1.0, %v5124
    %v5126 = vrcp.pop %v5123
    %v5127 = vmul.f32 1.0, %v5126
    %v5128 = vtanh.pop %v5100
    %v5129 = vtanh.pop %v5101
    %v5130 = vxor.u32 %v5102, 2147483648
    %v5131 = vxor.u32 %v5103, 2147483648
    %v5132 = vmul.f32 %v5130, 1.442695
    %v5133 = vpow.pop %v5132
    %v5134 = vmul.f32 %v5131, 1.442695
    %v5135 = vpow.pop %v5134
    %v5136 = vadd.f32 %v5133, 1.0
    %v5137 = vadd.f32 %v5135, 1.0
    %v5138 = vrcp.pop %v5136
    %v5139 = vmul.f32 1.0, %v5138
    %v5140 = vrcp.pop %v5137
    %v5141 = vmul.f32 1.0, %v5140
    %v5142 = vmul.f32 %v5125, %v4484
    %v5143 = vmul.f32 %v5127, %v4485
    %v5144 = vmul.f32 %v5113, %v5128
    %v5145 = vmul.f32 %v5115, %v5129
    %v5146 = vadd.f32 %v5142, %v5144
    %v5147 = vadd.f32 %v5143, %v5145
    %v5148 = vtanh.pop %v5146
    %v5149 = vtanh.pop %v5147
    %v5150 = vmul.f32 %v5139, %v5148
    %v5151 = vmul.f32 %v5141, %v5149
    %v5154 = vcombine.low %v5150, %v5151
    %v5156 = vunpack.c.l.s4 1966171168
    %v5157 = vunpack.c.0.s8 %v5156
    %v5158 = vlaneseq
    %v5159 = vshrl.u32 %v5158, 7
    %v5160 = vsub.s32 %v5157, %v5159
    %v5161 = vrot.slane %v5154, %v5160
    %v5162 = vcombine.high %v5161, %v5161
    %v5164 = vunpack.c.l.s4 1966171168
    %v5165 = vunpack.c.0.s8 %v5164
    %v5166 = vlaneseq
    %v5167 = vshrl.u32 %v5166, 7
    %v5168 = vsub.s32 %v5165, %v5167
    %v5169 = vrot.slane %v5161, %v5168
    %v5171 = vunpack.c.l.s4 1966171168
    %v5172 = vunpack.c.0.s8 %v5171
    %v5173 = vlaneseq
    %v5174 = vshrl.u32 %v5173, 7
    %v5175 = vsub.s32 %v5172, %v5174
    %v5176 = vrot.slane %v5162, %v5175
    %s5179 = scalar_lea.vmem [#allocation2], 5
    %5180 = vst.msk [vmem:[%s5179] ss:$8 sm:$0x3] %vm1869, %v5169
    %5181 = vst.msk [vmem:[%s5179] ss:$8 sm:$0x0] %vm1869, %v5169
    %s5182 = scalar_lea.vmem [#allocation2], 37
    %5183 = vst.msk [vmem:[%s5182] ss:$8 sm:$0x3] %vm1869, %v5176
    %5184 = vst.msk [vmem:[%s5182] ss:$8 sm:$0x0] %vm1869, %v5176
    %5185 = vmatprep.subr.mxu0 %v65
    %5186 = vmatpush1.msra.mxu0 %v64
    %5187 = vmatprep.subr.mxu0 %v73
    %5188 = vmatpush1.msra.mxu0 %v72
    %5189 = vmatprep.subr.mxu0 %v81
    %5190 = vmatpush1.msra.mxu0 %v80
    %5191 = vmatprep.subr.mxu0 %v89
    %5192 = vmatpush1.msra.mxu0 %v88
    %5193 = vmatprep.subr.mxu0 %v97
    %5194 = vmatpush1.msra.mxu0 %v96
    %5195 = vmatprep.subr.mxu0 %v105
    %5196 = vmatpush1.msra.mxu0 %v104
    %5197 = vmatprep.subr.mxu0 %v113
    %5198 = vmatpush1.msra.mxu0 %v112
    %5199 = vmatprep.subr.mxu0 %v121
    %5200 = vmatpush1.msra.mxu0 %v120
    %5201 = vmatprep.subr.mxu0 %v129
    %5202 = vmatpush1.msra.mxu0 %v128
    %5203 = vmatprep.subr.mxu0 %v137
    %5204 = vmatpush1.msra.mxu0 %v136
    %5205 = vmatprep.subr.mxu0 %v145
    %5206 = vmatpush1.msra.mxu0 %v144
    %5207 = vmatprep.subr.mxu0 %v153
    %5208 = vmatpush1.msra.mxu0 %v152
    %5209 = vmatprep.subr.mxu0 %v161
    %5210 = vmatpush1.msra.mxu0 %v160
    %5211 = vmatprep.subr.mxu0 %v169
    %5212 = vmatpush1.msra.mxu0 %v168
    %5213 = vmatprep.subr.mxu0 %v177
    %5214 = vmatpush1.msra.mxu0 %v176
    %5215 = vmatprep.subr.mxu0 %v185
    %5216 = vmatpush1.msra.mxu0 %v184
    %5217 = vmatprep.subr.mxu0 %v193
    %5218 = vmatpush1.msra.mxu0 %v192
    %5219 = vmatprep.subr.mxu0 %v201
    %5220 = vmatpush1.msra.mxu0 %v200
    %5221 = vmatprep.subr.mxu0 %v209
    %5222 = vmatpush1.msra.mxu0 %v208
    %5223 = vmatprep.subr.mxu0 %v217
    %5224 = vmatpush1.msra.mxu0 %v216
    %5225 = vmatprep.subr.mxu0 %v225
    %5226 = vmatpush1.msra.mxu0 %v224
    %5227 = vmatprep.subr.mxu0 %v233
    %5228 = vmatpush1.msra.mxu0 %v232
    %5229 = vmatprep.subr.mxu0 %v241
    %5230 = vmatpush1.msra.mxu0 %v240
    %5231 = vmatprep.subr.mxu0 %v249
    %5232 = vmatpush1.msra.mxu0 %v248
    %5233 = vmatprep.subr.mxu0 %v257
    %5234 = vmatpush1.msra.mxu0 %v256
    %5235 = vmatprep.subr.mxu0 %v265
    %5236 = vmatpush1.msra.mxu0 %v264
    %5237 = vmatprep.subr.mxu0 %v273
    %5238 = vmatpush1.msra.mxu0 %v272
    %5239 = vmatprep.subr.mxu0 %v281
    %5240 = vmatpush1.msra.mxu0 %v280
    %5241 = vmatprep.subr.mxu0 %v289
    %5242 = vmatpush1.msra.mxu0 %v288
    %5243 = vmatprep.subr.mxu0 %v297
    %5244 = vmatpush1.msra.mxu0 %v296
    %5245 = vmatprep.subr.mxu0 %v305
    %5246 = vmatpush1.msra.mxu0 %v304
    %5247 = vmatprep.subr.mxu0 %v313
    %5248 = vmatpush1.msra.mxu0 %v312
    %5249 = vmatprep.mubr.f32.mxu0 %v5151
    %5250 = vmatmul.mubr.f32.gmra.mrb[0].mxu0 %v5150
    %v5251 = vpop.f32.mrb[0].mxu0
    %v5252 = vadd.f32 0.0, %v5251
    %v5253 = vpop.f32.mrb[0].mxu0
    %v5254 = vadd.f32 0.0, %v5253
    %5255 = vdwg.mxu0
    %5256 = vmatprep.subr.mxu0 %v67
    %5257 = vmatpush1.msra.mxu0 %v66
    %5258 = vmatprep.subr.mxu0 %v75
    %5259 = vmatpush1.msra.mxu0 %v74
    %5260 = vmatprep.subr.mxu0 %v83
    %5261 = vmatpush1.msra.mxu0 %v82
    %5262 = vmatprep.subr.mxu0 %v91
    %5263 = vmatpush1.msra.mxu0 %v90
    %5264 = vmatprep.subr.mxu0 %v99
    %5265 = vmatpush1.msra.mxu0 %v98
    %5266 = vmatprep.subr.mxu0 %v107
    %5267 = vmatpush1.msra.mxu0 %v106
    %5268 = vmatprep.subr.mxu0 %v115
    %5269 = vmatpush1.msra.mxu0 %v114
    %5270 = vmatprep.subr.mxu0 %v123
    %5271 = vmatpush1.msra.mxu0 %v122
    %5272 = vmatprep.subr.mxu0 %v131
    %5273 = vmatpush1.msra.mxu0 %v130
    %5274 = vmatprep.subr.mxu0 %v139
    %5275 = vmatpush1.msra.mxu0 %v138
    %5276 = vmatprep.subr.mxu0 %v147
    %5277 = vmatpush1.msra.mxu0 %v146
    %5278 = vmatprep.subr.mxu0 %v155
    %5279 = vmatpush1.msra.mxu0 %v154
    %5280 = vmatprep.subr.mxu0 %v163
    %5281 = vmatpush1.msra.mxu0 %v162
    %5282 = vmatprep.subr.mxu0 %v171
    %5283 = vmatpush1.msra.mxu0 %v170
    %5284 = vmatprep.subr.mxu0 %v179
    %5285 = vmatpush1.msra.mxu0 %v178
    %5286 = vmatprep.subr.mxu0 %v187
    %5287 = vmatpush1.msra.mxu0 %v186
    %5288 = vmatprep.subr.mxu0 %v195
    %5289 = vmatpush1.msra.mxu0 %v194
    %5290 = vmatprep.subr.mxu0 %v203
    %5291 = vmatpush1.msra.mxu0 %v202
    %5292 = vmatprep.subr.mxu0 %v211
    %5293 = vmatpush1.msra.mxu0 %v210
    %5294 = vmatprep.subr.mxu0 %v219
    %5295 = vmatpush1.msra.mxu0 %v218
    %5296 = vmatprep.subr.mxu0 %v227
    %5297 = vmatpush1.msra.mxu0 %v226
    %5298 = vmatprep.subr.mxu0 %v235
    %5299 = vmatpush1.msra.mxu0 %v234
    %5300 = vmatprep.subr.mxu0 %v243
    %5301 = vmatpush1.msra.mxu0 %v242
    %5302 = vmatprep.subr.mxu0 %v251
    %5303 = vmatpush1.msra.mxu0 %v250
    %5304 = vmatprep.subr.mxu0 %v259
    %5305 = vmatpush1.msra.mxu0 %v258
    %5306 = vmatprep.subr.mxu0 %v267
    %5307 = vmatpush1.msra.mxu0 %v266
    %5308 = vmatprep.subr.mxu0 %v275
    %5309 = vmatpush1.msra.mxu0 %v274
    %5310 = vmatprep.subr.mxu0 %v283
    %5311 = vmatpush1.msra.mxu0 %v282
    %5312 = vmatprep.subr.mxu0 %v291
    %5313 = vmatpush1.msra.mxu0 %v290
    %5314 = vmatprep.subr.mxu0 %v299
    %5315 = vmatpush1.msra.mxu0 %v298
    %5316 = vmatprep.subr.mxu0 %v307
    %5317 = vmatpush1.msra.mxu0 %v306
    %5318 = vmatprep.subr.mxu0 %v315
    %5319 = vmatpush1.msra.mxu0 %v314
    %5320 = vmatprep.mubr.f32.mxu0 %v5151
    %5321 = vmatmul.mubr.f32.gmra.mrb[0].mxu0 %v5150
    %v5322 = vpop.f32.mrb[0].mxu0
    %v5323 = vadd.f32 0.0, %v5322
    %v5324 = vpop.f32.mrb[0].mxu0
    %v5325 = vadd.f32 0.0, %v5324
    %5326 = vdwg.mxu0
    %5327 = vmatprep.subr.mxu0 %v69
    %5328 = vmatpush1.msra.mxu0 %v68
    %5329 = vmatprep.subr.mxu0 %v77
    %5330 = vmatpush1.msra.mxu0 %v76
    %5331 = vmatprep.subr.mxu0 %v85
    %5332 = vmatpush1.msra.mxu0 %v84
    %5333 = vmatprep.subr.mxu0 %v93
    %5334 = vmatpush1.msra.mxu0 %v92
    %5335 = vmatprep.subr.mxu0 %v101
    %5336 = vmatpush1.msra.mxu0 %v100
    %5337 = vmatprep.subr.mxu0 %v109
    %5338 = vmatpush1.msra.mxu0 %v108
    %5339 = vmatprep.subr.mxu0 %v117
    %5340 = vmatpush1.msra.mxu0 %v116
    %5341 = vmatprep.subr.mxu0 %v125
    %5342 = vmatpush1.msra.mxu0 %v124
    %5343 = vmatprep.subr.mxu0 %v133
    %5344 = vmatpush1.msra.mxu0 %v132
    %5345 = vmatprep.subr.mxu0 %v141
    %5346 = vmatpush1.msra.mxu0 %v140
    %5347 = vmatprep.subr.mxu0 %v149
    %5348 = vmatpush1.msra.mxu0 %v148
    %5349 = vmatprep.subr.mxu0 %v157
    %5350 = vmatpush1.msra.mxu0 %v156
    %5351 = vmatprep.subr.mxu0 %v165
    %5352 = vmatpush1.msra.mxu0 %v164
    %5353 = vmatprep.subr.mxu0 %v173
    %5354 = vmatpush1.msra.mxu0 %v172
    %5355 = vmatprep.subr.mxu0 %v181
    %5356 = vmatpush1.msra.mxu0 %v180
    %5357 = vmatprep.subr.mxu0 %v189
    %5358 = vmatpush1.msra.mxu0 %v188
    %5359 = vmatprep.subr.mxu0 %v197
    %5360 = vmatpush1.msra.mxu0 %v196
    %5361 = vmatprep.subr.mxu0 %v205
    %5362 = vmatpush1.msra.mxu0 %v204
    %5363 = vmatprep.subr.mxu0 %v213
    %5364 = vmatpush1.msra.mxu0 %v212
    %5365 = vmatprep.subr.mxu0 %v221
    %5366 = vmatpush1.msra.mxu0 %v220
    %5367 = vmatprep.subr.mxu0 %v229
    %5368 = vmatpush1.msra.mxu0 %v228
    %5369 = vmatprep.subr.mxu0 %v237
    %5370 = vmatpush1.msra.mxu0 %v236
    %5371 = vmatprep.subr.mxu0 %v245
    %5372 = vmatpush1.msra.mxu0 %v244
    %5373 = vmatprep.subr.mxu0 %v253
    %5374 = vmatpush1.msra.mxu0 %v252
    %5375 = vmatprep.subr.mxu0 %v261
    %5376 = vmatpush1.msra.mxu0 %v260
    %5377 = vmatprep.subr.mxu0 %v269
    %5378 = vmatpush1.msra.mxu0 %v268
    %5379 = vmatprep.subr.mxu0 %v277
    %5380 = vmatpush1.msra.mxu0 %v276
    %5381 = vmatprep.subr.mxu0 %v285
    %5382 = vmatpush1.msra.mxu0 %v284
    %5383 = vmatprep.subr.mxu0 %v293
    %5384 = vmatpush1.msra.mxu0 %v292
    %5385 = vmatprep.subr.mxu0 %v301
    %5386 = vmatpush1.msra.mxu0 %v300
    %5387 = vmatprep.subr.mxu0 %v309
    %5388 = vmatpush1.msra.mxu0 %v308
    %5389 = vmatprep.subr.mxu0 %v317
    %5390 = vmatpush1.msra.mxu0 %v316
    %5391 = vmatprep.mubr.f32.mxu0 %v5151
    %5392 = vmatmul.mubr.f32.gmra.mrb[0].mxu0 %v5150
    %v5393 = vpop.f32.mrb[0].mxu0
    %v5394 = vadd.f32 0.0, %v5393
    %v5395 = vpop.f32.mrb[0].mxu0
    %v5396 = vadd.f32 0.0, %v5395
    %5397 = vdwg.mxu0
    %5398 = vmatprep.subr.mxu0 %v71
    %5399 = vmatpush1.msra.mxu0 %v70
    %5400 = vmatprep.subr.mxu0 %v79
    %5401 = vmatpush1.msra.mxu0 %v78
    %5402 = vmatprep.subr.mxu0 %v87
    %5403 = vmatpush1.msra.mxu0 %v86
    %5404 = vmatprep.subr.mxu0 %v95
    %5405 = vmatpush1.msra.mxu0 %v94
    %5406 = vmatprep.subr.mxu0 %v103
    %5407 = vmatpush1.msra.mxu0 %v102
    %5408 = vmatprep.subr.mxu0 %v111
    %5409 = vmatpush1.msra.mxu0 %v110
    %5410 = vmatprep.subr.mxu0 %v119
    %5411 = vmatpush1.msra.mxu0 %v118
    %5412 = vmatprep.subr.mxu0 %v127
    %5413 = vmatpush1.msra.mxu0 %v126
    %5414 = vmatprep.subr.mxu0 %v135
    %5415 = vmatpush1.msra.mxu0 %v134
    %5416 = vmatprep.subr.mxu0 %v143
    %5417 = vmatpush1.msra.mxu0 %v142
    %5418 = vmatprep.subr.mxu0 %v151
    %5419 = vmatpush1.msra.mxu0 %v150
    %5420 = vmatprep.subr.mxu0 %v159
    %5421 = vmatpush1.msra.mxu0 %v158
    %5422 = vmatprep.subr.mxu0 %v167
    %5423 = vmatpush1.msra.mxu0 %v166
    %5424 = vmatprep.subr.mxu0 %v175
    %5425 = vmatpush1.msra.mxu0 %v174
    %5426 = vmatprep.subr.mxu0 %v183
    %5427 = vmatpush1.msra.mxu0 %v182
    %5428 = vmatprep.subr.mxu0 %v191
    %5429 = vmatpush1.msra.mxu0 %v190
    %5430 = vmatprep.subr.mxu0 %v199
    %5431 = vmatpush1.msra.mxu0 %v198
    %5432 = vmatprep.subr.mxu0 %v207
    %5433 = vmatpush1.msra.mxu0 %v206
    %5434 = vmatprep.subr.mxu0 %v215
    %5435 = vmatpush1.msra.mxu0 %v214
    %5436 = vmatprep.subr.mxu0 %v223
    %5437 = vmatpush1.msra.mxu0 %v222
    %5438 = vmatprep.subr.mxu0 %v231
    %5439 = vmatpush1.msra.mxu0 %v230
    %5440 = vmatprep.subr.mxu0 %v239
    %5441 = vmatpush1.msra.mxu0 %v238
    %5442 = vmatprep.subr.mxu0 %v247
    %5443 = vmatpush1.msra.mxu0 %v246
    %5444 = vmatprep.subr.mxu0 %v255
    %5445 = vmatpush1.msra.mxu0 %v254
    %5446 = vmatprep.subr.mxu0 %v263
    %5447 = vmatpush1.msra.mxu0 %v262
    %5448 = vmatprep.subr.mxu0 %v271
    %5449 = vmatpush1.msra.mxu0 %v270
    %5450 = vmatprep.subr.mxu0 %v279
    %5451 = vmatpush1.msra.mxu0 %v278
    %5452 = vmatprep.subr.mxu0 %v287
    %5453 = vmatpush1.msra.mxu0 %v286
    %5454 = vmatprep.subr.mxu0 %v295
    %5455 = vmatpush1.msra.mxu0 %v294
    %5456 = vmatprep.subr.mxu0 %v303
    %5457 = vmatpush1.msra.mxu0 %v302
    %5458 = vmatprep.subr.mxu0 %v311
    %5459 = vmatpush1.msra.mxu0 %v310
    %5460 = vmatprep.subr.mxu0 %v319
    %5461 = vmatpush1.msra.mxu0 %v318
    %5462 = vmatprep.mubr.f32.mxu0 %v5151
    %5463 = vmatmul.mubr.f32.gmra.mrb[0].mxu0 %v5150
    %v5464 = vpop.f32.mrb[0].mxu0
    %v5465 = vadd.f32 0.0, %v5464
    %v5466 = vpop.f32.mrb[0].mxu0
    %v5467 = vadd.f32 0.0, %v5466
    %5468 = vdwg.mxu0
    %v5469 = vrot.slane %v57, 7
    %v5470 = vrot.slane %v58, 6
    %v5471 = vsel %vm800, %v5470, %v5469
    %v5472 = vsel %vm810, %v5471, 0
    %5474 = vmatprep.subr.mxu0 %v816
    %5475 = vmatpush1.msra.mxu0 %v814
    %5476 = vmatprep.subr.mxu0 0.0
    %5477 = vmatpush1.msra.mxu0 0.0
    %5478 = vmatprep.subr.mxu0 0.0
    %5479 = vmatpush1.msra.mxu0 0.0
    %5480 = vmatprep.subr.mxu0 0.0
    %5481 = vmatpush1.msra.mxu0 0.0
    %5482 = vmatprep.subr.mxu0 0.0
    %5483 = vmatpush1.msra.mxu0 0.0
    %5484 = vmatprep.subr.mxu0 0.0
    %5485 = vmatpush1.msra.mxu0 0.0
    %5486 = vmatprep.subr.mxu0 0.0
    %5487 = vmatpush1.msra.mxu0 0.0
    %5488 = vmatprep.subr.mxu0 0.0
    %5489 = vmatpush1.msra.mxu0 0.0
    %5490 = vmatprep.subr.mxu0 0.0
    %5491 = vmatpush1.msra.mxu0 0.0
    %5492 = vmatprep.subr.mxu0 0.0
    %5493 = vmatpush1.msra.mxu0 0.0
    %5494 = vmatprep.subr.mxu0 0.0
    %5495 = vmatpush1.msra.mxu0 0.0
    %5496 = vmatprep.subr.mxu0 0.0
    %5497 = vmatpush1.msra.mxu0 0.0
    %5498 = vmatprep.subr.mxu0 0.0
    %5499 = vmatpush1.msra.mxu0 0.0
    %5500 = vmatprep.subr.mxu0 0.0
    %5501 = vmatpush1.msra.mxu0 0.0
    %5502 = vmatprep.subr.mxu0 0.0
    %5503 = vmatpush1.msra.mxu0 0.0
    %5504 = vmatprep.subr.mxu0 0.0
    %5505 = vmatpush1.msra.mxu0 0.0
    %5506 = vmatprep.subr.mxu0 0.0
    %5507 = vmatpush1.msra.mxu0 0.0
    %5508 = vmatprep.subr.mxu0 0.0
    %5509 = vmatpush1.msra.mxu0 0.0
    %5510 = vmatprep.subr.mxu0 0.0
    %5511 = vmatpush1.msra.mxu0 0.0
    %5512 = vmatprep.subr.mxu0 0.0
    %5513 = vmatpush1.msra.mxu0 0.0
    %5514 = vmatprep.subr.mxu0 0.0
    %5515 = vmatpush1.msra.mxu0 0.0
    %5516 = vmatprep.subr.mxu0 0.0
    %5517 = vmatpush1.msra.mxu0 0.0
    %5518 = vmatprep.subr.mxu0 0.0
    %5519 = vmatpush1.msra.mxu0 0.0
    %5520 = vmatprep.subr.mxu0 0.0
    %5521 = vmatpush1.msra.mxu0 0.0
    %5522 = vmatprep.subr.mxu0 0.0
    %5523 = vmatpush1.msra.mxu0 0.0
    %5524 = vmatprep.subr.mxu0 0.0
    %5525 = vmatpush1.msra.mxu0 0.0
    %5526 = vmatprep.subr.mxu0 0.0
    %5527 = vmatpush1.msra.mxu0 0.0
    %5528 = vmatprep.subr.mxu0 0.0
    %5529 = vmatpush1.msra.mxu0 0.0
    %5530 = vmatprep.subr.mxu0 0.0
    %5531 = vmatpush1.msra.mxu0 0.0
    %5532 = vmatprep.subr.mxu0 0.0
    %5533 = vmatpush1.msra.mxu0 0.0
    %5534 = vmatprep.subr.mxu0 0.0
    %5535 = vmatpush1.msra.mxu0 0.0
    %5536 = vmatprep.subr.mxu0 0.0
    %5537 = vmatpush1.msra.mxu0 0.0
    %5538 = vmatprep.mubr.f32.mxu0 0.0
    %5539 = vmatmul.mubr.f32.gmra.mrb[0].mxu0 %v5472
    %v5540 = vpop.f32.mrb[0].mxu0
    %v5541 = vadd.f32 %v5252, %v5540
    %v5542 = vpop.f32.mrb[0].mxu0
    %v5543 = vadd.f32 %v5254, %v5542
    %5544 = vdwg.mxu0
    %5545 = vmatprep.subr.mxu0 %v820
    %5546 = vmatpush1.msra.mxu0 %v818
    %5547 = vmatprep.subr.mxu0 0.0
    %5548 = vmatpush1.msra.mxu0 0.0
    %5549 = vmatprep.subr.mxu0 0.0
    %5550 = vmatpush1.msra.mxu0 0.0
    %5551 = vmatprep.subr.mxu0 0.0
    %5552 = vmatpush1.msra.mxu0 0.0
    %5553 = vmatprep.subr.mxu0 0.0
    %5554 = vmatpush1.msra.mxu0 0.0
    %5555 = vmatprep.subr.mxu0 0.0
    %5556 = vmatpush1.msra.mxu0 0.0
    %5557 = vmatprep.subr.mxu0 0.0
    %5558 = vmatpush1.msra.mxu0 0.0
    %5559 = vmatprep.subr.mxu0 0.0
    %5560 = vmatpush1.msra.mxu0 0.0
    %5561 = vmatprep.subr.mxu0 0.0
    %5562 = vmatpush1.msra.mxu0 0.0
    %5563 = vmatprep.subr.mxu0 0.0
    %5564 = vmatpush1.msra.mxu0 0.0
    %5565 = vmatprep.subr.mxu0 0.0
    %5566 = vmatpush1.msra.mxu0 0.0
    %5567 = vmatprep.subr.mxu0 0.0
    %5568 = vmatpush1.msra.mxu0 0.0
    %5569 = vmatprep.subr.mxu0 0.0
    %5570 = vmatpush1.msra.mxu0 0.0
    %5571 = vmatprep.subr.mxu0 0.0
    %5572 = vmatpush1.msra.mxu0 0.0
    %5573 = vmatprep.subr.mxu0 0.0
    %5574 = vmatpush1.msra.mxu0 0.0
    %5575 = vmatprep.subr.mxu0 0.0
    %5576 = vmatpush1.msra.mxu0 0.0
    %5577 = vmatprep.subr.mxu0 0.0
    %5578 = vmatpush1.msra.mxu0 0.0
    %5579 = vmatprep.subr.mxu0 0.0
    %5580 = vmatpush1.msra.mxu0 0.0
    %5581 = vmatprep.subr.mxu0 0.0
    %5582 = vmatpush1.msra.mxu0 0.0
    %5583 = vmatprep.subr.mxu0 0.0
    %5584 = vmatpush1.msra.mxu0 0.0
    %5585 = vmatprep.subr.mxu0 0.0
    %5586 = vmatpush1.msra.mxu0 0.0
    %5587 = vmatprep.subr.mxu0 0.0
    %5588 = vmatpush1.msra.mxu0 0.0
    %5589 = vmatprep.subr.mxu0 0.0
    %5590 = vmatpush1.msra.mxu0 0.0
    %5591 = vmatprep.subr.mxu0 0.0
    %5592 = vmatpush1.msra.mxu0 0.0
    %5593 = vmatprep.subr.mxu0 0.0
    %5594 = vmatpush1.msra.mxu0 0.0
    %5595 = vmatprep.subr.mxu0 0.0
    %5596 = vmatpush1.msra.mxu0 0.0
    %5597 = vmatprep.subr.mxu0 0.0
    %5598 = vmatpush1.msra.mxu0 0.0
    %5599 = vmatprep.subr.mxu0 0.0
    %5600 = vmatpush1.msra.mxu0 0.0
    %5601 = vmatprep.subr.mxu0 0.0
    %5602 = vmatpush1.msra.mxu0 0.0
    %5603 = vmatprep.subr.mxu0 0.0
    %5604 = vmatpush1.msra.mxu0 0.0
    %5605 = vmatprep.subr.mxu0 0.0
    %5606 = vmatpush1.msra.mxu0 0.0
    %5607 = vmatprep.subr.mxu0 0.0
    %5608 = vmatpush1.msra.mxu0 0.0
    %5609 = vmatprep.mubr.f32.mxu0 0.0
    %5610 = vmatmul.mubr.f32.gmra.mrb[0].mxu0 %v5472
    %v5611 = vpop.f32.mrb[0].mxu0
    %v5612 = vadd.f32 %v5323, %v5611
    %v5613 = vpop.f32.mrb[0].mxu0
    %v5614 = vadd.f32 %v5325, %v5613
    %5615 = vdwg.mxu0
    %5616 = vmatprep.subr.mxu0 %v824
    %5617 = vmatpush1.msra.mxu0 %v822
    %5618 = vmatprep.subr.mxu0 0.0
    %5619 = vmatpush1.msra.mxu0 0.0
    %5620 = vmatprep.subr.mxu0 0.0
    %5621 = vmatpush1.msra.mxu0 0.0
    %5622 = vmatprep.subr.mxu0 0.0
    %5623 = vmatpush1.msra.mxu0 0.0
    %5624 = vmatprep.subr.mxu0 0.0
    %5625 = vmatpush1.msra.mxu0 0.0
    %5626 = vmatprep.subr.mxu0 0.0
    %5627 = vmatpush1.msra.mxu0 0.0
    %5628 = vmatprep.subr.mxu0 0.0
    %5629 = vmatpush1.msra.mxu0 0.0
    %5630 = vmatprep.subr.mxu0 0.0
    %5631 = vmatpush1.msra.mxu0 0.0
    %5632 = vmatprep.subr.mxu0 0.0
    %5633 = vmatpush1.msra.mxu0 0.0
    %5634 = vmatprep.subr.mxu0 0.0
    %5635 = vmatpush1.msra.mxu0 0.0
    %5636 = vmatprep.subr.mxu0 0.0
    %5637 = vmatpush1.msra.mxu0 0.0
    %5638 = vmatprep.subr.mxu0 0.0
    %5639 = vmatpush1.msra.mxu0 0.0
    %5640 = vmatprep.subr.mxu0 0.0
    %5641 = vmatpush1.msra.mxu0 0.0
    %5642 = vmatprep.subr.mxu0 0.0
    %5643 = vmatpush1.msra.mxu0 0.0
    %5644 = vmatprep.subr.mxu0 0.0
    %5645 = vmatpush1.msra.mxu0 0.0
    %5646 = vmatprep.subr.mxu0 0.0
    %5647 = vmatpush1.msra.mxu0 0.0
    %5648 = vmatprep.subr.mxu0 0.0
    %5649 = vmatpush1.msra.mxu0 0.0
    %5650 = vmatprep.subr.mxu0 0.0
    %5651 = vmatpush1.msra.mxu0 0.0
    %5652 = vmatprep.subr.mxu0 0.0
    %5653 = vmatpush1.msra.mxu0 0.0
    %5654 = vmatprep.subr.mxu0 0.0
    %5655 = vmatpush1.msra.mxu0 0.0
    %5656 = vmatprep.subr.mxu0 0.0
    %5657 = vmatpush1.msra.mxu0 0.0
    %5658 = vmatprep.subr.mxu0 0.0
    %5659 = vmatpush1.msra.mxu0 0.0
    %5660 = vmatprep.subr.mxu0 0.0
    %5661 = vmatpush1.msra.mxu0 0.0
    %5662 = vmatprep.subr.mxu0 0.0
    %5663 = vmatpush1.msra.mxu0 0.0
    %5664 = vmatprep.subr.mxu0 0.0
    %5665 = vmatpush1.msra.mxu0 0.0
    %5666 = vmatprep.subr.mxu0 0.0
    %5667 = vmatpush1.msra.mxu0 0.0
    %5668 = vmatprep.subr.mxu0 0.0
    %5669 = vmatpush1.msra.mxu0 0.0
    %5670 = vmatprep.subr.mxu0 0.0
    %5671 = vmatpush1.msra.mxu0 0.0
    %5672 = vmatprep.subr.mxu0 0.0
    %5673 = vmatpush1.msra.mxu0 0.0
    %5674 = vmatprep.subr.mxu0 0.0
    %5675 = vmatpush1.msra.mxu0 0.0
    %5676 = vmatprep.subr.mxu0 0.0
    %5677 = vmatpush1.msra.mxu0 0.0
    %5678 = vmatprep.subr.mxu0 0.0
    %5679 = vmatpush1.msra.mxu0 0.0
    %5680 = vmatprep.mubr.f32.mxu0 0.0
    %5681 = vmatmul.mubr.f32.gmra.mrb[0].mxu0 %v5472
    %v5682 = vpop.f32.mrb[0].mxu0
    %v5683 = vadd.f32 %v5394, %v5682
    %v5684 = vpop.f32.mrb[0].mxu0
    %v5685 = vadd.f32 %v5396, %v5684
    %5686 = vdwg.mxu0
    %5687 = vmatprep.subr.mxu0 %v828
    %5688 = vmatpush1.msra.mxu0 %v826
    %5689 = vmatprep.subr.mxu0 0.0
    %5690 = vmatpush1.msra.mxu0 0.0
    %5691 = vmatprep.subr.mxu0 0.0
    %5692 = vmatpush1.msra.mxu0 0.0
    %5693 = vmatprep.subr.mxu0 0.0
    %5694 = vmatpush1.msra.mxu0 0.0
    %5695 = vmatprep.subr.mxu0 0.0
    %5696 = vmatpush1.msra.mxu0 0.0
    %5697 = vmatprep.subr.mxu0 0.0
    %5698 = vmatpush1.msra.mxu0 0.0
    %5699 = vmatprep.subr.mxu0 0.0
    %5700 = vmatpush1.msra.mxu0 0.0
    %5701 = vmatprep.subr.mxu0 0.0
    %5702 = vmatpush1.msra.mxu0 0.0
    %5703 = vmatprep.subr.mxu0 0.0
    %5704 = vmatpush1.msra.mxu0 0.0
    %5705 = vmatprep.subr.mxu0 0.0
    %5706 = vmatpush1.msra.mxu0 0.0
    %5707 = vmatprep.subr.mxu0 0.0
    %5708 = vmatpush1.msra.mxu0 0.0
    %5709 = vmatprep.subr.mxu0 0.0
    %5710 = vmatpush1.msra.mxu0 0.0
    %5711 = vmatprep.subr.mxu0 0.0
    %5712 = vmatpush1.msra.mxu0 0.0
    %5713 = vmatprep.subr.mxu0 0.0
    %5714 = vmatpush1.msra.mxu0 0.0
    %5715 = vmatprep.subr.mxu0 0.0
    %5716 = vmatpush1.msra.mxu0 0.0
    %5717 = vmatprep.subr.mxu0 0.0
    %5718 = vmatpush1.msra.mxu0 0.0
    %5719 = vmatprep.subr.mxu0 0.0
    %5720 = vmatpush1.msra.mxu0 0.0
    %5721 = vmatprep.subr.mxu0 0.0
    %5722 = vmatpush1.msra.mxu0 0.0
    %5723 = vmatprep.subr.mxu0 0.0
    %5724 = vmatpush1.msra.mxu0 0.0
    %5725 = vmatprep.subr.mxu0 0.0
    %5726 = vmatpush1.msra.mxu0 0.0
    %5727 = vmatprep.subr.mxu0 0.0
    %5728 = vmatpush1.msra.mxu0 0.0
    %5729 = vmatprep.subr.mxu0 0.0
    %5730 = vmatpush1.msra.mxu0 0.0
    %5731 = vmatprep.subr.mxu0 0.0
    %5732 = vmatpush1.msra.mxu0 0.0
    %5733 = vmatprep.subr.mxu0 0.0
    %5734 = vmatpush1.msra.mxu0 0.0
    %5735 = vmatprep.subr.mxu0 0.0
    %5736 = vmatpush1.msra.mxu0 0.0
    %5737 = vmatprep.subr.mxu0 0.0
    %5738 = vmatpush1.msra.mxu0 0.0
    %5739 = vmatprep.subr.mxu0 0.0
    %5740 = vmatpush1.msra.mxu0 0.0
    %5741 = vmatprep.subr.mxu0 0.0
    %5742 = vmatpush1.msra.mxu0 0.0
    %5743 = vmatprep.subr.mxu0 0.0
    %5744 = vmatpush1.msra.mxu0 0.0
    %5745 = vmatprep.subr.mxu0 0.0
    %5746 = vmatpush1.msra.mxu0 0.0
    %5747 = vmatprep.subr.mxu0 0.0
    %5748 = vmatpush1.msra.mxu0 0.0
    %5749 = vmatprep.subr.mxu0 0.0
    %5750 = vmatpush1.msra.mxu0 0.0
    %5751 = vmatprep.mubr.f32.mxu0 0.0
    %5752 = vmatmul.mubr.f32.gmra.mrb[0].mxu0 %v5472
    %v5753 = vpop.f32.mrb[0].mxu0
    %v5754 = vadd.f32 %v5465, %v5753
    %v5755 = vpop.f32.mrb[0].mxu0
    %v5756 = vadd.f32 %v5467, %v5755
    %5757 = vdwg.mxu0
    %v5758 = vadd.f32 %v5541, %v1118
    %v5759 = vadd.f32 %v5543, %v1122
    %v5760 = vadd.f32 %v5612, %v1126
    %v5761 = vadd.f32 %v5614, %v1130
    %v5762 = vadd.f32 %v5683, %v1134
    %v5763 = vadd.f32 %v5685, %v1138
    %v5764 = vadd.f32 %v5754, %v1142
    %v5765 = vadd.f32 %v5756, %v1146
    %v5766 = vxor.u32 %v5758, 2147483648
    %v5767 = vxor.u32 %v5759, 2147483648
    %v5768 = vmul.f32 %v5766, 1.442695
    %v5769 = vpow.pop %v5768
    %v5770 = vmul.f32 %v5767, 1.442695
    %v5771 = vpow.pop %v5770
    %v5772 = vadd.f32 %v5769, 1.0
    %v5773 = vadd.f32 %v5771, 1.0
    %v5774 = vrcp.pop %v5772
    %v5775 = vmul.f32 1.0, %v5774
    %v5776 = vrcp.pop %v5773
    %v5777 = vmul.f32 1.0, %v5776
    %v5778 = vxor.u32 %v5760, 2147483648
    %v5779 = vxor.u32 %v5761, 2147483648
    %v5780 = vmul.f32 %v5778, 1.442695
    %v5781 = vpow.pop %v5780
    %v5782 = vmul.f32 %v5779, 1.442695
    %v5783 = vpow.pop %v5782
    %v5784 = vadd.f32 %v5781, 1.0
    %v5785 = vadd.f32 %v5783, 1.0
    %v5786 = vrcp.pop %v5784
    %v5787 = vmul.f32 1.0, %v5786
    %v5788 = vrcp.pop %v5785
    %v5789 = vmul.f32 1.0, %v5788
    %v5790 = vtanh.pop %v5762
    %v5791 = vtanh.pop %v5763
    %v5792 = vxor.u32 %v5764, 2147483648
    %v5793 = vxor.u32 %v5765, 2147483648
    %v5794 = vmul.f32 %v5792, 1.442695
    %v5795 = vpow.pop %v5794
    %v5796 = vmul.f32 %v5793, 1.442695
    %v5797 = vpow.pop %v5796
    %v5798 = vadd.f32 %v5795, 1.0
    %v5799 = vadd.f32 %v5797, 1.0
    %v5800 = vrcp.pop %v5798
    %v5801 = vmul.f32 1.0, %v5800
    %v5802 = vrcp.pop %v5799
    %v5803 = vmul.f32 1.0, %v5802
    %v5804 = vmul.f32 %v5787, %v5146
    %v5805 = vmul.f32 %v5789, %v5147
    %v5806 = vmul.f32 %v5775, %v5790
    %v5807 = vmul.f32 %v5777, %v5791
    %v5808 = vadd.f32 %v5804, %v5806
    %v5809 = vadd.f32 %v5805, %v5807
    %v5810 = vtanh.pop %v5808
    %v5811 = vtanh.pop %v5809
    %v5812 = vmul.f32 %v5801, %v5810
    %v5813 = vmul.f32 %v5803, %v5811
    %v5816 = vcombine.low %v5812, %v5813
    %v5818 = vunpack.c.l.s4 1966171168
    %v5819 = vunpack.c.0.s8 %v5818
    %v5820 = vlaneseq
    %v5821 = vshrl.u32 %v5820, 7
    %v5822 = vsub.s32 %v5819, %v5821
    %v5823 = vrot.slane %v5816, %v5822
    %v5824 = vcombine.high %v5823, %v5823
    %v5826 = vunpack.c.l.s4 1966171168
    %v5827 = vunpack.c.0.s8 %v5826
    %v5828 = vlaneseq
    %v5829 = vshrl.u32 %v5828, 7
    %v5830 = vsub.s32 %v5827, %v5829
    %v5831 = vrot.slane %v5823, %v5830
    %v5833 = vunpack.c.l.s4 1966171168
    %v5834 = vunpack.c.0.s8 %v5833
    %v5835 = vlaneseq
    %v5836 = vshrl.u32 %v5835, 7
    %v5837 = vsub.s32 %v5834, %v5836
    %v5838 = vrot.slane %v5824, %v5837
    %s5841 = scalar_lea.vmem [#allocation2], 6
    %5842 = vst.msk [vmem:[%s5841] ss:$8 sm:$0x3] %vm1869, %v5831
    %5843 = vst.msk [vmem:[%s5841] ss:$8 sm:$0x0] %vm1869, %v5831
    %s5844 = scalar_lea.vmem [#allocation2], 38
    %5845 = vst.msk [vmem:[%s5844] ss:$8 sm:$0x3] %vm1869, %v5838
    %5846 = vst.msk [vmem:[%s5844] ss:$8 sm:$0x0] %vm1869, %v5838
    %v5848 = vlaneseq
    %v5849 = vshrl.u32 %v5848, 7
    %v5850 = vsub.s32 0, %v5849
    %v5851 = vrot.slane %v512, %v5850
    %v5852 = vlaneseq
    %v5853 = vshrl.u32 %v5852, 7
    %v5854 = vsub.s32 1, %v5853
    %v5855 = vrot.slane %v512, %v5854
    %v5856 = vlaneseq
    %v5857 = vshrl.u32 %v5856, 7
    %v5858 = vsub.s32 2, %v5857
    %v5859 = vrot.slane %v512, %v5858
    %v5860 = vlaneseq
    %v5861 = vshrl.u32 %v5860, 7
    %v5862 = vsub.s32 3, %v5861
    %v5863 = vrot.slane %v512, %v5862
    %v5864 = vlaneseq
    %v5865 = vshrl.u32 %v5864, 7
    %v5866 = vsub.s32 4, %v5865
    %v5867 = vrot.slane %v512, %v5866
    %v5868 = vlaneseq
    %v5869 = vshrl.u32 %v5868, 7
    %v5870 = vsub.s32 5, %v5869
    %v5871 = vrot.slane %v512, %v5870
    %5878 = vmatprep.subr.mxu0 %v321
    %5879 = vmatpush1.msra.mxu0 %v320
    %5880 = vmatprep.subr.mxu0 %v327
    %5881 = vmatpush1.msra.mxu0 %v326
    %5882 = vmatprep.subr.mxu0 %v333
    %5883 = vmatpush1.msra.mxu0 %v332
    %5884 = vmatprep.subr.mxu0 %v339
    %5885 = vmatpush1.msra.mxu0 %v338
    %5886 = vmatprep.subr.mxu0 %v345
    %5887 = vmatpush1.msra.mxu0 %v344
    %5888 = vmatprep.subr.mxu0 %v351
    %5889 = vmatpush1.msra.mxu0 %v350
    %5890 = vmatprep.subr.mxu0 %v357
    %5891 = vmatpush1.msra.mxu0 %v356
    %5892 = vmatprep.subr.mxu0 %v363
    %5893 = vmatpush1.msra.mxu0 %v362
    %5894 = vmatprep.subr.mxu0 %v369
    %5895 = vmatpush1.msra.mxu0 %v368
    %5896 = vmatprep.subr.mxu0 %v375
    %5897 = vmatpush1.msra.mxu0 %v374
    %5898 = vmatprep.subr.mxu0 %v381
    %5899 = vmatpush1.msra.mxu0 %v380
    %5900 = vmatprep.subr.mxu0 %v387
    %5901 = vmatpush1.msra.mxu0 %v386
    %5902 = vmatprep.subr.mxu0 %v393
    %5903 = vmatpush1.msra.mxu0 %v392
    %5904 = vmatprep.subr.mxu0 %v399
    %5905 = vmatpush1.msra.mxu0 %v398
    %5906 = vmatprep.subr.mxu0 %v405
    %5907 = vmatpush1.msra.mxu0 %v404
    %5908 = vmatprep.subr.mxu0 %v411
    %5909 = vmatpush1.msra.mxu0 %v410
    %5910 = vmatprep.subr.mxu0 %v417
    %5911 = vmatpush1.msra.mxu0 %v416
    %5912 = vmatprep.subr.mxu0 %v423
    %5913 = vmatpush1.msra.mxu0 %v422
    %5914 = vmatprep.subr.mxu0 %v429
    %5915 = vmatpush1.msra.mxu0 %v428
    %5916 = vmatprep.subr.mxu0 %v435
    %5917 = vmatpush1.msra.mxu0 %v434
    %5918 = vmatprep.subr.mxu0 %v441
    %5919 = vmatpush1.msra.mxu0 %v440
    %5920 = vmatprep.subr.mxu0 %v447
    %5921 = vmatpush1.msra.mxu0 %v446
    %5922 = vmatprep.subr.mxu0 %v453
    %5923 = vmatpush1.msra.mxu0 %v452
    %5924 = vmatprep.subr.mxu0 %v459
    %5925 = vmatpush1.msra.mxu0 %v458
    %5926 = vmatprep.subr.mxu0 %v465
    %5927 = vmatpush1.msra.mxu0 %v464
    %5928 = vmatprep.subr.mxu0 %v471
    %5929 = vmatpush1.msra.mxu0 %v470
    %5930 = vmatprep.subr.mxu0 %v477
    %5931 = vmatpush1.msra.mxu0 %v476
    %5932 = vmatprep.subr.mxu0 %v483
    %5933 = vmatpush1.msra.mxu0 %v482
    %5934 = vmatprep.subr.mxu0 %v489
    %5935 = vmatpush1.msra.mxu0 %v488
    %5936 = vmatprep.subr.mxu0 %v495
    %5937 = vmatpush1.msra.mxu0 %v494
    %5938 = vmatprep.subr.mxu0 %v501
    %5939 = vmatpush1.msra.mxu0 %v500
    %5940 = vmatprep.subr.mxu0 %v507
    %5941 = vmatpush1.msra.mxu0 %v506
    %5942 = vmatprep.mubr.f32.mxu0 %v5813
    %5943 = vmatmul.mubr.f32.gmra.mrb[0].mxu0 %v5812
    %v5944 = vpop.f32.mrb[0].mxu0
    %v5945 = vadd.f32 %v5851, %v5944
    %v5946 = vpop.f32.mrb[0].mxu0
    %v5947 = vadd.f32 %v5855, %v5946
    %5948 = vdwg.mxu0
    %5949 = vmatprep.subr.mxu0 %v323
    %5950 = vmatpush1.msra.mxu0 %v322
    %5951 = vmatprep.subr.mxu0 %v329
    %5952 = vmatpush1.msra.mxu0 %v328
    %5953 = vmatprep.subr.mxu0 %v335
    %5954 = vmatpush1.msra.mxu0 %v334
    %5955 = vmatprep.subr.mxu0 %v341
    %5956 = vmatpush1.msra.mxu0 %v340
    %5957 = vmatprep.subr.mxu0 %v347
    %5958 = vmatpush1.msra.mxu0 %v346
    %5959 = vmatprep.subr.mxu0 %v353
    %5960 = vmatpush1.msra.mxu0 %v352
    %5961 = vmatprep.subr.mxu0 %v359
    %5962 = vmatpush1.msra.mxu0 %v358
    %5963 = vmatprep.subr.mxu0 %v365
    %5964 = vmatpush1.msra.mxu0 %v364
    %5965 = vmatprep.subr.mxu0 %v371
    %5966 = vmatpush1.msra.mxu0 %v370
    %5967 = vmatprep.subr.mxu0 %v377
    %5968 = vmatpush1.msra.mxu0 %v376
    %5969 = vmatprep.subr.mxu0 %v383
    %5970 = vmatpush1.msra.mxu0 %v382
    %5971 = vmatprep.subr.mxu0 %v389
    %5972 = vmatpush1.msra.mxu0 %v388
    %5973 = vmatprep.subr.mxu0 %v395
    %5974 = vmatpush1.msra.mxu0 %v394
    %5975 = vmatprep.subr.mxu0 %v401
    %5976 = vmatpush1.msra.mxu0 %v400
    %5977 = vmatprep.subr.mxu0 %v407
    %5978 = vmatpush1.msra.mxu0 %v406
    %5979 = vmatprep.subr.mxu0 %v413
    %5980 = vmatpush1.msra.mxu0 %v412
    %5981 = vmatprep.subr.mxu0 %v419
    %5982 = vmatpush1.msra.mxu0 %v418
    %5983 = vmatprep.subr.mxu0 %v425
    %5984 = vmatpush1.msra.mxu0 %v424
    %5985 = vmatprep.subr.mxu0 %v431
    %5986 = vmatpush1.msra.mxu0 %v430
    %5987 = vmatprep.subr.mxu0 %v437
    %5988 = vmatpush1.msra.mxu0 %v436
    %5989 = vmatprep.subr.mxu0 %v443
    %5990 = vmatpush1.msra.mxu0 %v442
    %5991 = vmatprep.subr.mxu0 %v449
    %5992 = vmatpush1.msra.mxu0 %v448
    %5993 = vmatprep.subr.mxu0 %v455
    %5994 = vmatpush1.msra.mxu0 %v454
    %5995 = vmatprep.subr.mxu0 %v461
    %5996 = vmatpush1.msra.mxu0 %v460
    %5997 = vmatprep.subr.mxu0 %v467
    %5998 = vmatpush1.msra.mxu0 %v466
    %5999 = vmatprep.subr.mxu0 %v473
    %6000 = vmatpush1.msra.mxu0 %v472
    %6001 = vmatprep.subr.mxu0 %v479
    %6002 = vmatpush1.msra.mxu0 %v478
    %6003 = vmatprep.subr.mxu0 %v485
    %6004 = vmatpush1.msra.mxu0 %v484
    %6005 = vmatprep.subr.mxu0 %v491
    %6006 = vmatpush1.msra.mxu0 %v490
    %6007 = vmatprep.subr.mxu0 %v497
    %6008 = vmatpush1.msra.mxu0 %v496
    %6009 = vmatprep.subr.mxu0 %v503
    %6010 = vmatpush1.msra.mxu0 %v502
    %6011 = vmatprep.subr.mxu0 %v509
    %6012 = vmatpush1.msra.mxu0 %v508
    %6013 = vmatprep.mubr.f32.mxu0 %v5813
    %6014 = vmatmul.mubr.f32.gmra.mrb[0].mxu0 %v5812
    %v6015 = vpop.f32.mrb[0].mxu0
    %v6016 = vadd.f32 %v5859, %v6015
    %v6017 = vpop.f32.mrb[0].mxu0
    %v6018 = vadd.f32 %v5863, %v6017
    %6019 = vdwg.mxu0
    %6020 = vmatprep.subr.mxu0 %v325
    %6021 = vmatpush1.msra.mxu0 %v324
    %6022 = vmatprep.subr.mxu0 %v331
    %6023 = vmatpush1.msra.mxu0 %v330
    %6024 = vmatprep.subr.mxu0 %v337
    %6025 = vmatpush1.msra.mxu0 %v336
    %6026 = vmatprep.subr.mxu0 %v343
    %6027 = vmatpush1.msra.mxu0 %v342
    %6028 = vmatprep.subr.mxu0 %v349
    %6029 = vmatpush1.msra.mxu0 %v348
    %6030 = vmatprep.subr.mxu0 %v355
    %6031 = vmatpush1.msra.mxu0 %v354
    %6032 = vmatprep.subr.mxu0 %v361
    %6033 = vmatpush1.msra.mxu0 %v360
    %6034 = vmatprep.subr.mxu0 %v367
    %6035 = vmatpush1.msra.mxu0 %v366
    %6036 = vmatprep.subr.mxu0 %v373
    %6037 = vmatpush1.msra.mxu0 %v372
    %6038 = vmatprep.subr.mxu0 %v379
    %6039 = vmatpush1.msra.mxu0 %v378
    %6040 = vmatprep.subr.mxu0 %v385
    %6041 = vmatpush1.msra.mxu0 %v384
    %6042 = vmatprep.subr.mxu0 %v391
    %6043 = vmatpush1.msra.mxu0 %v390
    %6044 = vmatprep.subr.mxu0 %v397
    %6045 = vmatpush1.msra.mxu0 %v396
    %6046 = vmatprep.subr.mxu0 %v403
    %6047 = vmatpush1.msra.mxu0 %v402
    %6048 = vmatprep.subr.mxu0 %v409
    %6049 = vmatpush1.msra.mxu0 %v408
    %6050 = vmatprep.subr.mxu0 %v415
    %6051 = vmatpush1.msra.mxu0 %v414
    %6052 = vmatprep.subr.mxu0 %v421
    %6053 = vmatpush1.msra.mxu0 %v420
    %6054 = vmatprep.subr.mxu0 %v427
    %6055 = vmatpush1.msra.mxu0 %v426
    %6056 = vmatprep.subr.mxu0 %v433
    %6057 = vmatpush1.msra.mxu0 %v432
    %6058 = vmatprep.subr.mxu0 %v439
    %6059 = vmatpush1.msra.mxu0 %v438
    %6060 = vmatprep.subr.mxu0 %v445
    %6061 = vmatpush1.msra.mxu0 %v444
    %6062 = vmatprep.subr.mxu0 %v451
    %6063 = vmatpush1.msra.mxu0 %v450
    %6064 = vmatprep.subr.mxu0 %v457
    %6065 = vmatpush1.msra.mxu0 %v456
    %6066 = vmatprep.subr.mxu0 %v463
    %6067 = vmatpush1.msra.mxu0 %v462
    %6068 = vmatprep.subr.mxu0 %v469
    %6069 = vmatpush1.msra.mxu0 %v468
    %6070 = vmatprep.subr.mxu0 %v475
    %6071 = vmatpush1.msra.mxu0 %v474
    %6072 = vmatprep.subr.mxu0 %v481
    %6073 = vmatpush1.msra.mxu0 %v480
    %6074 = vmatprep.subr.mxu0 %v487
    %6075 = vmatpush1.msra.mxu0 %v486
    %6076 = vmatprep.subr.mxu0 %v493
    %6077 = vmatpush1.msra.mxu0 %v492
    %6078 = vmatprep.subr.mxu0 %v499
    %6079 = vmatpush1.msra.mxu0 %v498
    %6080 = vmatprep.subr.mxu0 %v505
    %6081 = vmatpush1.msra.mxu0 %v504
    %6082 = vmatprep.subr.mxu0 %v511
    %6083 = vmatpush1.msra.mxu0 %v510
    %6084 = vmatprep.mubr.f32.mxu0 %v5813
    %6085 = vmatmul.mubr.f32.gmra.mrb[0].mxu0 %v5812
    %v6086 = vpop.f32.mrb[0].mxu0
    %v6087 = vadd.f32 %v5867, %v6086
    %v6088 = vpop.f32.mrb[0].mxu0
    %v6089 = vadd.f32 %v5871, %v6088
    %6090 = vdwg.mxu0
    %v6091 = vxor.u32 %v5945, 2147483648
    %v6092 = vxor.u32 %v5947, 2147483648
    %v6093 = vmul.f32 %v6091, 1.442695
    %v6094 = vpow.pop %v6093
    %v6095 = vmul.f32 %v6092, 1.442695
    %v6096 = vpow.pop %v6095
    %v6097 = vadd.f32 %v6094, 1.0
    %v6098 = vadd.f32 %v6096, 1.0
    %v6099 = vrcp.pop %v6097
    %v6100 = vmul.f32 1.0, %v6099
    %v6101 = vrcp.pop %v6098
    %v6102 = vmul.f32 1.0, %v6101
    %v6103 = vtanh.pop %v6016
    %v6104 = vtanh.pop %v6018
    %v6105 = vxor.u32 %v6087, 2147483648
    %v6106 = vxor.u32 %v6089, 2147483648
    %v6107 = vmul.f32 %v6105, 1.442695
    %v6108 = vpow.pop %v6107
    %v6109 = vmul.f32 %v6106, 1.442695
    %v6110 = vpow.pop %v6109
    %v6111 = vadd.f32 %v6108, 1.0
    %v6112 = vadd.f32 %v6110, 1.0
    %v6113 = vrcp.pop %v6111
    %v6114 = vmul.f32 1.0, %v6113
    %v6115 = vrcp.pop %v6112
    %v6116 = vmul.f32 1.0, %v6115
    %v6117 = vmul.f32 %v6100, %v6103
    %v6118 = vmul.f32 %v6102, %v6104
    %v6119 = vtanh.pop %v6117
    %v6120 = vtanh.pop %v6118
    %v6121 = vmul.f32 %v6114, %v6119
    %v6122 = vmul.f32 %v6116, %v6120
    %v6125 = vcombine.low %v6121, %v6122
    %v6127 = vunpack.c.l.s4 1966171168
    %v6128 = vunpack.c.0.s8 %v6127
    %v6129 = vlaneseq
    %v6130 = vshrl.u32 %v6129, 7
    %v6131 = vsub.s32 %v6128, %v6130
    %v6132 = vrot.slane %v6125, %v6131
    %v6133 = vcombine.high %v6132, %v6132
    %v6135 = vunpack.c.l.s4 1966171168
    %v6136 = vunpack.c.0.s8 %v6135
    %v6137 = vlaneseq
    %v6138 = vshrl.u32 %v6137, 7
    %v6139 = vsub.s32 %v6136, %v6138
    %v6140 = vrot.slane %v6132, %v6139
    %v6142 = vunpack.c.l.s4 1966171168
    %v6143 = vunpack.c.0.s8 %v6142
    %v6144 = vlaneseq
    %v6145 = vshrl.u32 %v6144, 7
    %v6146 = vsub.s32 %v6143, %v6145
    %v6147 = vrot.slane %v6133, %v6146
    %s6150 = scalar_lea.vmem [#allocation2], 7
    %6151 = vst.msk [vmem:[%s6150] ss:$8 sm:$0x3] %vm1869, %v6140
    %6152 = vst.msk [vmem:[%s6150] ss:$8 sm:$0x0] %vm1869, %v6140
    %s6153 = scalar_lea.vmem [#allocation2], 39
    %6154 = vst.msk [vmem:[%s6153] ss:$8 sm:$0x3] %vm1869, %v6147
    %6155 = vst.msk [vmem:[%s6153] ss:$8 sm:$0x0] %vm1869, %v6147
    %6156 = vmatprep.subr.mxu0 %v321
    %6157 = vmatpush1.msra.mxu0 %v320
    %6158 = vmatprep.subr.mxu0 %v327
    %6159 = vmatpush1.msra.mxu0 %v326
    %6160 = vmatprep.subr.mxu0 %v333
    %6161 = vmatpush1.msra.mxu0 %v332
    %6162 = vmatprep.subr.mxu0 %v339
    %6163 = vmatpush1.msra.mxu0 %v338
    %6164 = vmatprep.subr.mxu0 %v345
    %6165 = vmatpush1.msra.mxu0 %v344
    %6166 = vmatprep.subr.mxu0 %v351
    %6167 = vmatpush1.msra.mxu0 %v350
    %6168 = vmatprep.subr.mxu0 %v357
    %6169 = vmatpush1.msra.mxu0 %v356
    %6170 = vmatprep.subr.mxu0 %v363
    %6171 = vmatpush1.msra.mxu0 %v362
    %6172 = vmatprep.subr.mxu0 %v369
    %6173 = vmatpush1.msra.mxu0 %v368
    %6174 = vmatprep.subr.mxu0 %v375
    %6175 = vmatpush1.msra.mxu0 %v374
    %6176 = vmatprep.subr.mxu0 %v381
    %6177 = vmatpush1.msra.mxu0 %v380
    %6178 = vmatprep.subr.mxu0 %v387
    %6179 = vmatpush1.msra.mxu0 %v386
    %6180 = vmatprep.subr.mxu0 %v393
    %6181 = vmatpush1.msra.mxu0 %v392
    %6182 = vmatprep.subr.mxu0 %v399
    %6183 = vmatpush1.msra.mxu0 %v398
    %6184 = vmatprep.subr.mxu0 %v405
    %6185 = vmatpush1.msra.mxu0 %v404
    %6186 = vmatprep.subr.mxu0 %v411
    %6187 = vmatpush1.msra.mxu0 %v410
    %6188 = vmatprep.subr.mxu0 %v417
    %6189 = vmatpush1.msra.mxu0 %v416
    %6190 = vmatprep.subr.mxu0 %v423
    %6191 = vmatpush1.msra.mxu0 %v422
    %6192 = vmatprep.subr.mxu0 %v429
    %6193 = vmatpush1.msra.mxu0 %v428
    %6194 = vmatprep.subr.mxu0 %v435
    %6195 = vmatpush1.msra.mxu0 %v434
    %6196 = vmatprep.subr.mxu0 %v441
    %6197 = vmatpush1.msra.mxu0 %v440
    %6198 = vmatprep.subr.mxu0 %v447
    %6199 = vmatpush1.msra.mxu0 %v446
    %6200 = vmatprep.subr.mxu0 %v453
    %6201 = vmatpush1.msra.mxu0 %v452
    %6202 = vmatprep.subr.mxu0 %v459
    %6203 = vmatpush1.msra.mxu0 %v458
    %6204 = vmatprep.subr.mxu0 %v465
    %6205 = vmatpush1.msra.mxu0 %v464
    %6206 = vmatprep.subr.mxu0 %v471
    %6207 = vmatpush1.msra.mxu0 %v470
    %6208 = vmatprep.subr.mxu0 %v477
    %6209 = vmatpush1.msra.mxu0 %v476
    %6210 = vmatprep.subr.mxu0 %v483
    %6211 = vmatpush1.msra.mxu0 %v482
    %6212 = vmatprep.subr.mxu0 %v489
    %6213 = vmatpush1.msra.mxu0 %v488
    %6214 = vmatprep.subr.mxu0 %v495
    %6215 = vmatpush1.msra.mxu0 %v494
    %6216 = vmatprep.subr.mxu0 %v501
    %6217 = vmatpush1.msra.mxu0 %v500
    %6218 = vmatprep.subr.mxu0 %v507
    %6219 = vmatpush1.msra.mxu0 %v506
    %6220 = vmatprep.mubr.f32.mxu0 %v6122
    %6221 = vmatmul.mubr.f32.gmra.mrb[0].mxu0 %v6121
    %v6222 = vpop.f32.mrb[0].mxu0
    %v6223 = vadd.f32 %v5851, %v6222
    %v6224 = vpop.f32.mrb[0].mxu0
    %v6225 = vadd.f32 %v5855, %v6224
    %6226 = vdwg.mxu0
    %6227 = vmatprep.subr.mxu0 %v323
    %6228 = vmatpush1.msra.mxu0 %v322
    %6229 = vmatprep.subr.mxu0 %v329
    %6230 = vmatpush1.msra.mxu0 %v328
    %6231 = vmatprep.subr.mxu0 %v335
    %6232 = vmatpush1.msra.mxu0 %v334
    %6233 = vmatprep.subr.mxu0 %v341
    %6234 = vmatpush1.msra.mxu0 %v340
    %6235 = vmatprep.subr.mxu0 %v347
    %6236 = vmatpush1.msra.mxu0 %v346
    %6237 = vmatprep.subr.mxu0 %v353
    %6238 = vmatpush1.msra.mxu0 %v352
    %6239 = vmatprep.subr.mxu0 %v359
    %6240 = vmatpush1.msra.mxu0 %v358
    %6241 = vmatprep.subr.mxu0 %v365
    %6242 = vmatpush1.msra.mxu0 %v364
    %6243 = vmatprep.subr.mxu0 %v371
    %6244 = vmatpush1.msra.mxu0 %v370
    %6245 = vmatprep.subr.mxu0 %v377
    %6246 = vmatpush1.msra.mxu0 %v376
    %6247 = vmatprep.subr.mxu0 %v383
    %6248 = vmatpush1.msra.mxu0 %v382
    %6249 = vmatprep.subr.mxu0 %v389
    %6250 = vmatpush1.msra.mxu0 %v388
    %6251 = vmatprep.subr.mxu0 %v395
    %6252 = vmatpush1.msra.mxu0 %v394
    %6253 = vmatprep.subr.mxu0 %v401
    %6254 = vmatpush1.msra.mxu0 %v400
    %6255 = vmatprep.subr.mxu0 %v407
    %6256 = vmatpush1.msra.mxu0 %v406
    %6257 = vmatprep.subr.mxu0 %v413
    %6258 = vmatpush1.msra.mxu0 %v412
    %6259 = vmatprep.subr.mxu0 %v419
    %6260 = vmatpush1.msra.mxu0 %v418
    %6261 = vmatprep.subr.mxu0 %v425
    %6262 = vmatpush1.msra.mxu0 %v424
    %6263 = vmatprep.subr.mxu0 %v431
    %6264 = vmatpush1.msra.mxu0 %v430
    %6265 = vmatprep.subr.mxu0 %v437
    %6266 = vmatpush1.msra.mxu0 %v436
    %6267 = vmatprep.subr.mxu0 %v443
    %6268 = vmatpush1.msra.mxu0 %v442
    %6269 = vmatprep.subr.mxu0 %v449
    %6270 = vmatpush1.msra.mxu0 %v448
    %6271 = vmatprep.subr.mxu0 %v455
    %6272 = vmatpush1.msra.mxu0 %v454
    %6273 = vmatprep.subr.mxu0 %v461
    %6274 = vmatpush1.msra.mxu0 %v460
    %6275 = vmatprep.subr.mxu0 %v467
    %6276 = vmatpush1.msra.mxu0 %v466
    %6277 = vmatprep.subr.mxu0 %v473
    %6278 = vmatpush1.msra.mxu0 %v472
    %6279 = vmatprep.subr.mxu0 %v479
    %6280 = vmatpush1.msra.mxu0 %v478
    %6281 = vmatprep.subr.mxu0 %v485
    %6282 = vmatpush1.msra.mxu0 %v484
    %6283 = vmatprep.subr.mxu0 %v491
    %6284 = vmatpush1.msra.mxu0 %v490
    %6285 = vmatprep.subr.mxu0 %v497
    %6286 = vmatpush1.msra.mxu0 %v496
    %6287 = vmatprep.subr.mxu0 %v503
    %6288 = vmatpush1.msra.mxu0 %v502
    %6289 = vmatprep.subr.mxu0 %v509
    %6290 = vmatpush1.msra.mxu0 %v508
    %6291 = vmatprep.mubr.f32.mxu0 %v6122
    %6292 = vmatmul.mubr.f32.gmra.mrb[0].mxu0 %v6121
    %v6293 = vpop.f32.mrb[0].mxu0
    %v6294 = vadd.f32 %v5859, %v6293
    %v6295 = vpop.f32.mrb[0].mxu0
    %v6296 = vadd.f32 %v5863, %v6295
    %6297 = vdwg.mxu0
    %6298 = vmatprep.subr.mxu0 %v325
    %6299 = vmatpush1.msra.mxu0 %v324
    %6300 = vmatprep.subr.mxu0 %v331
    %6301 = vmatpush1.msra.mxu0 %v330
    %6302 = vmatprep.subr.mxu0 %v337
    %6303 = vmatpush1.msra.mxu0 %v336
    %6304 = vmatprep.subr.mxu0 %v343
    %6305 = vmatpush1.msra.mxu0 %v342
    %6306 = vmatprep.subr.mxu0 %v349
    %6307 = vmatpush1.msra.mxu0 %v348
    %6308 = vmatprep.subr.mxu0 %v355
    %6309 = vmatpush1.msra.mxu0 %v354
    %6310 = vmatprep.subr.mxu0 %v361
    %6311 = vmatpush1.msra.mxu0 %v360
    %6312 = vmatprep.subr.mxu0 %v367
    %6313 = vmatpush1.msra.mxu0 %v366
    %6314 = vmatprep.subr.mxu0 %v373
    %6315 = vmatpush1.msra.mxu0 %v372
    %6316 = vmatprep.subr.mxu0 %v379
    %6317 = vmatpush1.msra.mxu0 %v378
    %6318 = vmatprep.subr.mxu0 %v385
    %6319 = vmatpush1.msra.mxu0 %v384
    %6320 = vmatprep.subr.mxu0 %v391
    %6321 = vmatpush1.msra.mxu0 %v390
    %6322 = vmatprep.subr.mxu0 %v397
    %6323 = vmatpush1.msra.mxu0 %v396
    %6324 = vmatprep.subr.mxu0 %v403
    %6325 = vmatpush1.msra.mxu0 %v402
    %6326 = vmatprep.subr.mxu0 %v409
    %6327 = vmatpush1.msra.mxu0 %v408
    %6328 = vmatprep.subr.mxu0 %v415
    %6329 = vmatpush1.msra.mxu0 %v414
    %6330 = vmatprep.subr.mxu0 %v421
    %6331 = vmatpush1.msra.mxu0 %v420
    %6332 = vmatprep.subr.mxu0 %v427
    %6333 = vmatpush1.msra.mxu0 %v426
    %6334 = vmatprep.subr.mxu0 %v433
    %6335 = vmatpush1.msra.mxu0 %v432
    %6336 = vmatprep.subr.mxu0 %v439
    %6337 = vmatpush1.msra.mxu0 %v438
    %6338 = vmatprep.subr.mxu0 %v445
    %6339 = vmatpush1.msra.mxu0 %v444
    %6340 = vmatprep.subr.mxu0 %v451
    %6341 = vmatpush1.msra.mxu0 %v450
    %6342 = vmatprep.subr.mxu0 %v457
    %6343 = vmatpush1.msra.mxu0 %v456
    %6344 = vmatprep.subr.mxu0 %v463
    %6345 = vmatpush1.msra.mxu0 %v462
    %6346 = vmatprep.subr.mxu0 %v469
    %6347 = vmatpush1.msra.mxu0 %v468
    %6348 = vmatprep.subr.mxu0 %v475
    %6349 = vmatpush1.msra.mxu0 %v474
    %6350 = vmatprep.subr.mxu0 %v481
    %6351 = vmatpush1.msra.mxu0 %v480
    %6352 = vmatprep.subr.mxu0 %v487
    %6353 = vmatpush1.msra.mxu0 %v486
    %6354 = vmatprep.subr.mxu0 %v493
    %6355 = vmatpush1.msra.mxu0 %v492
    %6356 = vmatprep.subr.mxu0 %v499
    %6357 = vmatpush1.msra.mxu0 %v498
    %6358 = vmatprep.subr.mxu0 %v505
    %6359 = vmatpush1.msra.mxu0 %v504
    %6360 = vmatprep.subr.mxu0 %v511
    %6361 = vmatpush1.msra.mxu0 %v510
    %6362 = vmatprep.mubr.f32.mxu0 %v6122
    %6363 = vmatmul.mubr.f32.gmra.mrb[0].mxu0 %v6121
    %v6364 = vpop.f32.mrb[0].mxu0
    %v6365 = vadd.f32 %v5867, %v6364
    %v6366 = vpop.f32.mrb[0].mxu0
    %v6367 = vadd.f32 %v5871, %v6366
    %6368 = vdwg.mxu0
    %v6369 = vxor.u32 %v6223, 2147483648
    %v6370 = vxor.u32 %v6225, 2147483648
    %v6371 = vmul.f32 %v6369, 1.442695
    %v6372 = vpow.pop %v6371
    %v6373 = vmul.f32 %v6370, 1.442695
    %v6374 = vpow.pop %v6373
    %v6375 = vadd.f32 %v6372, 1.0
    %v6376 = vadd.f32 %v6374, 1.0
    %v6377 = vrcp.pop %v6375
    %v6378 = vmul.f32 1.0, %v6377
    %v6379 = vrcp.pop %v6376
    %v6380 = vmul.f32 1.0, %v6379
    %v6381 = vtanh.pop %v6294
    %v6382 = vtanh.pop %v6296
    %v6383 = vxor.u32 %v6365, 2147483648
    %v6384 = vxor.u32 %v6367, 2147483648
    %v6385 = vmul.f32 %v6383, 1.442695
    %v6386 = vpow.pop %v6385
    %v6387 = vmul.f32 %v6384, 1.442695
    %v6388 = vpow.pop %v6387
    %v6389 = vadd.f32 %v6386, 1.0
    %v6390 = vadd.f32 %v6388, 1.0
    %v6391 = vrcp.pop %v6389
    %v6392 = vmul.f32 1.0, %v6391
    %v6393 = vrcp.pop %v6390
    %v6394 = vmul.f32 1.0, %v6393
    %v6395 = vmul.f32 %v6378, %v6381
    %v6396 = vmul.f32 %v6380, %v6382
    %v6397 = vtanh.pop %v6395
    %v6398 = vtanh.pop %v6396
    %v6399 = vmul.f32 %v6392, %v6397
    %v6400 = vmul.f32 %v6394, %v6398
    %v6403 = vcombine.low %v6399, %v6400
    %v6405 = vunpack.c.l.s4 1966171168
    %v6406 = vunpack.c.0.s8 %v6405
    %v6407 = vlaneseq
    %v6408 = vshrl.u32 %v6407, 7
    %v6409 = vsub.s32 %v6406, %v6408
    %v6410 = vrot.slane %v6403, %v6409
    %v6411 = vcombine.high %v6410, %v6410
    %v6413 = vunpack.c.l.s4 1966171168
    %v6414 = vunpack.c.0.s8 %v6413
    %v6415 = vlaneseq
    %v6416 = vshrl.u32 %v6415, 7
    %v6417 = vsub.s32 %v6414, %v6416
    %v6418 = vrot.slane %v6410, %v6417
    %v6420 = vunpack.c.l.s4 1966171168
    %v6421 = vunpack.c.0.s8 %v6420
    %v6422 = vlaneseq
    %v6423 = vshrl.u32 %v6422, 7
    %v6424 = vsub.s32 %v6421, %v6423
    %v6425 = vrot.slane %v6411, %v6424
    %s6428 = scalar_lea.vmem [#allocation2], 16
    %6429 = vst.msk [vmem:[%s6428] ss:$8 sm:$0x3] %vm1869, %v6418
    %6430 = vst.msk [vmem:[%s6428] ss:$8 sm:$0x0] %vm1869, %v6418
    %s6431 = scalar_lea.vmem [#allocation2], 48
    %6432 = vst.msk [vmem:[%s6431] ss:$8 sm:$0x3] %vm1869, %v6425
    %6433 = vst.msk [vmem:[%s6431] ss:$8 sm:$0x0] %vm1869, %v6425
    %6434 = vmatprep.subr.mxu0 %v321
    %6435 = vmatpush1.msra.mxu0 %v320
    %6436 = vmatprep.subr.mxu0 %v327
    %6437 = vmatpush1.msra.mxu0 %v326
    %6438 = vmatprep.subr.mxu0 %v333
    %6439 = vmatpush1.msra.mxu0 %v332
    %6440 = vmatprep.subr.mxu0 %v339
    %6441 = vmatpush1.msra.mxu0 %v338
    %6442 = vmatprep.subr.mxu0 %v345
    %6443 = vmatpush1.msra.mxu0 %v344
    %6444 = vmatprep.subr.mxu0 %v351
    %6445 = vmatpush1.msra.mxu0 %v350
    %6446 = vmatprep.subr.mxu0 %v357
    %6447 = vmatpush1.msra.mxu0 %v356
    %6448 = vmatprep.subr.mxu0 %v363
    %6449 = vmatpush1.msra.mxu0 %v362
    %6450 = vmatprep.subr.mxu0 %v369
    %6451 = vmatpush1.msra.mxu0 %v368
    %6452 = vmatprep.subr.mxu0 %v375
    %6453 = vmatpush1.msra.mxu0 %v374
    %6454 = vmatprep.subr.mxu0 %v381
    %6455 = vmatpush1.msra.mxu0 %v380
    %6456 = vmatprep.subr.mxu0 %v387
    %6457 = vmatpush1.msra.mxu0 %v386
    %6458 = vmatprep.subr.mxu0 %v393
    %6459 = vmatpush1.msra.mxu0 %v392
    %6460 = vmatprep.subr.mxu0 %v399
    %6461 = vmatpush1.msra.mxu0 %v398
    %6462 = vmatprep.subr.mxu0 %v405
    %6463 = vmatpush1.msra.mxu0 %v404
    %6464 = vmatprep.subr.mxu0 %v411
    %6465 = vmatpush1.msra.mxu0 %v410
    %6466 = vmatprep.subr.mxu0 %v417
    %6467 = vmatpush1.msra.mxu0 %v416
    %6468 = vmatprep.subr.mxu0 %v423
    %6469 = vmatpush1.msra.mxu0 %v422
    %6470 = vmatprep.subr.mxu0 %v429
    %6471 = vmatpush1.msra.mxu0 %v428
    %6472 = vmatprep.subr.mxu0 %v435
    %6473 = vmatpush1.msra.mxu0 %v434
    %6474 = vmatprep.subr.mxu0 %v441
    %6475 = vmatpush1.msra.mxu0 %v440
    %6476 = vmatprep.subr.mxu0 %v447
    %6477 = vmatpush1.msra.mxu0 %v446
    %6478 = vmatprep.subr.mxu0 %v453
    %6479 = vmatpush1.msra.mxu0 %v452
    %6480 = vmatprep.subr.mxu0 %v459
    %6481 = vmatpush1.msra.mxu0 %v458
    %6482 = vmatprep.subr.mxu0 %v465
    %6483 = vmatpush1.msra.mxu0 %v464
    %6484 = vmatprep.subr.mxu0 %v471
    %6485 = vmatpush1.msra.mxu0 %v470
    %6486 = vmatprep.subr.mxu0 %v477
    %6487 = vmatpush1.msra.mxu0 %v476
    %6488 = vmatprep.subr.mxu0 %v483
    %6489 = vmatpush1.msra.mxu0 %v482
    %6490 = vmatprep.subr.mxu0 %v489
    %6491 = vmatpush1.msra.mxu0 %v488
    %6492 = vmatprep.subr.mxu0 %v495
    %6493 = vmatpush1.msra.mxu0 %v494
    %6494 = vmatprep.subr.mxu0 %v501
    %6495 = vmatpush1.msra.mxu0 %v500
    %6496 = vmatprep.subr.mxu0 %v507
    %6497 = vmatpush1.msra.mxu0 %v506
    %6498 = vmatprep.mubr.f32.mxu0 %v6400
    %6499 = vmatmul.mubr.f32.gmra.mrb[0].mxu0 %v6399
    %v6500 = vpop.f32.mrb[0].mxu0
    %v6501 = vadd.f32 %v5851, %v6500
    %v6502 = vpop.f32.mrb[0].mxu0
    %v6503 = vadd.f32 %v5855, %v6502
    %6504 = vdwg.mxu0
    %6505 = vmatprep.subr.mxu0 %v323
    %6506 = vmatpush1.msra.mxu0 %v322
    %6507 = vmatprep.subr.mxu0 %v329
    %6508 = vmatpush1.msra.mxu0 %v328
    %6509 = vmatprep.subr.mxu0 %v335
    %6510 = vmatpush1.msra.mxu0 %v334
    %6511 = vmatprep.subr.mxu0 %v341
    %6512 = vmatpush1.msra.mxu0 %v340
    %6513 = vmatprep.subr.mxu0 %v347
    %6514 = vmatpush1.msra.mxu0 %v346
    %6515 = vmatprep.subr.mxu0 %v353
    %6516 = vmatpush1.msra.mxu0 %v352
    %6517 = vmatprep.subr.mxu0 %v359
    %6518 = vmatpush1.msra.mxu0 %v358
    %6519 = vmatprep.subr.mxu0 %v365
    %6520 = vmatpush1.msra.mxu0 %v364
    %6521 = vmatprep.subr.mxu0 %v371
    %6522 = vmatpush1.msra.mxu0 %v370
    %6523 = vmatprep.subr.mxu0 %v377
    %6524 = vmatpush1.msra.mxu0 %v376
    %6525 = vmatprep.subr.mxu0 %v383
    %6526 = vmatpush1.msra.mxu0 %v382
    %6527 = vmatprep.subr.mxu0 %v389
    %6528 = vmatpush1.msra.mxu0 %v388
    %6529 = vmatprep.subr.mxu0 %v395
    %6530 = vmatpush1.msra.mxu0 %v394
    %6531 = vmatprep.subr.mxu0 %v401
    %6532 = vmatpush1.msra.mxu0 %v400
    %6533 = vmatprep.subr.mxu0 %v407
    %6534 = vmatpush1.msra.mxu0 %v406
    %6535 = vmatprep.subr.mxu0 %v413
    %6536 = vmatpush1.msra.mxu0 %v412
    %6537 = vmatprep.subr.mxu0 %v419
    %6538 = vmatpush1.msra.mxu0 %v418
    %6539 = vmatprep.subr.mxu0 %v425
    %6540 = vmatpush1.msra.mxu0 %v424
    %6541 = vmatprep.subr.mxu0 %v431
    %6542 = vmatpush1.msra.mxu0 %v430
    %6543 = vmatprep.subr.mxu0 %v437
    %6544 = vmatpush1.msra.mxu0 %v436
    %6545 = vmatprep.subr.mxu0 %v443
    %6546 = vmatpush1.msra.mxu0 %v442
    %6547 = vmatprep.subr.mxu0 %v449
    %6548 = vmatpush1.msra.mxu0 %v448
    %6549 = vmatprep.subr.mxu0 %v455
    %6550 = vmatpush1.msra.mxu0 %v454
    %6551 = vmatprep.subr.mxu0 %v461
    %6552 = vmatpush1.msra.mxu0 %v460
    %6553 = vmatprep.subr.mxu0 %v467
    %6554 = vmatpush1.msra.mxu0 %v466
    %6555 = vmatprep.subr.mxu0 %v473
    %6556 = vmatpush1.msra.mxu0 %v472
    %6557 = vmatprep.subr.mxu0 %v479
    %6558 = vmatpush1.msra.mxu0 %v478
    %6559 = vmatprep.subr.mxu0 %v485
    %6560 = vmatpush1.msra.mxu0 %v484
    %6561 = vmatprep.subr.mxu0 %v491
    %6562 = vmatpush1.msra.mxu0 %v490
    %6563 = vmatprep.subr.mxu0 %v497
    %6564 = vmatpush1.msra.mxu0 %v496
    %6565 = vmatprep.subr.mxu0 %v503
    %6566 = vmatpush1.msra.mxu0 %v502
    %6567 = vmatprep.subr.mxu0 %v509
    %6568 = vmatpush1.msra.mxu0 %v508
    %6569 = vmatprep.mubr.f32.mxu0 %v6400
    %6570 = vmatmul.mubr.f32.gmra.mrb[0].mxu0 %v6399
    %v6571 = vpop.f32.mrb[0].mxu0
    %v6572 = vadd.f32 %v5859, %v6571
    %v6573 = vpop.f32.mrb[0].mxu0
    %v6574 = vadd.f32 %v5863, %v6573
    %6575 = vdwg.mxu0
    %6576 = vmatprep.subr.mxu0 %v325
    %6577 = vmatpush1.msra.mxu0 %v324
    %6578 = vmatprep.subr.mxu0 %v331
    %6579 = vmatpush1.msra.mxu0 %v330
    %6580 = vmatprep.subr.mxu0 %v337
    %6581 = vmatpush1.msra.mxu0 %v336
    %6582 = vmatprep.subr.mxu0 %v343
    %6583 = vmatpush1.msra.mxu0 %v342
    %6584 = vmatprep.subr.mxu0 %v349
    %6585 = vmatpush1.msra.mxu0 %v348
    %6586 = vmatprep.subr.mxu0 %v355
    %6587 = vmatpush1.msra.mxu0 %v354
    %6588 = vmatprep.subr.mxu0 %v361
    %6589 = vmatpush1.msra.mxu0 %v360
    %6590 = vmatprep.subr.mxu0 %v367
    %6591 = vmatpush1.msra.mxu0 %v366
    %6592 = vmatprep.subr.mxu0 %v373
    %6593 = vmatpush1.msra.mxu0 %v372
    %6594 = vmatprep.subr.mxu0 %v379
    %6595 = vmatpush1.msra.mxu0 %v378
    %6596 = vmatprep.subr.mxu0 %v385
    %6597 = vmatpush1.msra.mxu0 %v384
    %6598 = vmatprep.subr.mxu0 %v391
    %6599 = vmatpush1.msra.mxu0 %v390
    %6600 = vmatprep.subr.mxu0 %v397
    %6601 = vmatpush1.msra.mxu0 %v396
    %6602 = vmatprep.subr.mxu0 %v403
    %6603 = vmatpush1.msra.mxu0 %v402
    %6604 = vmatprep.subr.mxu0 %v409
    %6605 = vmatpush1.msra.mxu0 %v408
    %6606 = vmatprep.subr.mxu0 %v415
    %6607 = vmatpush1.msra.mxu0 %v414
    %6608 = vmatprep.subr.mxu0 %v421
    %6609 = vmatpush1.msra.mxu0 %v420
    %6610 = vmatprep.subr.mxu0 %v427
    %6611 = vmatpush1.msra.mxu0 %v426
    %6612 = vmatprep.subr.mxu0 %v433
    %6613 = vmatpush1.msra.mxu0 %v432
    %6614 = vmatprep.subr.mxu0 %v439
    %6615 = vmatpush1.msra.mxu0 %v438
    %6616 = vmatprep.subr.mxu0 %v445
    %6617 = vmatpush1.msra.mxu0 %v444
    %6618 = vmatprep.subr.mxu0 %v451
    %6619 = vmatpush1.msra.mxu0 %v450
    %6620 = vmatprep.subr.mxu0 %v457
    %6621 = vmatpush1.msra.mxu0 %v456
    %6622 = vmatprep.subr.mxu0 %v463
    %6623 = vmatpush1.msra.mxu0 %v462
    %6624 = vmatprep.subr.mxu0 %v469
    %6625 = vmatpush1.msra.mxu0 %v468
    %6626 = vmatprep.subr.mxu0 %v475
    %6627 = vmatpush1.msra.mxu0 %v474
    %6628 = vmatprep.subr.mxu0 %v481
    %6629 = vmatpush1.msra.mxu0 %v480
    %6630 = vmatprep.subr.mxu0 %v487
    %6631 = vmatpush1.msra.mxu0 %v486
    %6632 = vmatprep.subr.mxu0 %v493
    %6633 = vmatpush1.msra.mxu0 %v492
    %6634 = vmatprep.subr.mxu0 %v499
    %6635 = vmatpush1.msra.mxu0 %v498
    %6636 = vmatprep.subr.mxu0 %v505
    %6637 = vmatpush1.msra.mxu0 %v504
    %6638 = vmatprep.subr.mxu0 %v511
    %6639 = vmatpush1.msra.mxu0 %v510
    %6640 = vmatprep.mubr.f32.mxu0 %v6400
    %6641 = vmatmul.mubr.f32.gmra.mrb[0].mxu0 %v6399
    %v6642 = vpop.f32.mrb[0].mxu0
    %v6643 = vadd.f32 %v5867, %v6642
    %v6644 = vpop.f32.mrb[0].mxu0
    %v6645 = vadd.f32 %v5871, %v6644
    %6646 = vdwg.mxu0
    %v6647 = vxor.u32 %v6501, 2147483648
    %v6648 = vxor.u32 %v6503, 2147483648
    %v6649 = vmul.f32 %v6647, 1.442695
    %v6650 = vpow.pop %v6649
    %v6651 = vmul.f32 %v6648, 1.442695
    %v6652 = vpow.pop %v6651
    %v6653 = vadd.f32 %v6650, 1.0
    %v6654 = vadd.f32 %v6652, 1.0
    %v6655 = vrcp.pop %v6653
    %v6656 = vmul.f32 1.0, %v6655
    %v6657 = vrcp.pop %v6654
    %v6658 = vmul.f32 1.0, %v6657
    %v6659 = vtanh.pop %v6572
    %v6660 = vtanh.pop %v6574
    %v6661 = vxor.u32 %v6643, 2147483648
    %v6662 = vxor.u32 %v6645, 2147483648
    %v6663 = vmul.f32 %v6661, 1.442695
    %v6664 = vpow.pop %v6663
    %v6665 = vmul.f32 %v6662, 1.442695
    %v6666 = vpow.pop %v6665
    %v6667 = vadd.f32 %v6664, 1.0
    %v6668 = vadd.f32 %v6666, 1.0
    %v6669 = vrcp.pop %v6667
    %v6670 = vmul.f32 1.0, %v6669
    %v6671 = vrcp.pop %v6668
    %v6672 = vmul.f32 1.0, %v6671
    %v6673 = vmul.f32 %v6656, %v6659
    %v6674 = vmul.f32 %v6658, %v6660
    %v6675 = vtanh.pop %v6673
    %v6676 = vtanh.pop %v6674
    %v6677 = vmul.f32 %v6670, %v6675
    %v6678 = vmul.f32 %v6672, %v6676
    %v6681 = vcombine.low %v6677, %v6678
    %v6683 = vunpack.c.l.s4 1966171168
    %v6684 = vunpack.c.0.s8 %v6683
    %v6685 = vlaneseq
    %v6686 = vshrl.u32 %v6685, 7
    %v6687 = vsub.s32 %v6684, %v6686
    %v6688 = vrot.slane %v6681, %v6687
    %v6689 = vcombine.high %v6688, %v6688
    %v6691 = vunpack.c.l.s4 1966171168
    %v6692 = vunpack.c.0.s8 %v6691
    %v6693 = vlaneseq
    %v6694 = vshrl.u32 %v6693, 7
    %v6695 = vsub.s32 %v6692, %v6694
    %v6696 = vrot.slane %v6688, %v6695
    %v6698 = vunpack.c.l.s4 1966171168
    %v6699 = vunpack.c.0.s8 %v6698
    %v6700 = vlaneseq
    %v6701 = vshrl.u32 %v6700, 7
    %v6702 = vsub.s32 %v6699, %v6701
    %v6703 = vrot.slane %v6689, %v6702
    %s6706 = scalar_lea.vmem [#allocation2], 17
    %6707 = vst.msk [vmem:[%s6706] ss:$8 sm:$0x3] %vm1869, %v6696
    %6708 = vst.msk [vmem:[%s6706] ss:$8 sm:$0x0] %vm1869, %v6696
    %s6709 = scalar_lea.vmem [#allocation2], 49
    %6710 = vst.msk [vmem:[%s6709] ss:$8 sm:$0x3] %vm1869, %v6703
    %6711 = vst.msk [vmem:[%s6709] ss:$8 sm:$0x0] %vm1869, %v6703
    %6712 = vmatprep.subr.mxu0 %v321
    %6713 = vmatpush1.msra.mxu0 %v320
    %6714 = vmatprep.subr.mxu0 %v327
    %6715 = vmatpush1.msra.mxu0 %v326
    %6716 = vmatprep.subr.mxu0 %v333
    %6717 = vmatpush1.msra.mxu0 %v332
    %6718 = vmatprep.subr.mxu0 %v339
    %6719 = vmatpush1.msra.mxu0 %v338
    %6720 = vmatprep.subr.mxu0 %v345
    %6721 = vmatpush1.msra.mxu0 %v344
    %6722 = vmatprep.subr.mxu0 %v351
    %6723 = vmatpush1.msra.mxu0 %v350
    %6724 = vmatprep.subr.mxu0 %v357
    %6725 = vmatpush1.msra.mxu0 %v356
    %6726 = vmatprep.subr.mxu0 %v363
    %6727 = vmatpush1.msra.mxu0 %v362
    %6728 = vmatprep.subr.mxu0 %v369
    %6729 = vmatpush1.msra.mxu0 %v368
    %6730 = vmatprep.subr.mxu0 %v375
    %6731 = vmatpush1.msra.mxu0 %v374
    %6732 = vmatprep.subr.mxu0 %v381
    %6733 = vmatpush1.msra.mxu0 %v380
    %6734 = vmatprep.subr.mxu0 %v387
    %6735 = vmatpush1.msra.mxu0 %v386
    %6736 = vmatprep.subr.mxu0 %v393
    %6737 = vmatpush1.msra.mxu0 %v392
    %6738 = vmatprep.subr.mxu0 %v399
    %6739 = vmatpush1.msra.mxu0 %v398
    %6740 = vmatprep.subr.mxu0 %v405
    %6741 = vmatpush1.msra.mxu0 %v404
    %6742 = vmatprep.subr.mxu0 %v411
    %6743 = vmatpush1.msra.mxu0 %v410
    %6744 = vmatprep.subr.mxu0 %v417
    %6745 = vmatpush1.msra.mxu0 %v416
    %6746 = vmatprep.subr.mxu0 %v423
    %6747 = vmatpush1.msra.mxu0 %v422
    %6748 = vmatprep.subr.mxu0 %v429
    %6749 = vmatpush1.msra.mxu0 %v428
    %6750 = vmatprep.subr.mxu0 %v435
    %6751 = vmatpush1.msra.mxu0 %v434
    %6752 = vmatprep.subr.mxu0 %v441
    %6753 = vmatpush1.msra.mxu0 %v440
    %6754 = vmatprep.subr.mxu0 %v447
    %6755 = vmatpush1.msra.mxu0 %v446
    %6756 = vmatprep.subr.mxu0 %v453
    %6757 = vmatpush1.msra.mxu0 %v452
    %6758 = vmatprep.subr.mxu0 %v459
    %6759 = vmatpush1.msra.mxu0 %v458
    %6760 = vmatprep.subr.mxu0 %v465
    %6761 = vmatpush1.msra.mxu0 %v464
    %6762 = vmatprep.subr.mxu0 %v471
    %6763 = vmatpush1.msra.mxu0 %v470
    %6764 = vmatprep.subr.mxu0 %v477
    %6765 = vmatpush1.msra.mxu0 %v476
    %6766 = vmatprep.subr.mxu0 %v483
    %6767 = vmatpush1.msra.mxu0 %v482
    %6768 = vmatprep.subr.mxu0 %v489
    %6769 = vmatpush1.msra.mxu0 %v488
    %6770 = vmatprep.subr.mxu0 %v495
    %6771 = vmatpush1.msra.mxu0 %v494
    %6772 = vmatprep.subr.mxu0 %v501
    %6773 = vmatpush1.msra.mxu0 %v500
    %6774 = vmatprep.subr.mxu0 %v507
    %6775 = vmatpush1.msra.mxu0 %v506
    %6776 = vmatprep.mubr.f32.mxu0 %v6678
    %6777 = vmatmul.mubr.f32.gmra.mrb[0].mxu0 %v6677
    %v6778 = vpop.f32.mrb[0].mxu0
    %v6779 = vadd.f32 %v5851, %v6778
    %v6780 = vpop.f32.mrb[0].mxu0
    %v6781 = vadd.f32 %v5855, %v6780
    %6782 = vdwg.mxu0
    %6783 = vmatprep.subr.mxu0 %v323
    %6784 = vmatpush1.msra.mxu0 %v322
    %6785 = vmatprep.subr.mxu0 %v329
    %6786 = vmatpush1.msra.mxu0 %v328
    %6787 = vmatprep.subr.mxu0 %v335
    %6788 = vmatpush1.msra.mxu0 %v334
    %6789 = vmatprep.subr.mxu0 %v341
    %6790 = vmatpush1.msra.mxu0 %v340
    %6791 = vmatprep.subr.mxu0 %v347
    %6792 = vmatpush1.msra.mxu0 %v346
    %6793 = vmatprep.subr.mxu0 %v353
    %6794 = vmatpush1.msra.mxu0 %v352
    %6795 = vmatprep.subr.mxu0 %v359
    %6796 = vmatpush1.msra.mxu0 %v358
    %6797 = vmatprep.subr.mxu0 %v365
    %6798 = vmatpush1.msra.mxu0 %v364
    %6799 = vmatprep.subr.mxu0 %v371
    %6800 = vmatpush1.msra.mxu0 %v370
    %6801 = vmatprep.subr.mxu0 %v377
    %6802 = vmatpush1.msra.mxu0 %v376
    %6803 = vmatprep.subr.mxu0 %v383
    %6804 = vmatpush1.msra.mxu0 %v382
    %6805 = vmatprep.subr.mxu0 %v389
    %6806 = vmatpush1.msra.mxu0 %v388
    %6807 = vmatprep.subr.mxu0 %v395
    %6808 = vmatpush1.msra.mxu0 %v394
    %6809 = vmatprep.subr.mxu0 %v401
    %6810 = vmatpush1.msra.mxu0 %v400
    %6811 = vmatprep.subr.mxu0 %v407
    %6812 = vmatpush1.msra.mxu0 %v406
    %6813 = vmatprep.subr.mxu0 %v413
    %6814 = vmatpush1.msra.mxu0 %v412
    %6815 = vmatprep.subr.mxu0 %v419
    %6816 = vmatpush1.msra.mxu0 %v418
    %6817 = vmatprep.subr.mxu0 %v425
    %6818 = vmatpush1.msra.mxu0 %v424
    %6819 = vmatprep.subr.mxu0 %v431
    %6820 = vmatpush1.msra.mxu0 %v430
    %6821 = vmatprep.subr.mxu0 %v437
    %6822 = vmatpush1.msra.mxu0 %v436
    %6823 = vmatprep.subr.mxu0 %v443
    %6824 = vmatpush1.msra.mxu0 %v442
    %6825 = vmatprep.subr.mxu0 %v449
    %6826 = vmatpush1.msra.mxu0 %v448
    %6827 = vmatprep.subr.mxu0 %v455
    %6828 = vmatpush1.msra.mxu0 %v454
    %6829 = vmatprep.subr.mxu0 %v461
    %6830 = vmatpush1.msra.mxu0 %v460
    %6831 = vmatprep.subr.mxu0 %v467
    %6832 = vmatpush1.msra.mxu0 %v466
    %6833 = vmatprep.subr.mxu0 %v473
    %6834 = vmatpush1.msra.mxu0 %v472
    %6835 = vmatprep.subr.mxu0 %v479
    %6836 = vmatpush1.msra.mxu0 %v478
    %6837 = vmatprep.subr.mxu0 %v485
    %6838 = vmatpush1.msra.mxu0 %v484
    %6839 = vmatprep.subr.mxu0 %v491
    %6840 = vmatpush1.msra.mxu0 %v490
    %6841 = vmatprep.subr.mxu0 %v497
    %6842 = vmatpush1.msra.mxu0 %v496
    %6843 = vmatprep.subr.mxu0 %v503
    %6844 = vmatpush1.msra.mxu0 %v502
    %6845 = vmatprep.subr.mxu0 %v509
    %6846 = vmatpush1.msra.mxu0 %v508
    %6847 = vmatprep.mubr.f32.mxu0 %v6678
    %6848 = vmatmul.mubr.f32.gmra.mrb[0].mxu0 %v6677
    %v6849 = vpop.f32.mrb[0].mxu0
    %v6850 = vadd.f32 %v5859, %v6849
    %v6851 = vpop.f32.mrb[0].mxu0
    %v6852 = vadd.f32 %v5863, %v6851
    %6853 = vdwg.mxu0
    %6854 = vmatprep.subr.mxu0 %v325
    %6855 = vmatpush1.msra.mxu0 %v324
    %6856 = vmatprep.subr.mxu0 %v331
    %6857 = vmatpush1.msra.mxu0 %v330
    %6858 = vmatprep.subr.mxu0 %v337
    %6859 = vmatpush1.msra.mxu0 %v336
    %6860 = vmatprep.subr.mxu0 %v343
    %6861 = vmatpush1.msra.mxu0 %v342
    %6862 = vmatprep.subr.mxu0 %v349
    %6863 = vmatpush1.msra.mxu0 %v348
    %6864 = vmatprep.subr.mxu0 %v355
    %6865 = vmatpush1.msra.mxu0 %v354
    %6866 = vmatprep.subr.mxu0 %v361
    %6867 = vmatpush1.msra.mxu0 %v360
    %6868 = vmatprep.subr.mxu0 %v367
    %6869 = vmatpush1.msra.mxu0 %v366
    %6870 = vmatprep.subr.mxu0 %v373
    %6871 = vmatpush1.msra.mxu0 %v372
    %6872 = vmatprep.subr.mxu0 %v379
    %6873 = vmatpush1.msra.mxu0 %v378
    %6874 = vmatprep.subr.mxu0 %v385
    %6875 = vmatpush1.msra.mxu0 %v384
    %6876 = vmatprep.subr.mxu0 %v391
    %6877 = vmatpush1.msra.mxu0 %v390
    %6878 = vmatprep.subr.mxu0 %v397
    %6879 = vmatpush1.msra.mxu0 %v396
    %6880 = vmatprep.subr.mxu0 %v403
    %6881 = vmatpush1.msra.mxu0 %v402
    %6882 = vmatprep.subr.mxu0 %v409
    %6883 = vmatpush1.msra.mxu0 %v408
    %6884 = vmatprep.subr.mxu0 %v415
    %6885 = vmatpush1.msra.mxu0 %v414
    %6886 = vmatprep.subr.mxu0 %v421
    %6887 = vmatpush1.msra.mxu0 %v420
    %6888 = vmatprep.subr.mxu0 %v427
    %6889 = vmatpush1.msra.mxu0 %v426
    %6890 = vmatprep.subr.mxu0 %v433
    %6891 = vmatpush1.msra.mxu0 %v432
    %6892 = vmatprep.subr.mxu0 %v439
    %6893 = vmatpush1.msra.mxu0 %v438
    %6894 = vmatprep.subr.mxu0 %v445
    %6895 = vmatpush1.msra.mxu0 %v444
    %6896 = vmatprep.subr.mxu0 %v451
    %6897 = vmatpush1.msra.mxu0 %v450
    %6898 = vmatprep.subr.mxu0 %v457
    %6899 = vmatpush1.msra.mxu0 %v456
    %6900 = vmatprep.subr.mxu0 %v463
    %6901 = vmatpush1.msra.mxu0 %v462
    %6902 = vmatprep.subr.mxu0 %v469
    %6903 = vmatpush1.msra.mxu0 %v468
    %6904 = vmatprep.subr.mxu0 %v475
    %6905 = vmatpush1.msra.mxu0 %v474
    %6906 = vmatprep.subr.mxu0 %v481
    %6907 = vmatpush1.msra.mxu0 %v480
    %6908 = vmatprep.subr.mxu0 %v487
    %6909 = vmatpush1.msra.mxu0 %v486
    %6910 = vmatprep.subr.mxu0 %v493
    %6911 = vmatpush1.msra.mxu0 %v492
    %6912 = vmatprep.subr.mxu0 %v499
    %6913 = vmatpush1.msra.mxu0 %v498
    %6914 = vmatprep.subr.mxu0 %v505
    %6915 = vmatpush1.msra.mxu0 %v504
    %6916 = vmatprep.subr.mxu0 %v511
    %6917 = vmatpush1.msra.mxu0 %v510
    %6918 = vmatprep.mubr.f32.mxu0 %v6678
    %6919 = vmatmul.mubr.f32.gmra.mrb[0].mxu0 %v6677
    %v6920 = vpop.f32.mrb[0].mxu0
    %v6921 = vadd.f32 %v5867, %v6920
    %v6922 = vpop.f32.mrb[0].mxu0
    %v6923 = vadd.f32 %v5871, %v6922
    %6924 = vdwg.mxu0
    %v6925 = vxor.u32 %v6779, 2147483648
    %v6926 = vxor.u32 %v6781, 2147483648
    %v6927 = vmul.f32 %v6925, 1.442695
    %v6928 = vpow.pop %v6927
    %v6929 = vmul.f32 %v6926, 1.442695
    %v6930 = vpow.pop %v6929
    %v6931 = vadd.f32 %v6928, 1.0
    %v6932 = vadd.f32 %v6930, 1.0
    %v6933 = vrcp.pop %v6931
    %v6934 = vmul.f32 1.0, %v6933
    %v6935 = vrcp.pop %v6932
    %v6936 = vmul.f32 1.0, %v6935
    %v6937 = vtanh.pop %v6850
    %v6938 = vtanh.pop %v6852
    %v6939 = vxor.u32 %v6921, 2147483648
    %v6940 = vxor.u32 %v6923, 2147483648
    %v6941 = vmul.f32 %v6939, 1.442695
    %v6942 = vpow.pop %v6941
    %v6943 = vmul.f32 %v6940, 1.442695
    %v6944 = vpow.pop %v6943
    %v6945 = vadd.f32 %v6942, 1.0
    %v6946 = vadd.f32 %v6944, 1.0
    %v6947 = vrcp.pop %v6945
    %v6948 = vmul.f32 1.0, %v6947
    %v6949 = vrcp.pop %v6946
    %v6950 = vmul.f32 1.0, %v6949
    %v6951 = vmul.f32 %v6934, %v6937
    %v6952 = vmul.f32 %v6936, %v6938
    %v6953 = vtanh.pop %v6951
    %v6954 = vtanh.pop %v6952
    %v6955 = vmul.f32 %v6948, %v6953
    %v6956 = vmul.f32 %v6950, %v6954
    %v6959 = vcombine.low %v6955, %v6956
    %v6961 = vunpack.c.l.s4 1966171168
    %v6962 = vunpack.c.0.s8 %v6961
    %v6963 = vlaneseq
    %v6964 = vshrl.u32 %v6963, 7
    %v6965 = vsub.s32 %v6962, %v6964
    %v6966 = vrot.slane %v6959, %v6965
    %v6967 = vcombine.high %v6966, %v6966
    %v6969 = vunpack.c.l.s4 1966171168
    %v6970 = vunpack.c.0.s8 %v6969
    %v6971 = vlaneseq
    %v6972 = vshrl.u32 %v6971, 7
    %v6973 = vsub.s32 %v6970, %v6972
    %v6974 = vrot.slane %v6966, %v6973
    %v6976 = vunpack.c.l.s4 1966171168
    %v6977 = vunpack.c.0.s8 %v6976
    %v6978 = vlaneseq
    %v6979 = vshrl.u32 %v6978, 7
    %v6980 = vsub.s32 %v6977, %v6979
    %v6981 = vrot.slane %v6967, %v6980
    %s6984 = scalar_lea.vmem [#allocation2], 18
    %6985 = vst.msk [vmem:[%s6984] ss:$8 sm:$0x3] %vm1869, %v6974
    %6986 = vst.msk [vmem:[%s6984] ss:$8 sm:$0x0] %vm1869, %v6974
    %s6987 = scalar_lea.vmem [#allocation2], 50
    %6988 = vst.msk [vmem:[%s6987] ss:$8 sm:$0x3] %vm1869, %v6981
    %6989 = vst.msk [vmem:[%s6987] ss:$8 sm:$0x0] %vm1869, %v6981
    %v6990 = vld [vmem:[%s6] sm:$0xff]
    %v6991 = vld [vmem:[%s6 + $0x8] sm:$0xff]
    %v6992 = vld [vmem:[%s6 + $0x10] sm:$0xff]
    %v6993 = vld [vmem:[%s6 + $0x18] sm:$0xff]
    %v6994 = vld [vmem:[%s6 + $0x20] sm:$0xff]
    %v6995 = vld [vmem:[%s6 + $0x28] sm:$0xff]
    %v6996 = vld [vmem:[%s6 + $0x30] sm:$0xff]
    %v6997 = vld [vmem:[%s6 + $0x38] sm:$0xff]
    %v6998 = vld [vmem:[%s6 + $0x40] sm:$0xff]
    %v6999 = vld [vmem:[%s6 + $0x48] sm:$0xff]
    %v7000 = vld [vmem:[%s6 + $0x50] sm:$0xff]
    %v7001 = vld [vmem:[%s6 + $0x58] sm:$0xff]
    %v7002 = vld [vmem:[%s6 + $0x60] sm:$0xff]
    %v7003 = vld [vmem:[%s6 + $0x68] sm:$0xff]
    %v7004 = vld [vmem:[%s6 + $0x70] sm:$0xff]
    %v7005 = vld [vmem:[%s6 + $0x78] sm:$0xff]
    %v7006 = vld [vmem:[%s6 + $0x80] sm:$0xff]
    %v7007 = vld [vmem:[%s6 + $0x88] sm:$0xff]
    %v7008 = vld [vmem:[%s6 + $0x90] sm:$0xff]
    %v7009 = vld [vmem:[%s6 + $0x98] sm:$0xff]
    %v7010 = vld [vmem:[%s6 + $0xa0] sm:$0xff]
    %v7011 = vld [vmem:[%s6 + $0xa8] sm:$0xff]
    %v7012 = vld [vmem:[%s6 + $0xb0] sm:$0xff]
    %v7013 = vld [vmem:[%s6 + $0xb8] sm:$0xff]
    %v7014 = vld [vmem:[%s6 + $0xc0] sm:$0xff]
    %v7015 = vld [vmem:[%s6 + $0xc8] sm:$0xff]
    %v7016 = vld [vmem:[%s6 + $0xd0] sm:$0xff]
    %v7017 = vld [vmem:[%s6 + $0xd8] sm:$0xff]
    %v7018 = vld [vmem:[%s6 + $0xe0] sm:$0xff]
    %v7019 = vld [vmem:[%s6 + $0xe8] sm:$0xff]
    %v7020 = vld [vmem:[%s6 + $0xf0] sm:$0xff]
    %v7021 = vld [vmem:[%s6 + $0xf8] sm:$0xff]
    %v7022 = vld [vmem:[%s7] sm:$0x1]
    %v7023 = vld [vmem:[#allocation2] sm:$0xff]
    %v7024 = vld [vmem:[#allocation2 + $0x8] sm:$0xff]
    %v7025 = vld [vmem:[#allocation2 + $0x10] sm:$0x7]
    %v7026 = vld [vmem:[#allocation2 + $0x18] sm:$0x7]
    %v7028 = vlaneseq
    %v7029 = vshrl.u32 %v7028, 7
    %v7030 = vsub.s32 0, %v7029
    %v7031 = vrot.slane %v7022, %v7030
    %7033 = vmatprep.subr.mxu0 0.0
    %7034 = vmatpush1.msra.mxu0 %v6990
    %7035 = vmatprep.subr.mxu0 0.0
    %7036 = vmatpush1.msra.mxu0 %v6991
    %7037 = vmatprep.subr.mxu0 0.0
    %7038 = vmatpush1.msra.mxu0 %v6992
    %7039 = vmatprep.subr.mxu0 0.0
    %7040 = vmatpush1.msra.mxu0 %v6993
    %7041 = vmatprep.subr.mxu0 0.0
    %7042 = vmatpush1.msra.mxu0 %v6994
    %7043 = vmatprep.subr.mxu0 0.0
    %7044 = vmatpush1.msra.mxu0 %v6995
    %7045 = vmatprep.subr.mxu0 0.0
    %7046 = vmatpush1.msra.mxu0 %v6996
    %7047 = vmatprep.subr.mxu0 0.0
    %7048 = vmatpush1.msra.mxu0 %v6997
    %7049 = vmatprep.subr.mxu0 0.0
    %7050 = vmatpush1.msra.mxu0 %v6998
    %7051 = vmatprep.subr.mxu0 0.0
    %7052 = vmatpush1.msra.mxu0 %v6999
    %7053 = vmatprep.subr.mxu0 0.0
    %7054 = vmatpush1.msra.mxu0 %v7000
    %7055 = vmatprep.subr.mxu0 0.0
    %7056 = vmatpush1.msra.mxu0 %v7001
    %7057 = vmatprep.subr.mxu0 0.0
    %7058 = vmatpush1.msra.mxu0 %v7002
    %7059 = vmatprep.subr.mxu0 0.0
    %7060 = vmatpush1.msra.mxu0 %v7003
    %7061 = vmatprep.subr.mxu0 0.0
    %7062 = vmatpush1.msra.mxu0 %v7004
    %7063 = vmatprep.subr.mxu0 0.0
    %7064 = vmatpush1.msra.mxu0 %v7005
    %7065 = vmatprep.subr.mxu0 0.0
    %7066 = vmatpush1.msra.mxu0 %v7006
    %7067 = vmatprep.subr.mxu0 0.0
    %7068 = vmatpush1.msra.mxu0 %v7007
    %7069 = vmatprep.subr.mxu0 0.0
    %7070 = vmatpush1.msra.mxu0 %v7008
    %7071 = vmatprep.subr.mxu0 0.0
    %7072 = vmatpush1.msra.mxu0 %v7009
    %7073 = vmatprep.subr.mxu0 0.0
    %7074 = vmatpush1.msra.mxu0 %v7010
    %7075 = vmatprep.subr.mxu0 0.0
    %7076 = vmatpush1.msra.mxu0 %v7011
    %7077 = vmatprep.subr.mxu0 0.0
    %7078 = vmatpush1.msra.mxu0 %v7012
    %7079 = vmatprep.subr.mxu0 0.0
    %7080 = vmatpush1.msra.mxu0 %v7013
    %7081 = vmatprep.subr.mxu0 0.0
    %7082 = vmatpush1.msra.mxu0 %v7014
    %7083 = vmatprep.subr.mxu0 0.0
    %7084 = vmatpush1.msra.mxu0 %v7015
    %7085 = vmatprep.subr.mxu0 0.0
    %7086 = vmatpush1.msra.mxu0 %v7016
    %7087 = vmatprep.subr.mxu0 0.0
    %7088 = vmatpush1.msra.mxu0 %v7017
    %7089 = vmatprep.subr.mxu0 0.0
    %7090 = vmatpush1.msra.mxu0 %v7018
    %7091 = vmatprep.subr.mxu0 0.0
    %7092 = vmatpush1.msra.mxu0 %v7019
    %7093 = vmatprep.subr.mxu0 0.0
    %7094 = vmatpush1.msra.mxu0 %v7020
    %7095 = vmatprep.subr.mxu0 0.0
    %7096 = vmatpush1.msra.mxu0 %v7021
    %7097 = vmatprep.mubr.f32.mxu0 %v7024
    %7098 = vmatmul.mubr.f32.gmra.mrb[0].mxu0 %v7023
    %v7099 = vpop.f32.mrb[0].mxu0
    %v7100 = vadd.f32 %v7031, %v7099
    %v7101 = vpop.f32.mrb[0].mxu0
    %7102 = vmatprep.mubr.f32.mxu0 %v7026
    %7103 = vmatmul.mubr.f32.gmra.mrb[0].mxu0 %v7025
    %v7104 = vpop.f32.mrb[0].mxu0
    %v7105 = vadd.f32 %v7031, %v7104
    %v7106 = vpop.f32.mrb[0].mxu0
    %7107 = vdwg.mxu0
    %7108 = vst.msk [vmem:[%s8] sm:$0xff] %vm810, %v7100
    %vm7109 = vcmask 26624
    %7110 = vst.msk [vmem:[%s8 + $0x8] sm:$0x7] %vm7109, %v7105
    %s7111 = scalar_lea.vmem [#allocation2], 32
    %v7112 = vld [vmem:[%s7111] sm:$0xff]
    %v7113 = vld [vmem:[%s7111 + $0x8] sm:$0xff]
    %v7114 = vld [vmem:[%s7111 + $0x10] sm:$0x7]
    %v7115 = vld [vmem:[%s7111 + $0x18] sm:$0x7]
    %7116 = vmatprep.subr.mxu0 0.0
    %7117 = vmatpush1.msra.mxu0 %v6990
    %7118 = vmatprep.subr.mxu0 0.0
    %7119 = vmatpush1.msra.mxu0 %v6991
    %7120 = vmatprep.subr.mxu0 0.0
    %7121 = vmatpush1.msra.mxu0 %v6992
    %7122 = vmatprep.subr.mxu0 0.0
    %7123 = vmatpush1.msra.mxu0 %v6993
    %7124 = vmatprep.subr.mxu0 0.0
    %7125 = vmatpush1.msra.mxu0 %v6994
    %7126 = vmatprep.subr.mxu0 0.0
    %7127 = vmatpush1.msra.mxu0 %v6995
    %7128 = vmatprep.subr.mxu0 0.0
    %7129 = vmatpush1.msra.mxu0 %v6996
    %7130 = vmatprep.subr.mxu0 0.0
    %7131 = vmatpush1.msra.mxu0 %v6997
    %7132 = vmatprep.subr.mxu0 0.0
    %7133 = vmatpush1.msra.mxu0 %v6998
    %7134 = vmatprep.subr.mxu0 0.0
    %7135 = vmatpush1.msra.mxu0 %v6999
    %7136 = vmatprep.subr.mxu0 0.0
    %7137 = vmatpush1.msra.mxu0 %v7000
    %7138 = vmatprep.subr.mxu0 0.0
    %7139 = vmatpush1.msra.mxu0 %v7001
    %7140 = vmatprep.subr.mxu0 0.0
    %7141 = vmatpush1.msra.mxu0 %v7002
    %7142 = vmatprep.subr.mxu0 0.0
    %7143 = vmatpush1.msra.mxu0 %v7003
    %7144 = vmatprep.subr.mxu0 0.0
    %7145 = vmatpush1.msra.mxu0 %v7004
    %7146 = vmatprep.subr.mxu0 0.0
    %7147 = vmatpush1.msra.mxu0 %v7005
    %7148 = vmatprep.subr.mxu0 0.0
    %7149 = vmatpush1.msra.mxu0 %v7006
    %7150 = vmatprep.subr.mxu0 0.0
    %7151 = vmatpush1.msra.mxu0 %v7007
    %7152 = vmatprep.subr.mxu0 0.0
    %7153 = vmatpush1.msra.mxu0 %v7008
    %7154 = vmatprep.subr.mxu0 0.0
    %7155 = vmatpush1.msra.mxu0 %v7009
    %7156 = vmatprep.subr.mxu0 0.0
    %7157 = vmatpush1.msra.mxu0 %v7010
    %7158 = vmatprep.subr.mxu0 0.0
    %7159 = vmatpush1.msra.mxu0 %v7011
    %7160 = vmatprep.subr.mxu0 0.0
    %7161 = vmatpush1.msra.mxu0 %v7012
    %7162 = vmatprep.subr.mxu0 0.0
    %7163 = vmatpush1.msra.mxu0 %v7013
    %7164 = vmatprep.subr.mxu0 0.0
    %7165 = vmatpush1.msra.mxu0 %v7014
    %7166 = vmatprep.subr.mxu0 0.0
    %7167 = vmatpush1.msra.mxu0 %v7015
    %7168 = vmatprep.subr.mxu0 0.0
    %7169 = vmatpush1.msra.mxu0 %v7016
    %7170 = vmatprep.subr.mxu0 0.0
    %7171 = vmatpush1.msra.mxu0 %v7017
    %7172 = vmatprep.subr.mxu0 0.0
    %7173 = vmatpush1.msra.mxu0 %v7018
    %7174 = vmatprep.subr.mxu0 0.0
    %7175 = vmatpush1.msra.mxu0 %v7019
    %7176 = vmatprep.subr.mxu0 0.0
    %7177 = vmatpush1.msra.mxu0 %v7020
    %7178 = vmatprep.subr.mxu0 0.0
    %7179 = vmatpush1.msra.mxu0 %v7021
    %7180 = vmatprep.mubr.f32.mxu0 %v7113
    %7181 = vmatmul.mubr.f32.gmra.mrb[0].mxu0 %v7112
    %v7182 = vpop.f32.mrb[0].mxu0
    %v7183 = vadd.f32 %v7031, %v7182
    %v7184 = vpop.f32.mrb[0].mxu0
    %7185 = vmatprep.mubr.f32.mxu0 %v7115
    %7186 = vmatmul.mubr.f32.gmra.mrb[0].mxu0 %v7114
    %v7187 = vpop.f32.mrb[0].mxu0
    %v7188 = vadd.f32 %v7031, %v7187
    %v7189 = vpop.f32.mrb[0].mxu0
    %7190 = vdwg.mxu0
    %s7191 = scalar_lea.vmem %s8, 16
    %7192 = vst.msk [vmem:[%s7191] sm:$0xff] %vm810, %v7183
    %7193 = vst.msk [vmem:[%s7191 + $0x8] sm:$0x7] %vm7109, %v7188
    // Predicated region
    $region42: #{model_forward.1} parent=1 // pred_check
      _
    $region43: #{model_forward.1} parent=1 // pred_check_branch
      %7195 = sbr.rel (0) target = $region45
    $region44: #{model_forward.1} parent=1 // pred_region
      _
    $region45: #{model_forward.1} parent=1 // pred_fallthru
      _
    // Predicated region
    $region46: #{model_forward.1} parent=1 // pred_check
      _
    $region47: #{model_forward.1} parent=1 // pred_check_branch
      %7197 = sbr.rel (0) target = $region49
    $region48: #{model_forward.1} parent=1 // pred_region
      _
    $region49: #{model_forward.1} parent=1 // pred_fallthru
      _
    %7198 = vsyncpa [#allocation4], 1
    %7199 = vsyncpa [#allocation6], 1

</llo_original>
